<compile_context>
chip_gen: v7x
topology: tpu7x:2x2x1
jax: 0.10.0
libtpu: 0.0.40
codegen_flags: <defaults>
</compile_context>

<pallas_src>
import jax
import jax.numpy as jnp
from jax.experimental import pallas as pl
from jax.experimental.pallas import tpu as pltpu

# Fixed channel widths from the module spec.
_C1, _C2, _C3 = 256, 128, 64


def _pool2x2(a, n, h, w, c):
    """2x2 / stride-2 max pool.

    `a` holds rows flattened as (n*h*w, c) in (n, h, w) order.
    Returns (n, h//2, w//2, c).
    """
    h2, w2 = h // 2, w // 2
    # pool along W: adjacent row pairs share (n, h)
    aw = a.reshape(n * h * w2, 2, c)
    pw = jnp.maximum(aw[:, 0, :], aw[:, 1, :])                 # rows (n, h, j)
    # pool along H
    ah = pw.reshape(n, h2, 2, w2, c)
    return jnp.maximum(ah[:, :, 0, :, :], ah[:, :, 1, :, :])   # (n, h2, w2, c)


def _make_fused_kernel(N, H, W, n_out):
    """Whole-network kernel: conv1..conv4 + pools + mean/logsoftmax head."""
    H1, W1 = H, W                 # conv1 output spatial
    H2, W2 = H1 // 2, W1 // 2     # conv2 input (after pool1)
    H3, W3 = H2 // 2, W2 // 2     # conv3 input
    H4, W4 = H3 // 2, W3 // 2     # conv4 input
    H5, W5 = H4 // 2, W4 // 2     # after pool4

    def kernel(xcol_ref, w1_ref, b1_ref, w2_ref, b2_ref, w3_ref, b3_ref,
               w4_ref, b4_ref, o_ref, p2_ref, p3_ref, p4_ref):
        # ---------- conv1: single deep im2col matmul + ReLU + pool1 ----------
        # xcol_ref: (N*H*W, 128)   w1_ref: (128, 256)
        a = jnp.dot(xcol_ref[...], w1_ref[...],
                    preferred_element_type=jnp.float32)        # (N*H*W, 256)
        a = jnp.maximum(a + b1_ref[...], 0.0)
        x2 = _pool2x2(a, N, H1, W1, _C1)                       # (N, H2, W2, 256)

        # ---------- conv2: 3x3 'same' + ReLU + pool2 ----------
        # in-kernel zero padding into a VMEM scratch, then 9 shifted-tap matmuls
        p2_ref[...] = jnp.zeros_like(p2_ref)
        p2_ref[:, 1:1 + H2, 1:1 + W2, :] = x2
        acc = jnp.zeros((N * H2 * W2, _C2), jnp.float32)       # 64 KiB acc
        for dh in range(3):
            for dw in range(3):
                patch = p2_ref[:, dh:dh + H2, dw:dw + W2, :].reshape(
                    N * H2 * W2, _C1)
                acc = acc + jnp.dot(patch, w2_ref[dh, dw],
                                    preferred_element_type=jnp.float32)
        acc = jnp.maximum(acc + b2_ref[...], 0.0)
        x3 = _pool2x2(acc, N, H2, W2, _C2)                     # (N, H3, W3, 128)

        # ---------- conv3: 3x3 'same' + ReLU + pool3 ----------
        p3_ref[...] = jnp.zeros_like(p3_ref)
        p3_ref[:, 1:1 + H3, 1:1 + W3, :] = x3
        acc = jnp.zeros((N * H3 * W3, _C3), jnp.float32)
        for dh in range(3):
            for dw in range(3):
                patch = p3_ref[:, dh:dh + H3, dw:dw + W3, :].reshape(
                    N * H3 * W3, _C2)
                acc = acc + jnp.dot(patch, w3_ref[dh, dw],
                                    preferred_element_type=jnp.float32)
        acc = jnp.maximum(acc + b3_ref[...], 0.0)
        x4 = _pool2x2(acc, N, H3, W3, _C3)                     # (N, H4, W4, 64)

        # ---------- conv4: 3x3 'same' (no activation) + pool4 ----------
        p4_ref[...] = jnp.zeros_like(p4_ref)
        p4_ref[:, 1:1 + H4, 1:1 + W4, :] = x4
        acc = jnp.zeros((N * H4 * W4, n_out), jnp.float32)
        for dh in range(3):
            for dw in range(3):
                patch = p4_ref[:, dh:dh + H4, dw:dw + W4, :].reshape(
                    N * H4 * W4, _C3)
                acc = acc + jnp.dot(patch, w4_ref[dh, dw],
                                    preferred_element_type=jnp.float32)
        acc = acc + b4_ref[...]
        x5 = _pool2x2(acc, N, H4, W4, n_out)                   # (N, H5, W5, n_out)

        # ---------- head epilogue: mean over batch+spatial, then logsoftmax ----------
        rows = x5.reshape(N * H5 * W5, n_out)
        m = jnp.sum(rows, axis=0, keepdims=True) * (1.0 / float(N * H5 * W5))
        z = m - jnp.max(m, axis=1, keepdims=True)
        o_ref[...] = z - jnp.log(jnp.sum(jnp.exp(z), axis=1, keepdims=True))

    return kernel


def classifier_forward(params, x_nchw):
    """Forward pass. x_nchw: (N, C, H, W) exactly as the PyTorch module expects."""
    (w1, b1), (w2, b2), (w3, b3), (w4, b4) = params
    N, Cin, H, W = x_nchw.shape
    n_out = w4.shape[-1]

    x = jnp.transpose(x_nchw, (0, 2, 3, 1)).astype(jnp.float32)   # -> NHWC (glue)

    # conv1 im2col (glue on the tiny network *input* only; all later layers
    # live entirely inside the fused kernel's VMEM).
    K = 5
    p = K // 2
    xp = jnp.pad(x, ((0, 0), (p, p), (p, p), (0, 0)))
    cols = [xp[:, dh:dh + H, dw:dw + W, :] for dh in range(K) for dw in range(K)]
    kdim = K * K * Cin
    xcol = jnp.concatenate(cols, axis=-1).reshape(N * H * W, kdim)
    kpad = pl.cdiv(kdim, 128) * 128                      # lane-align contraction
    xcol = jnp.pad(xcol, ((0, 0), (0, kpad - kdim)))     # (N*H*W, 128)
    w1col = jnp.pad(w1.reshape(kdim, _C1), ((0, kpad - kdim), (0, 0)))

    H2, W2 = H // 2, W // 2
    H3, W3 = H2 // 2, W2 // 2
    H4, W4 = H3 // 2, W3 // 2

    kernel = _make_fused_kernel(N, H, W, n_out)
    vmem = lambda: pl.BlockSpec(memory_space=pltpu.MemorySpace.VMEM)

    out = pl.pallas_call(
        kernel,
        out_shape=jax.ShapeDtypeStruct((1, n_out), jnp.float32),
        in_specs=[vmem() for _ in range(9)],   # whole arrays, DMA'd exactly once
        out_specs=vmem(),
        scratch_shapes=[
            # zero-padded inter-layer activation buffers ('same' conv halos)
            pltpu.VMEM((N, H2 + 2, W2 + 2, _C1), jnp.float32),
            pltpu.VMEM((N, H3 + 2, W3 + 2, _C2), jnp.float32),
            pltpu.VMEM((N, H4 + 2, W4 + 2, _C3), jnp.float32),
        ],
    )(xcol, w1col, b1.reshape(1, _C1),
      w2, b2.reshape(1, _C2),
      w3, b3.reshape(1, _C3),
      w4, b4.reshape(1, n_out))
    return out[0]                                        # (n_out,) log-probs


def init_classifier_params(key, n_in, n_out):
    """Deterministic synthetic init matching the module's weight shapes."""
    specs = [
        (5, n_in, _C1),   # conv1: SameConv5x5(n_in, 256)
        (3, _C1, _C2),    # conv2: SameConv3x3(256, 128)
        (3, _C2, _C3),    # conv3: SameConv3x3(128, 64)
        (3, _C3, n_out),  # conv4: SameConv3x3(64, n_out)
    ]
    params = []
    for i, (k, cin, cout) in enumerate(specs):
        kw, kb = jax.random.split(jax.random.fold_in(key, i))
        scale = 1.0 / float(k * k * cin) ** 0.5
        w = scale * jax.random.normal(kw, (k, k, cin, cout), jnp.float32)
        b = scale * jax.random.normal(kb, (cout,), jnp.float32)
        params.append((w, b))
    return params


if __name__ == "__main__":
    key = jax.random.PRNGKey(0)
    n_in, n_out = 4, 8
    N, H, W = 2, 16, 16            # 16 -> 8 -> 4 -> 2 -> 1 after the 4 pools

    kx, kp = jax.random.split(key)
    x = jax.random.normal(kx, (N, n_in, H, W), jnp.float32)   # NCHW input
    params = init_classifier_params(kp, n_in, n_out)

    out = jax.jit(classifier_forward)(params, x)
    out = jax.block_until_ready(out)
    assert out.shape == (n_out,)
    assert bool(jnp.isfinite(out).all())
    print("KERNEL_OK")
</pallas_src>

<mosaic_0001>
module attributes {stable_mosaic.version = 11 : i64} {
  func.func @kernel(%arg0: memref<512x128xf32, #tpu.memory_space<vmem>>, %arg1: memref<128x256xf32, #tpu.memory_space<vmem>>, %arg2: memref<1x256xf32, #tpu.memory_space<vmem>>, %arg3: memref<3x3x256x128xf32, #tpu.memory_space<vmem>>, %arg4: memref<1x128xf32, #tpu.memory_space<vmem>>, %arg5: memref<3x3x128x64xf32, #tpu.memory_space<vmem>>, %arg6: memref<1x64xf32, #tpu.memory_space<vmem>>, %arg7: memref<3x3x64x8xf32, #tpu.memory_space<vmem>>, %arg8: memref<1x8xf32, #tpu.memory_space<vmem>>, %arg9: memref<1x8xf32, #tpu.memory_space<vmem>>, %arg10: memref<2x10x10x256xf32, #tpu.memory_space<vmem>>, %arg11: memref<2x6x6x128xf32, #tpu.memory_space<vmem>>, %arg12: memref<2x4x4x64xf32, #tpu.memory_space<vmem>>) attributes {dimension_semantics = [], scalar_prefetch = 0 : i64, scratch_operands = 3 : i64, tpu.core_type = #tpu.core_type<tc>} {
    %c0 = arith.constant 0 : index
    %c0_0 = arith.constant 0 : index
    %0 = vector.load %arg0[%c0, %c0_0] : memref<512x128xf32, #tpu.memory_space<vmem>>, vector<512x128xf32>
    %c0_1 = arith.constant 0 : index
    %c0_2 = arith.constant 0 : index
    %1 = vector.load %arg1[%c0_1, %c0_2] : memref<128x256xf32, #tpu.memory_space<vmem>>, vector<128x256xf32>
    %cst = arith.constant dense<0.000000e+00> : vector<512x256xf32>
    %2 = tpu.matmul %0, %1, %cst {dimension_numbers = #tpu.dot_dimension_numbers<[1], [0], [0], [1], [0, 0, 1, 1], [], []>} : vector<512x128xf32>, vector<128x256xf32>, vector<512x256xf32> -> vector<512x256xf32>
    %c0_3 = arith.constant 0 : index
    %c0_4 = arith.constant 0 : index
    %3 = vector.load %arg2[%c0_3, %c0_4] : memref<1x256xf32, #tpu.memory_space<vmem>>, vector<1x256xf32>
    %4 = vector.broadcast %3 : vector<1x256xf32> to vector<512x256xf32>
    %5 = arith.addf %2, %4 : vector<512x256xf32>
    %cst_5 = arith.constant 0.000000e+00 : f32
    %6 = vector.broadcast %cst_5 : f32 to vector<512x256xf32>
    %7 = arith.maximumf %5, %6 : vector<512x256xf32>
    %8 = vector.shape_cast %7 : vector<512x256xf32> to vector<256x2x256xf32>
    %9 = vector.extract_strided_slice %8 {offsets = [0, 0, 0], sizes = [256, 1, 256], strides = [1, 1, 1]} : vector<256x2x256xf32> to vector<256x1x256xf32>
    %10 = vector.shape_cast %9 : vector<256x1x256xf32> to vector<256x256xf32>
    %11 = vector.extract_strided_slice %8 {offsets = [0, 1, 0], sizes = [256, 1, 256], strides = [1, 1, 1]} : vector<256x2x256xf32> to vector<256x1x256xf32>
    %12 = vector.shape_cast %11 : vector<256x1x256xf32> to vector<256x256xf32>
    %13 = arith.maximumf %10, %12 : vector<256x256xf32>
    %14 = vector.shape_cast %13 : vector<256x256xf32> to vector<2x8x2x8x256xf32>
    %15 = vector.extract_strided_slice %14 {offsets = [0, 0, 0, 0, 0], sizes = [2, 8, 1, 8, 256], strides = [1, 1, 1, 1, 1]} : vector<2x8x2x8x256xf32> to vector<2x8x1x8x256xf32>
    %16 = vector.shape_cast %15 : vector<2x8x1x8x256xf32> to vector<2x8x8x256xf32>
    %17 = vector.extract_strided_slice %14 {offsets = [0, 0, 1, 0, 0], sizes = [2, 8, 1, 8, 256], strides = [1, 1, 1, 1, 1]} : vector<2x8x2x8x256xf32> to vector<2x8x1x8x256xf32>
    %18 = vector.shape_cast %17 : vector<2x8x1x8x256xf32> to vector<2x8x8x256xf32>
    %19 = arith.maximumf %16, %18 : vector<2x8x8x256xf32>
    %cst_6 = arith.constant 0.000000e+00 : f32
    %20 = vector.broadcast %cst_6 : f32 to vector<2x10x10x256xf32>
    %c0_7 = arith.constant 0 : index
    %c0_8 = arith.constant 0 : index
    %c0_9 = arith.constant 0 : index
    %c0_10 = arith.constant 0 : index
    %21 = vector.load %arg10[%c0_7, %c0_8, %c0_9, %c0_10] : memref<2x10x10x256xf32, #tpu.memory_space<vmem>>, vector<2x10x10x256xf32>
    tpu.vector_store %arg10[%c0_7, %c0_8, %c0_9, %c0_10], %20 {strides = array<i32>} : memref<2x10x10x256xf32, #tpu.memory_space<vmem>>, vector<2x10x10x256xf32>,
    %c0_11 = arith.constant 0 : index
    %c1 = arith.constant 1 : index
    %c1_12 = arith.constant 1 : index
    %c0_13 = arith.constant 0 : index
    %22 = vector.load %arg10[%c0_11, %c1, %c1_12, %c0_13] : memref<2x10x10x256xf32, #tpu.memory_space<vmem>>, vector<2x8x8x256xf32>
    tpu.vector_store %arg10[%c0_11, %c1, %c1_12, %c0_13], %19 {strides = array<i32>} : memref<2x10x10x256xf32, #tpu.memory_space<vmem>>, vector<2x8x8x256xf32>,
    %cst_14 = arith.constant 0.000000e+00 : f32
    %23 = vector.broadcast %cst_14 : f32 to vector<128x128xf32>
    %c0_15 = arith.constant 0 : index
    %c0_16 = arith.constant 0 : index
    %c0_17 = arith.constant 0 : index
    %c0_18 = arith.constant 0 : index
    %24 = vector.load %arg10[%c0_15, %c0_16, %c0_17, %c0_18] : memref<2x10x10x256xf32, #tpu.memory_space<vmem>>, vector<2x8x8x256xf32>
    %25 = vector.shape_cast %24 : vector<2x8x8x256xf32> to vector<128x256xf32>
    %c0_19 = arith.constant 0 : index
    %c0_20 = arith.constant 0 : index
    %c0_21 = arith.constant 0 : index
    %c0_22 = arith.constant 0 : index
    %26 = vector.load %arg3[%c0_19, %c0_20, %c0_21, %c0_22] : memref<3x3x256x128xf32, #tpu.memory_space<vmem>>, vector<1x1x256x128xf32>
    %27 = vector.shape_cast %26 : vector<1x1x256x128xf32> to vector<256x128xf32>
    %cst_23 = arith.constant dense<0.000000e+00> : vector<128x128xf32>
    %28 = tpu.matmul %25, %27, %cst_23 {dimension_numbers = #tpu.dot_dimension_numbers<[1], [0], [0], [1], [0, 0, 1, 1], [], []>} : vector<128x256xf32>, vector<256x128xf32>, vector<128x128xf32> -> vector<128x128xf32>
    %29 = arith.addf %23, %28 : vector<128x128xf32>
    %c0_24 = arith.constant 0 : index
    %c0_25 = arith.constant 0 : index
    %c1_26 = arith.constant 1 : index
    %c0_27 = arith.constant 0 : index
    %30 = vector.load %arg10[%c0_24, %c0_25, %c1_26, %c0_27] : memref<2x10x10x256xf32, #tpu.memory_space<vmem>>, vector<2x8x8x256xf32>
    %31 = vector.shape_cast %30 : vector<2x8x8x256xf32> to vector<128x256xf32>
    %c0_28 = arith.constant 0 : index
    %c1_29 = arith.constant 1 : index
    %c0_30 = arith.constant 0 : index
    %c0_31 = arith.constant 0 : index
    %32 = vector.load %arg3[%c0_28, %c1_29, %c0_30, %c0_31] : memref<3x3x256x128xf32, #tpu.memory_space<vmem>>, vector<1x1x256x128xf32>
    %33 = vector.shape_cast %32 : vector<1x1x256x128xf32> to vector<256x128xf32>
    %cst_32 = arith.constant dense<0.000000e+00> : vector<128x128xf32>
    %34 = tpu.matmul %31, %33, %cst_32 {dimension_numbers = #tpu.dot_dimension_numbers<[1], [0], [0], [1], [0, 0, 1, 1], [], []>} : vector<128x256xf32>, vector<256x128xf32>, vector<128x128xf32> -> vector<128x128xf32>
    %35 = arith.addf %29, %34 : vector<128x128xf32>
    %c0_33 = arith.constant 0 : index
    %c0_34 = arith.constant 0 : index
    %c2 = arith.constant 2 : index
    %c0_35 = arith.constant 0 : index
    %36 = vector.load %arg10[%c0_33, %c0_34, %c2, %c0_35] : memref<2x10x10x256xf32, #tpu.memory_space<vmem>>, vector<2x8x8x256xf32>
    %37 = vector.shape_cast %36 : vector<2x8x8x256xf32> to vector<128x256xf32>
    %c0_36 = arith.constant 0 : index
    %c2_37 = arith.constant 2 : index
    %c0_38 = arith.constant 0 : index
    %c0_39 = arith.constant 0 : index
    %38 = vector.load %arg3[%c0_36, %c2_37, %c0_38, %c0_39] : memref<3x3x256x128xf32, #tpu.memory_space<vmem>>, vector<1x1x256x128xf32>
    %39 = vector.shape_cast %38 : vector<1x1x256x128xf32> to vector<256x128xf32>
    %cst_40 = arith.constant dense<0.000000e+00> : vector<128x128xf32>
    %40 = tpu.matmul %37, %39, %cst_40 {dimension_numbers = #tpu.dot_dimension_numbers<[1], [0], [0], [1], [0, 0, 1, 1], [], []>} : vector<128x256xf32>, vector<256x128xf32>, vector<128x128xf32> -> vector<128x128xf32>
    %41 = arith.addf %35, %40 : vector<128x128xf32>
    %c0_41 = arith.constant 0 : index
    %c1_42 = arith.constant 1 : index
    %c0_43 = arith.constant 0 : index
    %c0_44 = arith.constant 0 : index
    %42 = vector.load %arg10[%c0_41, %c1_42, %c0_43, %c0_44] : memref<2x10x10x256xf32, #tpu.memory_space<vmem>>, vector<2x8x8x256xf32>
    %43 = vector.shape_cast %42 : vector<2x8x8x256xf32> to vector<128x256xf32>
    %c1_45 = arith.constant 1 : index
    %c0_46 = arith.constant 0 : index
    %c0_47 = arith.constant 0 : index
    %c0_48 = arith.constant 0 : index
    %44 = vector.load %arg3[%c1_45, %c0_46, %c0_47, %c0_48] : memref<3x3x256x128xf32, #tpu.memory_space<vmem>>, vector<1x1x256x128xf32>
    %45 = vector.shape_cast %44 : vector<1x1x256x128xf32> to vector<256x128xf32>
    %cst_49 = arith.constant dense<0.000000e+00> : vector<128x128xf32>
    %46 = tpu.matmul %43, %45, %cst_49 {dimension_numbers = #tpu.dot_dimension_numbers<[1], [0], [0], [1], [0, 0, 1, 1], [], []>} : vector<128x256xf32>, vector<256x128xf32>, vector<128x128xf32> -> vector<128x128xf32>
    %47 = arith.addf %41, %46 : vector<128x128xf32>
    %c0_50 = arith.constant 0 : index
    %c1_51 = arith.constant 1 : index
    %c1_52 = arith.constant 1 : index
    %c0_53 = arith.constant 0 : index
    %48 = vector.load %arg10[%c0_50, %c1_51, %c1_52, %c0_53] : memref<2x10x10x256xf32, #tpu.memory_space<vmem>>, vector<2x8x8x256xf32>
    %49 = vector.shape_cast %48 : vector<2x8x8x256xf32> to vector<128x256xf32>
    %c1_54 = arith.constant 1 : index
    %c1_55 = arith.constant 1 : index
    %c0_56 = arith.constant 0 : index
    %c0_57 = arith.constant 0 : index
    %50 = vector.load %arg3[%c1_54, %c1_55, %c0_56, %c0_57] : memref<3x3x256x128xf32, #tpu.memory_space<vmem>>, vector<1x1x256x128xf32>
    %51 = vector.shape_cast %50 : vector<1x1x256x128xf32> to vector<256x128xf32>
    %cst_58 = arith.constant dense<0.000000e+00> : vector<128x128xf32>
    %52 = tpu.matmul %49, %51, %cst_58 {dimension_numbers = #tpu.dot_dimension_numbers<[1], [0], [0], [1], [0, 0, 1, 1], [], []>} : vector<128x256xf32>, vector<256x128xf32>, vector<128x128xf32> -> vector<128x128xf32>
    %53 = arith.addf %47, %52 : vector<128x128xf32>
    %c0_59 = arith.constant 0 : index
    %c1_60 = arith.constant 1 : index
    %c2_61 = arith.constant 2 : index
    %c0_62 = arith.constant 0 : index
    %54 = vector.load %arg10[%c0_59, %c1_60, %c2_61, %c0_62] : memref<2x10x10x256xf32, #tpu.memory_space<vmem>>, vector<2x8x8x256xf32>
    %55 = vector.shape_cast %54 : vector<2x8x8x256xf32> to vector<128x256xf32>
    %c1_63 = arith.constant 1 : index
    %c2_64 = arith.constant 2 : index
    %c0_65 = arith.constant 0 : index
    %c0_66 = arith.constant 0 : index
    %56 = vector.load %arg3[%c1_63, %c2_64, %c0_65, %c0_66] : memref<3x3x256x128xf32, #tpu.memory_space<vmem>>, vector<1x1x256x128xf32>
    %57 = vector.shape_cast %56 : vector<1x1x256x128xf32> to vector<256x128xf32>
    %cst_67 = arith.constant dense<0.000000e+00> : vector<128x128xf32>
    %58 = tpu.matmul %55, %57, %cst_67 {dimension_numbers = #tpu.dot_dimension_numbers<[1], [0], [0], [1], [0, 0, 1, 1], [], []>} : vector<128x256xf32>, vector<256x128xf32>, vector<128x128xf32> -> vector<128x128xf32>
    %59 = arith.addf %53, %58 : vector<128x128xf32>
    %c0_68 = arith.constant 0 : index
    %c2_69 = arith.constant 2 : index
    %c0_70 = arith.constant 0 : index
    %c0_71 = arith.constant 0 : index
    %60 = vector.load %arg10[%c0_68, %c2_69, %c0_70, %c0_71] : memref<2x10x10x256xf32, #tpu.memory_space<vmem>>, vector<2x8x8x256xf32>
    %61 = vector.shape_cast %60 : vector<2x8x8x256xf32> to vector<128x256xf32>
    %c2_72 = arith.constant 2 : index
    %c0_73 = arith.constant 0 : index
    %c0_74 = arith.constant 0 : index
    %c0_75 = arith.constant 0 : index
    %62 = vector.load %arg3[%c2_72, %c0_73, %c0_74, %c0_75] : memref<3x3x256x128xf32, #tpu.memory_space<vmem>>, vector<1x1x256x128xf32>
    %63 = vector.shape_cast %62 : vector<1x1x256x128xf32> to vector<256x128xf32>
    %cst_76 = arith.constant dense<0.000000e+00> : vector<128x128xf32>
    %64 = tpu.matmul %61, %63, %cst_76 {dimension_numbers = #tpu.dot_dimension_numbers<[1], [0], [0], [1], [0, 0, 1, 1], [], []>} : vector<128x256xf32>, vector<256x128xf32>, vector<128x128xf32> -> vector<128x128xf32>
    %65 = arith.addf %59, %64 : vector<128x128xf32>
    %c0_77 = arith.constant 0 : index
    %c2_78 = arith.constant 2 : index
    %c1_79 = arith.constant 1 : index
    %c0_80 = arith.constant 0 : index
    %66 = vector.load %arg10[%c0_77, %c2_78, %c1_79, %c0_80] : memref<2x10x10x256xf32, #tpu.memory_space<vmem>>, vector<2x8x8x256xf32>
    %67 = vector.shape_cast %66 : vector<2x8x8x256xf32> to vector<128x256xf32>
    %c2_81 = arith.constant 2 : index
    %c1_82 = arith.constant 1 : index
    %c0_83 = arith.constant 0 : index
    %c0_84 = arith.constant 0 : index
    %68 = vector.load %arg3[%c2_81, %c1_82, %c0_83, %c0_84] : memref<3x3x256x128xf32, #tpu.memory_space<vmem>>, vector<1x1x256x128xf32>
    %69 = vector.shape_cast %68 : vector<1x1x256x128xf32> to vector<256x128xf32>
    %cst_85 = arith.constant dense<0.000000e+00> : vector<128x128xf32>
    %70 = tpu.matmul %67, %69, %cst_85 {dimension_numbers = #tpu.dot_dimension_numbers<[1], [0], [0], [1], [0, 0, 1, 1], [], []>} : vector<128x256xf32>, vector<256x128xf32>, vector<128x128xf32> -> vector<128x128xf32>
    %71 = arith.addf %65, %70 : vector<128x128xf32>
    %c0_86 = arith.constant 0 : index
    %c2_87 = arith.constant 2 : index
    %c2_88 = arith.constant 2 : index
    %c0_89 = arith.constant 0 : index
    %72 = vector.load %arg10[%c0_86, %c2_87, %c2_88, %c0_89] : memref<2x10x10x256xf32, #tpu.memory_space<vmem>>, vector<2x8x8x256xf32>
    %73 = vector.shape_cast %72 : vector<2x8x8x256xf32> to vector<128x256xf32>
    %c2_90 = arith.constant 2 : index
    %c2_91 = arith.constant 2 : index
    %c0_92 = arith.constant 0 : index
    %c0_93 = arith.constant 0 : index
    %74 = vector.load %arg3[%c2_90, %c2_91, %c0_92, %c0_93] : memref<3x3x256x128xf32, #tpu.memory_space<vmem>>, vector<1x1x256x128xf32>
    %75 = vector.shape_cast %74 : vector<1x1x256x128xf32> to vector<256x128xf32>
    %cst_94 = arith.constant dense<0.000000e+00> : vector<128x128xf32>
    %76 = tpu.matmul %73, %75, %cst_94 {dimension_numbers = #tpu.dot_dimension_numbers<[1], [0], [0], [1], [0, 0, 1, 1], [], []>} : vector<128x256xf32>, vector<256x128xf32>, vector<128x128xf32> -> vector<128x128xf32>
    %77 = arith.addf %71, %76 : vector<128x128xf32>
    %c0_95 = arith.constant 0 : index
    %c0_96 = arith.constant 0 : index
    %78 = vector.load %arg4[%c0_95, %c0_96] : memref<1x128xf32, #tpu.memory_space<vmem>>, vector<1x128xf32>
    %79 = vector.broadcast %78 : vector<1x128xf32> to vector<128x128xf32>
    %80 = arith.addf %77, %79 : vector<128x128xf32>
    %cst_97 = arith.constant 0.000000e+00 : f32
    %81 = vector.broadcast %cst_97 : f32 to vector<128x128xf32>
    %82 = arith.maximumf %80, %81 : vector<128x128xf32>
    %83 = vector.shape_cast %82 : vector<128x128xf32> to vector<64x2x128xf32>
    %84 = vector.extract_strided_slice %83 {offsets = [0, 0, 0], sizes = [64, 1, 128], strides = [1, 1, 1]} : vector<64x2x128xf32> to vector<64x1x128xf32>
    %85 = vector.shape_cast %84 : vector<64x1x128xf32> to vector<64x128xf32>
    %86 = vector.extract_strided_slice %83 {offsets = [0, 1, 0], sizes = [64, 1, 128], strides = [1, 1, 1]} : vector<64x2x128xf32> to vector<64x1x128xf32>
    %87 = vector.shape_cast %86 : vector<64x1x128xf32> to vector<64x128xf32>
    %88 = arith.maximumf %85, %87 : vector<64x128xf32>
    %89 = vector.shape_cast %88 : vector<64x128xf32> to vector<2x4x2x4x128xf32>
    %90 = vector.extract_strided_slice %89 {offsets = [0, 0, 0, 0, 0], sizes = [2, 4, 1, 4, 128], strides = [1, 1, 1, 1, 1]} : vector<2x4x2x4x128xf32> to vector<2x4x1x4x128xf32>
    %91 = vector.shape_cast %90 : vector<2x4x1x4x128xf32> to vector<2x4x4x128xf32>
    %92 = vector.extract_strided_slice %89 {offsets = [0, 0, 1, 0, 0], sizes = [2, 4, 1, 4, 128], strides = [1, 1, 1, 1, 1]} : vector<2x4x2x4x128xf32> to vector<2x4x1x4x128xf32>
    %93 = vector.shape_cast %92 : vector<2x4x1x4x128xf32> to vector<2x4x4x128xf32>
    %94 = arith.maximumf %91, %93 : vector<2x4x4x128xf32>
    %cst_98 = arith.constant 0.000000e+00 : f32
    %95 = vector.broadcast %cst_98 : f32 to vector<2x6x6x128xf32>
    %c0_99 = arith.constant 0 : index
    %c0_100 = arith.constant 0 : index
    %c0_101 = arith.constant 0 : index
    %c0_102 = arith.constant 0 : index
    %96 = vector.load %arg11[%c0_99, %c0_100, %c0_101, %c0_102] : memref<2x6x6x128xf32, #tpu.memory_space<vmem>>, vector<2x6x6x128xf32>
    tpu.vector_store %arg11[%c0_99, %c0_100, %c0_101, %c0_102], %95 {strides = array<i32>} : memref<2x6x6x128xf32, #tpu.memory_space<vmem>>, vector<2x6x6x128xf32>,
    %c0_103 = arith.constant 0 : index
    %c1_104 = arith.constant 1 : index
    %c1_105 = arith.constant 1 : index
    %c0_106 = arith.constant 0 : index
    %97 = vector.load %arg11[%c0_103, %c1_104, %c1_105, %c0_106] : memref<2x6x6x128xf32, #tpu.memory_space<vmem>>, vector<2x4x4x128xf32>
    tpu.vector_store %arg11[%c0_103, %c1_104, %c1_105, %c0_106], %94 {strides = array<i32>} : memref<2x6x6x128xf32, #tpu.memory_space<vmem>>, vector<2x4x4x128xf32>,
    %cst_107 = arith.constant 0.000000e+00 : f32
    %98 = vector.broadcast %cst_107 : f32 to vector<32x64xf32>
    %c0_108 = arith.constant 0 : index
    %c0_109 = arith.constant 0 : index
    %c0_110 = arith.constant 0 : index
    %c0_111 = arith.constant 0 : index
    %99 = vector.load %arg11[%c0_108, %c0_109, %c0_110, %c0_111] : memref<2x6x6x128xf32, #tpu.memory_space<vmem>>, vector<2x4x4x128xf32>
    %100 = vector.shape_cast %99 : vector<2x4x4x128xf32> to vector<32x128xf32>
    %c0_112 = arith.constant 0 : index
    %c0_113 = arith.constant 0 : index
    %c0_114 = arith.constant 0 : index
    %c0_115 = arith.constant 0 : index
    %101 = vector.load %arg5[%c0_112, %c0_113, %c0_114, %c0_115] : memref<3x3x128x64xf32, #tpu.memory_space<vmem>>, vector<1x1x128x64xf32>
    %102 = vector.shape_cast %101 : vector<1x1x128x64xf32> to vector<128x64xf32>
    %cst_116 = arith.constant dense<0.000000e+00> : vector<32x64xf32>
    %103 = tpu.matmul %100, %102, %cst_116 {dimension_numbers = #tpu.dot_dimension_numbers<[1], [0], [0], [1], [0, 0, 1, 1], [], []>} : vector<32x128xf32>, vector<128x64xf32>, vector<32x64xf32> -> vector<32x64xf32>
    %104 = arith.addf %98, %103 : vector<32x64xf32>
    %c0_117 = arith.constant 0 : index
    %c0_118 = arith.constant 0 : index
    %c1_119 = arith.constant 1 : index
    %c0_120 = arith.constant 0 : index
    %105 = vector.load %arg11[%c0_117, %c0_118, %c1_119, %c0_120] : memref<2x6x6x128xf32, #tpu.memory_space<vmem>>, vector<2x4x4x128xf32>
    %106 = vector.shape_cast %105 : vector<2x4x4x128xf32> to vector<32x128xf32>
    %c0_121 = arith.constant 0 : index
    %c1_122 = arith.constant 1 : index
    %c0_123 = arith.constant 0 : index
    %c0_124 = arith.constant 0 : index
    %107 = vector.load %arg5[%c0_121, %c1_122, %c0_123, %c0_124] : memref<3x3x128x64xf32, #tpu.memory_space<vmem>>, vector<1x1x128x64xf32>
    %108 = vector.shape_cast %107 : vector<1x1x128x64xf32> to vector<128x64xf32>
    %cst_125 = arith.constant dense<0.000000e+00> : vector<32x64xf32>
    %109 = tpu.matmul %106, %108, %cst_125 {dimension_numbers = #tpu.dot_dimension_numbers<[1], [0], [0], [1], [0, 0, 1, 1], [], []>} : vector<32x128xf32>, vector<128x64xf32>, vector<32x64xf32> -> vector<32x64xf32>
    %110 = arith.addf %104, %109 : vector<32x64xf32>
    %c0_126 = arith.constant 0 : index
    %c0_127 = arith.constant 0 : index
    %c2_128 = arith.constant 2 : index
    %c0_129 = arith.constant 0 : index
    %111 = vector.load %arg11[%c0_126, %c0_127, %c2_128, %c0_129] : memref<2x6x6x128xf32, #tpu.memory_space<vmem>>, vector<2x4x4x128xf32>
    %112 = vector.shape_cast %111 : vector<2x4x4x128xf32> to vector<32x128xf32>
    %c0_130 = arith.constant 0 : index
    %c2_131 = arith.constant 2 : index
    %c0_132 = arith.constant 0 : index
    %c0_133 = arith.constant 0 : index
    %113 = vector.load %arg5[%c0_130, %c2_131, %c0_132, %c0_133] : memref<3x3x128x64xf32, #tpu.memory_space<vmem>>, vector<1x1x128x64xf32>
    %114 = vector.shape_cast %113 : vector<1x1x128x64xf32> to vector<128x64xf32>
    %cst_134 = arith.constant dense<0.000000e+00> : vector<32x64xf32>
    %115 = tpu.matmul %112, %114, %cst_134 {dimension_numbers = #tpu.dot_dimension_numbers<[1], [0], [0], [1], [0, 0, 1, 1], [], []>} : vector<32x128xf32>, vector<128x64xf32>, vector<32x64xf32> -> vector<32x64xf32>
    %116 = arith.addf %110, %115 : vector<32x64xf32>
    %c0_135 = arith.constant 0 : index
    %c1_136 = arith.constant 1 : index
    %c0_137 = arith.constant 0 : index
    %c0_138 = arith.constant 0 : index
    %117 = vector.load %arg11[%c0_135, %c1_136, %c0_137, %c0_138] : memref<2x6x6x128xf32, #tpu.memory_space<vmem>>, vector<2x4x4x128xf32>
    %118 = vector.shape_cast %117 : vector<2x4x4x128xf32> to vector<32x128xf32>
    %c1_139 = arith.constant 1 : index
    %c0_140 = arith.constant 0 : index
    %c0_141 = arith.constant 0 : index
    %c0_142 = arith.constant 0 : index
    %119 = vector.load %arg5[%c1_139, %c0_140, %c0_141, %c0_142] : memref<3x3x128x64xf32, #tpu.memory_space<vmem>>, vector<1x1x128x64xf32>
    %120 = vector.shape_cast %119 : vector<1x1x128x64xf32> to vector<128x64xf32>
    %cst_143 = arith.constant dense<0.000000e+00> : vector<32x64xf32>
    %121 = tpu.matmul %118, %120, %cst_143 {dimension_numbers = #tpu.dot_dimension_numbers<[1], [0], [0], [1], [0, 0, 1, 1], [], []>} : vector<32x128xf32>, vector<128x64xf32>, vector<32x64xf32> -> vector<32x64xf32>
    %122 = arith.addf %116, %121 : vector<32x64xf32>
    %c0_144 = arith.constant 0 : index
    %c1_145 = arith.constant 1 : index
    %c1_146 = arith.constant 1 : index
    %c0_147 = arith.constant 0 : index
    %123 = vector.load %arg11[%c0_144, %c1_145, %c1_146, %c0_147] : memref<2x6x6x128xf32, #tpu.memory_space<vmem>>, vector<2x4x4x128xf32>
    %124 = vector.shape_cast %123 : vector<2x4x4x128xf32> to vector<32x128xf32>
    %c1_148 = arith.constant 1 : index
    %c1_149 = arith.constant 1 : index
    %c0_150 = arith.constant 0 : index
    %c0_151 = arith.constant 0 : index
    %125 = vector.load %arg5[%c1_148, %c1_149, %c0_150, %c0_151] : memref<3x3x128x64xf32, #tpu.memory_space<vmem>>, vector<1x1x128x64xf32>
    %126 = vector.shape_cast %125 : vector<1x1x128x64xf32> to vector<128x64xf32>
    %cst_152 = arith.constant dense<0.000000e+00> : vector<32x64xf32>
    %127 = tpu.matmul %124, %126, %cst_152 {dimension_numbers = #tpu.dot_dimension_numbers<[1], [0], [0], [1], [0, 0, 1, 1], [], []>} : vector<32x128xf32>, vector<128x64xf32>, vector<32x64xf32> -> vector<32x64xf32>
    %128 = arith.addf %122, %127 : vector<32x64xf32>
    %c0_153 = arith.constant 0 : index
    %c1_154 = arith.constant 1 : index
    %c2_155 = arith.constant 2 : index
    %c0_156 = arith.constant 0 : index
    %129 = vector.load %arg11[%c0_153, %c1_154, %c2_155, %c0_156] : memref<2x6x6x128xf32, #tpu.memory_space<vmem>>, vector<2x4x4x128xf32>
    %130 = vector.shape_cast %129 : vector<2x4x4x128xf32> to vector<32x128xf32>
    %c1_157 = arith.constant 1 : index
    %c2_158 = arith.constant 2 : index
    %c0_159 = arith.constant 0 : index
    %c0_160 = arith.constant 0 : index
    %131 = vector.load %arg5[%c1_157, %c2_158, %c0_159, %c0_160] : memref<3x3x128x64xf32, #tpu.memory_space<vmem>>, vector<1x1x128x64xf32>
    %132 = vector.shape_cast %131 : vector<1x1x128x64xf32> to vector<128x64xf32>
    %cst_161 = arith.constant dense<0.000000e+00> : vector<32x64xf32>
    %133 = tpu.matmul %130, %132, %cst_161 {dimension_numbers = #tpu.dot_dimension_numbers<[1], [0], [0], [1], [0, 0, 1, 1], [], []>} : vector<32x128xf32>, vector<128x64xf32>, vector<32x64xf32> -> vector<32x64xf32>
    %134 = arith.addf %128, %133 : vector<32x64xf32>
    %c0_162 = arith.constant 0 : index
    %c2_163 = arith.constant 2 : index
    %c0_164 = arith.constant 0 : index
    %c0_165 = arith.constant 0 : index
    %135 = vector.load %arg11[%c0_162, %c2_163, %c0_164, %c0_165] : memref<2x6x6x128xf32, #tpu.memory_space<vmem>>, vector<2x4x4x128xf32>
    %136 = vector.shape_cast %135 : vector<2x4x4x128xf32> to vector<32x128xf32>
    %c2_166 = arith.constant 2 : index
    %c0_167 = arith.constant 0 : index
    %c0_168 = arith.constant 0 : index
    %c0_169 = arith.constant 0 : index
    %137 = vector.load %arg5[%c2_166, %c0_167, %c0_168, %c0_169] : memref<3x3x128x64xf32, #tpu.memory_space<vmem>>, vector<1x1x128x64xf32>
    %138 = vector.shape_cast %137 : vector<1x1x128x64xf32> to vector<128x64xf32>
    %cst_170 = arith.constant dense<0.000000e+00> : vector<32x64xf32>
    %139 = tpu.matmul %136, %138, %cst_170 {dimension_numbers = #tpu.dot_dimension_numbers<[1], [0], [0], [1], [0, 0, 1, 1], [], []>} : vector<32x128xf32>, vector<128x64xf32>, vector<32x64xf32> -> vector<32x64xf32>
    %140 = arith.addf %134, %139 : vector<32x64xf32>
    %c0_171 = arith.constant 0 : index
    %c2_172 = arith.constant 2 : index
    %c1_173 = arith.constant 1 : index
    %c0_174 = arith.constant 0 : index
    %141 = vector.load %arg11[%c0_171, %c2_172, %c1_173, %c0_174] : memref<2x6x6x128xf32, #tpu.memory_space<vmem>>, vector<2x4x4x128xf32>
    %142 = vector.shape_cast %141 : vector<2x4x4x128xf32> to vector<32x128xf32>
    %c2_175 = arith.constant 2 : index
    %c1_176 = arith.constant 1 : index
    %c0_177 = arith.constant 0 : index
    %c0_178 = arith.constant 0 : index
    %143 = vector.load %arg5[%c2_175, %c1_176, %c0_177, %c0_178] : memref<3x3x128x64xf32, #tpu.memory_space<vmem>>, vector<1x1x128x64xf32>
    %144 = vector.shape_cast %143 : vector<1x1x128x64xf32> to vector<128x64xf32>
    %cst_179 = arith.constant dense<0.000000e+00> : vector<32x64xf32>
    %145 = tpu.matmul %142, %144, %cst_179 {dimension_numbers = #tpu.dot_dimension_numbers<[1], [0], [0], [1], [0, 0, 1, 1], [], []>} : vector<32x128xf32>, vector<128x64xf32>, vector<32x64xf32> -> vector<32x64xf32>
    %146 = arith.addf %140, %145 : vector<32x64xf32>
    %c0_180 = arith.constant 0 : index
    %c2_181 = arith.constant 2 : index
    %c2_182 = arith.constant 2 : index
    %c0_183 = arith.constant 0 : index
    %147 = vector.load %arg11[%c0_180, %c2_181, %c2_182, %c0_183] : memref<2x6x6x128xf32, #tpu.memory_space<vmem>>, vector<2x4x4x128xf32>
    %148 = vector.shape_cast %147 : vector<2x4x4x128xf32> to vector<32x128xf32>
    %c2_184 = arith.constant 2 : index
    %c2_185 = arith.constant 2 : index
    %c0_186 = arith.constant 0 : index
    %c0_187 = arith.constant 0 : index
    %149 = vector.load %arg5[%c2_184, %c2_185, %c0_186, %c0_187] : memref<3x3x128x64xf32, #tpu.memory_space<vmem>>, vector<1x1x128x64xf32>
    %150 = vector.shape_cast %149 : vector<1x1x128x64xf32> to vector<128x64xf32>
    %cst_188 = arith.constant dense<0.000000e+00> : vector<32x64xf32>
    %151 = tpu.matmul %148, %150, %cst_188 {dimension_numbers = #tpu.dot_dimension_numbers<[1], [0], [0], [1], [0, 0, 1, 1], [], []>} : vector<32x128xf32>, vector<128x64xf32>, vector<32x64xf32> -> vector<32x64xf32>
    %152 = arith.addf %146, %151 : vector<32x64xf32>
    %c0_189 = arith.constant 0 : index
    %c0_190 = arith.constant 0 : index
    %153 = vector.load %arg6[%c0_189, %c0_190] : memref<1x64xf32, #tpu.memory_space<vmem>>, vector<1x64xf32>
    %154 = vector.broadcast %153 : vector<1x64xf32> to vector<32x64xf32>
    %155 = arith.addf %152, %154 : vector<32x64xf32>
    %cst_191 = arith.constant 0.000000e+00 : f32
    %156 = vector.broadcast %cst_191 : f32 to vector<32x64xf32>
    %157 = arith.maximumf %155, %156 : vector<32x64xf32>
    %158 = vector.shape_cast %157 : vector<32x64xf32> to vector<16x2x64xf32>
    %159 = vector.extract_strided_slice %158 {offsets = [0, 0, 0], sizes = [16, 1, 64], strides = [1, 1, 1]} : vector<16x2x64xf32> to vector<16x1x64xf32>
    %160 = vector.shape_cast %159 : vector<16x1x64xf32> to vector<16x64xf32>
    %161 = vector.extract_strided_slice %158 {offsets = [0, 1, 0], sizes = [16, 1, 64], strides = [1, 1, 1]} : vector<16x2x64xf32> to vector<16x1x64xf32>
    %162 = vector.shape_cast %161 : vector<16x1x64xf32> to vector<16x64xf32>
    %163 = arith.maximumf %160, %162 : vector<16x64xf32>
    %164 = vector.shape_cast %163 : vector<16x64xf32> to vector<2x2x2x2x64xf32>
    %165 = vector.extract_strided_slice %164 {offsets = [0, 0, 0, 0, 0], sizes = [2, 2, 1, 2, 64], strides = [1, 1, 1, 1, 1]} : vector<2x2x2x2x64xf32> to vector<2x2x1x2x64xf32>
    %166 = vector.shape_cast %165 : vector<2x2x1x2x64xf32> to vector<2x2x2x64xf32>
    %167 = vector.extract_strided_slice %164 {offsets = [0, 0, 1, 0, 0], sizes = [2, 2, 1, 2, 64], strides = [1, 1, 1, 1, 1]} : vector<2x2x2x2x64xf32> to vector<2x2x1x2x64xf32>
    %168 = vector.shape_cast %167 : vector<2x2x1x2x64xf32> to vector<2x2x2x64xf32>
    %169 = arith.maximumf %166, %168 : vector<2x2x2x64xf32>
    %cst_192 = arith.constant 0.000000e+00 : f32
    %170 = vector.broadcast %cst_192 : f32 to vector<2x4x4x64xf32>
    %c0_193 = arith.constant 0 : index
    %c0_194 = arith.constant 0 : index
    %c0_195 = arith.constant 0 : index
    %c0_196 = arith.constant 0 : index
    %171 = vector.load %arg12[%c0_193, %c0_194, %c0_195, %c0_196] : memref<2x4x4x64xf32, #tpu.memory_space<vmem>>, vector<2x4x4x64xf32>
    tpu.vector_store %arg12[%c0_193, %c0_194, %c0_195, %c0_196], %170 {strides = array<i32>} : memref<2x4x4x64xf32, #tpu.memory_space<vmem>>, vector<2x4x4x64xf32>,
    %c0_197 = arith.constant 0 : index
    %c1_198 = arith.constant 1 : index
    %c1_199 = arith.constant 1 : index
    %c0_200 = arith.constant 0 : index
    %172 = vector.load %arg12[%c0_197, %c1_198, %c1_199, %c0_200] : memref<2x4x4x64xf32, #tpu.memory_space<vmem>>, vector<2x2x2x64xf32>
    tpu.vector_store %arg12[%c0_197, %c1_198, %c1_199, %c0_200], %169 {strides = array<i32>} : memref<2x4x4x64xf32, #tpu.memory_space<vmem>>, vector<2x2x2x64xf32>,
    %cst_201 = arith.constant 0.000000e+00 : f32
    %173 = vector.broadcast %cst_201 : f32 to vector<8x8xf32>
    %c0_202 = arith.constant 0 : index
    %c0_203 = arith.constant 0 : index
    %c0_204 = arith.constant 0 : index
    %c0_205 = arith.constant 0 : index
    %174 = vector.load %arg12[%c0_202, %c0_203, %c0_204, %c0_205] : memref<2x4x4x64xf32, #tpu.memory_space<vmem>>, vector<2x2x2x64xf32>
    %175 = vector.shape_cast %174 : vector<2x2x2x64xf32> to vector<8x64xf32>
    %c0_206 = arith.constant 0 : index
    %c0_207 = arith.constant 0 : index
    %c0_208 = arith.constant 0 : index
    %c0_209 = arith.constant 0 : index
    %176 = vector.load %arg7[%c0_206, %c0_207, %c0_208, %c0_209] : memref<3x3x64x8xf32, #tpu.memory_space<vmem>>, vector<1x1x64x8xf32>
    %177 = vector.shape_cast %176 : vector<1x1x64x8xf32> to vector<64x8xf32>
    %cst_210 = arith.constant dense<0.000000e+00> : vector<8x8xf32>
    %178 = tpu.matmul %175, %177, %cst_210 {dimension_numbers = #tpu.dot_dimension_numbers<[1], [0], [0], [1], [0, 0, 1, 1], [], []>} : vector<8x64xf32>, vector<64x8xf32>, vector<8x8xf32> -> vector<8x8xf32>
    %179 = arith.addf %173, %178 : vector<8x8xf32>
    %c0_211 = arith.constant 0 : index
    %c0_212 = arith.constant 0 : index
    %c1_213 = arith.constant 1 : index
    %c0_214 = arith.constant 0 : index
    %180 = vector.load %arg12[%c0_211, %c0_212, %c1_213, %c0_214] : memref<2x4x4x64xf32, #tpu.memory_space<vmem>>, vector<2x2x2x64xf32>
    %181 = vector.shape_cast %180 : vector<2x2x2x64xf32> to vector<8x64xf32>
    %c0_215 = arith.constant 0 : index
    %c1_216 = arith.constant 1 : index
    %c0_217 = arith.constant 0 : index
    %c0_218 = arith.constant 0 : index
    %182 = vector.load %arg7[%c0_215, %c1_216, %c0_217, %c0_218] : memref<3x3x64x8xf32, #tpu.memory_space<vmem>>, vector<1x1x64x8xf32>
    %183 = vector.shape_cast %182 : vector<1x1x64x8xf32> to vector<64x8xf32>
    %cst_219 = arith.constant dense<0.000000e+00> : vector<8x8xf32>
    %184 = tpu.matmul %181, %183, %cst_219 {dimension_numbers = #tpu.dot_dimension_numbers<[1], [0], [0], [1], [0, 0, 1, 1], [], []>} : vector<8x64xf32>, vector<64x8xf32>, vector<8x8xf32> -> vector<8x8xf32>
    %185 = arith.addf %179, %184 : vector<8x8xf32>
    %c0_220 = arith.constant 0 : index
    %c0_221 = arith.constant 0 : index
    %c2_222 = arith.constant 2 : index
    %c0_223 = arith.constant 0 : index
    %186 = vector.load %arg12[%c0_220, %c0_221, %c2_222, %c0_223] : memref<2x4x4x64xf32, #tpu.memory_space<vmem>>, vector<2x2x2x64xf32>
    %187 = vector.shape_cast %186 : vector<2x2x2x64xf32> to vector<8x64xf32>
    %c0_224 = arith.constant 0 : index
    %c2_225 = arith.constant 2 : index
    %c0_226 = arith.constant 0 : index
    %c0_227 = arith.constant 0 : index
    %188 = vector.load %arg7[%c0_224, %c2_225, %c0_226, %c0_227] : memref<3x3x64x8xf32, #tpu.memory_space<vmem>>, vector<1x1x64x8xf32>
    %189 = vector.shape_cast %188 : vector<1x1x64x8xf32> to vector<64x8xf32>
    %cst_228 = arith.constant dense<0.000000e+00> : vector<8x8xf32>
    %190 = tpu.matmul %187, %189, %cst_228 {dimension_numbers = #tpu.dot_dimension_numbers<[1], [0], [0], [1], [0, 0, 1, 1], [], []>} : vector<8x64xf32>, vector<64x8xf32>, vector<8x8xf32> -> vector<8x8xf32>
    %191 = arith.addf %185, %190 : vector<8x8xf32>
    %c0_229 = arith.constant 0 : index
    %c1_230 = arith.constant 1 : index
    %c0_231 = arith.constant 0 : index
    %c0_232 = arith.constant 0 : index
    %192 = vector.load %arg12[%c0_229, %c1_230, %c0_231, %c0_232] : memref<2x4x4x64xf32, #tpu.memory_space<vmem>>, vector<2x2x2x64xf32>
    %193 = vector.shape_cast %192 : vector<2x2x2x64xf32> to vector<8x64xf32>
    %c1_233 = arith.constant 1 : index
    %c0_234 = arith.constant 0 : index
    %c0_235 = arith.constant 0 : index
    %c0_236 = arith.constant 0 : index
    %194 = vector.load %arg7[%c1_233, %c0_234, %c0_235, %c0_236] : memref<3x3x64x8xf32, #tpu.memory_space<vmem>>, vector<1x1x64x8xf32>
    %195 = vector.shape_cast %194 : vector<1x1x64x8xf32> to vector<64x8xf32>
    %cst_237 = arith.constant dense<0.000000e+00> : vector<8x8xf32>
    %196 = tpu.matmul %193, %195, %cst_237 {dimension_numbers = #tpu.dot_dimension_numbers<[1], [0], [0], [1], [0, 0, 1, 1], [], []>} : vector<8x64xf32>, vector<64x8xf32>, vector<8x8xf32> -> vector<8x8xf32>
    %197 = arith.addf %191, %196 : vector<8x8xf32>
    %c0_238 = arith.constant 0 : index
    %c1_239 = arith.constant 1 : index
    %c1_240 = arith.constant 1 : index
    %c0_241 = arith.constant 0 : index
    %198 = vector.load %arg12[%c0_238, %c1_239, %c1_240, %c0_241] : memref<2x4x4x64xf32, #tpu.memory_space<vmem>>, vector<2x2x2x64xf32>
    %199 = vector.shape_cast %198 : vector<2x2x2x64xf32> to vector<8x64xf32>
    %c1_242 = arith.constant 1 : index
    %c1_243 = arith.constant 1 : index
    %c0_244 = arith.constant 0 : index
    %c0_245 = arith.constant 0 : index
    %200 = vector.load %arg7[%c1_242, %c1_243, %c0_244, %c0_245] : memref<3x3x64x8xf32, #tpu.memory_space<vmem>>, vector<1x1x64x8xf32>
    %201 = vector.shape_cast %200 : vector<1x1x64x8xf32> to vector<64x8xf32>
    %cst_246 = arith.constant dense<0.000000e+00> : vector<8x8xf32>
    %202 = tpu.matmul %199, %201, %cst_246 {dimension_numbers = #tpu.dot_dimension_numbers<[1], [0], [0], [1], [0, 0, 1, 1], [], []>} : vector<8x64xf32>, vector<64x8xf32>, vector<8x8xf32> -> vector<8x8xf32>
    %203 = arith.addf %197, %202 : vector<8x8xf32>
    %c0_247 = arith.constant 0 : index
    %c1_248 = arith.constant 1 : index
    %c2_249 = arith.constant 2 : index
    %c0_250 = arith.constant 0 : index
    %204 = vector.load %arg12[%c0_247, %c1_248, %c2_249, %c0_250] : memref<2x4x4x64xf32, #tpu.memory_space<vmem>>, vector<2x2x2x64xf32>
    %205 = vector.shape_cast %204 : vector<2x2x2x64xf32> to vector<8x64xf32>
    %c1_251 = arith.constant 1 : index
    %c2_252 = arith.constant 2 : index
    %c0_253 = arith.constant 0 : index
    %c0_254 = arith.constant 0 : index
    %206 = vector.load %arg7[%c1_251, %c2_252, %c0_253, %c0_254] : memref<3x3x64x8xf32, #tpu.memory_space<vmem>>, vector<1x1x64x8xf32>
    %207 = vector.shape_cast %206 : vector<1x1x64x8xf32> to vector<64x8xf32>
    %cst_255 = arith.constant dense<0.000000e+00> : vector<8x8xf32>
    %208 = tpu.matmul %205, %207, %cst_255 {dimension_numbers = #tpu.dot_dimension_numbers<[1], [0], [0], [1], [0, 0, 1, 1], [], []>} : vector<8x64xf32>, vector<64x8xf32>, vector<8x8xf32> -> vector<8x8xf32>
    %209 = arith.addf %203, %208 : vector<8x8xf32>
    %c0_256 = arith.constant 0 : index
    %c2_257 = arith.constant 2 : index
    %c0_258 = arith.constant 0 : index
    %c0_259 = arith.constant 0 : index
    %210 = vector.load %arg12[%c0_256, %c2_257, %c0_258, %c0_259] : memref<2x4x4x64xf32, #tpu.memory_space<vmem>>, vector<2x2x2x64xf32>
    %211 = vector.shape_cast %210 : vector<2x2x2x64xf32> to vector<8x64xf32>
    %c2_260 = arith.constant 2 : index
    %c0_261 = arith.constant 0 : index
    %c0_262 = arith.constant 0 : index
    %c0_263 = arith.constant 0 : index
    %212 = vector.load %arg7[%c2_260, %c0_261, %c0_262, %c0_263] : memref<3x3x64x8xf32, #tpu.memory_space<vmem>>, vector<1x1x64x8xf32>
    %213 = vector.shape_cast %212 : vector<1x1x64x8xf32> to vector<64x8xf32>
    %cst_264 = arith.constant dense<0.000000e+00> : vector<8x8xf32>
    %214 = tpu.matmul %211, %213, %cst_264 {dimension_numbers = #tpu.dot_dimension_numbers<[1], [0], [0], [1], [0, 0, 1, 1], [], []>} : vector<8x64xf32>, vector<64x8xf32>, vector<8x8xf32> -> vector<8x8xf32>
    %215 = arith.addf %209, %214 : vector<8x8xf32>
    %c0_265 = arith.constant 0 : index
    %c2_266 = arith.constant 2 : index
    %c1_267 = arith.constant 1 : index
    %c0_268 = arith.constant 0 : index
    %216 = vector.load %arg12[%c0_265, %c2_266, %c1_267, %c0_268] : memref<2x4x4x64xf32, #tpu.memory_space<vmem>>, vector<2x2x2x64xf32>
    %217 = vector.shape_cast %216 : vector<2x2x2x64xf32> to vector<8x64xf32>
    %c2_269 = arith.constant 2 : index
    %c1_270 = arith.constant 1 : index
    %c0_271 = arith.constant 0 : index
    %c0_272 = arith.constant 0 : index
    %218 = vector.load %arg7[%c2_269, %c1_270, %c0_271, %c0_272] : memref<3x3x64x8xf32, #tpu.memory_space<vmem>>, vector<1x1x64x8xf32>
    %219 = vector.shape_cast %218 : vector<1x1x64x8xf32> to vector<64x8xf32>
    %cst_273 = arith.constant dense<0.000000e+00> : vector<8x8xf32>
    %220 = tpu.matmul %217, %219, %cst_273 {dimension_numbers = #tpu.dot_dimension_numbers<[1], [0], [0], [1], [0, 0, 1, 1], [], []>} : vector<8x64xf32>, vector<64x8xf32>, vector<8x8xf32> -> vector<8x8xf32>
    %221 = arith.addf %215, %220 : vector<8x8xf32>
    %c0_274 = arith.constant 0 : index
    %c2_275 = arith.constant 2 : index
    %c2_276 = arith.constant 2 : index
    %c0_277 = arith.constant 0 : index
    %222 = vector.load %arg12[%c0_274, %c2_275, %c2_276, %c0_277] : memref<2x4x4x64xf32, #tpu.memory_space<vmem>>, vector<2x2x2x64xf32>
    %223 = vector.shape_cast %222 : vector<2x2x2x64xf32> to vector<8x64xf32>
    %c2_278 = arith.constant 2 : index
    %c2_279 = arith.constant 2 : index
    %c0_280 = arith.constant 0 : index
    %c0_281 = arith.constant 0 : index
    %224 = vector.load %arg7[%c2_278, %c2_279, %c0_280, %c0_281] : memref<3x3x64x8xf32, #tpu.memory_space<vmem>>, vector<1x1x64x8xf32>
    %225 = vector.shape_cast %224 : vector<1x1x64x8xf32> to vector<64x8xf32>
    %cst_282 = arith.constant dense<0.000000e+00> : vector<8x8xf32>
    %226 = tpu.matmul %223, %225, %cst_282 {dimension_numbers = #tpu.dot_dimension_numbers<[1], [0], [0], [1], [0, 0, 1, 1], [], []>} : vector<8x64xf32>, vector<64x8xf32>, vector<8x8xf32> -> vector<8x8xf32>
    %227 = arith.addf %221, %226 : vector<8x8xf32>
    %c0_283 = arith.constant 0 : index
    %c0_284 = arith.constant 0 : index
    %228 = vector.load %arg8[%c0_283, %c0_284] : memref<1x8xf32, #tpu.memory_space<vmem>>, vector<1x8xf32>
    %229 = vector.broadcast %228 : vector<1x8xf32> to vector<8x8xf32>
    %230 = arith.addf %227, %229 : vector<8x8xf32>
    %231 = vector.shape_cast %230 : vector<8x8xf32> to vector<4x2x8xf32>
    %232 = vector.extract_strided_slice %231 {offsets = [0, 0, 0], sizes = [4, 1, 8], strides = [1, 1, 1]} : vector<4x2x8xf32> to vector<4x1x8xf32>
    %233 = vector.shape_cast %232 : vector<4x1x8xf32> to vector<4x8xf32>
    %234 = vector.extract_strided_slice %231 {offsets = [0, 1, 0], sizes = [4, 1, 8], strides = [1, 1, 1]} : vector<4x2x8xf32> to vector<4x1x8xf32>
    %235 = vector.shape_cast %234 : vector<4x1x8xf32> to vector<4x8xf32>
    %236 = arith.maximumf %233, %235 : vector<4x8xf32>
    %237 = vector.shape_cast %236 : vector<4x8xf32> to vector<2x1x2x1x8xf32>
    %238 = vector.extract_strided_slice %237 {offsets = [0, 0, 0, 0, 0], sizes = [2, 1, 1, 1, 8], strides = [1, 1, 1, 1, 1]} : vector<2x1x2x1x8xf32> to vector<2x1x1x1x8xf32>
    %239 = vector.shape_cast %238 : vector<2x1x1x1x8xf32> to vector<2x1x1x8xf32>
    %240 = vector.extract_strided_slice %237 {offsets = [0, 0, 1, 0, 0], sizes = [2, 1, 1, 1, 8], strides = [1, 1, 1, 1, 1]} : vector<2x1x2x1x8xf32> to vector<2x1x1x1x8xf32>
    %241 = vector.shape_cast %240 : vector<2x1x1x1x8xf32> to vector<2x1x1x8xf32>
    %242 = arith.maximumf %239, %241 : vector<2x1x1x8xf32>
    %243 = vector.shape_cast %242 : vector<2x1x1x8xf32> to vector<2x8xf32>
    %cst_285 = arith.constant dense<0.000000e+00> : vector<8xf32>
    %244 = vector.multi_reduction <add>, %243, %cst_285 [0] : vector<2x8xf32> to vector<8xf32>
    %245 = vector.shape_cast %244 : vector<8xf32> to vector<1x8xf32>
    %cst_286 = arith.constant 5.000000e-01 : f32
    %246 = vector.broadcast %cst_286 : f32 to vector<1x8xf32>
    %247 = arith.mulf %245, %246 : vector<1x8xf32>
    %cst_287 = arith.constant dense<0xFF800000> : vector<1xf32>
    %248 = vector.multi_reduction <maximumf>, %247, %cst_287 [1] : vector<1x8xf32> to vector<1xf32>
    %249 = vector.shape_cast %248 : vector<1xf32> to vector<1x1xf32>
    %250 = vector.broadcast %249 : vector<1x1xf32> to vector<1x8xf32>
    %251 = arith.subf %247, %250 : vector<1x8xf32>
    %252 = math.exp %251 : vector<1x8xf32>
    %cst_288 = arith.constant dense<0.000000e+00> : vector<1xf32>
    %253 = vector.multi_reduction <add>, %252, %cst_288 [1] : vector<1x8xf32> to vector<1xf32>
    %254 = vector.shape_cast %253 : vector<1xf32> to vector<1x1xf32>
    %255 = math.log %254 : vector<1x1xf32>
    %256 = vector.broadcast %255 : vector<1x1xf32> to vector<1x8xf32>
    %257 = arith.subf %251, %256 : vector<1x8xf32>
    %c0_289 = arith.constant 0 : index
    %c0_290 = arith.constant 0 : index
    %258 = vector.load %arg9[%c0_289, %c0_290] : memref<1x8xf32, #tpu.memory_space<vmem>>, vector<1x8xf32>
    tpu.vector_store %arg9[%c0_289, %c0_290], %257 {strides = array<i32>} : memref<1x8xf32, #tpu.memory_space<vmem>>, vector<1x8xf32>,
    return
  }
}

</mosaic_0001>

<llo_original>
// kernel: classifier_forward.1
$region0: #{classifier_forward.1}
  #allocation0 [shape = 'u32[]', space=smem, size = 0x4, offset = 0x4, fixed_abs, tag = 'smem constant byte address 0x4 - core index']
  #allocation1 [shape = 'u32[144,128]{1,0:T(1,128)}', space=vmem, size = 0x12000, scoped, tag = 'internal scratch']
  #allocation2 [shape = 'f32[2,10,10,256]{3,2,1,0:T(8,128)}', space=vmem, size = 0x50000, scoped, tag = 'scratch operand']
  #allocation3 [shape = 'f32[2,6,6,128]{3,2,1,0:T(8,128)}', space=vmem, size = 0xc000, scoped, tag = 'scratch operand']
  #allocation4 [shape = 'f32[2,4,4,64]{3,2,1,0:T(4,128)}', space=vmem, size = 0x4000, scoped, tag = 'scratch operand']
  %s0 = inlined_call_operand.vmem [shape: f32[512,128], index: 0, kind: input, shape index: {}]
  %s1 = inlined_call_operand.vmem [shape: f32[128,256], index: 1, kind: input, shape index: {}]
  %s2 = inlined_call_operand.vmem [shape: f32[1,256], index: 2, kind: input, shape index: {}]
  %s3 = inlined_call_operand.vmem [shape: f32[3,3,256,128], index: 3, kind: input, shape index: {}]
  %s4 = inlined_call_operand.vmem [shape: f32[1,128], index: 4, kind: input, shape index: {}]
  %s5 = inlined_call_operand.vmem [shape: f32[3,3,128,64], index: 5, kind: input, shape index: {}]
  %s6 = inlined_call_operand.vmem [shape: f32[1,64], index: 6, kind: input, shape index: {}]
  %s7 = inlined_call_operand.vmem [shape: f32[3,3,64,8], index: 7, kind: input, shape index: {}]
  %s8 = inlined_call_operand.vmem [shape: f32[1,8], index: 8, kind: input, shape index: {}]
  %s9 = inlined_call_operand.hbm [shape: f32[1,8], index: 9, kind: output, shape index: {}]
  %s10 = sld [smem:[#allocation0]]
  $region46: #{classifier_forward.1} parent=0
    _
  %s12 = ssub.s32 1, %s10
  %s13 = scalar_select 0, %s12, %s10
  $region1: #{classifier_forward.1} parent=0
    #allocation5 [shape = 'u8[512]{0}', space=vmem, size = 0x400, scoped, tag = 'output window, operand 0, single buffered']
    #allocation6 [shape = 's32[1]{0}', space=sflag, size = 0x4, scoped, tag = 'scoped memory for classifier_forward.1']
    %14 = vsyncpa [#allocation6], 0
    // Predicated region
    $region2: #{classifier_forward.1} parent=1 // pred_check
      _
    $region3: #{classifier_forward.1} parent=1 // pred_check_branch
      %16 = sbr.rel (0) target = $region5
    $region4: #{classifier_forward.1} parent=1 // pred_region
      _
    $region5: #{classifier_forward.1} parent=1 // pred_fallthru
      _
    // Predicated region
    $region6: #{classifier_forward.1} parent=1 // pred_check
      _
    $region7: #{classifier_forward.1} parent=1 // pred_check_branch
      %18 = sbr.rel (0) target = $region9
    $region8: #{classifier_forward.1} parent=1 // pred_region
      _
    $region9: #{classifier_forward.1} parent=1 // pred_fallthru
      _
    // Predicated region
    $region10: #{classifier_forward.1} parent=1 // pred_check
      _
    $region11: #{classifier_forward.1} parent=1 // pred_check_branch
      %20 = sbr.rel (0) target = $region13
    $region12: #{classifier_forward.1} parent=1 // pred_region
      _
    $region13: #{classifier_forward.1} parent=1 // pred_fallthru
      _
    // Predicated region
    $region14: #{classifier_forward.1} parent=1 // pred_check
      _
    $region15: #{classifier_forward.1} parent=1 // pred_check_branch
      %22 = sbr.rel (0) target = $region17
    $region16: #{classifier_forward.1} parent=1 // pred_region
      _
    $region17: #{classifier_forward.1} parent=1 // pred_fallthru
      _
    // Predicated region
    $region18: #{classifier_forward.1} parent=1 // pred_check
      _
    $region19: #{classifier_forward.1} parent=1 // pred_check_branch
      %24 = sbr.rel (0) target = $region21
    $region20: #{classifier_forward.1} parent=1 // pred_region
      _
    $region21: #{classifier_forward.1} parent=1 // pred_fallthru
      _
    // Predicated region
    $region22: #{classifier_forward.1} parent=1 // pred_check
      _
    $region23: #{classifier_forward.1} parent=1 // pred_check_branch
      %26 = sbr.rel (0) target = $region25
    $region24: #{classifier_forward.1} parent=1 // pred_region
      _
    $region25: #{classifier_forward.1} parent=1 // pred_fallthru
      _
    // Predicated region
    $region26: #{classifier_forward.1} parent=1 // pred_check
      _
    $region27: #{classifier_forward.1} parent=1 // pred_check_branch
      %28 = sbr.rel (0) target = $region29
    $region28: #{classifier_forward.1} parent=1 // pred_region
      _
    $region29: #{classifier_forward.1} parent=1 // pred_fallthru
      _
    // Predicated region
    $region30: #{classifier_forward.1} parent=1 // pred_check
      _
    $region31: #{classifier_forward.1} parent=1 // pred_check_branch
      %30 = sbr.rel (0) target = $region33
    $region32: #{classifier_forward.1} parent=1 // pred_region
      _
    $region33: #{classifier_forward.1} parent=1 // pred_fallthru
      _
    // Predicated region
    $region34: #{classifier_forward.1} parent=1 // pred_check
      _
    $region35: #{classifier_forward.1} parent=1 // pred_check_branch
      %32 = sbr.rel (0) target = $region37
    $region36: #{classifier_forward.1} parent=1 // pred_region
      _
    $region37: #{classifier_forward.1} parent=1 // pred_fallthru
      _
    %v33 = vld [vmem:[%s0] sm:$0xff]
    %v34 = vld [vmem:[%s0 + $0x8] sm:$0xff]
    %v35 = vld [vmem:[%s0 + $0x10] sm:$0xff]
    %v36 = vld [vmem:[%s0 + $0x18] sm:$0xff]
    %v37 = vld [vmem:[%s0 + $0x20] sm:$0xff]
    %v38 = vld [vmem:[%s0 + $0x28] sm:$0xff]
    %v39 = vld [vmem:[%s0 + $0x30] sm:$0xff]
    %v40 = vld [vmem:[%s0 + $0x38] sm:$0xff]
    %v41 = vld [vmem:[%s0 + $0x40] sm:$0xff]
    %v42 = vld [vmem:[%s0 + $0x48] sm:$0xff]
    %v43 = vld [vmem:[%s0 + $0x50] sm:$0xff]
    %v44 = vld [vmem:[%s0 + $0x58] sm:$0xff]
    %v45 = vld [vmem:[%s0 + $0x60] sm:$0xff]
    %v46 = vld [vmem:[%s0 + $0x68] sm:$0xff]
    %v47 = vld [vmem:[%s0 + $0x70] sm:$0xff]
    %v48 = vld [vmem:[%s0 + $0x78] sm:$0xff]
    %v49 = vld [vmem:[%s0 + $0x80] sm:$0xff]
    %v50 = vld [vmem:[%s0 + $0x88] sm:$0xff]
    %v51 = vld [vmem:[%s0 + $0x90] sm:$0xff]
    %v52 = vld [vmem:[%s0 + $0x98] sm:$0xff]
    %v53 = vld [vmem:[%s0 + $0xa0] sm:$0xff]
    %v54 = vld [vmem:[%s0 + $0xa8] sm:$0xff]
    %v55 = vld [vmem:[%s0 + $0xb0] sm:$0xff]
    %v56 = vld [vmem:[%s0 + $0xb8] sm:$0xff]
    %v57 = vld [vmem:[%s0 + $0xc0] sm:$0xff]
    %v58 = vld [vmem:[%s0 + $0xc8] sm:$0xff]
    %v59 = vld [vmem:[%s0 + $0xd0] sm:$0xff]
    %v60 = vld [vmem:[%s0 + $0xd8] sm:$0xff]
    %v61 = vld [vmem:[%s0 + $0xe0] sm:$0xff]
    %v62 = vld [vmem:[%s0 + $0xe8] sm:$0xff]
    %v63 = vld [vmem:[%s0 + $0xf0] sm:$0xff]
    %v64 = vld [vmem:[%s0 + $0xf8] sm:$0xff]
    %v65 = vld [vmem:[%s0 + $0x100] sm:$0xff]
    %v66 = vld [vmem:[%s0 + $0x108] sm:$0xff]
    %v67 = vld [vmem:[%s0 + $0x110] sm:$0xff]
    %v68 = vld [vmem:[%s0 + $0x118] sm:$0xff]
    %v69 = vld [vmem:[%s0 + $0x120] sm:$0xff]
    %v70 = vld [vmem:[%s0 + $0x128] sm:$0xff]
    %v71 = vld [vmem:[%s0 + $0x130] sm:$0xff]
    %v72 = vld [vmem:[%s0 + $0x138] sm:$0xff]
    %v73 = vld [vmem:[%s0 + $0x140] sm:$0xff]
    %v74 = vld [vmem:[%s0 + $0x148] sm:$0xff]
    %v75 = vld [vmem:[%s0 + $0x150] sm:$0xff]
    %v76 = vld [vmem:[%s0 + $0x158] sm:$0xff]
    %v77 = vld [vmem:[%s0 + $0x160] sm:$0xff]
    %v78 = vld [vmem:[%s0 + $0x168] sm:$0xff]
    %v79 = vld [vmem:[%s0 + $0x170] sm:$0xff]
    %v80 = vld [vmem:[%s0 + $0x178] sm:$0xff]
    %v81 = vld [vmem:[%s0 + $0x180] sm:$0xff]
    %v82 = vld [vmem:[%s0 + $0x188] sm:$0xff]
    %v83 = vld [vmem:[%s0 + $0x190] sm:$0xff]
    %v84 = vld [vmem:[%s0 + $0x198] sm:$0xff]
    %v85 = vld [vmem:[%s0 + $0x1a0] sm:$0xff]
    %v86 = vld [vmem:[%s0 + $0x1a8] sm:$0xff]
    %v87 = vld [vmem:[%s0 + $0x1b0] sm:$0xff]
    %v88 = vld [vmem:[%s0 + $0x1b8] sm:$0xff]
    %v89 = vld [vmem:[%s0 + $0x1c0] sm:$0xff]
    %v90 = vld [vmem:[%s0 + $0x1c8] sm:$0xff]
    %v91 = vld [vmem:[%s0 + $0x1d0] sm:$0xff]
    %v92 = vld [vmem:[%s0 + $0x1d8] sm:$0xff]
    %v93 = vld [vmem:[%s0 + $0x1e0] sm:$0xff]
    %v94 = vld [vmem:[%s0 + $0x1e8] sm:$0xff]
    %v95 = vld [vmem:[%s0 + $0x1f0] sm:$0xff]
    %v96 = vld [vmem:[%s0 + $0x1f8] sm:$0xff]
    %v97 = vld [vmem:[%s1] sm:$0xff]
    %v98 = vld [vmem:[%s1 + $0x8] sm:$0xff]
    %v99 = vld [vmem:[%s1 + $0x10] sm:$0xff]
    %v100 = vld [vmem:[%s1 + $0x18] sm:$0xff]
    %v101 = vld [vmem:[%s1 + $0x20] sm:$0xff]
    %v102 = vld [vmem:[%s1 + $0x28] sm:$0xff]
    %v103 = vld [vmem:[%s1 + $0x30] sm:$0xff]
    %v104 = vld [vmem:[%s1 + $0x38] sm:$0xff]
    %v105 = vld [vmem:[%s1 + $0x40] sm:$0xff]
    %v106 = vld [vmem:[%s1 + $0x48] sm:$0xff]
    %v107 = vld [vmem:[%s1 + $0x50] sm:$0xff]
    %v108 = vld [vmem:[%s1 + $0x58] sm:$0xff]
    %v109 = vld [vmem:[%s1 + $0x60] sm:$0xff]
    %v110 = vld [vmem:[%s1 + $0x68] sm:$0xff]
    %v111 = vld [vmem:[%s1 + $0x70] sm:$0xff]
    %v112 = vld [vmem:[%s1 + $0x78] sm:$0xff]
    %v113 = vld [vmem:[%s1 + $0x80] sm:$0xff]
    %v114 = vld [vmem:[%s1 + $0x88] sm:$0xff]
    %v115 = vld [vmem:[%s1 + $0x90] sm:$0xff]
    %v116 = vld [vmem:[%s1 + $0x98] sm:$0xff]
    %v117 = vld [vmem:[%s1 + $0xa0] sm:$0xff]
    %v118 = vld [vmem:[%s1 + $0xa8] sm:$0xff]
    %v119 = vld [vmem:[%s1 + $0xb0] sm:$0xff]
    %v120 = vld [vmem:[%s1 + $0xb8] sm:$0xff]
    %v121 = vld [vmem:[%s1 + $0xc0] sm:$0xff]
    %v122 = vld [vmem:[%s1 + $0xc8] sm:$0xff]
    %v123 = vld [vmem:[%s1 + $0xd0] sm:$0xff]
    %v124 = vld [vmem:[%s1 + $0xd8] sm:$0xff]
    %v125 = vld [vmem:[%s1 + $0xe0] sm:$0xff]
    %v126 = vld [vmem:[%s1 + $0xe8] sm:$0xff]
    %v127 = vld [vmem:[%s1 + $0xf0] sm:$0xff]
    %v128 = vld [vmem:[%s1 + $0xf8] sm:$0xff]
    %v129 = vld [vmem:[%s2] sm:$0x3]
    %v131 = vlaneseq
    %v132 = vshrl.u32 %v131, 7
    %v133 = vsub.s32 0, %v132
    %v134 = vrot.slane %v129, %v133
    %v135 = vlaneseq
    %v136 = vshrl.u32 %v135, 7
    %v137 = vsub.s32 1, %v136
    %v138 = vrot.slane %v129, %v137
    %141 = vmatprep.subr.mxu0 %v98
    %142 = vmatpush1.msra.mxu0 %v97
    %143 = vmatprep.subr.mxu0 %v100
    %144 = vmatpush1.msra.mxu0 %v99
    %145 = vmatprep.subr.mxu0 %v102
    %146 = vmatpush1.msra.mxu0 %v101
    %147 = vmatprep.subr.mxu0 %v104
    %148 = vmatpush1.msra.mxu0 %v103
    %149 = vmatprep.subr.mxu0 %v106
    %150 = vmatpush1.msra.mxu0 %v105
    %151 = vmatprep.subr.mxu0 %v108
    %152 = vmatpush1.msra.mxu0 %v107
    %153 = vmatprep.subr.mxu0 %v110
    %154 = vmatpush1.msra.mxu0 %v109
    %155 = vmatprep.subr.mxu0 %v112
    %156 = vmatpush1.msra.mxu0 %v111
    %157 = vmatprep.subr.mxu0 %v114
    %158 = vmatpush1.msra.mxu0 %v113
    %159 = vmatprep.subr.mxu0 %v116
    %160 = vmatpush1.msra.mxu0 %v115
    %161 = vmatprep.subr.mxu0 %v118
    %162 = vmatpush1.msra.mxu0 %v117
    %163 = vmatprep.subr.mxu0 %v120
    %164 = vmatpush1.msra.mxu0 %v119
    %165 = vmatprep.subr.mxu0 %v122
    %166 = vmatpush1.msra.mxu0 %v121
    %167 = vmatprep.subr.mxu0 %v124
    %168 = vmatpush1.msra.mxu0 %v123
    %169 = vmatprep.subr.mxu0 %v126
    %170 = vmatpush1.msra.mxu0 %v125
    %171 = vmatprep.subr.mxu0 %v128
    %172 = vmatpush1.msra.mxu0 %v127
    %173 = vmatprep.subr.mxu0 0.0
    %174 = vmatpush1.msra.mxu0 0.0
    %175 = vmatprep.subr.mxu0 0.0
    %176 = vmatpush1.msra.mxu0 0.0
    %177 = vmatprep.subr.mxu0 0.0
    %178 = vmatpush1.msra.mxu0 0.0
    %179 = vmatprep.subr.mxu0 0.0
    %180 = vmatpush1.msra.mxu0 0.0
    %181 = vmatprep.subr.mxu0 0.0
    %182 = vmatpush1.msra.mxu0 0.0
    %183 = vmatprep.subr.mxu0 0.0
    %184 = vmatpush1.msra.mxu0 0.0
    %185 = vmatprep.subr.mxu0 0.0
    %186 = vmatpush1.msra.mxu0 0.0
    %187 = vmatprep.subr.mxu0 0.0
    %188 = vmatpush1.msra.mxu0 0.0
    %189 = vmatprep.subr.mxu0 0.0
    %190 = vmatpush1.msra.mxu0 0.0
    %191 = vmatprep.subr.mxu0 0.0
    %192 = vmatpush1.msra.mxu0 0.0
    %193 = vmatprep.subr.mxu0 0.0
    %194 = vmatpush1.msra.mxu0 0.0
    %195 = vmatprep.subr.mxu0 0.0
    %196 = vmatpush1.msra.mxu0 0.0
    %197 = vmatprep.subr.mxu0 0.0
    %198 = vmatpush1.msra.mxu0 0.0
    %199 = vmatprep.subr.mxu0 0.0
    %200 = vmatpush1.msra.mxu0 0.0
    %201 = vmatprep.subr.mxu0 0.0
    %202 = vmatpush1.msra.mxu0 0.0
    %203 = vmatprep.subr.mxu0 0.0
    %204 = vmatpush1.msra.mxu0 0.0
    %205 = vmatprep.mubr.f32.mxu0 0.0
    %206 = vmatmul.mubr.f32.gmra.mrb[0].mxu0 %v33
    %v207 = vpop.f32.mrb[0].mxu0
    %v208 = vadd.f32 %v134, %v207
    %v209 = vpop.f32.mrb[0].mxu0
    %v210 = vadd.f32 %v138, %v209
    %211 = vmatprep.mubr.f32.mxu0 0.0
    %212 = vmatmul.mubr.f32.gmra.mrb[0].mxu0 %v34
    %v213 = vpop.f32.mrb[0].mxu0
    %v214 = vadd.f32 %v134, %v213
    %v215 = vpop.f32.mrb[0].mxu0
    %v216 = vadd.f32 %v138, %v215
    %217 = vmatprep.mubr.f32.mxu0 0.0
    %218 = vmatmul.mubr.f32.gmra.mrb[0].mxu0 %v35
    %v219 = vpop.f32.mrb[0].mxu0
    %v220 = vadd.f32 %v134, %v219
    %v221 = vpop.f32.mrb[0].mxu0
    %v222 = vadd.f32 %v138, %v221
    %223 = vmatprep.mubr.f32.mxu0 0.0
    %224 = vmatmul.mubr.f32.gmra.mrb[0].mxu0 %v36
    %v225 = vpop.f32.mrb[0].mxu0
    %v226 = vadd.f32 %v134, %v225
    %v227 = vpop.f32.mrb[0].mxu0
    %v228 = vadd.f32 %v138, %v227
    %229 = vmatprep.mubr.f32.mxu0 0.0
    %230 = vmatmul.mubr.f32.gmra.mrb[0].mxu0 %v37
    %v231 = vpop.f32.mrb[0].mxu0
    %v232 = vadd.f32 %v134, %v231
    %v233 = vpop.f32.mrb[0].mxu0
    %v234 = vadd.f32 %v138, %v233
    %235 = vmatprep.mubr.f32.mxu0 0.0
    %236 = vmatmul.mubr.f32.gmra.mrb[0].mxu0 %v38
    %v237 = vpop.f32.mrb[0].mxu0
    %v238 = vadd.f32 %v134, %v237
    %v239 = vpop.f32.mrb[0].mxu0
    %v240 = vadd.f32 %v138, %v239
    %241 = vmatprep.mubr.f32.mxu0 0.0
    %242 = vmatmul.mubr.f32.gmra.mrb[0].mxu0 %v39
    %v243 = vpop.f32.mrb[0].mxu0
    %v244 = vadd.f32 %v134, %v243
    %v245 = vpop.f32.mrb[0].mxu0
    %v246 = vadd.f32 %v138, %v245
    %247 = vmatprep.mubr.f32.mxu0 0.0
    %248 = vmatmul.mubr.f32.gmra.mrb[0].mxu0 %v40
    %v249 = vpop.f32.mrb[0].mxu0
    %v250 = vadd.f32 %v134, %v249
    %v251 = vpop.f32.mrb[0].mxu0
    %v252 = vadd.f32 %v138, %v251
    %253 = vmatprep.mubr.f32.mxu0 0.0
    %254 = vmatmul.mubr.f32.gmra.mrb[0].mxu0 %v41
    %v255 = vpop.f32.mrb[0].mxu0
    %v256 = vadd.f32 %v134, %v255
    %v257 = vpop.f32.mrb[0].mxu0
    %v258 = vadd.f32 %v138, %v257
    %259 = vmatprep.mubr.f32.mxu0 0.0
    %260 = vmatmul.mubr.f32.gmra.mrb[0].mxu0 %v42
    %v261 = vpop.f32.mrb[0].mxu0
    %v262 = vadd.f32 %v134, %v261
    %v263 = vpop.f32.mrb[0].mxu0
    %v264 = vadd.f32 %v138, %v263
    %265 = vmatprep.mubr.f32.mxu0 0.0
    %266 = vmatmul.mubr.f32.gmra.mrb[0].mxu0 %v43
    %v267 = vpop.f32.mrb[0].mxu0
    %v268 = vadd.f32 %v134, %v267
    %v269 = vpop.f32.mrb[0].mxu0
    %v270 = vadd.f32 %v138, %v269
    %271 = vmatprep.mubr.f32.mxu0 0.0
    %272 = vmatmul.mubr.f32.gmra.mrb[0].mxu0 %v44
    %v273 = vpop.f32.mrb[0].mxu0
    %v274 = vadd.f32 %v134, %v273
    %v275 = vpop.f32.mrb[0].mxu0
    %v276 = vadd.f32 %v138, %v275
    %277 = vmatprep.mubr.f32.mxu0 0.0
    %278 = vmatmul.mubr.f32.gmra.mrb[0].mxu0 %v45
    %v279 = vpop.f32.mrb[0].mxu0
    %v280 = vadd.f32 %v134, %v279
    %v281 = vpop.f32.mrb[0].mxu0
    %v282 = vadd.f32 %v138, %v281
    %283 = vmatprep.mubr.f32.mxu0 0.0
    %284 = vmatmul.mubr.f32.gmra.mrb[0].mxu0 %v46
    %v285 = vpop.f32.mrb[0].mxu0
    %v286 = vadd.f32 %v134, %v285
    %v287 = vpop.f32.mrb[0].mxu0
    %v288 = vadd.f32 %v138, %v287
    %289 = vmatprep.mubr.f32.mxu0 0.0
    %290 = vmatmul.mubr.f32.gmra.mrb[0].mxu0 %v47
    %v291 = vpop.f32.mrb[0].mxu0
    %v292 = vadd.f32 %v134, %v291
    %v293 = vpop.f32.mrb[0].mxu0
    %v294 = vadd.f32 %v138, %v293
    %295 = vmatprep.mubr.f32.mxu0 0.0
    %296 = vmatmul.mubr.f32.gmra.mrb[0].mxu0 %v48
    %v297 = vpop.f32.mrb[0].mxu0
    %v298 = vadd.f32 %v134, %v297
    %v299 = vpop.f32.mrb[0].mxu0
    %v300 = vadd.f32 %v138, %v299
    %301 = vmatprep.mubr.f32.mxu0 0.0
    %302 = vmatmul.mubr.f32.gmra.mrb[0].mxu0 %v49
    %v303 = vpop.f32.mrb[0].mxu0
    %v304 = vadd.f32 %v134, %v303
    %v305 = vpop.f32.mrb[0].mxu0
    %v306 = vadd.f32 %v138, %v305
    %307 = vmatprep.mubr.f32.mxu0 0.0
    %308 = vmatmul.mubr.f32.gmra.mrb[0].mxu0 %v50
    %v309 = vpop.f32.mrb[0].mxu0
    %v310 = vadd.f32 %v134, %v309
    %v311 = vpop.f32.mrb[0].mxu0
    %v312 = vadd.f32 %v138, %v311
    %313 = vmatprep.mubr.f32.mxu0 0.0
    %314 = vmatmul.mubr.f32.gmra.mrb[0].mxu0 %v51
    %v315 = vpop.f32.mrb[0].mxu0
    %v316 = vadd.f32 %v134, %v315
    %v317 = vpop.f32.mrb[0].mxu0
    %v318 = vadd.f32 %v138, %v317
    %319 = vmatprep.mubr.f32.mxu0 0.0
    %320 = vmatmul.mubr.f32.gmra.mrb[0].mxu0 %v52
    %v321 = vpop.f32.mrb[0].mxu0
    %v322 = vadd.f32 %v134, %v321
    %v323 = vpop.f32.mrb[0].mxu0
    %v324 = vadd.f32 %v138, %v323
    %325 = vmatprep.mubr.f32.mxu0 0.0
    %326 = vmatmul.mubr.f32.gmra.mrb[0].mxu0 %v53
    %v327 = vpop.f32.mrb[0].mxu0
    %v328 = vadd.f32 %v134, %v327
    %v329 = vpop.f32.mrb[0].mxu0
    %v330 = vadd.f32 %v138, %v329
    %331 = vmatprep.mubr.f32.mxu0 0.0
    %332 = vmatmul.mubr.f32.gmra.mrb[0].mxu0 %v54
    %v333 = vpop.f32.mrb[0].mxu0
    %v334 = vadd.f32 %v134, %v333
    %v335 = vpop.f32.mrb[0].mxu0
    %v336 = vadd.f32 %v138, %v335
    %337 = vmatprep.mubr.f32.mxu0 0.0
    %338 = vmatmul.mubr.f32.gmra.mrb[0].mxu0 %v55
    %v339 = vpop.f32.mrb[0].mxu0
    %v340 = vadd.f32 %v134, %v339
    %v341 = vpop.f32.mrb[0].mxu0
    %v342 = vadd.f32 %v138, %v341
    %343 = vmatprep.mubr.f32.mxu0 0.0
    %344 = vmatmul.mubr.f32.gmra.mrb[0].mxu0 %v56
    %v345 = vpop.f32.mrb[0].mxu0
    %v346 = vadd.f32 %v134, %v345
    %v347 = vpop.f32.mrb[0].mxu0
    %v348 = vadd.f32 %v138, %v347
    %349 = vmatprep.mubr.f32.mxu0 0.0
    %350 = vmatmul.mubr.f32.gmra.mrb[0].mxu0 %v57
    %v351 = vpop.f32.mrb[0].mxu0
    %v352 = vadd.f32 %v134, %v351
    %v353 = vpop.f32.mrb[0].mxu0
    %v354 = vadd.f32 %v138, %v353
    %355 = vmatprep.mubr.f32.mxu0 0.0
    %356 = vmatmul.mubr.f32.gmra.mrb[0].mxu0 %v58
    %v357 = vpop.f32.mrb[0].mxu0
    %v358 = vadd.f32 %v134, %v357
    %v359 = vpop.f32.mrb[0].mxu0
    %v360 = vadd.f32 %v138, %v359
    %361 = vmatprep.mubr.f32.mxu0 0.0
    %362 = vmatmul.mubr.f32.gmra.mrb[0].mxu0 %v59
    %v363 = vpop.f32.mrb[0].mxu0
    %v364 = vadd.f32 %v134, %v363
    %v365 = vpop.f32.mrb[0].mxu0
    %v366 = vadd.f32 %v138, %v365
    %367 = vmatprep.mubr.f32.mxu0 0.0
    %368 = vmatmul.mubr.f32.gmra.mrb[0].mxu0 %v60
    %v369 = vpop.f32.mrb[0].mxu0
    %v370 = vadd.f32 %v134, %v369
    %v371 = vpop.f32.mrb[0].mxu0
    %v372 = vadd.f32 %v138, %v371
    %373 = vmatprep.mubr.f32.mxu0 0.0
    %374 = vmatmul.mubr.f32.gmra.mrb[0].mxu0 %v61
    %v375 = vpop.f32.mrb[0].mxu0
    %v376 = vadd.f32 %v134, %v375
    %v377 = vpop.f32.mrb[0].mxu0
    %v378 = vadd.f32 %v138, %v377
    %379 = vmatprep.mubr.f32.mxu0 0.0
    %380 = vmatmul.mubr.f32.gmra.mrb[0].mxu0 %v62
    %v381 = vpop.f32.mrb[0].mxu0
    %v382 = vadd.f32 %v134, %v381
    %v383 = vpop.f32.mrb[0].mxu0
    %v384 = vadd.f32 %v138, %v383
    %385 = vmatprep.mubr.f32.mxu0 0.0
    %386 = vmatmul.mubr.f32.gmra.mrb[0].mxu0 %v63
    %v387 = vpop.f32.mrb[0].mxu0
    %v388 = vadd.f32 %v134, %v387
    %v389 = vpop.f32.mrb[0].mxu0
    %v390 = vadd.f32 %v138, %v389
    %391 = vmatprep.mubr.f32.mxu0 0.0
    %392 = vmatmul.mubr.f32.gmra.mrb[0].mxu0 %v64
    %v393 = vpop.f32.mrb[0].mxu0
    %v394 = vadd.f32 %v134, %v393
    %v395 = vpop.f32.mrb[0].mxu0
    %v396 = vadd.f32 %v138, %v395
    %397 = vmatprep.mubr.f32.mxu0 0.0
    %398 = vmatmul.mubr.f32.gmra.mrb[0].mxu0 %v65
    %v399 = vpop.f32.mrb[0].mxu0
    %v400 = vadd.f32 %v134, %v399
    %v401 = vpop.f32.mrb[0].mxu0
    %v402 = vadd.f32 %v138, %v401
    %403 = vmatprep.mubr.f32.mxu0 0.0
    %404 = vmatmul.mubr.f32.gmra.mrb[0].mxu0 %v66
    %v405 = vpop.f32.mrb[0].mxu0
    %v406 = vadd.f32 %v134, %v405
    %v407 = vpop.f32.mrb[0].mxu0
    %v408 = vadd.f32 %v138, %v407
    %409 = vmatprep.mubr.f32.mxu0 0.0
    %410 = vmatmul.mubr.f32.gmra.mrb[0].mxu0 %v67
    %v411 = vpop.f32.mrb[0].mxu0
    %v412 = vadd.f32 %v134, %v411
    %v413 = vpop.f32.mrb[0].mxu0
    %v414 = vadd.f32 %v138, %v413
    %415 = vmatprep.mubr.f32.mxu0 0.0
    %416 = vmatmul.mubr.f32.gmra.mrb[0].mxu0 %v68
    %v417 = vpop.f32.mrb[0].mxu0
    %v418 = vadd.f32 %v134, %v417
    %v419 = vpop.f32.mrb[0].mxu0
    %v420 = vadd.f32 %v138, %v419
    %421 = vmatprep.mubr.f32.mxu0 0.0
    %422 = vmatmul.mubr.f32.gmra.mrb[0].mxu0 %v69
    %v423 = vpop.f32.mrb[0].mxu0
    %v424 = vadd.f32 %v134, %v423
    %v425 = vpop.f32.mrb[0].mxu0
    %v426 = vadd.f32 %v138, %v425
    %427 = vmatprep.mubr.f32.mxu0 0.0
    %428 = vmatmul.mubr.f32.gmra.mrb[0].mxu0 %v70
    %v429 = vpop.f32.mrb[0].mxu0
    %v430 = vadd.f32 %v134, %v429
    %v431 = vpop.f32.mrb[0].mxu0
    %v432 = vadd.f32 %v138, %v431
    %433 = vmatprep.mubr.f32.mxu0 0.0
    %434 = vmatmul.mubr.f32.gmra.mrb[0].mxu0 %v71
    %v435 = vpop.f32.mrb[0].mxu0
    %v436 = vadd.f32 %v134, %v435
    %v437 = vpop.f32.mrb[0].mxu0
    %v438 = vadd.f32 %v138, %v437
    %439 = vmatprep.mubr.f32.mxu0 0.0
    %440 = vmatmul.mubr.f32.gmra.mrb[0].mxu0 %v72
    %v441 = vpop.f32.mrb[0].mxu0
    %v442 = vadd.f32 %v134, %v441
    %v443 = vpop.f32.mrb[0].mxu0
    %v444 = vadd.f32 %v138, %v443
    %445 = vmatprep.mubr.f32.mxu0 0.0
    %446 = vmatmul.mubr.f32.gmra.mrb[0].mxu0 %v73
    %v447 = vpop.f32.mrb[0].mxu0
    %v448 = vadd.f32 %v134, %v447
    %v449 = vpop.f32.mrb[0].mxu0
    %v450 = vadd.f32 %v138, %v449
    %451 = vmatprep.mubr.f32.mxu0 0.0
    %452 = vmatmul.mubr.f32.gmra.mrb[0].mxu0 %v74
    %v453 = vpop.f32.mrb[0].mxu0
    %v454 = vadd.f32 %v134, %v453
    %v455 = vpop.f32.mrb[0].mxu0
    %v456 = vadd.f32 %v138, %v455
    %457 = vmatprep.mubr.f32.mxu0 0.0
    %458 = vmatmul.mubr.f32.gmra.mrb[0].mxu0 %v75
    %v459 = vpop.f32.mrb[0].mxu0
    %v460 = vadd.f32 %v134, %v459
    %v461 = vpop.f32.mrb[0].mxu0
    %v462 = vadd.f32 %v138, %v461
    %463 = vmatprep.mubr.f32.mxu0 0.0
    %464 = vmatmul.mubr.f32.gmra.mrb[0].mxu0 %v76
    %v465 = vpop.f32.mrb[0].mxu0
    %v466 = vadd.f32 %v134, %v465
    %v467 = vpop.f32.mrb[0].mxu0
    %v468 = vadd.f32 %v138, %v467
    %469 = vmatprep.mubr.f32.mxu0 0.0
    %470 = vmatmul.mubr.f32.gmra.mrb[0].mxu0 %v77
    %v471 = vpop.f32.mrb[0].mxu0
    %v472 = vadd.f32 %v134, %v471
    %v473 = vpop.f32.mrb[0].mxu0
    %v474 = vadd.f32 %v138, %v473
    %475 = vmatprep.mubr.f32.mxu0 0.0
    %476 = vmatmul.mubr.f32.gmra.mrb[0].mxu0 %v78
    %v477 = vpop.f32.mrb[0].mxu0
    %v478 = vadd.f32 %v134, %v477
    %v479 = vpop.f32.mrb[0].mxu0
    %v480 = vadd.f32 %v138, %v479
    %481 = vmatprep.mubr.f32.mxu0 0.0
    %482 = vmatmul.mubr.f32.gmra.mrb[0].mxu0 %v79
    %v483 = vpop.f32.mrb[0].mxu0
    %v484 = vadd.f32 %v134, %v483
    %v485 = vpop.f32.mrb[0].mxu0
    %v486 = vadd.f32 %v138, %v485
    %487 = vmatprep.mubr.f32.mxu0 0.0
    %488 = vmatmul.mubr.f32.gmra.mrb[0].mxu0 %v80
    %v489 = vpop.f32.mrb[0].mxu0
    %v490 = vadd.f32 %v134, %v489
    %v491 = vpop.f32.mrb[0].mxu0
    %v492 = vadd.f32 %v138, %v491
    %493 = vmatprep.mubr.f32.mxu0 0.0
    %494 = vmatmul.mubr.f32.gmra.mrb[0].mxu0 %v81
    %v495 = vpop.f32.mrb[0].mxu0
    %v496 = vadd.f32 %v134, %v495
    %v497 = vpop.f32.mrb[0].mxu0
    %v498 = vadd.f32 %v138, %v497
    %499 = vmatprep.mubr.f32.mxu0 0.0
    %500 = vmatmul.mubr.f32.gmra.mrb[0].mxu0 %v82
    %v501 = vpop.f32.mrb[0].mxu0
    %v502 = vadd.f32 %v134, %v501
    %v503 = vpop.f32.mrb[0].mxu0
    %v504 = vadd.f32 %v138, %v503
    %505 = vmatprep.mubr.f32.mxu0 0.0
    %506 = vmatmul.mubr.f32.gmra.mrb[0].mxu0 %v83
    %v507 = vpop.f32.mrb[0].mxu0
    %v508 = vadd.f32 %v134, %v507
    %v509 = vpop.f32.mrb[0].mxu0
    %v510 = vadd.f32 %v138, %v509
    %511 = vmatprep.mubr.f32.mxu0 0.0
    %512 = vmatmul.mubr.f32.gmra.mrb[0].mxu0 %v84
    %v513 = vpop.f32.mrb[0].mxu0
    %v514 = vadd.f32 %v134, %v513
    %v515 = vpop.f32.mrb[0].mxu0
    %v516 = vadd.f32 %v138, %v515
    %517 = vmatprep.mubr.f32.mxu0 0.0
    %518 = vmatmul.mubr.f32.gmra.mrb[0].mxu0 %v85
    %v519 = vpop.f32.mrb[0].mxu0
    %v520 = vadd.f32 %v134, %v519
    %v521 = vpop.f32.mrb[0].mxu0
    %v522 = vadd.f32 %v138, %v521
    %523 = vmatprep.mubr.f32.mxu0 0.0
    %524 = vmatmul.mubr.f32.gmra.mrb[0].mxu0 %v86
    %v525 = vpop.f32.mrb[0].mxu0
    %v526 = vadd.f32 %v134, %v525
    %v527 = vpop.f32.mrb[0].mxu0
    %v528 = vadd.f32 %v138, %v527
    %529 = vmatprep.mubr.f32.mxu0 0.0
    %530 = vmatmul.mubr.f32.gmra.mrb[0].mxu0 %v87
    %v531 = vpop.f32.mrb[0].mxu0
    %v532 = vadd.f32 %v134, %v531
    %v533 = vpop.f32.mrb[0].mxu0
    %v534 = vadd.f32 %v138, %v533
    %535 = vmatprep.mubr.f32.mxu0 0.0
    %536 = vmatmul.mubr.f32.gmra.mrb[0].mxu0 %v88
    %v537 = vpop.f32.mrb[0].mxu0
    %v538 = vadd.f32 %v134, %v537
    %v539 = vpop.f32.mrb[0].mxu0
    %v540 = vadd.f32 %v138, %v539
    %541 = vmatprep.mubr.f32.mxu0 0.0
    %542 = vmatmul.mubr.f32.gmra.mrb[0].mxu0 %v89
    %v543 = vpop.f32.mrb[0].mxu0
    %v544 = vadd.f32 %v134, %v543
    %v545 = vpop.f32.mrb[0].mxu0
    %v546 = vadd.f32 %v138, %v545
    %547 = vmatprep.mubr.f32.mxu0 0.0
    %548 = vmatmul.mubr.f32.gmra.mrb[0].mxu0 %v90
    %v549 = vpop.f32.mrb[0].mxu0
    %v550 = vadd.f32 %v134, %v549
    %v551 = vpop.f32.mrb[0].mxu0
    %v552 = vadd.f32 %v138, %v551
    %553 = vmatprep.mubr.f32.mxu0 0.0
    %554 = vmatmul.mubr.f32.gmra.mrb[0].mxu0 %v91
    %v555 = vpop.f32.mrb[0].mxu0
    %v556 = vadd.f32 %v134, %v555
    %v557 = vpop.f32.mrb[0].mxu0
    %v558 = vadd.f32 %v138, %v557
    %559 = vmatprep.mubr.f32.mxu0 0.0
    %560 = vmatmul.mubr.f32.gmra.mrb[0].mxu0 %v92
    %v561 = vpop.f32.mrb[0].mxu0
    %v562 = vadd.f32 %v134, %v561
    %v563 = vpop.f32.mrb[0].mxu0
    %v564 = vadd.f32 %v138, %v563
    %565 = vmatprep.mubr.f32.mxu0 0.0
    %566 = vmatmul.mubr.f32.gmra.mrb[0].mxu0 %v93
    %v567 = vpop.f32.mrb[0].mxu0
    %v568 = vadd.f32 %v134, %v567
    %v569 = vpop.f32.mrb[0].mxu0
    %v570 = vadd.f32 %v138, %v569
    %571 = vmatprep.mubr.f32.mxu0 0.0
    %572 = vmatmul.mubr.f32.gmra.mrb[0].mxu0 %v94
    %v573 = vpop.f32.mrb[0].mxu0
    %v574 = vadd.f32 %v134, %v573
    %v575 = vpop.f32.mrb[0].mxu0
    %v576 = vadd.f32 %v138, %v575
    %577 = vmatprep.mubr.f32.mxu0 0.0
    %578 = vmatmul.mubr.f32.gmra.mrb[0].mxu0 %v95
    %v579 = vpop.f32.mrb[0].mxu0
    %v580 = vadd.f32 %v134, %v579
    %v581 = vpop.f32.mrb[0].mxu0
    %v582 = vadd.f32 %v138, %v581
    %583 = vmatprep.mubr.f32.mxu0 0.0
    %584 = vmatmul.mubr.f32.gmra.mrb[0].mxu0 %v96
    %v585 = vpop.f32.mrb[0].mxu0
    %v586 = vadd.f32 %v134, %v585
    %v587 = vpop.f32.mrb[0].mxu0
    %v588 = vadd.f32 %v138, %v587
    %589 = vdwg.mxu0
    %v590 = vmax.f32 %v208, 0.0
    %v591 = vmax.f32 %v210, 0.0
    %v592 = vmax.f32 %v214, 0.0
    %v593 = vmax.f32 %v216, 0.0
    %v594 = vmax.f32 %v220, 0.0
    %v595 = vmax.f32 %v222, 0.0
    %v596 = vmax.f32 %v226, 0.0
    %v597 = vmax.f32 %v228, 0.0
    %v598 = vmax.f32 %v232, 0.0
    %v599 = vmax.f32 %v234, 0.0
    %v600 = vmax.f32 %v238, 0.0
    %v601 = vmax.f32 %v240, 0.0
    %v602 = vmax.f32 %v244, 0.0
    %v603 = vmax.f32 %v246, 0.0
    %v604 = vmax.f32 %v250, 0.0
    %v605 = vmax.f32 %v252, 0.0
    %v606 = vmax.f32 %v256, 0.0
    %v607 = vmax.f32 %v258, 0.0
    %v608 = vmax.f32 %v262, 0.0
    %v609 = vmax.f32 %v264, 0.0
    %v610 = vmax.f32 %v268, 0.0
    %v611 = vmax.f32 %v270, 0.0
    %v612 = vmax.f32 %v274, 0.0
    %v613 = vmax.f32 %v276, 0.0
    %v614 = vmax.f32 %v280, 0.0
    %v615 = vmax.f32 %v282, 0.0
    %v616 = vmax.f32 %v286, 0.0
    %v617 = vmax.f32 %v288, 0.0
    %v618 = vmax.f32 %v292, 0.0
    %v619 = vmax.f32 %v294, 0.0
    %v620 = vmax.f32 %v298, 0.0
    %v621 = vmax.f32 %v300, 0.0
    %v622 = vmax.f32 %v304, 0.0
    %v623 = vmax.f32 %v306, 0.0
    %v624 = vmax.f32 %v310, 0.0
    %v625 = vmax.f32 %v312, 0.0
    %v626 = vmax.f32 %v316, 0.0
    %v627 = vmax.f32 %v318, 0.0
    %v628 = vmax.f32 %v322, 0.0
    %v629 = vmax.f32 %v324, 0.0
    %v630 = vmax.f32 %v328, 0.0
    %v631 = vmax.f32 %v330, 0.0
    %v632 = vmax.f32 %v334, 0.0
    %v633 = vmax.f32 %v336, 0.0
    %v634 = vmax.f32 %v340, 0.0
    %v635 = vmax.f32 %v342, 0.0
    %v636 = vmax.f32 %v346, 0.0
    %v637 = vmax.f32 %v348, 0.0
    %v638 = vmax.f32 %v352, 0.0
    %v639 = vmax.f32 %v354, 0.0
    %v640 = vmax.f32 %v358, 0.0
    %v641 = vmax.f32 %v360, 0.0
    %v642 = vmax.f32 %v364, 0.0
    %v643 = vmax.f32 %v366, 0.0
    %v644 = vmax.f32 %v370, 0.0
    %v645 = vmax.f32 %v372, 0.0
    %v646 = vmax.f32 %v376, 0.0
    %v647 = vmax.f32 %v378, 0.0
    %v648 = vmax.f32 %v382, 0.0
    %v649 = vmax.f32 %v384, 0.0
    %v650 = vmax.f32 %v388, 0.0
    %v651 = vmax.f32 %v390, 0.0
    %v652 = vmax.f32 %v394, 0.0
    %v653 = vmax.f32 %v396, 0.0
    %v654 = vmax.f32 %v400, 0.0
    %v655 = vmax.f32 %v402, 0.0
    %v656 = vmax.f32 %v406, 0.0
    %v657 = vmax.f32 %v408, 0.0
    %v658 = vmax.f32 %v412, 0.0
    %v659 = vmax.f32 %v414, 0.0
    %v660 = vmax.f32 %v418, 0.0
    %v661 = vmax.f32 %v420, 0.0
    %v662 = vmax.f32 %v424, 0.0
    %v663 = vmax.f32 %v426, 0.0
    %v664 = vmax.f32 %v430, 0.0
    %v665 = vmax.f32 %v432, 0.0
    %v666 = vmax.f32 %v436, 0.0
    %v667 = vmax.f32 %v438, 0.0
    %v668 = vmax.f32 %v442, 0.0
    %v669 = vmax.f32 %v444, 0.0
    %v670 = vmax.f32 %v448, 0.0
    %v671 = vmax.f32 %v450, 0.0
    %v672 = vmax.f32 %v454, 0.0
    %v673 = vmax.f32 %v456, 0.0
    %v674 = vmax.f32 %v460, 0.0
    %v675 = vmax.f32 %v462, 0.0
    %v676 = vmax.f32 %v466, 0.0
    %v677 = vmax.f32 %v468, 0.0
    %v678 = vmax.f32 %v472, 0.0
    %v679 = vmax.f32 %v474, 0.0
    %v680 = vmax.f32 %v478, 0.0
    %v681 = vmax.f32 %v480, 0.0
    %v682 = vmax.f32 %v484, 0.0
    %v683 = vmax.f32 %v486, 0.0
    %v684 = vmax.f32 %v490, 0.0
    %v685 = vmax.f32 %v492, 0.0
    %v686 = vmax.f32 %v496, 0.0
    %v687 = vmax.f32 %v498, 0.0
    %v688 = vmax.f32 %v502, 0.0
    %v689 = vmax.f32 %v504, 0.0
    %v690 = vmax.f32 %v508, 0.0
    %v691 = vmax.f32 %v510, 0.0
    %v692 = vmax.f32 %v514, 0.0
    %v693 = vmax.f32 %v516, 0.0
    %v694 = vmax.f32 %v520, 0.0
    %v695 = vmax.f32 %v522, 0.0
    %v696 = vmax.f32 %v526, 0.0
    %v697 = vmax.f32 %v528, 0.0
    %v698 = vmax.f32 %v532, 0.0
    %v699 = vmax.f32 %v534, 0.0
    %v700 = vmax.f32 %v538, 0.0
    %v701 = vmax.f32 %v540, 0.0
    %v702 = vmax.f32 %v544, 0.0
    %v703 = vmax.f32 %v546, 0.0
    %v704 = vmax.f32 %v550, 0.0
    %v705 = vmax.f32 %v552, 0.0
    %v706 = vmax.f32 %v556, 0.0
    %v707 = vmax.f32 %v558, 0.0
    %v708 = vmax.f32 %v562, 0.0
    %v709 = vmax.f32 %v564, 0.0
    %v710 = vmax.f32 %v568, 0.0
    %v711 = vmax.f32 %v570, 0.0
    %v712 = vmax.f32 %v574, 0.0
    %v713 = vmax.f32 %v576, 0.0
    %v714 = vmax.f32 %v580, 0.0
    %v715 = vmax.f32 %v582, 0.0
    %v716 = vmax.f32 %v586, 0.0
    %v717 = vmax.f32 %v588, 0.0
    %v846 = vcombine.low %v590, %v591
    %v847 = vcombine.high %v590, %v591
    %v849 = vunpack.c.l.s4 1983009808
    %v850 = vunpack.c.0.s8 %v849
    %v851 = vlaneseq
    %v852 = vshrl.u32 %v851, 7
    %v853 = vsub.s32 %v850, %v852
    %v854 = vrot.slane %v846, %v853
    %v856 = vunpack.c.l.s4 1983009808
    %v857 = vunpack.c.0.s8 %v856
    %v858 = vlaneseq
    %v859 = vshrl.u32 %v858, 7
    %v860 = vsub.s32 %v857, %v859
    %v861 = vrot.slane %v847, %v860
    %v862 = vcombine.high %v854, %v854
    %v863 = vcombine.high %v861, %v861
    %v864 = vcombine.low %v592, %v593
    %v865 = vcombine.high %v592, %v593
    %v867 = vunpack.c.l.s4 1983009808
    %v868 = vunpack.c.0.s8 %v867
    %v869 = vlaneseq
    %v870 = vshrl.u32 %v869, 7
    %v871 = vsub.s32 %v868, %v870
    %v872 = vrot.slane %v864, %v871
    %v874 = vunpack.c.l.s4 1983009808
    %v875 = vunpack.c.0.s8 %v874
    %v876 = vlaneseq
    %v877 = vshrl.u32 %v876, 7
    %v878 = vsub.s32 %v875, %v877
    %v879 = vrot.slane %v865, %v878
    %v880 = vcombine.high %v872, %v872
    %v881 = vcombine.high %v879, %v879
    %v882 = vcombine.low %v594, %v595
    %v883 = vcombine.high %v594, %v595
    %v885 = vunpack.c.l.s4 1983009808
    %v886 = vunpack.c.0.s8 %v885
    %v887 = vlaneseq
    %v888 = vshrl.u32 %v887, 7
    %v889 = vsub.s32 %v886, %v888
    %v890 = vrot.slane %v882, %v889
    %v892 = vunpack.c.l.s4 1983009808
    %v893 = vunpack.c.0.s8 %v892
    %v894 = vlaneseq
    %v895 = vshrl.u32 %v894, 7
    %v896 = vsub.s32 %v893, %v895
    %v897 = vrot.slane %v883, %v896
    %v898 = vcombine.high %v890, %v890
    %v899 = vcombine.high %v897, %v897
    %v900 = vcombine.low %v596, %v597
    %v901 = vcombine.high %v596, %v597
    %v903 = vunpack.c.l.s4 1983009808
    %v904 = vunpack.c.0.s8 %v903
    %v905 = vlaneseq
    %v906 = vshrl.u32 %v905, 7
    %v907 = vsub.s32 %v904, %v906
    %v908 = vrot.slane %v900, %v907
    %v910 = vunpack.c.l.s4 1983009808
    %v911 = vunpack.c.0.s8 %v910
    %v912 = vlaneseq
    %v913 = vshrl.u32 %v912, 7
    %v914 = vsub.s32 %v911, %v913
    %v915 = vrot.slane %v901, %v914
    %v916 = vcombine.high %v908, %v908
    %v917 = vcombine.high %v915, %v915
    %v918 = vcombine.low %v598, %v599
    %v919 = vcombine.high %v598, %v599
    %v921 = vunpack.c.l.s4 1983009808
    %v922 = vunpack.c.0.s8 %v921
    %v923 = vlaneseq
    %v924 = vshrl.u32 %v923, 7
    %v925 = vsub.s32 %v922, %v924
    %v926 = vrot.slane %v918, %v925
    %v928 = vunpack.c.l.s4 1983009808
    %v929 = vunpack.c.0.s8 %v928
    %v930 = vlaneseq
    %v931 = vshrl.u32 %v930, 7
    %v932 = vsub.s32 %v929, %v931
    %v933 = vrot.slane %v919, %v932
    %v934 = vcombine.high %v926, %v926
    %v935 = vcombine.high %v933, %v933
    %v936 = vcombine.low %v600, %v601
    %v937 = vcombine.high %v600, %v601
    %v939 = vunpack.c.l.s4 1983009808
    %v940 = vunpack.c.0.s8 %v939
    %v941 = vlaneseq
    %v942 = vshrl.u32 %v941, 7
    %v943 = vsub.s32 %v940, %v942
    %v944 = vrot.slane %v936, %v943
    %v946 = vunpack.c.l.s4 1983009808
    %v947 = vunpack.c.0.s8 %v946
    %v948 = vlaneseq
    %v949 = vshrl.u32 %v948, 7
    %v950 = vsub.s32 %v947, %v949
    %v951 = vrot.slane %v937, %v950
    %v952 = vcombine.high %v944, %v944
    %v953 = vcombine.high %v951, %v951
    %v954 = vcombine.low %v602, %v603
    %v955 = vcombine.high %v602, %v603
    %v957 = vunpack.c.l.s4 1983009808
    %v958 = vunpack.c.0.s8 %v957
    %v959 = vlaneseq
    %v960 = vshrl.u32 %v959, 7
    %v961 = vsub.s32 %v958, %v960
    %v962 = vrot.slane %v954, %v961
    %v964 = vunpack.c.l.s4 1983009808
    %v965 = vunpack.c.0.s8 %v964
    %v966 = vlaneseq
    %v967 = vshrl.u32 %v966, 7
    %v968 = vsub.s32 %v965, %v967
    %v969 = vrot.slane %v955, %v968
    %v970 = vcombine.high %v962, %v962
    %v971 = vcombine.high %v969, %v969
    %v972 = vcombine.low %v604, %v605
    %v973 = vcombine.high %v604, %v605
    %v975 = vunpack.c.l.s4 1983009808
    %v976 = vunpack.c.0.s8 %v975
    %v977 = vlaneseq
    %v978 = vshrl.u32 %v977, 7
    %v979 = vsub.s32 %v976, %v978
    %v980 = vrot.slane %v972, %v979
    %v982 = vunpack.c.l.s4 1983009808
    %v983 = vunpack.c.0.s8 %v982
    %v984 = vlaneseq
    %v985 = vshrl.u32 %v984, 7
    %v986 = vsub.s32 %v983, %v985
    %v987 = vrot.slane %v973, %v986
    %v988 = vcombine.high %v980, %v980
    %v989 = vcombine.high %v987, %v987
    %v990 = vcombine.low %v606, %v607
    %v991 = vcombine.high %v606, %v607
    %v993 = vunpack.c.l.s4 1983009808
    %v994 = vunpack.c.0.s8 %v993
    %v995 = vlaneseq
    %v996 = vshrl.u32 %v995, 7
    %v997 = vsub.s32 %v994, %v996
    %v998 = vrot.slane %v990, %v997
    %v1000 = vunpack.c.l.s4 1983009808
    %v1001 = vunpack.c.0.s8 %v1000
    %v1002 = vlaneseq
    %v1003 = vshrl.u32 %v1002, 7
    %v1004 = vsub.s32 %v1001, %v1003
    %v1005 = vrot.slane %v991, %v1004
    %v1006 = vcombine.high %v998, %v998
    %v1007 = vcombine.high %v1005, %v1005
    %v1008 = vcombine.low %v608, %v609
    %v1009 = vcombine.high %v608, %v609
    %v1011 = vunpack.c.l.s4 1983009808
    %v1012 = vunpack.c.0.s8 %v1011
    %v1013 = vlaneseq
    %v1014 = vshrl.u32 %v1013, 7
    %v1015 = vsub.s32 %v1012, %v1014
    %v1016 = vrot.slane %v1008, %v1015
    %v1018 = vunpack.c.l.s4 1983009808
    %v1019 = vunpack.c.0.s8 %v1018
    %v1020 = vlaneseq
    %v1021 = vshrl.u32 %v1020, 7
    %v1022 = vsub.s32 %v1019, %v1021
    %v1023 = vrot.slane %v1009, %v1022
    %v1024 = vcombine.high %v1016, %v1016
    %v1025 = vcombine.high %v1023, %v1023
    %v1026 = vcombine.low %v610, %v611
    %v1027 = vcombine.high %v610, %v611
    %v1029 = vunpack.c.l.s4 1983009808
    %v1030 = vunpack.c.0.s8 %v1029
    %v1031 = vlaneseq
    %v1032 = vshrl.u32 %v1031, 7
    %v1033 = vsub.s32 %v1030, %v1032
    %v1034 = vrot.slane %v1026, %v1033
    %v1036 = vunpack.c.l.s4 1983009808
    %v1037 = vunpack.c.0.s8 %v1036
    %v1038 = vlaneseq
    %v1039 = vshrl.u32 %v1038, 7
    %v1040 = vsub.s32 %v1037, %v1039
    %v1041 = vrot.slane %v1027, %v1040
    %v1042 = vcombine.high %v1034, %v1034
    %v1043 = vcombine.high %v1041, %v1041
    %v1044 = vcombine.low %v612, %v613
    %v1045 = vcombine.high %v612, %v613
    %v1047 = vunpack.c.l.s4 1983009808
    %v1048 = vunpack.c.0.s8 %v1047
    %v1049 = vlaneseq
    %v1050 = vshrl.u32 %v1049, 7
    %v1051 = vsub.s32 %v1048, %v1050
    %v1052 = vrot.slane %v1044, %v1051
    %v1054 = vunpack.c.l.s4 1983009808
    %v1055 = vunpack.c.0.s8 %v1054
    %v1056 = vlaneseq
    %v1057 = vshrl.u32 %v1056, 7
    %v1058 = vsub.s32 %v1055, %v1057
    %v1059 = vrot.slane %v1045, %v1058
    %v1060 = vcombine.high %v1052, %v1052
    %v1061 = vcombine.high %v1059, %v1059
    %v1062 = vcombine.low %v614, %v615
    %v1063 = vcombine.high %v614, %v615
    %v1065 = vunpack.c.l.s4 1983009808
    %v1066 = vunpack.c.0.s8 %v1065
    %v1067 = vlaneseq
    %v1068 = vshrl.u32 %v1067, 7
    %v1069 = vsub.s32 %v1066, %v1068
    %v1070 = vrot.slane %v1062, %v1069
    %v1072 = vunpack.c.l.s4 1983009808
    %v1073 = vunpack.c.0.s8 %v1072
    %v1074 = vlaneseq
    %v1075 = vshrl.u32 %v1074, 7
    %v1076 = vsub.s32 %v1073, %v1075
    %v1077 = vrot.slane %v1063, %v1076
    %v1078 = vcombine.high %v1070, %v1070
    %v1079 = vcombine.high %v1077, %v1077
    %v1080 = vcombine.low %v616, %v617
    %v1081 = vcombine.high %v616, %v617
    %v1083 = vunpack.c.l.s4 1983009808
    %v1084 = vunpack.c.0.s8 %v1083
    %v1085 = vlaneseq
    %v1086 = vshrl.u32 %v1085, 7
    %v1087 = vsub.s32 %v1084, %v1086
    %v1088 = vrot.slane %v1080, %v1087
    %v1090 = vunpack.c.l.s4 1983009808
    %v1091 = vunpack.c.0.s8 %v1090
    %v1092 = vlaneseq
    %v1093 = vshrl.u32 %v1092, 7
    %v1094 = vsub.s32 %v1091, %v1093
    %v1095 = vrot.slane %v1081, %v1094
    %v1096 = vcombine.high %v1088, %v1088
    %v1097 = vcombine.high %v1095, %v1095
    %v1098 = vcombine.low %v618, %v619
    %v1099 = vcombine.high %v618, %v619
    %v1101 = vunpack.c.l.s4 1983009808
    %v1102 = vunpack.c.0.s8 %v1101
    %v1103 = vlaneseq
    %v1104 = vshrl.u32 %v1103, 7
    %v1105 = vsub.s32 %v1102, %v1104
    %v1106 = vrot.slane %v1098, %v1105
    %v1108 = vunpack.c.l.s4 1983009808
    %v1109 = vunpack.c.0.s8 %v1108
    %v1110 = vlaneseq
    %v1111 = vshrl.u32 %v1110, 7
    %v1112 = vsub.s32 %v1109, %v1111
    %v1113 = vrot.slane %v1099, %v1112
    %v1114 = vcombine.high %v1106, %v1106
    %v1115 = vcombine.high %v1113, %v1113
    %v1116 = vcombine.low %v620, %v621
    %v1117 = vcombine.high %v620, %v621
    %v1119 = vunpack.c.l.s4 1983009808
    %v1120 = vunpack.c.0.s8 %v1119
    %v1121 = vlaneseq
    %v1122 = vshrl.u32 %v1121, 7
    %v1123 = vsub.s32 %v1120, %v1122
    %v1124 = vrot.slane %v1116, %v1123
    %v1126 = vunpack.c.l.s4 1983009808
    %v1127 = vunpack.c.0.s8 %v1126
    %v1128 = vlaneseq
    %v1129 = vshrl.u32 %v1128, 7
    %v1130 = vsub.s32 %v1127, %v1129
    %v1131 = vrot.slane %v1117, %v1130
    %v1132 = vcombine.high %v1124, %v1124
    %v1133 = vcombine.high %v1131, %v1131
    %v1134 = vcombine.low %v622, %v623
    %v1135 = vcombine.high %v622, %v623
    %v1137 = vunpack.c.l.s4 1983009808
    %v1138 = vunpack.c.0.s8 %v1137
    %v1139 = vlaneseq
    %v1140 = vshrl.u32 %v1139, 7
    %v1141 = vsub.s32 %v1138, %v1140
    %v1142 = vrot.slane %v1134, %v1141
    %v1144 = vunpack.c.l.s4 1983009808
    %v1145 = vunpack.c.0.s8 %v1144
    %v1146 = vlaneseq
    %v1147 = vshrl.u32 %v1146, 7
    %v1148 = vsub.s32 %v1145, %v1147
    %v1149 = vrot.slane %v1135, %v1148
    %v1150 = vcombine.high %v1142, %v1142
    %v1151 = vcombine.high %v1149, %v1149
    %v1152 = vcombine.low %v624, %v625
    %v1153 = vcombine.high %v624, %v625
    %v1155 = vunpack.c.l.s4 1983009808
    %v1156 = vunpack.c.0.s8 %v1155
    %v1157 = vlaneseq
    %v1158 = vshrl.u32 %v1157, 7
    %v1159 = vsub.s32 %v1156, %v1158
    %v1160 = vrot.slane %v1152, %v1159
    %v1162 = vunpack.c.l.s4 1983009808
    %v1163 = vunpack.c.0.s8 %v1162
    %v1164 = vlaneseq
    %v1165 = vshrl.u32 %v1164, 7
    %v1166 = vsub.s32 %v1163, %v1165
    %v1167 = vrot.slane %v1153, %v1166
    %v1168 = vcombine.high %v1160, %v1160
    %v1169 = vcombine.high %v1167, %v1167
    %v1170 = vcombine.low %v626, %v627
    %v1171 = vcombine.high %v626, %v627
    %v1173 = vunpack.c.l.s4 1983009808
    %v1174 = vunpack.c.0.s8 %v1173
    %v1175 = vlaneseq
    %v1176 = vshrl.u32 %v1175, 7
    %v1177 = vsub.s32 %v1174, %v1176
    %v1178 = vrot.slane %v1170, %v1177
    %v1180 = vunpack.c.l.s4 1983009808
    %v1181 = vunpack.c.0.s8 %v1180
    %v1182 = vlaneseq
    %v1183 = vshrl.u32 %v1182, 7
    %v1184 = vsub.s32 %v1181, %v1183
    %v1185 = vrot.slane %v1171, %v1184
    %v1186 = vcombine.high %v1178, %v1178
    %v1187 = vcombine.high %v1185, %v1185
    %v1188 = vcombine.low %v628, %v629
    %v1189 = vcombine.high %v628, %v629
    %v1191 = vunpack.c.l.s4 1983009808
    %v1192 = vunpack.c.0.s8 %v1191
    %v1193 = vlaneseq
    %v1194 = vshrl.u32 %v1193, 7
    %v1195 = vsub.s32 %v1192, %v1194
    %v1196 = vrot.slane %v1188, %v1195
    %v1198 = vunpack.c.l.s4 1983009808
    %v1199 = vunpack.c.0.s8 %v1198
    %v1200 = vlaneseq
    %v1201 = vshrl.u32 %v1200, 7
    %v1202 = vsub.s32 %v1199, %v1201
    %v1203 = vrot.slane %v1189, %v1202
    %v1204 = vcombine.high %v1196, %v1196
    %v1205 = vcombine.high %v1203, %v1203
    %v1206 = vcombine.low %v630, %v631
    %v1207 = vcombine.high %v630, %v631
    %v1209 = vunpack.c.l.s4 1983009808
    %v1210 = vunpack.c.0.s8 %v1209
    %v1211 = vlaneseq
    %v1212 = vshrl.u32 %v1211, 7
    %v1213 = vsub.s32 %v1210, %v1212
    %v1214 = vrot.slane %v1206, %v1213
    %v1216 = vunpack.c.l.s4 1983009808
    %v1217 = vunpack.c.0.s8 %v1216
    %v1218 = vlaneseq
    %v1219 = vshrl.u32 %v1218, 7
    %v1220 = vsub.s32 %v1217, %v1219
    %v1221 = vrot.slane %v1207, %v1220
    %v1222 = vcombine.high %v1214, %v1214
    %v1223 = vcombine.high %v1221, %v1221
    %v1224 = vcombine.low %v632, %v633
    %v1225 = vcombine.high %v632, %v633
    %v1227 = vunpack.c.l.s4 1983009808
    %v1228 = vunpack.c.0.s8 %v1227
    %v1229 = vlaneseq
    %v1230 = vshrl.u32 %v1229, 7
    %v1231 = vsub.s32 %v1228, %v1230
    %v1232 = vrot.slane %v1224, %v1231
    %v1234 = vunpack.c.l.s4 1983009808
    %v1235 = vunpack.c.0.s8 %v1234
    %v1236 = vlaneseq
    %v1237 = vshrl.u32 %v1236, 7
    %v1238 = vsub.s32 %v1235, %v1237
    %v1239 = vrot.slane %v1225, %v1238
    %v1240 = vcombine.high %v1232, %v1232
    %v1241 = vcombine.high %v1239, %v1239
    %v1242 = vcombine.low %v634, %v635
    %v1243 = vcombine.high %v634, %v635
    %v1245 = vunpack.c.l.s4 1983009808
    %v1246 = vunpack.c.0.s8 %v1245
    %v1247 = vlaneseq
    %v1248 = vshrl.u32 %v1247, 7
    %v1249 = vsub.s32 %v1246, %v1248
    %v1250 = vrot.slane %v1242, %v1249
    %v1252 = vunpack.c.l.s4 1983009808
    %v1253 = vunpack.c.0.s8 %v1252
    %v1254 = vlaneseq
    %v1255 = vshrl.u32 %v1254, 7
    %v1256 = vsub.s32 %v1253, %v1255
    %v1257 = vrot.slane %v1243, %v1256
    %v1258 = vcombine.high %v1250, %v1250
    %v1259 = vcombine.high %v1257, %v1257
    %v1260 = vcombine.low %v636, %v637
    %v1261 = vcombine.high %v636, %v637
    %v1263 = vunpack.c.l.s4 1983009808
    %v1264 = vunpack.c.0.s8 %v1263
    %v1265 = vlaneseq
    %v1266 = vshrl.u32 %v1265, 7
    %v1267 = vsub.s32 %v1264, %v1266
    %v1268 = vrot.slane %v1260, %v1267
    %v1270 = vunpack.c.l.s4 1983009808
    %v1271 = vunpack.c.0.s8 %v1270
    %v1272 = vlaneseq
    %v1273 = vshrl.u32 %v1272, 7
    %v1274 = vsub.s32 %v1271, %v1273
    %v1275 = vrot.slane %v1261, %v1274
    %v1276 = vcombine.high %v1268, %v1268
    %v1277 = vcombine.high %v1275, %v1275
    %v1278 = vcombine.low %v638, %v639
    %v1279 = vcombine.high %v638, %v639
    %v1281 = vunpack.c.l.s4 1983009808
    %v1282 = vunpack.c.0.s8 %v1281
    %v1283 = vlaneseq
    %v1284 = vshrl.u32 %v1283, 7
    %v1285 = vsub.s32 %v1282, %v1284
    %v1286 = vrot.slane %v1278, %v1285
    %v1288 = vunpack.c.l.s4 1983009808
    %v1289 = vunpack.c.0.s8 %v1288
    %v1290 = vlaneseq
    %v1291 = vshrl.u32 %v1290, 7
    %v1292 = vsub.s32 %v1289, %v1291
    %v1293 = vrot.slane %v1279, %v1292
    %v1294 = vcombine.high %v1286, %v1286
    %v1295 = vcombine.high %v1293, %v1293
    %v1296 = vcombine.low %v640, %v641
    %v1297 = vcombine.high %v640, %v641
    %v1299 = vunpack.c.l.s4 1983009808
    %v1300 = vunpack.c.0.s8 %v1299
    %v1301 = vlaneseq
    %v1302 = vshrl.u32 %v1301, 7
    %v1303 = vsub.s32 %v1300, %v1302
    %v1304 = vrot.slane %v1296, %v1303
    %v1306 = vunpack.c.l.s4 1983009808
    %v1307 = vunpack.c.0.s8 %v1306
    %v1308 = vlaneseq
    %v1309 = vshrl.u32 %v1308, 7
    %v1310 = vsub.s32 %v1307, %v1309
    %v1311 = vrot.slane %v1297, %v1310
    %v1312 = vcombine.high %v1304, %v1304
    %v1313 = vcombine.high %v1311, %v1311
    %v1314 = vcombine.low %v642, %v643
    %v1315 = vcombine.high %v642, %v643
    %v1317 = vunpack.c.l.s4 1983009808
    %v1318 = vunpack.c.0.s8 %v1317
    %v1319 = vlaneseq
    %v1320 = vshrl.u32 %v1319, 7
    %v1321 = vsub.s32 %v1318, %v1320
    %v1322 = vrot.slane %v1314, %v1321
    %v1324 = vunpack.c.l.s4 1983009808
    %v1325 = vunpack.c.0.s8 %v1324
    %v1326 = vlaneseq
    %v1327 = vshrl.u32 %v1326, 7
    %v1328 = vsub.s32 %v1325, %v1327
    %v1329 = vrot.slane %v1315, %v1328
    %v1330 = vcombine.high %v1322, %v1322
    %v1331 = vcombine.high %v1329, %v1329
    %v1332 = vcombine.low %v644, %v645
    %v1333 = vcombine.high %v644, %v645
    %v1335 = vunpack.c.l.s4 1983009808
    %v1336 = vunpack.c.0.s8 %v1335
    %v1337 = vlaneseq
    %v1338 = vshrl.u32 %v1337, 7
    %v1339 = vsub.s32 %v1336, %v1338
    %v1340 = vrot.slane %v1332, %v1339
    %v1342 = vunpack.c.l.s4 1983009808
    %v1343 = vunpack.c.0.s8 %v1342
    %v1344 = vlaneseq
    %v1345 = vshrl.u32 %v1344, 7
    %v1346 = vsub.s32 %v1343, %v1345
    %v1347 = vrot.slane %v1333, %v1346
    %v1348 = vcombine.high %v1340, %v1340
    %v1349 = vcombine.high %v1347, %v1347
    %v1350 = vcombine.low %v646, %v647
    %v1351 = vcombine.high %v646, %v647
    %v1353 = vunpack.c.l.s4 1983009808
    %v1354 = vunpack.c.0.s8 %v1353
    %v1355 = vlaneseq
    %v1356 = vshrl.u32 %v1355, 7
    %v1357 = vsub.s32 %v1354, %v1356
    %v1358 = vrot.slane %v1350, %v1357
    %v1360 = vunpack.c.l.s4 1983009808
    %v1361 = vunpack.c.0.s8 %v1360
    %v1362 = vlaneseq
    %v1363 = vshrl.u32 %v1362, 7
    %v1364 = vsub.s32 %v1361, %v1363
    %v1365 = vrot.slane %v1351, %v1364
    %v1366 = vcombine.high %v1358, %v1358
    %v1367 = vcombine.high %v1365, %v1365
    %v1368 = vcombine.low %v648, %v649
    %v1369 = vcombine.high %v648, %v649
    %v1371 = vunpack.c.l.s4 1983009808
    %v1372 = vunpack.c.0.s8 %v1371
    %v1373 = vlaneseq
    %v1374 = vshrl.u32 %v1373, 7
    %v1375 = vsub.s32 %v1372, %v1374
    %v1376 = vrot.slane %v1368, %v1375
    %v1378 = vunpack.c.l.s4 1983009808
    %v1379 = vunpack.c.0.s8 %v1378
    %v1380 = vlaneseq
    %v1381 = vshrl.u32 %v1380, 7
    %v1382 = vsub.s32 %v1379, %v1381
    %v1383 = vrot.slane %v1369, %v1382
    %v1384 = vcombine.high %v1376, %v1376
    %v1385 = vcombine.high %v1383, %v1383
    %v1386 = vcombine.low %v650, %v651
    %v1387 = vcombine.high %v650, %v651
    %v1389 = vunpack.c.l.s4 1983009808
    %v1390 = vunpack.c.0.s8 %v1389
    %v1391 = vlaneseq
    %v1392 = vshrl.u32 %v1391, 7
    %v1393 = vsub.s32 %v1390, %v1392
    %v1394 = vrot.slane %v1386, %v1393
    %v1396 = vunpack.c.l.s4 1983009808
    %v1397 = vunpack.c.0.s8 %v1396
    %v1398 = vlaneseq
    %v1399 = vshrl.u32 %v1398, 7
    %v1400 = vsub.s32 %v1397, %v1399
    %v1401 = vrot.slane %v1387, %v1400
    %v1402 = vcombine.high %v1394, %v1394
    %v1403 = vcombine.high %v1401, %v1401
    %v1404 = vcombine.low %v652, %v653
    %v1405 = vcombine.high %v652, %v653
    %v1407 = vunpack.c.l.s4 1983009808
    %v1408 = vunpack.c.0.s8 %v1407
    %v1409 = vlaneseq
    %v1410 = vshrl.u32 %v1409, 7
    %v1411 = vsub.s32 %v1408, %v1410
    %v1412 = vrot.slane %v1404, %v1411
    %v1414 = vunpack.c.l.s4 1983009808
    %v1415 = vunpack.c.0.s8 %v1414
    %v1416 = vlaneseq
    %v1417 = vshrl.u32 %v1416, 7
    %v1418 = vsub.s32 %v1415, %v1417
    %v1419 = vrot.slane %v1405, %v1418
    %v1420 = vcombine.high %v1412, %v1412
    %v1421 = vcombine.high %v1419, %v1419
    %v1422 = vcombine.low %v654, %v655
    %v1423 = vcombine.high %v654, %v655
    %v1425 = vunpack.c.l.s4 1983009808
    %v1426 = vunpack.c.0.s8 %v1425
    %v1427 = vlaneseq
    %v1428 = vshrl.u32 %v1427, 7
    %v1429 = vsub.s32 %v1426, %v1428
    %v1430 = vrot.slane %v1422, %v1429
    %v1432 = vunpack.c.l.s4 1983009808
    %v1433 = vunpack.c.0.s8 %v1432
    %v1434 = vlaneseq
    %v1435 = vshrl.u32 %v1434, 7
    %v1436 = vsub.s32 %v1433, %v1435
    %v1437 = vrot.slane %v1423, %v1436
    %v1438 = vcombine.high %v1430, %v1430
    %v1439 = vcombine.high %v1437, %v1437
    %v1440 = vcombine.low %v656, %v657
    %v1441 = vcombine.high %v656, %v657
    %v1443 = vunpack.c.l.s4 1983009808
    %v1444 = vunpack.c.0.s8 %v1443
    %v1445 = vlaneseq
    %v1446 = vshrl.u32 %v1445, 7
    %v1447 = vsub.s32 %v1444, %v1446
    %v1448 = vrot.slane %v1440, %v1447
    %v1450 = vunpack.c.l.s4 1983009808
    %v1451 = vunpack.c.0.s8 %v1450
    %v1452 = vlaneseq
    %v1453 = vshrl.u32 %v1452, 7
    %v1454 = vsub.s32 %v1451, %v1453
    %v1455 = vrot.slane %v1441, %v1454
    %v1456 = vcombine.high %v1448, %v1448
    %v1457 = vcombine.high %v1455, %v1455
    %v1458 = vcombine.low %v658, %v659
    %v1459 = vcombine.high %v658, %v659
    %v1461 = vunpack.c.l.s4 1983009808
    %v1462 = vunpack.c.0.s8 %v1461
    %v1463 = vlaneseq
    %v1464 = vshrl.u32 %v1463, 7
    %v1465 = vsub.s32 %v1462, %v1464
    %v1466 = vrot.slane %v1458, %v1465
    %v1468 = vunpack.c.l.s4 1983009808
    %v1469 = vunpack.c.0.s8 %v1468
    %v1470 = vlaneseq
    %v1471 = vshrl.u32 %v1470, 7
    %v1472 = vsub.s32 %v1469, %v1471
    %v1473 = vrot.slane %v1459, %v1472
    %v1474 = vcombine.high %v1466, %v1466
    %v1475 = vcombine.high %v1473, %v1473
    %v1476 = vcombine.low %v660, %v661
    %v1477 = vcombine.high %v660, %v661
    %v1479 = vunpack.c.l.s4 1983009808
    %v1480 = vunpack.c.0.s8 %v1479
    %v1481 = vlaneseq
    %v1482 = vshrl.u32 %v1481, 7
    %v1483 = vsub.s32 %v1480, %v1482
    %v1484 = vrot.slane %v1476, %v1483
    %v1486 = vunpack.c.l.s4 1983009808
    %v1487 = vunpack.c.0.s8 %v1486
    %v1488 = vlaneseq
    %v1489 = vshrl.u32 %v1488, 7
    %v1490 = vsub.s32 %v1487, %v1489
    %v1491 = vrot.slane %v1477, %v1490
    %v1492 = vcombine.high %v1484, %v1484
    %v1493 = vcombine.high %v1491, %v1491
    %v1494 = vcombine.low %v662, %v663
    %v1495 = vcombine.high %v662, %v663
    %v1497 = vunpack.c.l.s4 1983009808
    %v1498 = vunpack.c.0.s8 %v1497
    %v1499 = vlaneseq
    %v1500 = vshrl.u32 %v1499, 7
    %v1501 = vsub.s32 %v1498, %v1500
    %v1502 = vrot.slane %v1494, %v1501
    %v1504 = vunpack.c.l.s4 1983009808
    %v1505 = vunpack.c.0.s8 %v1504
    %v1506 = vlaneseq
    %v1507 = vshrl.u32 %v1506, 7
    %v1508 = vsub.s32 %v1505, %v1507
    %v1509 = vrot.slane %v1495, %v1508
    %v1510 = vcombine.high %v1502, %v1502
    %v1511 = vcombine.high %v1509, %v1509
    %v1512 = vcombine.low %v664, %v665
    %v1513 = vcombine.high %v664, %v665
    %v1515 = vunpack.c.l.s4 1983009808
    %v1516 = vunpack.c.0.s8 %v1515
    %v1517 = vlaneseq
    %v1518 = vshrl.u32 %v1517, 7
    %v1519 = vsub.s32 %v1516, %v1518
    %v1520 = vrot.slane %v1512, %v1519
    %v1522 = vunpack.c.l.s4 1983009808
    %v1523 = vunpack.c.0.s8 %v1522
    %v1524 = vlaneseq
    %v1525 = vshrl.u32 %v1524, 7
    %v1526 = vsub.s32 %v1523, %v1525
    %v1527 = vrot.slane %v1513, %v1526
    %v1528 = vcombine.high %v1520, %v1520
    %v1529 = vcombine.high %v1527, %v1527
    %v1530 = vcombine.low %v666, %v667
    %v1531 = vcombine.high %v666, %v667
    %v1533 = vunpack.c.l.s4 1983009808
    %v1534 = vunpack.c.0.s8 %v1533
    %v1535 = vlaneseq
    %v1536 = vshrl.u32 %v1535, 7
    %v1537 = vsub.s32 %v1534, %v1536
    %v1538 = vrot.slane %v1530, %v1537
    %v1540 = vunpack.c.l.s4 1983009808
    %v1541 = vunpack.c.0.s8 %v1540
    %v1542 = vlaneseq
    %v1543 = vshrl.u32 %v1542, 7
    %v1544 = vsub.s32 %v1541, %v1543
    %v1545 = vrot.slane %v1531, %v1544
    %v1546 = vcombine.high %v1538, %v1538
    %v1547 = vcombine.high %v1545, %v1545
    %v1548 = vcombine.low %v668, %v669
    %v1549 = vcombine.high %v668, %v669
    %v1551 = vunpack.c.l.s4 1983009808
    %v1552 = vunpack.c.0.s8 %v1551
    %v1553 = vlaneseq
    %v1554 = vshrl.u32 %v1553, 7
    %v1555 = vsub.s32 %v1552, %v1554
    %v1556 = vrot.slane %v1548, %v1555
    %v1558 = vunpack.c.l.s4 1983009808
    %v1559 = vunpack.c.0.s8 %v1558
    %v1560 = vlaneseq
    %v1561 = vshrl.u32 %v1560, 7
    %v1562 = vsub.s32 %v1559, %v1561
    %v1563 = vrot.slane %v1549, %v1562
    %v1564 = vcombine.high %v1556, %v1556
    %v1565 = vcombine.high %v1563, %v1563
    %v1566 = vcombine.low %v670, %v671
    %v1567 = vcombine.high %v670, %v671
    %v1569 = vunpack.c.l.s4 1983009808
    %v1570 = vunpack.c.0.s8 %v1569
    %v1571 = vlaneseq
    %v1572 = vshrl.u32 %v1571, 7
    %v1573 = vsub.s32 %v1570, %v1572
    %v1574 = vrot.slane %v1566, %v1573
    %v1576 = vunpack.c.l.s4 1983009808
    %v1577 = vunpack.c.0.s8 %v1576
    %v1578 = vlaneseq
    %v1579 = vshrl.u32 %v1578, 7
    %v1580 = vsub.s32 %v1577, %v1579
    %v1581 = vrot.slane %v1567, %v1580
    %v1582 = vcombine.high %v1574, %v1574
    %v1583 = vcombine.high %v1581, %v1581
    %v1584 = vcombine.low %v672, %v673
    %v1585 = vcombine.high %v672, %v673
    %v1587 = vunpack.c.l.s4 1983009808
    %v1588 = vunpack.c.0.s8 %v1587
    %v1589 = vlaneseq
    %v1590 = vshrl.u32 %v1589, 7
    %v1591 = vsub.s32 %v1588, %v1590
    %v1592 = vrot.slane %v1584, %v1591
    %v1594 = vunpack.c.l.s4 1983009808
    %v1595 = vunpack.c.0.s8 %v1594
    %v1596 = vlaneseq
    %v1597 = vshrl.u32 %v1596, 7
    %v1598 = vsub.s32 %v1595, %v1597
    %v1599 = vrot.slane %v1585, %v1598
    %v1600 = vcombine.high %v1592, %v1592
    %v1601 = vcombine.high %v1599, %v1599
    %v1602 = vcombine.low %v674, %v675
    %v1603 = vcombine.high %v674, %v675
    %v1605 = vunpack.c.l.s4 1983009808
    %v1606 = vunpack.c.0.s8 %v1605
    %v1607 = vlaneseq
    %v1608 = vshrl.u32 %v1607, 7
    %v1609 = vsub.s32 %v1606, %v1608
    %v1610 = vrot.slane %v1602, %v1609
    %v1612 = vunpack.c.l.s4 1983009808
    %v1613 = vunpack.c.0.s8 %v1612
    %v1614 = vlaneseq
    %v1615 = vshrl.u32 %v1614, 7
    %v1616 = vsub.s32 %v1613, %v1615
    %v1617 = vrot.slane %v1603, %v1616
    %v1618 = vcombine.high %v1610, %v1610
    %v1619 = vcombine.high %v1617, %v1617
    %v1620 = vcombine.low %v676, %v677
    %v1621 = vcombine.high %v676, %v677
    %v1623 = vunpack.c.l.s4 1983009808
    %v1624 = vunpack.c.0.s8 %v1623
    %v1625 = vlaneseq
    %v1626 = vshrl.u32 %v1625, 7
    %v1627 = vsub.s32 %v1624, %v1626
    %v1628 = vrot.slane %v1620, %v1627
    %v1630 = vunpack.c.l.s4 1983009808
    %v1631 = vunpack.c.0.s8 %v1630
    %v1632 = vlaneseq
    %v1633 = vshrl.u32 %v1632, 7
    %v1634 = vsub.s32 %v1631, %v1633
    %v1635 = vrot.slane %v1621, %v1634
    %v1636 = vcombine.high %v1628, %v1628
    %v1637 = vcombine.high %v1635, %v1635
    %v1638 = vcombine.low %v678, %v679
    %v1639 = vcombine.high %v678, %v679
    %v1641 = vunpack.c.l.s4 1983009808
    %v1642 = vunpack.c.0.s8 %v1641
    %v1643 = vlaneseq
    %v1644 = vshrl.u32 %v1643, 7
    %v1645 = vsub.s32 %v1642, %v1644
    %v1646 = vrot.slane %v1638, %v1645
    %v1648 = vunpack.c.l.s4 1983009808
    %v1649 = vunpack.c.0.s8 %v1648
    %v1650 = vlaneseq
    %v1651 = vshrl.u32 %v1650, 7
    %v1652 = vsub.s32 %v1649, %v1651
    %v1653 = vrot.slane %v1639, %v1652
    %v1654 = vcombine.high %v1646, %v1646
    %v1655 = vcombine.high %v1653, %v1653
    %v1656 = vcombine.low %v680, %v681
    %v1657 = vcombine.high %v680, %v681
    %v1659 = vunpack.c.l.s4 1983009808
    %v1660 = vunpack.c.0.s8 %v1659
    %v1661 = vlaneseq
    %v1662 = vshrl.u32 %v1661, 7
    %v1663 = vsub.s32 %v1660, %v1662
    %v1664 = vrot.slane %v1656, %v1663
    %v1666 = vunpack.c.l.s4 1983009808
    %v1667 = vunpack.c.0.s8 %v1666
    %v1668 = vlaneseq
    %v1669 = vshrl.u32 %v1668, 7
    %v1670 = vsub.s32 %v1667, %v1669
    %v1671 = vrot.slane %v1657, %v1670
    %v1672 = vcombine.high %v1664, %v1664
    %v1673 = vcombine.high %v1671, %v1671
    %v1674 = vcombine.low %v682, %v683
    %v1675 = vcombine.high %v682, %v683
    %v1677 = vunpack.c.l.s4 1983009808
    %v1678 = vunpack.c.0.s8 %v1677
    %v1679 = vlaneseq
    %v1680 = vshrl.u32 %v1679, 7
    %v1681 = vsub.s32 %v1678, %v1680
    %v1682 = vrot.slane %v1674, %v1681
    %v1684 = vunpack.c.l.s4 1983009808
    %v1685 = vunpack.c.0.s8 %v1684
    %v1686 = vlaneseq
    %v1687 = vshrl.u32 %v1686, 7
    %v1688 = vsub.s32 %v1685, %v1687
    %v1689 = vrot.slane %v1675, %v1688
    %v1690 = vcombine.high %v1682, %v1682
    %v1691 = vcombine.high %v1689, %v1689
    %v1692 = vcombine.low %v684, %v685
    %v1693 = vcombine.high %v684, %v685
    %v1695 = vunpack.c.l.s4 1983009808
    %v1696 = vunpack.c.0.s8 %v1695
    %v1697 = vlaneseq
    %v1698 = vshrl.u32 %v1697, 7
    %v1699 = vsub.s32 %v1696, %v1698
    %v1700 = vrot.slane %v1692, %v1699
    %v1702 = vunpack.c.l.s4 1983009808
    %v1703 = vunpack.c.0.s8 %v1702
    %v1704 = vlaneseq
    %v1705 = vshrl.u32 %v1704, 7
    %v1706 = vsub.s32 %v1703, %v1705
    %v1707 = vrot.slane %v1693, %v1706
    %v1708 = vcombine.high %v1700, %v1700
    %v1709 = vcombine.high %v1707, %v1707
    %v1710 = vcombine.low %v686, %v687
    %v1711 = vcombine.high %v686, %v687
    %v1713 = vunpack.c.l.s4 1983009808
    %v1714 = vunpack.c.0.s8 %v1713
    %v1715 = vlaneseq
    %v1716 = vshrl.u32 %v1715, 7
    %v1717 = vsub.s32 %v1714, %v1716
    %v1718 = vrot.slane %v1710, %v1717
    %v1720 = vunpack.c.l.s4 1983009808
    %v1721 = vunpack.c.0.s8 %v1720
    %v1722 = vlaneseq
    %v1723 = vshrl.u32 %v1722, 7
    %v1724 = vsub.s32 %v1721, %v1723
    %v1725 = vrot.slane %v1711, %v1724
    %v1726 = vcombine.high %v1718, %v1718
    %v1727 = vcombine.high %v1725, %v1725
    %v1728 = vcombine.low %v688, %v689
    %v1729 = vcombine.high %v688, %v689
    %v1731 = vunpack.c.l.s4 1983009808
    %v1732 = vunpack.c.0.s8 %v1731
    %v1733 = vlaneseq
    %v1734 = vshrl.u32 %v1733, 7
    %v1735 = vsub.s32 %v1732, %v1734
    %v1736 = vrot.slane %v1728, %v1735
    %v1738 = vunpack.c.l.s4 1983009808
    %v1739 = vunpack.c.0.s8 %v1738
    %v1740 = vlaneseq
    %v1741 = vshrl.u32 %v1740, 7
    %v1742 = vsub.s32 %v1739, %v1741
    %v1743 = vrot.slane %v1729, %v1742
    %v1744 = vcombine.high %v1736, %v1736
    %v1745 = vcombine.high %v1743, %v1743
    %v1746 = vcombine.low %v690, %v691
    %v1747 = vcombine.high %v690, %v691
    %v1749 = vunpack.c.l.s4 1983009808
    %v1750 = vunpack.c.0.s8 %v1749
    %v1751 = vlaneseq
    %v1752 = vshrl.u32 %v1751, 7
    %v1753 = vsub.s32 %v1750, %v1752
    %v1754 = vrot.slane %v1746, %v1753
    %v1756 = vunpack.c.l.s4 1983009808
    %v1757 = vunpack.c.0.s8 %v1756
    %v1758 = vlaneseq
    %v1759 = vshrl.u32 %v1758, 7
    %v1760 = vsub.s32 %v1757, %v1759
    %v1761 = vrot.slane %v1747, %v1760
    %v1762 = vcombine.high %v1754, %v1754
    %v1763 = vcombine.high %v1761, %v1761
    %v1764 = vcombine.low %v692, %v693
    %v1765 = vcombine.high %v692, %v693
    %v1767 = vunpack.c.l.s4 1983009808
    %v1768 = vunpack.c.0.s8 %v1767
    %v1769 = vlaneseq
    %v1770 = vshrl.u32 %v1769, 7
    %v1771 = vsub.s32 %v1768, %v1770
    %v1772 = vrot.slane %v1764, %v1771
    %v1774 = vunpack.c.l.s4 1983009808
    %v1775 = vunpack.c.0.s8 %v1774
    %v1776 = vlaneseq
    %v1777 = vshrl.u32 %v1776, 7
    %v1778 = vsub.s32 %v1775, %v1777
    %v1779 = vrot.slane %v1765, %v1778
    %v1780 = vcombine.high %v1772, %v1772
    %v1781 = vcombine.high %v1779, %v1779
    %v1782 = vcombine.low %v694, %v695
    %v1783 = vcombine.high %v694, %v695
    %v1785 = vunpack.c.l.s4 1983009808
    %v1786 = vunpack.c.0.s8 %v1785
    %v1787 = vlaneseq
    %v1788 = vshrl.u32 %v1787, 7
    %v1789 = vsub.s32 %v1786, %v1788
    %v1790 = vrot.slane %v1782, %v1789
    %v1792 = vunpack.c.l.s4 1983009808
    %v1793 = vunpack.c.0.s8 %v1792
    %v1794 = vlaneseq
    %v1795 = vshrl.u32 %v1794, 7
    %v1796 = vsub.s32 %v1793, %v1795
    %v1797 = vrot.slane %v1783, %v1796
    %v1798 = vcombine.high %v1790, %v1790
    %v1799 = vcombine.high %v1797, %v1797
    %v1800 = vcombine.low %v696, %v697
    %v1801 = vcombine.high %v696, %v697
    %v1803 = vunpack.c.l.s4 1983009808
    %v1804 = vunpack.c.0.s8 %v1803
    %v1805 = vlaneseq
    %v1806 = vshrl.u32 %v1805, 7
    %v1807 = vsub.s32 %v1804, %v1806
    %v1808 = vrot.slane %v1800, %v1807
    %v1810 = vunpack.c.l.s4 1983009808
    %v1811 = vunpack.c.0.s8 %v1810
    %v1812 = vlaneseq
    %v1813 = vshrl.u32 %v1812, 7
    %v1814 = vsub.s32 %v1811, %v1813
    %v1815 = vrot.slane %v1801, %v1814
    %v1816 = vcombine.high %v1808, %v1808
    %v1817 = vcombine.high %v1815, %v1815
    %v1818 = vcombine.low %v698, %v699
    %v1819 = vcombine.high %v698, %v699
    %v1821 = vunpack.c.l.s4 1983009808
    %v1822 = vunpack.c.0.s8 %v1821
    %v1823 = vlaneseq
    %v1824 = vshrl.u32 %v1823, 7
    %v1825 = vsub.s32 %v1822, %v1824
    %v1826 = vrot.slane %v1818, %v1825
    %v1828 = vunpack.c.l.s4 1983009808
    %v1829 = vunpack.c.0.s8 %v1828
    %v1830 = vlaneseq
    %v1831 = vshrl.u32 %v1830, 7
    %v1832 = vsub.s32 %v1829, %v1831
    %v1833 = vrot.slane %v1819, %v1832
    %v1834 = vcombine.high %v1826, %v1826
    %v1835 = vcombine.high %v1833, %v1833
    %v1836 = vcombine.low %v700, %v701
    %v1837 = vcombine.high %v700, %v701
    %v1839 = vunpack.c.l.s4 1983009808
    %v1840 = vunpack.c.0.s8 %v1839
    %v1841 = vlaneseq
    %v1842 = vshrl.u32 %v1841, 7
    %v1843 = vsub.s32 %v1840, %v1842
    %v1844 = vrot.slane %v1836, %v1843
    %v1846 = vunpack.c.l.s4 1983009808
    %v1847 = vunpack.c.0.s8 %v1846
    %v1848 = vlaneseq
    %v1849 = vshrl.u32 %v1848, 7
    %v1850 = vsub.s32 %v1847, %v1849
    %v1851 = vrot.slane %v1837, %v1850
    %v1852 = vcombine.high %v1844, %v1844
    %v1853 = vcombine.high %v1851, %v1851
    %v1854 = vcombine.low %v702, %v703
    %v1855 = vcombine.high %v702, %v703
    %v1857 = vunpack.c.l.s4 1983009808
    %v1858 = vunpack.c.0.s8 %v1857
    %v1859 = vlaneseq
    %v1860 = vshrl.u32 %v1859, 7
    %v1861 = vsub.s32 %v1858, %v1860
    %v1862 = vrot.slane %v1854, %v1861
    %v1864 = vunpack.c.l.s4 1983009808
    %v1865 = vunpack.c.0.s8 %v1864
    %v1866 = vlaneseq
    %v1867 = vshrl.u32 %v1866, 7
    %v1868 = vsub.s32 %v1865, %v1867
    %v1869 = vrot.slane %v1855, %v1868
    %v1870 = vcombine.high %v1862, %v1862
    %v1871 = vcombine.high %v1869, %v1869
    %v1872 = vcombine.low %v704, %v705
    %v1873 = vcombine.high %v704, %v705
    %v1875 = vunpack.c.l.s4 1983009808
    %v1876 = vunpack.c.0.s8 %v1875
    %v1877 = vlaneseq
    %v1878 = vshrl.u32 %v1877, 7
    %v1879 = vsub.s32 %v1876, %v1878
    %v1880 = vrot.slane %v1872, %v1879
    %v1882 = vunpack.c.l.s4 1983009808
    %v1883 = vunpack.c.0.s8 %v1882
    %v1884 = vlaneseq
    %v1885 = vshrl.u32 %v1884, 7
    %v1886 = vsub.s32 %v1883, %v1885
    %v1887 = vrot.slane %v1873, %v1886
    %v1888 = vcombine.high %v1880, %v1880
    %v1889 = vcombine.high %v1887, %v1887
    %v1890 = vcombine.low %v706, %v707
    %v1891 = vcombine.high %v706, %v707
    %v1893 = vunpack.c.l.s4 1983009808
    %v1894 = vunpack.c.0.s8 %v1893
    %v1895 = vlaneseq
    %v1896 = vshrl.u32 %v1895, 7
    %v1897 = vsub.s32 %v1894, %v1896
    %v1898 = vrot.slane %v1890, %v1897
    %v1900 = vunpack.c.l.s4 1983009808
    %v1901 = vunpack.c.0.s8 %v1900
    %v1902 = vlaneseq
    %v1903 = vshrl.u32 %v1902, 7
    %v1904 = vsub.s32 %v1901, %v1903
    %v1905 = vrot.slane %v1891, %v1904
    %v1906 = vcombine.high %v1898, %v1898
    %v1907 = vcombine.high %v1905, %v1905
    %v1908 = vcombine.low %v708, %v709
    %v1909 = vcombine.high %v708, %v709
    %v1911 = vunpack.c.l.s4 1983009808
    %v1912 = vunpack.c.0.s8 %v1911
    %v1913 = vlaneseq
    %v1914 = vshrl.u32 %v1913, 7
    %v1915 = vsub.s32 %v1912, %v1914
    %v1916 = vrot.slane %v1908, %v1915
    %v1918 = vunpack.c.l.s4 1983009808
    %v1919 = vunpack.c.0.s8 %v1918
    %v1920 = vlaneseq
    %v1921 = vshrl.u32 %v1920, 7
    %v1922 = vsub.s32 %v1919, %v1921
    %v1923 = vrot.slane %v1909, %v1922
    %v1924 = vcombine.high %v1916, %v1916
    %v1925 = vcombine.high %v1923, %v1923
    %v1926 = vcombine.low %v710, %v711
    %v1927 = vcombine.high %v710, %v711
    %v1929 = vunpack.c.l.s4 1983009808
    %v1930 = vunpack.c.0.s8 %v1929
    %v1931 = vlaneseq
    %v1932 = vshrl.u32 %v1931, 7
    %v1933 = vsub.s32 %v1930, %v1932
    %v1934 = vrot.slane %v1926, %v1933
    %v1936 = vunpack.c.l.s4 1983009808
    %v1937 = vunpack.c.0.s8 %v1936
    %v1938 = vlaneseq
    %v1939 = vshrl.u32 %v1938, 7
    %v1940 = vsub.s32 %v1937, %v1939
    %v1941 = vrot.slane %v1927, %v1940
    %v1942 = vcombine.high %v1934, %v1934
    %v1943 = vcombine.high %v1941, %v1941
    %v1944 = vcombine.low %v712, %v713
    %v1945 = vcombine.high %v712, %v713
    %v1947 = vunpack.c.l.s4 1983009808
    %v1948 = vunpack.c.0.s8 %v1947
    %v1949 = vlaneseq
    %v1950 = vshrl.u32 %v1949, 7
    %v1951 = vsub.s32 %v1948, %v1950
    %v1952 = vrot.slane %v1944, %v1951
    %v1954 = vunpack.c.l.s4 1983009808
    %v1955 = vunpack.c.0.s8 %v1954
    %v1956 = vlaneseq
    %v1957 = vshrl.u32 %v1956, 7
    %v1958 = vsub.s32 %v1955, %v1957
    %v1959 = vrot.slane %v1945, %v1958
    %v1960 = vcombine.high %v1952, %v1952
    %v1961 = vcombine.high %v1959, %v1959
    %v1962 = vcombine.low %v714, %v715
    %v1963 = vcombine.high %v714, %v715
    %v1965 = vunpack.c.l.s4 1983009808
    %v1966 = vunpack.c.0.s8 %v1965
    %v1967 = vlaneseq
    %v1968 = vshrl.u32 %v1967, 7
    %v1969 = vsub.s32 %v1966, %v1968
    %v1970 = vrot.slane %v1962, %v1969
    %v1972 = vunpack.c.l.s4 1983009808
    %v1973 = vunpack.c.0.s8 %v1972
    %v1974 = vlaneseq
    %v1975 = vshrl.u32 %v1974, 7
    %v1976 = vsub.s32 %v1973, %v1975
    %v1977 = vrot.slane %v1963, %v1976
    %v1978 = vcombine.high %v1970, %v1970
    %v1979 = vcombine.high %v1977, %v1977
    %v1980 = vcombine.low %v716, %v717
    %v1981 = vcombine.high %v716, %v717
    %v1983 = vunpack.c.l.s4 1983009808
    %v1984 = vunpack.c.0.s8 %v1983
    %v1985 = vlaneseq
    %v1986 = vshrl.u32 %v1985, 7
    %v1987 = vsub.s32 %v1984, %v1986
    %v1988 = vrot.slane %v1980, %v1987
    %v1990 = vunpack.c.l.s4 1983009808
    %v1991 = vunpack.c.0.s8 %v1990
    %v1992 = vlaneseq
    %v1993 = vshrl.u32 %v1992, 7
    %v1994 = vsub.s32 %v1991, %v1993
    %v1995 = vrot.slane %v1981, %v1994
    %v1996 = vcombine.high %v1988, %v1988
    %v1997 = vcombine.high %v1995, %v1995
    %v2254 = vrot.slane %v854, 7
    %v2255 = vrot.slane %v2254, 2
    %v2256 = vrot.slane %v862, 7
    %v2257 = vrot.slane %v2256, 2
    %v2258 = vrot.slane %v861, 7
    %v2259 = vrot.slane %v2258, 2
    %v2260 = vrot.slane %v863, 7
    %v2261 = vrot.slane %v2260, 2
    %v2262 = vrot.slane %v872, 7
    %v2263 = vrot.slane %v2262, 2
    %v2264 = vrot.slane %v880, 7
    %v2265 = vrot.slane %v2264, 2
    %v2266 = vrot.slane %v879, 7
    %v2267 = vrot.slane %v2266, 2
    %v2268 = vrot.slane %v881, 7
    %v2269 = vrot.slane %v2268, 2
    %v2270 = vrot.slane %v890, 7
    %v2271 = vrot.slane %v2270, 2
    %v2272 = vrot.slane %v898, 7
    %v2273 = vrot.slane %v2272, 2
    %v2274 = vrot.slane %v897, 7
    %v2275 = vrot.slane %v2274, 2
    %v2276 = vrot.slane %v899, 7
    %v2277 = vrot.slane %v2276, 2
    %v2278 = vrot.slane %v908, 7
    %v2279 = vrot.slane %v2278, 2
    %v2280 = vrot.slane %v916, 7
    %v2281 = vrot.slane %v2280, 2
    %v2282 = vrot.slane %v915, 7
    %v2283 = vrot.slane %v2282, 2
    %v2284 = vrot.slane %v917, 7
    %v2285 = vrot.slane %v2284, 2
    %v2286 = vrot.slane %v926, 7
    %v2287 = vrot.slane %v2286, 2
    %v2288 = vrot.slane %v934, 7
    %v2289 = vrot.slane %v2288, 2
    %v2290 = vrot.slane %v933, 7
    %v2291 = vrot.slane %v2290, 2
    %v2292 = vrot.slane %v935, 7
    %v2293 = vrot.slane %v2292, 2
    %v2294 = vrot.slane %v944, 7
    %v2295 = vrot.slane %v2294, 2
    %v2296 = vrot.slane %v952, 7
    %v2297 = vrot.slane %v2296, 2
    %v2298 = vrot.slane %v951, 7
    %v2299 = vrot.slane %v2298, 2
    %v2300 = vrot.slane %v953, 7
    %v2301 = vrot.slane %v2300, 2
    %v2302 = vrot.slane %v962, 7
    %v2303 = vrot.slane %v2302, 2
    %v2304 = vrot.slane %v970, 7
    %v2305 = vrot.slane %v2304, 2
    %v2306 = vrot.slane %v969, 7
    %v2307 = vrot.slane %v2306, 2
    %v2308 = vrot.slane %v971, 7
    %v2309 = vrot.slane %v2308, 2
    %v2310 = vrot.slane %v980, 7
    %v2311 = vrot.slane %v2310, 2
    %v2312 = vrot.slane %v988, 7
    %v2313 = vrot.slane %v2312, 2
    %v2314 = vrot.slane %v987, 7
    %v2315 = vrot.slane %v2314, 2
    %v2316 = vrot.slane %v989, 7
    %v2317 = vrot.slane %v2316, 2
    %v2318 = vrot.slane %v998, 7
    %v2319 = vrot.slane %v2318, 2
    %v2320 = vrot.slane %v1006, 7
    %v2321 = vrot.slane %v2320, 2
    %v2322 = vrot.slane %v1005, 7
    %v2323 = vrot.slane %v2322, 2
    %v2324 = vrot.slane %v1007, 7
    %v2325 = vrot.slane %v2324, 2
    %v2326 = vrot.slane %v1016, 7
    %v2327 = vrot.slane %v2326, 2
    %v2328 = vrot.slane %v1024, 7
    %v2329 = vrot.slane %v2328, 2
    %v2330 = vrot.slane %v1023, 7
    %v2331 = vrot.slane %v2330, 2
    %v2332 = vrot.slane %v1025, 7
    %v2333 = vrot.slane %v2332, 2
    %v2334 = vrot.slane %v1034, 7
    %v2335 = vrot.slane %v2334, 2
    %v2336 = vrot.slane %v1042, 7
    %v2337 = vrot.slane %v2336, 2
    %v2338 = vrot.slane %v1041, 7
    %v2339 = vrot.slane %v2338, 2
    %v2340 = vrot.slane %v1043, 7
    %v2341 = vrot.slane %v2340, 2
    %v2342 = vrot.slane %v1052, 7
    %v2343 = vrot.slane %v2342, 2
    %v2344 = vrot.slane %v1060, 7
    %v2345 = vrot.slane %v2344, 2
    %v2346 = vrot.slane %v1059, 7
    %v2347 = vrot.slane %v2346, 2
    %v2348 = vrot.slane %v1061, 7
    %v2349 = vrot.slane %v2348, 2
    %v2350 = vrot.slane %v1070, 7
    %v2351 = vrot.slane %v2350, 2
    %v2352 = vrot.slane %v1078, 7
    %v2353 = vrot.slane %v2352, 2
    %v2354 = vrot.slane %v1077, 7
    %v2355 = vrot.slane %v2354, 2
    %v2356 = vrot.slane %v1079, 7
    %v2357 = vrot.slane %v2356, 2
    %v2358 = vrot.slane %v1088, 7
    %v2359 = vrot.slane %v2358, 2
    %v2360 = vrot.slane %v1096, 7
    %v2361 = vrot.slane %v2360, 2
    %v2362 = vrot.slane %v1095, 7
    %v2363 = vrot.slane %v2362, 2
    %v2364 = vrot.slane %v1097, 7
    %v2365 = vrot.slane %v2364, 2
    %v2366 = vrot.slane %v1106, 7
    %v2367 = vrot.slane %v2366, 2
    %v2368 = vrot.slane %v1114, 7
    %v2369 = vrot.slane %v2368, 2
    %v2370 = vrot.slane %v1113, 7
    %v2371 = vrot.slane %v2370, 2
    %v2372 = vrot.slane %v1115, 7
    %v2373 = vrot.slane %v2372, 2
    %v2374 = vrot.slane %v1124, 7
    %v2375 = vrot.slane %v2374, 2
    %v2376 = vrot.slane %v1132, 7
    %v2377 = vrot.slane %v2376, 2
    %v2378 = vrot.slane %v1131, 7
    %v2379 = vrot.slane %v2378, 2
    %v2380 = vrot.slane %v1133, 7
    %v2381 = vrot.slane %v2380, 2
    %v2382 = vrot.slane %v1142, 7
    %v2383 = vrot.slane %v2382, 2
    %v2384 = vrot.slane %v1150, 7
    %v2385 = vrot.slane %v2384, 2
    %v2386 = vrot.slane %v1149, 7
    %v2387 = vrot.slane %v2386, 2
    %v2388 = vrot.slane %v1151, 7
    %v2389 = vrot.slane %v2388, 2
    %v2390 = vrot.slane %v1160, 7
    %v2391 = vrot.slane %v2390, 2
    %v2392 = vrot.slane %v1168, 7
    %v2393 = vrot.slane %v2392, 2
    %v2394 = vrot.slane %v1167, 7
    %v2395 = vrot.slane %v2394, 2
    %v2396 = vrot.slane %v1169, 7
    %v2397 = vrot.slane %v2396, 2
    %v2398 = vrot.slane %v1178, 7
    %v2399 = vrot.slane %v2398, 2
    %v2400 = vrot.slane %v1186, 7
    %v2401 = vrot.slane %v2400, 2
    %v2402 = vrot.slane %v1185, 7
    %v2403 = vrot.slane %v2402, 2
    %v2404 = vrot.slane %v1187, 7
    %v2405 = vrot.slane %v2404, 2
    %v2406 = vrot.slane %v1196, 7
    %v2407 = vrot.slane %v2406, 2
    %v2408 = vrot.slane %v1204, 7
    %v2409 = vrot.slane %v2408, 2
    %v2410 = vrot.slane %v1203, 7
    %v2411 = vrot.slane %v2410, 2
    %v2412 = vrot.slane %v1205, 7
    %v2413 = vrot.slane %v2412, 2
    %v2414 = vrot.slane %v1214, 7
    %v2415 = vrot.slane %v2414, 2
    %v2416 = vrot.slane %v1222, 7
    %v2417 = vrot.slane %v2416, 2
    %v2418 = vrot.slane %v1221, 7
    %v2419 = vrot.slane %v2418, 2
    %v2420 = vrot.slane %v1223, 7
    %v2421 = vrot.slane %v2420, 2
    %v2422 = vrot.slane %v1232, 7
    %v2423 = vrot.slane %v2422, 2
    %v2424 = vrot.slane %v1240, 7
    %v2425 = vrot.slane %v2424, 2
    %v2426 = vrot.slane %v1239, 7
    %v2427 = vrot.slane %v2426, 2
    %v2428 = vrot.slane %v1241, 7
    %v2429 = vrot.slane %v2428, 2
    %v2430 = vrot.slane %v1250, 7
    %v2431 = vrot.slane %v2430, 2
    %v2432 = vrot.slane %v1258, 7
    %v2433 = vrot.slane %v2432, 2
    %v2434 = vrot.slane %v1257, 7
    %v2435 = vrot.slane %v2434, 2
    %v2436 = vrot.slane %v1259, 7
    %v2437 = vrot.slane %v2436, 2
    %v2438 = vrot.slane %v1268, 7
    %v2439 = vrot.slane %v2438, 2
    %v2440 = vrot.slane %v1276, 7
    %v2441 = vrot.slane %v2440, 2
    %v2442 = vrot.slane %v1275, 7
    %v2443 = vrot.slane %v2442, 2
    %v2444 = vrot.slane %v1277, 7
    %v2445 = vrot.slane %v2444, 2
    %v2446 = vrot.slane %v1286, 7
    %v2447 = vrot.slane %v2446, 2
    %v2448 = vrot.slane %v1294, 7
    %v2449 = vrot.slane %v2448, 2
    %v2450 = vrot.slane %v1293, 7
    %v2451 = vrot.slane %v2450, 2
    %v2452 = vrot.slane %v1295, 7
    %v2453 = vrot.slane %v2452, 2
    %v2454 = vrot.slane %v1304, 7
    %v2455 = vrot.slane %v2454, 2
    %v2456 = vrot.slane %v1312, 7
    %v2457 = vrot.slane %v2456, 2
    %v2458 = vrot.slane %v1311, 7
    %v2459 = vrot.slane %v2458, 2
    %v2460 = vrot.slane %v1313, 7
    %v2461 = vrot.slane %v2460, 2
    %v2462 = vrot.slane %v1322, 7
    %v2463 = vrot.slane %v2462, 2
    %v2464 = vrot.slane %v1330, 7
    %v2465 = vrot.slane %v2464, 2
    %v2466 = vrot.slane %v1329, 7
    %v2467 = vrot.slane %v2466, 2
    %v2468 = vrot.slane %v1331, 7
    %v2469 = vrot.slane %v2468, 2
    %v2470 = vrot.slane %v1340, 7
    %v2471 = vrot.slane %v2470, 2
    %v2472 = vrot.slane %v1348, 7
    %v2473 = vrot.slane %v2472, 2
    %v2474 = vrot.slane %v1347, 7
    %v2475 = vrot.slane %v2474, 2
    %v2476 = vrot.slane %v1349, 7
    %v2477 = vrot.slane %v2476, 2
    %v2478 = vrot.slane %v1358, 7
    %v2479 = vrot.slane %v2478, 2
    %v2480 = vrot.slane %v1366, 7
    %v2481 = vrot.slane %v2480, 2
    %v2482 = vrot.slane %v1365, 7
    %v2483 = vrot.slane %v2482, 2
    %v2484 = vrot.slane %v1367, 7
    %v2485 = vrot.slane %v2484, 2
    %v2486 = vrot.slane %v1376, 7
    %v2487 = vrot.slane %v2486, 2
    %v2488 = vrot.slane %v1384, 7
    %v2489 = vrot.slane %v2488, 2
    %v2490 = vrot.slane %v1383, 7
    %v2491 = vrot.slane %v2490, 2
    %v2492 = vrot.slane %v1385, 7
    %v2493 = vrot.slane %v2492, 2
    %v2494 = vrot.slane %v1394, 7
    %v2495 = vrot.slane %v2494, 2
    %v2496 = vrot.slane %v1402, 7
    %v2497 = vrot.slane %v2496, 2
    %v2498 = vrot.slane %v1401, 7
    %v2499 = vrot.slane %v2498, 2
    %v2500 = vrot.slane %v1403, 7
    %v2501 = vrot.slane %v2500, 2
    %v2502 = vrot.slane %v1412, 7
    %v2503 = vrot.slane %v2502, 2
    %v2504 = vrot.slane %v1420, 7
    %v2505 = vrot.slane %v2504, 2
    %v2506 = vrot.slane %v1419, 7
    %v2507 = vrot.slane %v2506, 2
    %v2508 = vrot.slane %v1421, 7
    %v2509 = vrot.slane %v2508, 2
    %v2510 = vrot.slane %v1430, 7
    %v2511 = vrot.slane %v2510, 2
    %v2512 = vrot.slane %v1438, 7
    %v2513 = vrot.slane %v2512, 2
    %v2514 = vrot.slane %v1437, 7
    %v2515 = vrot.slane %v2514, 2
    %v2516 = vrot.slane %v1439, 7
    %v2517 = vrot.slane %v2516, 2
    %v2518 = vrot.slane %v1448, 7
    %v2519 = vrot.slane %v2518, 2
    %v2520 = vrot.slane %v1456, 7
    %v2521 = vrot.slane %v2520, 2
    %v2522 = vrot.slane %v1455, 7
    %v2523 = vrot.slane %v2522, 2
    %v2524 = vrot.slane %v1457, 7
    %v2525 = vrot.slane %v2524, 2
    %v2526 = vrot.slane %v1466, 7
    %v2527 = vrot.slane %v2526, 2
    %v2528 = vrot.slane %v1474, 7
    %v2529 = vrot.slane %v2528, 2
    %v2530 = vrot.slane %v1473, 7
    %v2531 = vrot.slane %v2530, 2
    %v2532 = vrot.slane %v1475, 7
    %v2533 = vrot.slane %v2532, 2
    %v2534 = vrot.slane %v1484, 7
    %v2535 = vrot.slane %v2534, 2
    %v2536 = vrot.slane %v1492, 7
    %v2537 = vrot.slane %v2536, 2
    %v2538 = vrot.slane %v1491, 7
    %v2539 = vrot.slane %v2538, 2
    %v2540 = vrot.slane %v1493, 7
    %v2541 = vrot.slane %v2540, 2
    %v2542 = vrot.slane %v1502, 7
    %v2543 = vrot.slane %v2542, 2
    %v2544 = vrot.slane %v1510, 7
    %v2545 = vrot.slane %v2544, 2
    %v2546 = vrot.slane %v1509, 7
    %v2547 = vrot.slane %v2546, 2
    %v2548 = vrot.slane %v1511, 7
    %v2549 = vrot.slane %v2548, 2
    %v2550 = vrot.slane %v1520, 7
    %v2551 = vrot.slane %v2550, 2
    %v2552 = vrot.slane %v1528, 7
    %v2553 = vrot.slane %v2552, 2
    %v2554 = vrot.slane %v1527, 7
    %v2555 = vrot.slane %v2554, 2
    %v2556 = vrot.slane %v1529, 7
    %v2557 = vrot.slane %v2556, 2
    %v2558 = vrot.slane %v1538, 7
    %v2559 = vrot.slane %v2558, 2
    %v2560 = vrot.slane %v1546, 7
    %v2561 = vrot.slane %v2560, 2
    %v2562 = vrot.slane %v1545, 7
    %v2563 = vrot.slane %v2562, 2
    %v2564 = vrot.slane %v1547, 7
    %v2565 = vrot.slane %v2564, 2
    %v2566 = vrot.slane %v1556, 7
    %v2567 = vrot.slane %v2566, 2
    %v2568 = vrot.slane %v1564, 7
    %v2569 = vrot.slane %v2568, 2
    %v2570 = vrot.slane %v1563, 7
    %v2571 = vrot.slane %v2570, 2
    %v2572 = vrot.slane %v1565, 7
    %v2573 = vrot.slane %v2572, 2
    %v2574 = vrot.slane %v1574, 7
    %v2575 = vrot.slane %v2574, 2
    %v2576 = vrot.slane %v1582, 7
    %v2577 = vrot.slane %v2576, 2
    %v2578 = vrot.slane %v1581, 7
    %v2579 = vrot.slane %v2578, 2
    %v2580 = vrot.slane %v1583, 7
    %v2581 = vrot.slane %v2580, 2
    %v2582 = vrot.slane %v1592, 7
    %v2583 = vrot.slane %v2582, 2
    %v2584 = vrot.slane %v1600, 7
    %v2585 = vrot.slane %v2584, 2
    %v2586 = vrot.slane %v1599, 7
    %v2587 = vrot.slane %v2586, 2
    %v2588 = vrot.slane %v1601, 7
    %v2589 = vrot.slane %v2588, 2
    %v2590 = vrot.slane %v1610, 7
    %v2591 = vrot.slane %v2590, 2
    %v2592 = vrot.slane %v1618, 7
    %v2593 = vrot.slane %v2592, 2
    %v2594 = vrot.slane %v1617, 7
    %v2595 = vrot.slane %v2594, 2
    %v2596 = vrot.slane %v1619, 7
    %v2597 = vrot.slane %v2596, 2
    %v2598 = vrot.slane %v1628, 7
    %v2599 = vrot.slane %v2598, 2
    %v2600 = vrot.slane %v1636, 7
    %v2601 = vrot.slane %v2600, 2
    %v2602 = vrot.slane %v1635, 7
    %v2603 = vrot.slane %v2602, 2
    %v2604 = vrot.slane %v1637, 7
    %v2605 = vrot.slane %v2604, 2
    %v2606 = vrot.slane %v1646, 7
    %v2607 = vrot.slane %v2606, 2
    %v2608 = vrot.slane %v1654, 7
    %v2609 = vrot.slane %v2608, 2
    %v2610 = vrot.slane %v1653, 7
    %v2611 = vrot.slane %v2610, 2
    %v2612 = vrot.slane %v1655, 7
    %v2613 = vrot.slane %v2612, 2
    %v2614 = vrot.slane %v1664, 7
    %v2615 = vrot.slane %v2614, 2
    %v2616 = vrot.slane %v1672, 7
    %v2617 = vrot.slane %v2616, 2
    %v2618 = vrot.slane %v1671, 7
    %v2619 = vrot.slane %v2618, 2
    %v2620 = vrot.slane %v1673, 7
    %v2621 = vrot.slane %v2620, 2
    %v2622 = vrot.slane %v1682, 7
    %v2623 = vrot.slane %v2622, 2
    %v2624 = vrot.slane %v1690, 7
    %v2625 = vrot.slane %v2624, 2
    %v2626 = vrot.slane %v1689, 7
    %v2627 = vrot.slane %v2626, 2
    %v2628 = vrot.slane %v1691, 7
    %v2629 = vrot.slane %v2628, 2
    %v2630 = vrot.slane %v1700, 7
    %v2631 = vrot.slane %v2630, 2
    %v2632 = vrot.slane %v1708, 7
    %v2633 = vrot.slane %v2632, 2
    %v2634 = vrot.slane %v1707, 7
    %v2635 = vrot.slane %v2634, 2
    %v2636 = vrot.slane %v1709, 7
    %v2637 = vrot.slane %v2636, 2
    %v2638 = vrot.slane %v1718, 7
    %v2639 = vrot.slane %v2638, 2
    %v2640 = vrot.slane %v1726, 7
    %v2641 = vrot.slane %v2640, 2
    %v2642 = vrot.slane %v1725, 7
    %v2643 = vrot.slane %v2642, 2
    %v2644 = vrot.slane %v1727, 7
    %v2645 = vrot.slane %v2644, 2
    %v2646 = vrot.slane %v1736, 7
    %v2647 = vrot.slane %v2646, 2
    %v2648 = vrot.slane %v1744, 7
    %v2649 = vrot.slane %v2648, 2
    %v2650 = vrot.slane %v1743, 7
    %v2651 = vrot.slane %v2650, 2
    %v2652 = vrot.slane %v1745, 7
    %v2653 = vrot.slane %v2652, 2
    %v2654 = vrot.slane %v1754, 7
    %v2655 = vrot.slane %v2654, 2
    %v2656 = vrot.slane %v1762, 7
    %v2657 = vrot.slane %v2656, 2
    %v2658 = vrot.slane %v1761, 7
    %v2659 = vrot.slane %v2658, 2
    %v2660 = vrot.slane %v1763, 7
    %v2661 = vrot.slane %v2660, 2
    %v2662 = vrot.slane %v1772, 7
    %v2663 = vrot.slane %v2662, 2
    %v2664 = vrot.slane %v1780, 7
    %v2665 = vrot.slane %v2664, 2
    %v2666 = vrot.slane %v1779, 7
    %v2667 = vrot.slane %v2666, 2
    %v2668 = vrot.slane %v1781, 7
    %v2669 = vrot.slane %v2668, 2
    %v2670 = vrot.slane %v1790, 7
    %v2671 = vrot.slane %v2670, 2
    %v2672 = vrot.slane %v1798, 7
    %v2673 = vrot.slane %v2672, 2
    %v2674 = vrot.slane %v1797, 7
    %v2675 = vrot.slane %v2674, 2
    %v2676 = vrot.slane %v1799, 7
    %v2677 = vrot.slane %v2676, 2
    %v2678 = vrot.slane %v1808, 7
    %v2679 = vrot.slane %v2678, 2
    %v2680 = vrot.slane %v1816, 7
    %v2681 = vrot.slane %v2680, 2
    %v2682 = vrot.slane %v1815, 7
    %v2683 = vrot.slane %v2682, 2
    %v2684 = vrot.slane %v1817, 7
    %v2685 = vrot.slane %v2684, 2
    %v2686 = vrot.slane %v1826, 7
    %v2687 = vrot.slane %v2686, 2
    %v2688 = vrot.slane %v1834, 7
    %v2689 = vrot.slane %v2688, 2
    %v2690 = vrot.slane %v1833, 7
    %v2691 = vrot.slane %v2690, 2
    %v2692 = vrot.slane %v1835, 7
    %v2693 = vrot.slane %v2692, 2
    %v2694 = vrot.slane %v1844, 7
    %v2695 = vrot.slane %v2694, 2
    %v2696 = vrot.slane %v1852, 7
    %v2697 = vrot.slane %v2696, 2
    %v2698 = vrot.slane %v1851, 7
    %v2699 = vrot.slane %v2698, 2
    %v2700 = vrot.slane %v1853, 7
    %v2701 = vrot.slane %v2700, 2
    %v2702 = vrot.slane %v1862, 7
    %v2703 = vrot.slane %v2702, 2
    %v2704 = vrot.slane %v1870, 7
    %v2705 = vrot.slane %v2704, 2
    %v2706 = vrot.slane %v1869, 7
    %v2707 = vrot.slane %v2706, 2
    %v2708 = vrot.slane %v1871, 7
    %v2709 = vrot.slane %v2708, 2
    %v2710 = vrot.slane %v1880, 7
    %v2711 = vrot.slane %v2710, 2
    %v2712 = vrot.slane %v1888, 7
    %v2713 = vrot.slane %v2712, 2
    %v2714 = vrot.slane %v1887, 7
    %v2715 = vrot.slane %v2714, 2
    %v2716 = vrot.slane %v1889, 7
    %v2717 = vrot.slane %v2716, 2
    %v2718 = vrot.slane %v1898, 7
    %v2719 = vrot.slane %v2718, 2
    %v2720 = vrot.slane %v1906, 7
    %v2721 = vrot.slane %v2720, 2
    %v2722 = vrot.slane %v1905, 7
    %v2723 = vrot.slane %v2722, 2
    %v2724 = vrot.slane %v1907, 7
    %v2725 = vrot.slane %v2724, 2
    %v2726 = vrot.slane %v1916, 7
    %v2727 = vrot.slane %v2726, 2
    %v2728 = vrot.slane %v1924, 7
    %v2729 = vrot.slane %v2728, 2
    %v2730 = vrot.slane %v1923, 7
    %v2731 = vrot.slane %v2730, 2
    %v2732 = vrot.slane %v1925, 7
    %v2733 = vrot.slane %v2732, 2
    %v2734 = vrot.slane %v1934, 7
    %v2735 = vrot.slane %v2734, 2
    %v2736 = vrot.slane %v1942, 7
    %v2737 = vrot.slane %v2736, 2
    %v2738 = vrot.slane %v1941, 7
    %v2739 = vrot.slane %v2738, 2
    %v2740 = vrot.slane %v1943, 7
    %v2741 = vrot.slane %v2740, 2
    %v2742 = vrot.slane %v1952, 7
    %v2743 = vrot.slane %v2742, 2
    %v2744 = vrot.slane %v1960, 7
    %v2745 = vrot.slane %v2744, 2
    %v2746 = vrot.slane %v1959, 7
    %v2747 = vrot.slane %v2746, 2
    %v2748 = vrot.slane %v1961, 7
    %v2749 = vrot.slane %v2748, 2
    %v2750 = vrot.slane %v1970, 7
    %v2751 = vrot.slane %v2750, 2
    %v2752 = vrot.slane %v1978, 7
    %v2753 = vrot.slane %v2752, 2
    %v2754 = vrot.slane %v1977, 7
    %v2755 = vrot.slane %v2754, 2
    %v2756 = vrot.slane %v1979, 7
    %v2757 = vrot.slane %v2756, 2
    %v2758 = vrot.slane %v1988, 7
    %v2759 = vrot.slane %v2758, 2
    %v2760 = vrot.slane %v1996, 7
    %v2761 = vrot.slane %v2760, 2
    %v2762 = vrot.slane %v1995, 7
    %v2763 = vrot.slane %v2762, 2
    %v2764 = vrot.slane %v1997, 7
    %v2765 = vrot.slane %v2764, 2
    %v3022 = vmax.f32 %v854, %v2255
    %v3023 = vmax.f32 %v862, %v2257
    %v3024 = vmax.f32 %v861, %v2259
    %v3025 = vmax.f32 %v863, %v2261
    %v3026 = vmax.f32 %v872, %v2263
    %v3027 = vmax.f32 %v880, %v2265
    %v3028 = vmax.f32 %v879, %v2267
    %v3029 = vmax.f32 %v881, %v2269
    %v3030 = vmax.f32 %v890, %v2271
    %v3031 = vmax.f32 %v898, %v2273
    %v3032 = vmax.f32 %v897, %v2275
    %v3033 = vmax.f32 %v899, %v2277
    %v3034 = vmax.f32 %v908, %v2279
    %v3035 = vmax.f32 %v916, %v2281
    %v3036 = vmax.f32 %v915, %v2283
    %v3037 = vmax.f32 %v917, %v2285
    %v3038 = vmax.f32 %v926, %v2287
    %v3039 = vmax.f32 %v934, %v2289
    %v3040 = vmax.f32 %v933, %v2291
    %v3041 = vmax.f32 %v935, %v2293
    %v3042 = vmax.f32 %v944, %v2295
    %v3043 = vmax.f32 %v952, %v2297
    %v3044 = vmax.f32 %v951, %v2299
    %v3045 = vmax.f32 %v953, %v2301
    %v3046 = vmax.f32 %v962, %v2303
    %v3047 = vmax.f32 %v970, %v2305
    %v3048 = vmax.f32 %v969, %v2307
    %v3049 = vmax.f32 %v971, %v2309
    %v3050 = vmax.f32 %v980, %v2311
    %v3051 = vmax.f32 %v988, %v2313
    %v3052 = vmax.f32 %v987, %v2315
    %v3053 = vmax.f32 %v989, %v2317
    %v3054 = vmax.f32 %v998, %v2319
    %v3055 = vmax.f32 %v1006, %v2321
    %v3056 = vmax.f32 %v1005, %v2323
    %v3057 = vmax.f32 %v1007, %v2325
    %v3058 = vmax.f32 %v1016, %v2327
    %v3059 = vmax.f32 %v1024, %v2329
    %v3060 = vmax.f32 %v1023, %v2331
    %v3061 = vmax.f32 %v1025, %v2333
    %v3062 = vmax.f32 %v1034, %v2335
    %v3063 = vmax.f32 %v1042, %v2337
    %v3064 = vmax.f32 %v1041, %v2339
    %v3065 = vmax.f32 %v1043, %v2341
    %v3066 = vmax.f32 %v1052, %v2343
    %v3067 = vmax.f32 %v1060, %v2345
    %v3068 = vmax.f32 %v1059, %v2347
    %v3069 = vmax.f32 %v1061, %v2349
    %v3070 = vmax.f32 %v1070, %v2351
    %v3071 = vmax.f32 %v1078, %v2353
    %v3072 = vmax.f32 %v1077, %v2355
    %v3073 = vmax.f32 %v1079, %v2357
    %v3074 = vmax.f32 %v1088, %v2359
    %v3075 = vmax.f32 %v1096, %v2361
    %v3076 = vmax.f32 %v1095, %v2363
    %v3077 = vmax.f32 %v1097, %v2365
    %v3078 = vmax.f32 %v1106, %v2367
    %v3079 = vmax.f32 %v1114, %v2369
    %v3080 = vmax.f32 %v1113, %v2371
    %v3081 = vmax.f32 %v1115, %v2373
    %v3082 = vmax.f32 %v1124, %v2375
    %v3083 = vmax.f32 %v1132, %v2377
    %v3084 = vmax.f32 %v1131, %v2379
    %v3085 = vmax.f32 %v1133, %v2381
    %v3086 = vmax.f32 %v1142, %v2383
    %v3087 = vmax.f32 %v1150, %v2385
    %v3088 = vmax.f32 %v1149, %v2387
    %v3089 = vmax.f32 %v1151, %v2389
    %v3090 = vmax.f32 %v1160, %v2391
    %v3091 = vmax.f32 %v1168, %v2393
    %v3092 = vmax.f32 %v1167, %v2395
    %v3093 = vmax.f32 %v1169, %v2397
    %v3094 = vmax.f32 %v1178, %v2399
    %v3095 = vmax.f32 %v1186, %v2401
    %v3096 = vmax.f32 %v1185, %v2403
    %v3097 = vmax.f32 %v1187, %v2405
    %v3098 = vmax.f32 %v1196, %v2407
    %v3099 = vmax.f32 %v1204, %v2409
    %v3100 = vmax.f32 %v1203, %v2411
    %v3101 = vmax.f32 %v1205, %v2413
    %v3102 = vmax.f32 %v1214, %v2415
    %v3103 = vmax.f32 %v1222, %v2417
    %v3104 = vmax.f32 %v1221, %v2419
    %v3105 = vmax.f32 %v1223, %v2421
    %v3106 = vmax.f32 %v1232, %v2423
    %v3107 = vmax.f32 %v1240, %v2425
    %v3108 = vmax.f32 %v1239, %v2427
    %v3109 = vmax.f32 %v1241, %v2429
    %v3110 = vmax.f32 %v1250, %v2431
    %v3111 = vmax.f32 %v1258, %v2433
    %v3112 = vmax.f32 %v1257, %v2435
    %v3113 = vmax.f32 %v1259, %v2437
    %v3114 = vmax.f32 %v1268, %v2439
    %v3115 = vmax.f32 %v1276, %v2441
    %v3116 = vmax.f32 %v1275, %v2443
    %v3117 = vmax.f32 %v1277, %v2445
    %v3118 = vmax.f32 %v1286, %v2447
    %v3119 = vmax.f32 %v1294, %v2449
    %v3120 = vmax.f32 %v1293, %v2451
    %v3121 = vmax.f32 %v1295, %v2453
    %v3122 = vmax.f32 %v1304, %v2455
    %v3123 = vmax.f32 %v1312, %v2457
    %v3124 = vmax.f32 %v1311, %v2459
    %v3125 = vmax.f32 %v1313, %v2461
    %v3126 = vmax.f32 %v1322, %v2463
    %v3127 = vmax.f32 %v1330, %v2465
    %v3128 = vmax.f32 %v1329, %v2467
    %v3129 = vmax.f32 %v1331, %v2469
    %v3130 = vmax.f32 %v1340, %v2471
    %v3131 = vmax.f32 %v1348, %v2473
    %v3132 = vmax.f32 %v1347, %v2475
    %v3133 = vmax.f32 %v1349, %v2477
    %v3134 = vmax.f32 %v1358, %v2479
    %v3135 = vmax.f32 %v1366, %v2481
    %v3136 = vmax.f32 %v1365, %v2483
    %v3137 = vmax.f32 %v1367, %v2485
    %v3138 = vmax.f32 %v1376, %v2487
    %v3139 = vmax.f32 %v1384, %v2489
    %v3140 = vmax.f32 %v1383, %v2491
    %v3141 = vmax.f32 %v1385, %v2493
    %v3142 = vmax.f32 %v1394, %v2495
    %v3143 = vmax.f32 %v1402, %v2497
    %v3144 = vmax.f32 %v1401, %v2499
    %v3145 = vmax.f32 %v1403, %v2501
    %v3146 = vmax.f32 %v1412, %v2503
    %v3147 = vmax.f32 %v1420, %v2505
    %v3148 = vmax.f32 %v1419, %v2507
    %v3149 = vmax.f32 %v1421, %v2509
    %v3150 = vmax.f32 %v1430, %v2511
    %v3151 = vmax.f32 %v1438, %v2513
    %v3152 = vmax.f32 %v1437, %v2515
    %v3153 = vmax.f32 %v1439, %v2517
    %v3154 = vmax.f32 %v1448, %v2519
    %v3155 = vmax.f32 %v1456, %v2521
    %v3156 = vmax.f32 %v1455, %v2523
    %v3157 = vmax.f32 %v1457, %v2525
    %v3158 = vmax.f32 %v1466, %v2527
    %v3159 = vmax.f32 %v1474, %v2529
    %v3160 = vmax.f32 %v1473, %v2531
    %v3161 = vmax.f32 %v1475, %v2533
    %v3162 = vmax.f32 %v1484, %v2535
    %v3163 = vmax.f32 %v1492, %v2537
    %v3164 = vmax.f32 %v1491, %v2539
    %v3165 = vmax.f32 %v1493, %v2541
    %v3166 = vmax.f32 %v1502, %v2543
    %v3167 = vmax.f32 %v1510, %v2545
    %v3168 = vmax.f32 %v1509, %v2547
    %v3169 = vmax.f32 %v1511, %v2549
    %v3170 = vmax.f32 %v1520, %v2551
    %v3171 = vmax.f32 %v1528, %v2553
    %v3172 = vmax.f32 %v1527, %v2555
    %v3173 = vmax.f32 %v1529, %v2557
    %v3174 = vmax.f32 %v1538, %v2559
    %v3175 = vmax.f32 %v1546, %v2561
    %v3176 = vmax.f32 %v1545, %v2563
    %v3177 = vmax.f32 %v1547, %v2565
    %v3178 = vmax.f32 %v1556, %v2567
    %v3179 = vmax.f32 %v1564, %v2569
    %v3180 = vmax.f32 %v1563, %v2571
    %v3181 = vmax.f32 %v1565, %v2573
    %v3182 = vmax.f32 %v1574, %v2575
    %v3183 = vmax.f32 %v1582, %v2577
    %v3184 = vmax.f32 %v1581, %v2579
    %v3185 = vmax.f32 %v1583, %v2581
    %v3186 = vmax.f32 %v1592, %v2583
    %v3187 = vmax.f32 %v1600, %v2585
    %v3188 = vmax.f32 %v1599, %v2587
    %v3189 = vmax.f32 %v1601, %v2589
    %v3190 = vmax.f32 %v1610, %v2591
    %v3191 = vmax.f32 %v1618, %v2593
    %v3192 = vmax.f32 %v1617, %v2595
    %v3193 = vmax.f32 %v1619, %v2597
    %v3194 = vmax.f32 %v1628, %v2599
    %v3195 = vmax.f32 %v1636, %v2601
    %v3196 = vmax.f32 %v1635, %v2603
    %v3197 = vmax.f32 %v1637, %v2605
    %v3198 = vmax.f32 %v1646, %v2607
    %v3199 = vmax.f32 %v1654, %v2609
    %v3200 = vmax.f32 %v1653, %v2611
    %v3201 = vmax.f32 %v1655, %v2613
    %v3202 = vmax.f32 %v1664, %v2615
    %v3203 = vmax.f32 %v1672, %v2617
    %v3204 = vmax.f32 %v1671, %v2619
    %v3205 = vmax.f32 %v1673, %v2621
    %v3206 = vmax.f32 %v1682, %v2623
    %v3207 = vmax.f32 %v1690, %v2625
    %v3208 = vmax.f32 %v1689, %v2627
    %v3209 = vmax.f32 %v1691, %v2629
    %v3210 = vmax.f32 %v1700, %v2631
    %v3211 = vmax.f32 %v1708, %v2633
    %v3212 = vmax.f32 %v1707, %v2635
    %v3213 = vmax.f32 %v1709, %v2637
    %v3214 = vmax.f32 %v1718, %v2639
    %v3215 = vmax.f32 %v1726, %v2641
    %v3216 = vmax.f32 %v1725, %v2643
    %v3217 = vmax.f32 %v1727, %v2645
    %v3218 = vmax.f32 %v1736, %v2647
    %v3219 = vmax.f32 %v1744, %v2649
    %v3220 = vmax.f32 %v1743, %v2651
    %v3221 = vmax.f32 %v1745, %v2653
    %v3222 = vmax.f32 %v1754, %v2655
    %v3223 = vmax.f32 %v1762, %v2657
    %v3224 = vmax.f32 %v1761, %v2659
    %v3225 = vmax.f32 %v1763, %v2661
    %v3226 = vmax.f32 %v1772, %v2663
    %v3227 = vmax.f32 %v1780, %v2665
    %v3228 = vmax.f32 %v1779, %v2667
    %v3229 = vmax.f32 %v1781, %v2669
    %v3230 = vmax.f32 %v1790, %v2671
    %v3231 = vmax.f32 %v1798, %v2673
    %v3232 = vmax.f32 %v1797, %v2675
    %v3233 = vmax.f32 %v1799, %v2677
    %v3234 = vmax.f32 %v1808, %v2679
    %v3235 = vmax.f32 %v1816, %v2681
    %v3236 = vmax.f32 %v1815, %v2683
    %v3237 = vmax.f32 %v1817, %v2685
    %v3238 = vmax.f32 %v1826, %v2687
    %v3239 = vmax.f32 %v1834, %v2689
    %v3240 = vmax.f32 %v1833, %v2691
    %v3241 = vmax.f32 %v1835, %v2693
    %v3242 = vmax.f32 %v1844, %v2695
    %v3243 = vmax.f32 %v1852, %v2697
    %v3244 = vmax.f32 %v1851, %v2699
    %v3245 = vmax.f32 %v1853, %v2701
    %v3246 = vmax.f32 %v1862, %v2703
    %v3247 = vmax.f32 %v1870, %v2705
    %v3248 = vmax.f32 %v1869, %v2707
    %v3249 = vmax.f32 %v1871, %v2709
    %v3250 = vmax.f32 %v1880, %v2711
    %v3251 = vmax.f32 %v1888, %v2713
    %v3252 = vmax.f32 %v1887, %v2715
    %v3253 = vmax.f32 %v1889, %v2717
    %v3254 = vmax.f32 %v1898, %v2719
    %v3255 = vmax.f32 %v1906, %v2721
    %v3256 = vmax.f32 %v1905, %v2723
    %v3257 = vmax.f32 %v1907, %v2725
    %v3258 = vmax.f32 %v1916, %v2727
    %v3259 = vmax.f32 %v1924, %v2729
    %v3260 = vmax.f32 %v1923, %v2731
    %v3261 = vmax.f32 %v1925, %v2733
    %v3262 = vmax.f32 %v1934, %v2735
    %v3263 = vmax.f32 %v1942, %v2737
    %v3264 = vmax.f32 %v1941, %v2739
    %v3265 = vmax.f32 %v1943, %v2741
    %v3266 = vmax.f32 %v1952, %v2743
    %v3267 = vmax.f32 %v1960, %v2745
    %v3268 = vmax.f32 %v1959, %v2747
    %v3269 = vmax.f32 %v1961, %v2749
    %v3270 = vmax.f32 %v1970, %v2751
    %v3271 = vmax.f32 %v1978, %v2753
    %v3272 = vmax.f32 %v1977, %v2755
    %v3273 = vmax.f32 %v1979, %v2757
    %v3274 = vmax.f32 %v1988, %v2759
    %v3275 = vmax.f32 %v1996, %v2761
    %v3276 = vmax.f32 %v1995, %v2763
    %v3277 = vmax.f32 %v1997, %v2765
    %v3278 = vmax.f32 %v3022, %v3030
    %v3279 = vmax.f32 %v3023, %v3031
    %v3280 = vmax.f32 %v3024, %v3032
    %v3281 = vmax.f32 %v3025, %v3033
    %v3282 = vmax.f32 %v3026, %v3034
    %v3283 = vmax.f32 %v3027, %v3035
    %v3284 = vmax.f32 %v3028, %v3036
    %v3285 = vmax.f32 %v3029, %v3037
    %v3286 = vmax.f32 %v3038, %v3046
    %v3287 = vmax.f32 %v3039, %v3047
    %v3288 = vmax.f32 %v3040, %v3048
    %v3289 = vmax.f32 %v3041, %v3049
    %v3290 = vmax.f32 %v3042, %v3050
    %v3291 = vmax.f32 %v3043, %v3051
    %v3292 = vmax.f32 %v3044, %v3052
    %v3293 = vmax.f32 %v3045, %v3053
    %v3294 = vmax.f32 %v3054, %v3062
    %v3295 = vmax.f32 %v3055, %v3063
    %v3296 = vmax.f32 %v3056, %v3064
    %v3297 = vmax.f32 %v3057, %v3065
    %v3298 = vmax.f32 %v3058, %v3066
    %v3299 = vmax.f32 %v3059, %v3067
    %v3300 = vmax.f32 %v3060, %v3068
    %v3301 = vmax.f32 %v3061, %v3069
    %v3302 = vmax.f32 %v3070, %v3078
    %v3303 = vmax.f32 %v3071, %v3079
    %v3304 = vmax.f32 %v3072, %v3080
    %v3305 = vmax.f32 %v3073, %v3081
    %v3306 = vmax.f32 %v3074, %v3082
    %v3307 = vmax.f32 %v3075, %v3083
    %v3308 = vmax.f32 %v3076, %v3084
    %v3309 = vmax.f32 %v3077, %v3085
    %v3310 = vmax.f32 %v3086, %v3094
    %v3311 = vmax.f32 %v3087, %v3095
    %v3312 = vmax.f32 %v3088, %v3096
    %v3313 = vmax.f32 %v3089, %v3097
    %v3314 = vmax.f32 %v3090, %v3098
    %v3315 = vmax.f32 %v3091, %v3099
    %v3316 = vmax.f32 %v3092, %v3100
    %v3317 = vmax.f32 %v3093, %v3101
    %v3318 = vmax.f32 %v3102, %v3110
    %v3319 = vmax.f32 %v3103, %v3111
    %v3320 = vmax.f32 %v3104, %v3112
    %v3321 = vmax.f32 %v3105, %v3113
    %v3322 = vmax.f32 %v3106, %v3114
    %v3323 = vmax.f32 %v3107, %v3115
    %v3324 = vmax.f32 %v3108, %v3116
    %v3325 = vmax.f32 %v3109, %v3117
    %v3326 = vmax.f32 %v3118, %v3126
    %v3327 = vmax.f32 %v3119, %v3127
    %v3328 = vmax.f32 %v3120, %v3128
    %v3329 = vmax.f32 %v3121, %v3129
    %v3330 = vmax.f32 %v3122, %v3130
    %v3331 = vmax.f32 %v3123, %v3131
    %v3332 = vmax.f32 %v3124, %v3132
    %v3333 = vmax.f32 %v3125, %v3133
    %v3334 = vmax.f32 %v3134, %v3142
    %v3335 = vmax.f32 %v3135, %v3143
    %v3336 = vmax.f32 %v3136, %v3144
    %v3337 = vmax.f32 %v3137, %v3145
    %v3338 = vmax.f32 %v3138, %v3146
    %v3339 = vmax.f32 %v3139, %v3147
    %v3340 = vmax.f32 %v3140, %v3148
    %v3341 = vmax.f32 %v3141, %v3149
    %v3342 = vmax.f32 %v3150, %v3158
    %v3343 = vmax.f32 %v3151, %v3159
    %v3344 = vmax.f32 %v3152, %v3160
    %v3345 = vmax.f32 %v3153, %v3161
    %v3346 = vmax.f32 %v3154, %v3162
    %v3347 = vmax.f32 %v3155, %v3163
    %v3348 = vmax.f32 %v3156, %v3164
    %v3349 = vmax.f32 %v3157, %v3165
    %v3350 = vmax.f32 %v3166, %v3174
    %v3351 = vmax.f32 %v3167, %v3175
    %v3352 = vmax.f32 %v3168, %v3176
    %v3353 = vmax.f32 %v3169, %v3177
    %v3354 = vmax.f32 %v3170, %v3178
    %v3355 = vmax.f32 %v3171, %v3179
    %v3356 = vmax.f32 %v3172, %v3180
    %v3357 = vmax.f32 %v3173, %v3181
    %v3358 = vmax.f32 %v3182, %v3190
    %v3359 = vmax.f32 %v3183, %v3191
    %v3360 = vmax.f32 %v3184, %v3192
    %v3361 = vmax.f32 %v3185, %v3193
    %v3362 = vmax.f32 %v3186, %v3194
    %v3363 = vmax.f32 %v3187, %v3195
    %v3364 = vmax.f32 %v3188, %v3196
    %v3365 = vmax.f32 %v3189, %v3197
    %v3366 = vmax.f32 %v3198, %v3206
    %v3367 = vmax.f32 %v3199, %v3207
    %v3368 = vmax.f32 %v3200, %v3208
    %v3369 = vmax.f32 %v3201, %v3209
    %v3370 = vmax.f32 %v3202, %v3210
    %v3371 = vmax.f32 %v3203, %v3211
    %v3372 = vmax.f32 %v3204, %v3212
    %v3373 = vmax.f32 %v3205, %v3213
    %v3374 = vmax.f32 %v3214, %v3222
    %v3375 = vmax.f32 %v3215, %v3223
    %v3376 = vmax.f32 %v3216, %v3224
    %v3377 = vmax.f32 %v3217, %v3225
    %v3378 = vmax.f32 %v3218, %v3226
    %v3379 = vmax.f32 %v3219, %v3227
    %v3380 = vmax.f32 %v3220, %v3228
    %v3381 = vmax.f32 %v3221, %v3229
    %v3382 = vmax.f32 %v3230, %v3238
    %v3383 = vmax.f32 %v3231, %v3239
    %v3384 = vmax.f32 %v3232, %v3240
    %v3385 = vmax.f32 %v3233, %v3241
    %v3386 = vmax.f32 %v3234, %v3242
    %v3387 = vmax.f32 %v3235, %v3243
    %v3388 = vmax.f32 %v3236, %v3244
    %v3389 = vmax.f32 %v3237, %v3245
    %v3390 = vmax.f32 %v3246, %v3254
    %v3391 = vmax.f32 %v3247, %v3255
    %v3392 = vmax.f32 %v3248, %v3256
    %v3393 = vmax.f32 %v3249, %v3257
    %v3394 = vmax.f32 %v3250, %v3258
    %v3395 = vmax.f32 %v3251, %v3259
    %v3396 = vmax.f32 %v3252, %v3260
    %v3397 = vmax.f32 %v3253, %v3261
    %v3398 = vmax.f32 %v3262, %v3270
    %v3399 = vmax.f32 %v3263, %v3271
    %v3400 = vmax.f32 %v3264, %v3272
    %v3401 = vmax.f32 %v3265, %v3273
    %v3402 = vmax.f32 %v3266, %v3274
    %v3403 = vmax.f32 %v3267, %v3275
    %v3404 = vmax.f32 %v3268, %v3276
    %v3405 = vmax.f32 %v3269, %v3277
    %3406 = vst [vmem:[#allocation2] sm:$0xff] 0.0
    %3407 = vst [vmem:[#allocation2 + $0x8] sm:$0xff] 0.0
    %3408 = vst [vmem:[#allocation2 + $0x10] sm:$0x3] 0.0
    %3409 = vst [vmem:[#allocation2 + $0x18] sm:$0x3] 0.0
    %3410 = vst [vmem:[#allocation2 + $0x20] sm:$0xff] 0.0
    %3411 = vst [vmem:[#allocation2 + $0x28] sm:$0xff] 0.0
    %3412 = vst [vmem:[#allocation2 + $0x30] sm:$0x3] 0.0
    %3413 = vst [vmem:[#allocation2 + $0x38] sm:$0x3] 0.0
    %3414 = vst [vmem:[#allocation2 + $0x40] sm:$0xff] 0.0
    %3415 = vst [vmem:[#allocation2 + $0x48] sm:$0xff] 0.0
    %3416 = vst [vmem:[#allocation2 + $0x50] sm:$0x3] 0.0
    %3417 = vst [vmem:[#allocation2 + $0x58] sm:$0x3] 0.0
    %3418 = vst [vmem:[#allocation2 + $0x60] sm:$0xff] 0.0
    %3419 = vst [vmem:[#allocation2 + $0x68] sm:$0xff] 0.0
    %3420 = vst [vmem:[#allocation2 + $0x70] sm:$0x3] 0.0
    %3421 = vst [vmem:[#allocation2 + $0x78] sm:$0x3] 0.0
    %3422 = vst [vmem:[#allocation2 + $0x80] sm:$0xff] 0.0
    %3423 = vst [vmem:[#allocation2 + $0x88] sm:$0xff] 0.0
    %3424 = vst [vmem:[#allocation2 + $0x90] sm:$0x3] 0.0
    %3425 = vst [vmem:[#allocation2 + $0x98] sm:$0x3] 0.0
    %3426 = vst [vmem:[#allocation2 + $0xa0] sm:$0xff] 0.0
    %3427 = vst [vmem:[#allocation2 + $0xa8] sm:$0xff] 0.0
    %3428 = vst [vmem:[#allocation2 + $0xb0] sm:$0x3] 0.0
    %3429 = vst [vmem:[#allocation2 + $0xb8] sm:$0x3] 0.0
    %3430 = vst [vmem:[#allocation2 + $0xc0] sm:$0xff] 0.0
    %3431 = vst [vmem:[#allocation2 + $0xc8] sm:$0xff] 0.0
    %3432 = vst [vmem:[#allocation2 + $0xd0] sm:$0x3] 0.0
    %3433 = vst [vmem:[#allocation2 + $0xd8] sm:$0x3] 0.0
    %3434 = vst [vmem:[#allocation2 + $0xe0] sm:$0xff] 0.0
    %3435 = vst [vmem:[#allocation2 + $0xe8] sm:$0xff] 0.0
    %3436 = vst [vmem:[#allocation2 + $0xf0] sm:$0x3] 0.0
    %3437 = vst [vmem:[#allocation2 + $0xf8] sm:$0x3] 0.0
    %3438 = vst [vmem:[#allocation2 + $0x100] sm:$0xff] 0.0
    %3439 = vst [vmem:[#allocation2 + $0x108] sm:$0xff] 0.0
    %3440 = vst [vmem:[#allocation2 + $0x110] sm:$0x3] 0.0
    %3441 = vst [vmem:[#allocation2 + $0x118] sm:$0x3] 0.0
    %3442 = vst [vmem:[#allocation2 + $0x120] sm:$0xff] 0.0
    %3443 = vst [vmem:[#allocation2 + $0x128] sm:$0xff] 0.0
    %3444 = vst [vmem:[#allocation2 + $0x130] sm:$0x3] 0.0
    %3445 = vst [vmem:[#allocation2 + $0x138] sm:$0x3] 0.0
    %3446 = vst [vmem:[#allocation2 + $0x140] sm:$0xff] 0.0
    %3447 = vst [vmem:[#allocation2 + $0x148] sm:$0xff] 0.0
    %3448 = vst [vmem:[#allocation2 + $0x150] sm:$0x3] 0.0
    %3449 = vst [vmem:[#allocation2 + $0x158] sm:$0x3] 0.0
    %3450 = vst [vmem:[#allocation2 + $0x160] sm:$0xff] 0.0
    %3451 = vst [vmem:[#allocation2 + $0x168] sm:$0xff] 0.0
    %3452 = vst [vmem:[#allocation2 + $0x170] sm:$0x3] 0.0
    %3453 = vst [vmem:[#allocation2 + $0x178] sm:$0x3] 0.0
    %3454 = vst [vmem:[#allocation2 + $0x180] sm:$0xff] 0.0
    %3455 = vst [vmem:[#allocation2 + $0x188] sm:$0xff] 0.0
    %3456 = vst [vmem:[#allocation2 + $0x190] sm:$0x3] 0.0
    %3457 = vst [vmem:[#allocation2 + $0x198] sm:$0x3] 0.0
    %3458 = vst [vmem:[#allocation2 + $0x1a0] sm:$0xff] 0.0
    %3459 = vst [vmem:[#allocation2 + $0x1a8] sm:$0xff] 0.0
    %3460 = vst [vmem:[#allocation2 + $0x1b0] sm:$0x3] 0.0
    %3461 = vst [vmem:[#allocation2 + $0x1b8] sm:$0x3] 0.0
    %3462 = vst [vmem:[#allocation2 + $0x1c0] sm:$0xff] 0.0
    %3463 = vst [vmem:[#allocation2 + $0x1c8] sm:$0xff] 0.0
    %3464 = vst [vmem:[#allocation2 + $0x1d0] sm:$0x3] 0.0
    %3465 = vst [vmem:[#allocation2 + $0x1d8] sm:$0x3] 0.0
    %3466 = vst [vmem:[#allocation2 + $0x1e0] sm:$0xff] 0.0
    %3467 = vst [vmem:[#allocation2 + $0x1e8] sm:$0xff] 0.0
    %3468 = vst [vmem:[#allocation2 + $0x1f0] sm:$0x3] 0.0
    %3469 = vst [vmem:[#allocation2 + $0x1f8] sm:$0x3] 0.0
    %3470 = vst [vmem:[#allocation2 + $0x200] sm:$0xff] 0.0
    %3471 = vst [vmem:[#allocation2 + $0x208] sm:$0xff] 0.0
    %3472 = vst [vmem:[#allocation2 + $0x210] sm:$0x3] 0.0
    %3473 = vst [vmem:[#allocation2 + $0x218] sm:$0x3] 0.0
    %3474 = vst [vmem:[#allocation2 + $0x220] sm:$0xff] 0.0
    %3475 = vst [vmem:[#allocation2 + $0x228] sm:$0xff] 0.0
    %3476 = vst [vmem:[#allocation2 + $0x230] sm:$0x3] 0.0
    %3477 = vst [vmem:[#allocation2 + $0x238] sm:$0x3] 0.0
    %3478 = vst [vmem:[#allocation2 + $0x240] sm:$0xff] 0.0
    %3479 = vst [vmem:[#allocation2 + $0x248] sm:$0xff] 0.0
    %3480 = vst [vmem:[#allocation2 + $0x250] sm:$0x3] 0.0
    %3481 = vst [vmem:[#allocation2 + $0x258] sm:$0x3] 0.0
    %3482 = vst [vmem:[#allocation2 + $0x260] sm:$0xff] 0.0
    %3483 = vst [vmem:[#allocation2 + $0x268] sm:$0xff] 0.0
    %3484 = vst [vmem:[#allocation2 + $0x270] sm:$0x3] 0.0
    %3485 = vst [vmem:[#allocation2 + $0x278] sm:$0x3] 0.0
    %v3614 = vlaneseq
    %v3615 = vshrl.u32 %v3614, 7
    %v3616 = vsub.s32 0, %v3615
    %v3617 = vrot.slane %v3278, %v3616
    %v3618 = vlaneseq
    %v3619 = vshrl.u32 %v3618, 7
    %v3620 = vsub.s32 2, %v3619
    %v3621 = vrot.slane %v3278, %v3620
    %v3622 = vlaneseq
    %v3623 = vshrl.u32 %v3622, 7
    %v3624 = vsub.s32 0, %v3623
    %v3625 = vrot.slane %v3279, %v3624
    %v3626 = vlaneseq
    %v3627 = vshrl.u32 %v3626, 7
    %v3628 = vsub.s32 2, %v3627
    %v3629 = vrot.slane %v3279, %v3628
    %v3630 = vlaneseq
    %v3631 = vshrl.u32 %v3630, 7
    %v3632 = vsub.s32 0, %v3631
    %v3633 = vrot.slane %v3280, %v3632
    %v3634 = vlaneseq
    %v3635 = vshrl.u32 %v3634, 7
    %v3636 = vsub.s32 2, %v3635
    %v3637 = vrot.slane %v3280, %v3636
    %v3638 = vlaneseq
    %v3639 = vshrl.u32 %v3638, 7
    %v3640 = vsub.s32 0, %v3639
    %v3641 = vrot.slane %v3281, %v3640
    %v3642 = vlaneseq
    %v3643 = vshrl.u32 %v3642, 7
    %v3644 = vsub.s32 2, %v3643
    %v3645 = vrot.slane %v3281, %v3644
    %v3646 = vlaneseq
    %v3647 = vshrl.u32 %v3646, 7
    %v3648 = vsub.s32 0, %v3647
    %v3649 = vrot.slane %v3282, %v3648
    %v3650 = vlaneseq
    %v3651 = vshrl.u32 %v3650, 7
    %v3652 = vsub.s32 2, %v3651
    %v3653 = vrot.slane %v3282, %v3652
    %v3654 = vlaneseq
    %v3655 = vshrl.u32 %v3654, 7
    %v3656 = vsub.s32 0, %v3655
    %v3657 = vrot.slane %v3283, %v3656
    %v3658 = vlaneseq
    %v3659 = vshrl.u32 %v3658, 7
    %v3660 = vsub.s32 2, %v3659
    %v3661 = vrot.slane %v3283, %v3660
    %v3662 = vlaneseq
    %v3663 = vshrl.u32 %v3662, 7
    %v3664 = vsub.s32 0, %v3663
    %v3665 = vrot.slane %v3284, %v3664
    %v3666 = vlaneseq
    %v3667 = vshrl.u32 %v3666, 7
    %v3668 = vsub.s32 2, %v3667
    %v3669 = vrot.slane %v3284, %v3668
    %v3670 = vlaneseq
    %v3671 = vshrl.u32 %v3670, 7
    %v3672 = vsub.s32 0, %v3671
    %v3673 = vrot.slane %v3285, %v3672
    %v3674 = vlaneseq
    %v3675 = vshrl.u32 %v3674, 7
    %v3676 = vsub.s32 2, %v3675
    %v3677 = vrot.slane %v3285, %v3676
    %v3678 = vlaneseq
    %v3679 = vshrl.u32 %v3678, 7
    %v3680 = vsub.s32 0, %v3679
    %v3681 = vrot.slane %v3286, %v3680
    %v3682 = vlaneseq
    %v3683 = vshrl.u32 %v3682, 7
    %v3684 = vsub.s32 2, %v3683
    %v3685 = vrot.slane %v3286, %v3684
    %v3686 = vlaneseq
    %v3687 = vshrl.u32 %v3686, 7
    %v3688 = vsub.s32 0, %v3687
    %v3689 = vrot.slane %v3287, %v3688
    %v3690 = vlaneseq
    %v3691 = vshrl.u32 %v3690, 7
    %v3692 = vsub.s32 2, %v3691
    %v3693 = vrot.slane %v3287, %v3692
    %v3694 = vlaneseq
    %v3695 = vshrl.u32 %v3694, 7
    %v3696 = vsub.s32 0, %v3695
    %v3697 = vrot.slane %v3288, %v3696
    %v3698 = vlaneseq
    %v3699 = vshrl.u32 %v3698, 7
    %v3700 = vsub.s32 2, %v3699
    %v3701 = vrot.slane %v3288, %v3700
    %v3702 = vlaneseq
    %v3703 = vshrl.u32 %v3702, 7
    %v3704 = vsub.s32 0, %v3703
    %v3705 = vrot.slane %v3289, %v3704
    %v3706 = vlaneseq
    %v3707 = vshrl.u32 %v3706, 7
    %v3708 = vsub.s32 2, %v3707
    %v3709 = vrot.slane %v3289, %v3708
    %v3710 = vlaneseq
    %v3711 = vshrl.u32 %v3710, 7
    %v3712 = vsub.s32 0, %v3711
    %v3713 = vrot.slane %v3290, %v3712
    %v3714 = vlaneseq
    %v3715 = vshrl.u32 %v3714, 7
    %v3716 = vsub.s32 2, %v3715
    %v3717 = vrot.slane %v3290, %v3716
    %v3718 = vlaneseq
    %v3719 = vshrl.u32 %v3718, 7
    %v3720 = vsub.s32 0, %v3719
    %v3721 = vrot.slane %v3291, %v3720
    %v3722 = vlaneseq
    %v3723 = vshrl.u32 %v3722, 7
    %v3724 = vsub.s32 2, %v3723
    %v3725 = vrot.slane %v3291, %v3724
    %v3726 = vlaneseq
    %v3727 = vshrl.u32 %v3726, 7
    %v3728 = vsub.s32 0, %v3727
    %v3729 = vrot.slane %v3292, %v3728
    %v3730 = vlaneseq
    %v3731 = vshrl.u32 %v3730, 7
    %v3732 = vsub.s32 2, %v3731
    %v3733 = vrot.slane %v3292, %v3732
    %v3734 = vlaneseq
    %v3735 = vshrl.u32 %v3734, 7
    %v3736 = vsub.s32 0, %v3735
    %v3737 = vrot.slane %v3293, %v3736
    %v3738 = vlaneseq
    %v3739 = vshrl.u32 %v3738, 7
    %v3740 = vsub.s32 2, %v3739
    %v3741 = vrot.slane %v3293, %v3740
    %v3742 = vlaneseq
    %v3743 = vshrl.u32 %v3742, 7
    %v3744 = vsub.s32 0, %v3743
    %v3745 = vrot.slane %v3294, %v3744
    %v3746 = vlaneseq
    %v3747 = vshrl.u32 %v3746, 7
    %v3748 = vsub.s32 2, %v3747
    %v3749 = vrot.slane %v3294, %v3748
    %v3750 = vlaneseq
    %v3751 = vshrl.u32 %v3750, 7
    %v3752 = vsub.s32 0, %v3751
    %v3753 = vrot.slane %v3295, %v3752
    %v3754 = vlaneseq
    %v3755 = vshrl.u32 %v3754, 7
    %v3756 = vsub.s32 2, %v3755
    %v3757 = vrot.slane %v3295, %v3756
    %v3758 = vlaneseq
    %v3759 = vshrl.u32 %v3758, 7
    %v3760 = vsub.s32 0, %v3759
    %v3761 = vrot.slane %v3296, %v3760
    %v3762 = vlaneseq
    %v3763 = vshrl.u32 %v3762, 7
    %v3764 = vsub.s32 2, %v3763
    %v3765 = vrot.slane %v3296, %v3764
    %v3766 = vlaneseq
    %v3767 = vshrl.u32 %v3766, 7
    %v3768 = vsub.s32 0, %v3767
    %v3769 = vrot.slane %v3297, %v3768
    %v3770 = vlaneseq
    %v3771 = vshrl.u32 %v3770, 7
    %v3772 = vsub.s32 2, %v3771
    %v3773 = vrot.slane %v3297, %v3772
    %v3774 = vlaneseq
    %v3775 = vshrl.u32 %v3774, 7
    %v3776 = vsub.s32 0, %v3775
    %v3777 = vrot.slane %v3298, %v3776
    %v3778 = vlaneseq
    %v3779 = vshrl.u32 %v3778, 7
    %v3780 = vsub.s32 2, %v3779
    %v3781 = vrot.slane %v3298, %v3780
    %v3782 = vlaneseq
    %v3783 = vshrl.u32 %v3782, 7
    %v3784 = vsub.s32 0, %v3783
    %v3785 = vrot.slane %v3299, %v3784
    %v3786 = vlaneseq
    %v3787 = vshrl.u32 %v3786, 7
    %v3788 = vsub.s32 2, %v3787
    %v3789 = vrot.slane %v3299, %v3788
    %v3790 = vlaneseq
    %v3791 = vshrl.u32 %v3790, 7
    %v3792 = vsub.s32 0, %v3791
    %v3793 = vrot.slane %v3300, %v3792
    %v3794 = vlaneseq
    %v3795 = vshrl.u32 %v3794, 7
    %v3796 = vsub.s32 2, %v3795
    %v3797 = vrot.slane %v3300, %v3796
    %v3798 = vlaneseq
    %v3799 = vshrl.u32 %v3798, 7
    %v3800 = vsub.s32 0, %v3799
    %v3801 = vrot.slane %v3301, %v3800
    %v3802 = vlaneseq
    %v3803 = vshrl.u32 %v3802, 7
    %v3804 = vsub.s32 2, %v3803
    %v3805 = vrot.slane %v3301, %v3804
    %v3806 = vlaneseq
    %v3807 = vshrl.u32 %v3806, 7
    %v3808 = vsub.s32 0, %v3807
    %v3809 = vrot.slane %v3302, %v3808
    %v3810 = vlaneseq
    %v3811 = vshrl.u32 %v3810, 7
    %v3812 = vsub.s32 2, %v3811
    %v3813 = vrot.slane %v3302, %v3812
    %v3814 = vlaneseq
    %v3815 = vshrl.u32 %v3814, 7
    %v3816 = vsub.s32 0, %v3815
    %v3817 = vrot.slane %v3303, %v3816
    %v3818 = vlaneseq
    %v3819 = vshrl.u32 %v3818, 7
    %v3820 = vsub.s32 2, %v3819
    %v3821 = vrot.slane %v3303, %v3820
    %v3822 = vlaneseq
    %v3823 = vshrl.u32 %v3822, 7
    %v3824 = vsub.s32 0, %v3823
    %v3825 = vrot.slane %v3304, %v3824
    %v3826 = vlaneseq
    %v3827 = vshrl.u32 %v3826, 7
    %v3828 = vsub.s32 2, %v3827
    %v3829 = vrot.slane %v3304, %v3828
    %v3830 = vlaneseq
    %v3831 = vshrl.u32 %v3830, 7
    %v3832 = vsub.s32 0, %v3831
    %v3833 = vrot.slane %v3305, %v3832
    %v3834 = vlaneseq
    %v3835 = vshrl.u32 %v3834, 7
    %v3836 = vsub.s32 2, %v3835
    %v3837 = vrot.slane %v3305, %v3836
    %v3838 = vlaneseq
    %v3839 = vshrl.u32 %v3838, 7
    %v3840 = vsub.s32 0, %v3839
    %v3841 = vrot.slane %v3306, %v3840
    %v3842 = vlaneseq
    %v3843 = vshrl.u32 %v3842, 7
    %v3844 = vsub.s32 2, %v3843
    %v3845 = vrot.slane %v3306, %v3844
    %v3846 = vlaneseq
    %v3847 = vshrl.u32 %v3846, 7
    %v3848 = vsub.s32 0, %v3847
    %v3849 = vrot.slane %v3307, %v3848
    %v3850 = vlaneseq
    %v3851 = vshrl.u32 %v3850, 7
    %v3852 = vsub.s32 2, %v3851
    %v3853 = vrot.slane %v3307, %v3852
    %v3854 = vlaneseq
    %v3855 = vshrl.u32 %v3854, 7
    %v3856 = vsub.s32 0, %v3855
    %v3857 = vrot.slane %v3308, %v3856
    %v3858 = vlaneseq
    %v3859 = vshrl.u32 %v3858, 7
    %v3860 = vsub.s32 2, %v3859
    %v3861 = vrot.slane %v3308, %v3860
    %v3862 = vlaneseq
    %v3863 = vshrl.u32 %v3862, 7
    %v3864 = vsub.s32 0, %v3863
    %v3865 = vrot.slane %v3309, %v3864
    %v3866 = vlaneseq
    %v3867 = vshrl.u32 %v3866, 7
    %v3868 = vsub.s32 2, %v3867
    %v3869 = vrot.slane %v3309, %v3868
    %v3870 = vlaneseq
    %v3871 = vshrl.u32 %v3870, 7
    %v3872 = vsub.s32 0, %v3871
    %v3873 = vrot.slane %v3310, %v3872
    %v3874 = vlaneseq
    %v3875 = vshrl.u32 %v3874, 7
    %v3876 = vsub.s32 2, %v3875
    %v3877 = vrot.slane %v3310, %v3876
    %v3878 = vlaneseq
    %v3879 = vshrl.u32 %v3878, 7
    %v3880 = vsub.s32 0, %v3879
    %v3881 = vrot.slane %v3311, %v3880
    %v3882 = vlaneseq
    %v3883 = vshrl.u32 %v3882, 7
    %v3884 = vsub.s32 2, %v3883
    %v3885 = vrot.slane %v3311, %v3884
    %v3886 = vlaneseq
    %v3887 = vshrl.u32 %v3886, 7
    %v3888 = vsub.s32 0, %v3887
    %v3889 = vrot.slane %v3312, %v3888
    %v3890 = vlaneseq
    %v3891 = vshrl.u32 %v3890, 7
    %v3892 = vsub.s32 2, %v3891
    %v3893 = vrot.slane %v3312, %v3892
    %v3894 = vlaneseq
    %v3895 = vshrl.u32 %v3894, 7
    %v3896 = vsub.s32 0, %v3895
    %v3897 = vrot.slane %v3313, %v3896
    %v3898 = vlaneseq
    %v3899 = vshrl.u32 %v3898, 7
    %v3900 = vsub.s32 2, %v3899
    %v3901 = vrot.slane %v3313, %v3900
    %v3902 = vlaneseq
    %v3903 = vshrl.u32 %v3902, 7
    %v3904 = vsub.s32 0, %v3903
    %v3905 = vrot.slane %v3314, %v3904
    %v3906 = vlaneseq
    %v3907 = vshrl.u32 %v3906, 7
    %v3908 = vsub.s32 2, %v3907
    %v3909 = vrot.slane %v3314, %v3908
    %v3910 = vlaneseq
    %v3911 = vshrl.u32 %v3910, 7
    %v3912 = vsub.s32 0, %v3911
    %v3913 = vrot.slane %v3315, %v3912
    %v3914 = vlaneseq
    %v3915 = vshrl.u32 %v3914, 7
    %v3916 = vsub.s32 2, %v3915
    %v3917 = vrot.slane %v3315, %v3916
    %v3918 = vlaneseq
    %v3919 = vshrl.u32 %v3918, 7
    %v3920 = vsub.s32 0, %v3919
    %v3921 = vrot.slane %v3316, %v3920
    %v3922 = vlaneseq
    %v3923 = vshrl.u32 %v3922, 7
    %v3924 = vsub.s32 2, %v3923
    %v3925 = vrot.slane %v3316, %v3924
    %v3926 = vlaneseq
    %v3927 = vshrl.u32 %v3926, 7
    %v3928 = vsub.s32 0, %v3927
    %v3929 = vrot.slane %v3317, %v3928
    %v3930 = vlaneseq
    %v3931 = vshrl.u32 %v3930, 7
    %v3932 = vsub.s32 2, %v3931
    %v3933 = vrot.slane %v3317, %v3932
    %v3934 = vlaneseq
    %v3935 = vshrl.u32 %v3934, 7
    %v3936 = vsub.s32 0, %v3935
    %v3937 = vrot.slane %v3318, %v3936
    %v3938 = vlaneseq
    %v3939 = vshrl.u32 %v3938, 7
    %v3940 = vsub.s32 2, %v3939
    %v3941 = vrot.slane %v3318, %v3940
    %v3942 = vlaneseq
    %v3943 = vshrl.u32 %v3942, 7
    %v3944 = vsub.s32 0, %v3943
    %v3945 = vrot.slane %v3319, %v3944
    %v3946 = vlaneseq
    %v3947 = vshrl.u32 %v3946, 7
    %v3948 = vsub.s32 2, %v3947
    %v3949 = vrot.slane %v3319, %v3948
    %v3950 = vlaneseq
    %v3951 = vshrl.u32 %v3950, 7
    %v3952 = vsub.s32 0, %v3951
    %v3953 = vrot.slane %v3320, %v3952
    %v3954 = vlaneseq
    %v3955 = vshrl.u32 %v3954, 7
    %v3956 = vsub.s32 2, %v3955
    %v3957 = vrot.slane %v3320, %v3956
    %v3958 = vlaneseq
    %v3959 = vshrl.u32 %v3958, 7
    %v3960 = vsub.s32 0, %v3959
    %v3961 = vrot.slane %v3321, %v3960
    %v3962 = vlaneseq
    %v3963 = vshrl.u32 %v3962, 7
    %v3964 = vsub.s32 2, %v3963
    %v3965 = vrot.slane %v3321, %v3964
    %v3966 = vlaneseq
    %v3967 = vshrl.u32 %v3966, 7
    %v3968 = vsub.s32 0, %v3967
    %v3969 = vrot.slane %v3322, %v3968
    %v3970 = vlaneseq
    %v3971 = vshrl.u32 %v3970, 7
    %v3972 = vsub.s32 2, %v3971
    %v3973 = vrot.slane %v3322, %v3972
    %v3974 = vlaneseq
    %v3975 = vshrl.u32 %v3974, 7
    %v3976 = vsub.s32 0, %v3975
    %v3977 = vrot.slane %v3323, %v3976
    %v3978 = vlaneseq
    %v3979 = vshrl.u32 %v3978, 7
    %v3980 = vsub.s32 2, %v3979
    %v3981 = vrot.slane %v3323, %v3980
    %v3982 = vlaneseq
    %v3983 = vshrl.u32 %v3982, 7
    %v3984 = vsub.s32 0, %v3983
    %v3985 = vrot.slane %v3324, %v3984
    %v3986 = vlaneseq
    %v3987 = vshrl.u32 %v3986, 7
    %v3988 = vsub.s32 2, %v3987
    %v3989 = vrot.slane %v3324, %v3988
    %v3990 = vlaneseq
    %v3991 = vshrl.u32 %v3990, 7
    %v3992 = vsub.s32 0, %v3991
    %v3993 = vrot.slane %v3325, %v3992
    %v3994 = vlaneseq
    %v3995 = vshrl.u32 %v3994, 7
    %v3996 = vsub.s32 2, %v3995
    %v3997 = vrot.slane %v3325, %v3996
    %v3998 = vlaneseq
    %v3999 = vshrl.u32 %v3998, 7
    %v4000 = vsub.s32 0, %v3999
    %v4001 = vrot.slane %v3326, %v4000
    %v4002 = vlaneseq
    %v4003 = vshrl.u32 %v4002, 7
    %v4004 = vsub.s32 2, %v4003
    %v4005 = vrot.slane %v3326, %v4004
    %v4006 = vlaneseq
    %v4007 = vshrl.u32 %v4006, 7
    %v4008 = vsub.s32 0, %v4007
    %v4009 = vrot.slane %v3327, %v4008
    %v4010 = vlaneseq
    %v4011 = vshrl.u32 %v4010, 7
    %v4012 = vsub.s32 2, %v4011
    %v4013 = vrot.slane %v3327, %v4012
    %v4014 = vlaneseq
    %v4015 = vshrl.u32 %v4014, 7
    %v4016 = vsub.s32 0, %v4015
    %v4017 = vrot.slane %v3328, %v4016
    %v4018 = vlaneseq
    %v4019 = vshrl.u32 %v4018, 7
    %v4020 = vsub.s32 2, %v4019
    %v4021 = vrot.slane %v3328, %v4020
    %v4022 = vlaneseq
    %v4023 = vshrl.u32 %v4022, 7
    %v4024 = vsub.s32 0, %v4023
    %v4025 = vrot.slane %v3329, %v4024
    %v4026 = vlaneseq
    %v4027 = vshrl.u32 %v4026, 7
    %v4028 = vsub.s32 2, %v4027
    %v4029 = vrot.slane %v3329, %v4028
    %v4030 = vlaneseq
    %v4031 = vshrl.u32 %v4030, 7
    %v4032 = vsub.s32 0, %v4031
    %v4033 = vrot.slane %v3330, %v4032
    %v4034 = vlaneseq
    %v4035 = vshrl.u32 %v4034, 7
    %v4036 = vsub.s32 2, %v4035
    %v4037 = vrot.slane %v3330, %v4036
    %v4038 = vlaneseq
    %v4039 = vshrl.u32 %v4038, 7
    %v4040 = vsub.s32 0, %v4039
    %v4041 = vrot.slane %v3331, %v4040
    %v4042 = vlaneseq
    %v4043 = vshrl.u32 %v4042, 7
    %v4044 = vsub.s32 2, %v4043
    %v4045 = vrot.slane %v3331, %v4044
    %v4046 = vlaneseq
    %v4047 = vshrl.u32 %v4046, 7
    %v4048 = vsub.s32 0, %v4047
    %v4049 = vrot.slane %v3332, %v4048
    %v4050 = vlaneseq
    %v4051 = vshrl.u32 %v4050, 7
    %v4052 = vsub.s32 2, %v4051
    %v4053 = vrot.slane %v3332, %v4052
    %v4054 = vlaneseq
    %v4055 = vshrl.u32 %v4054, 7
    %v4056 = vsub.s32 0, %v4055
    %v4057 = vrot.slane %v3333, %v4056
    %v4058 = vlaneseq
    %v4059 = vshrl.u32 %v4058, 7
    %v4060 = vsub.s32 2, %v4059
    %v4061 = vrot.slane %v3333, %v4060
    %v4062 = vlaneseq
    %v4063 = vshrl.u32 %v4062, 7
    %v4064 = vsub.s32 0, %v4063
    %v4065 = vrot.slane %v3334, %v4064
    %v4066 = vlaneseq
    %v4067 = vshrl.u32 %v4066, 7
    %v4068 = vsub.s32 2, %v4067
    %v4069 = vrot.slane %v3334, %v4068
    %v4070 = vlaneseq
    %v4071 = vshrl.u32 %v4070, 7
    %v4072 = vsub.s32 0, %v4071
    %v4073 = vrot.slane %v3335, %v4072
    %v4074 = vlaneseq
    %v4075 = vshrl.u32 %v4074, 7
    %v4076 = vsub.s32 2, %v4075
    %v4077 = vrot.slane %v3335, %v4076
    %v4078 = vlaneseq
    %v4079 = vshrl.u32 %v4078, 7
    %v4080 = vsub.s32 0, %v4079
    %v4081 = vrot.slane %v3336, %v4080
    %v4082 = vlaneseq
    %v4083 = vshrl.u32 %v4082, 7
    %v4084 = vsub.s32 2, %v4083
    %v4085 = vrot.slane %v3336, %v4084
    %v4086 = vlaneseq
    %v4087 = vshrl.u32 %v4086, 7
    %v4088 = vsub.s32 0, %v4087
    %v4089 = vrot.slane %v3337, %v4088
    %v4090 = vlaneseq
    %v4091 = vshrl.u32 %v4090, 7
    %v4092 = vsub.s32 2, %v4091
    %v4093 = vrot.slane %v3337, %v4092
    %v4094 = vlaneseq
    %v4095 = vshrl.u32 %v4094, 7
    %v4096 = vsub.s32 0, %v4095
    %v4097 = vrot.slane %v3338, %v4096
    %v4098 = vlaneseq
    %v4099 = vshrl.u32 %v4098, 7
    %v4100 = vsub.s32 2, %v4099
    %v4101 = vrot.slane %v3338, %v4100
    %v4102 = vlaneseq
    %v4103 = vshrl.u32 %v4102, 7
    %v4104 = vsub.s32 0, %v4103
    %v4105 = vrot.slane %v3339, %v4104
    %v4106 = vlaneseq
    %v4107 = vshrl.u32 %v4106, 7
    %v4108 = vsub.s32 2, %v4107
    %v4109 = vrot.slane %v3339, %v4108
    %v4110 = vlaneseq
    %v4111 = vshrl.u32 %v4110, 7
    %v4112 = vsub.s32 0, %v4111
    %v4113 = vrot.slane %v3340, %v4112
    %v4114 = vlaneseq
    %v4115 = vshrl.u32 %v4114, 7
    %v4116 = vsub.s32 2, %v4115
    %v4117 = vrot.slane %v3340, %v4116
    %v4118 = vlaneseq
    %v4119 = vshrl.u32 %v4118, 7
    %v4120 = vsub.s32 0, %v4119
    %v4121 = vrot.slane %v3341, %v4120
    %v4122 = vlaneseq
    %v4123 = vshrl.u32 %v4122, 7
    %v4124 = vsub.s32 2, %v4123
    %v4125 = vrot.slane %v3341, %v4124
    %v4126 = vlaneseq
    %v4127 = vshrl.u32 %v4126, 7
    %v4128 = vsub.s32 0, %v4127
    %v4129 = vrot.slane %v3342, %v4128
    %v4130 = vlaneseq
    %v4131 = vshrl.u32 %v4130, 7
    %v4132 = vsub.s32 2, %v4131
    %v4133 = vrot.slane %v3342, %v4132
    %v4134 = vlaneseq
    %v4135 = vshrl.u32 %v4134, 7
    %v4136 = vsub.s32 0, %v4135
    %v4137 = vrot.slane %v3343, %v4136
    %v4138 = vlaneseq
    %v4139 = vshrl.u32 %v4138, 7
    %v4140 = vsub.s32 2, %v4139
    %v4141 = vrot.slane %v3343, %v4140
    %v4142 = vlaneseq
    %v4143 = vshrl.u32 %v4142, 7
    %v4144 = vsub.s32 0, %v4143
    %v4145 = vrot.slane %v3344, %v4144
    %v4146 = vlaneseq
    %v4147 = vshrl.u32 %v4146, 7
    %v4148 = vsub.s32 2, %v4147
    %v4149 = vrot.slane %v3344, %v4148
    %v4150 = vlaneseq
    %v4151 = vshrl.u32 %v4150, 7
    %v4152 = vsub.s32 0, %v4151
    %v4153 = vrot.slane %v3345, %v4152
    %v4154 = vlaneseq
    %v4155 = vshrl.u32 %v4154, 7
    %v4156 = vsub.s32 2, %v4155
    %v4157 = vrot.slane %v3345, %v4156
    %v4158 = vlaneseq
    %v4159 = vshrl.u32 %v4158, 7
    %v4160 = vsub.s32 0, %v4159
    %v4161 = vrot.slane %v3346, %v4160
    %v4162 = vlaneseq
    %v4163 = vshrl.u32 %v4162, 7
    %v4164 = vsub.s32 2, %v4163
    %v4165 = vrot.slane %v3346, %v4164
    %v4166 = vlaneseq
    %v4167 = vshrl.u32 %v4166, 7
    %v4168 = vsub.s32 0, %v4167
    %v4169 = vrot.slane %v3347, %v4168
    %v4170 = vlaneseq
    %v4171 = vshrl.u32 %v4170, 7
    %v4172 = vsub.s32 2, %v4171
    %v4173 = vrot.slane %v3347, %v4172
    %v4174 = vlaneseq
    %v4175 = vshrl.u32 %v4174, 7
    %v4176 = vsub.s32 0, %v4175
    %v4177 = vrot.slane %v3348, %v4176
    %v4178 = vlaneseq
    %v4179 = vshrl.u32 %v4178, 7
    %v4180 = vsub.s32 2, %v4179
    %v4181 = vrot.slane %v3348, %v4180
    %v4182 = vlaneseq
    %v4183 = vshrl.u32 %v4182, 7
    %v4184 = vsub.s32 0, %v4183
    %v4185 = vrot.slane %v3349, %v4184
    %v4186 = vlaneseq
    %v4187 = vshrl.u32 %v4186, 7
    %v4188 = vsub.s32 2, %v4187
    %v4189 = vrot.slane %v3349, %v4188
    %v4190 = vlaneseq
    %v4191 = vshrl.u32 %v4190, 7
    %v4192 = vsub.s32 0, %v4191
    %v4193 = vrot.slane %v3350, %v4192
    %v4194 = vlaneseq
    %v4195 = vshrl.u32 %v4194, 7
    %v4196 = vsub.s32 2, %v4195
    %v4197 = vrot.slane %v3350, %v4196
    %v4198 = vlaneseq
    %v4199 = vshrl.u32 %v4198, 7
    %v4200 = vsub.s32 0, %v4199
    %v4201 = vrot.slane %v3351, %v4200
    %v4202 = vlaneseq
    %v4203 = vshrl.u32 %v4202, 7
    %v4204 = vsub.s32 2, %v4203
    %v4205 = vrot.slane %v3351, %v4204
    %v4206 = vlaneseq
    %v4207 = vshrl.u32 %v4206, 7
    %v4208 = vsub.s32 0, %v4207
    %v4209 = vrot.slane %v3352, %v4208
    %v4210 = vlaneseq
    %v4211 = vshrl.u32 %v4210, 7
    %v4212 = vsub.s32 2, %v4211
    %v4213 = vrot.slane %v3352, %v4212
    %v4214 = vlaneseq
    %v4215 = vshrl.u32 %v4214, 7
    %v4216 = vsub.s32 0, %v4215
    %v4217 = vrot.slane %v3353, %v4216
    %v4218 = vlaneseq
    %v4219 = vshrl.u32 %v4218, 7
    %v4220 = vsub.s32 2, %v4219
    %v4221 = vrot.slane %v3353, %v4220
    %v4222 = vlaneseq
    %v4223 = vshrl.u32 %v4222, 7
    %v4224 = vsub.s32 0, %v4223
    %v4225 = vrot.slane %v3354, %v4224
    %v4226 = vlaneseq
    %v4227 = vshrl.u32 %v4226, 7
    %v4228 = vsub.s32 2, %v4227
    %v4229 = vrot.slane %v3354, %v4228
    %v4230 = vlaneseq
    %v4231 = vshrl.u32 %v4230, 7
    %v4232 = vsub.s32 0, %v4231
    %v4233 = vrot.slane %v3355, %v4232
    %v4234 = vlaneseq
    %v4235 = vshrl.u32 %v4234, 7
    %v4236 = vsub.s32 2, %v4235
    %v4237 = vrot.slane %v3355, %v4236
    %v4238 = vlaneseq
    %v4239 = vshrl.u32 %v4238, 7
    %v4240 = vsub.s32 0, %v4239
    %v4241 = vrot.slane %v3356, %v4240
    %v4242 = vlaneseq
    %v4243 = vshrl.u32 %v4242, 7
    %v4244 = vsub.s32 2, %v4243
    %v4245 = vrot.slane %v3356, %v4244
    %v4246 = vlaneseq
    %v4247 = vshrl.u32 %v4246, 7
    %v4248 = vsub.s32 0, %v4247
    %v4249 = vrot.slane %v3357, %v4248
    %v4250 = vlaneseq
    %v4251 = vshrl.u32 %v4250, 7
    %v4252 = vsub.s32 2, %v4251
    %v4253 = vrot.slane %v3357, %v4252
    %v4254 = vlaneseq
    %v4255 = vshrl.u32 %v4254, 7
    %v4256 = vsub.s32 0, %v4255
    %v4257 = vrot.slane %v3358, %v4256
    %v4258 = vlaneseq
    %v4259 = vshrl.u32 %v4258, 7
    %v4260 = vsub.s32 2, %v4259
    %v4261 = vrot.slane %v3358, %v4260
    %v4262 = vlaneseq
    %v4263 = vshrl.u32 %v4262, 7
    %v4264 = vsub.s32 0, %v4263
    %v4265 = vrot.slane %v3359, %v4264
    %v4266 = vlaneseq
    %v4267 = vshrl.u32 %v4266, 7
    %v4268 = vsub.s32 2, %v4267
    %v4269 = vrot.slane %v3359, %v4268
    %v4270 = vlaneseq
    %v4271 = vshrl.u32 %v4270, 7
    %v4272 = vsub.s32 0, %v4271
    %v4273 = vrot.slane %v3360, %v4272
    %v4274 = vlaneseq
    %v4275 = vshrl.u32 %v4274, 7
    %v4276 = vsub.s32 2, %v4275
    %v4277 = vrot.slane %v3360, %v4276
    %v4278 = vlaneseq
    %v4279 = vshrl.u32 %v4278, 7
    %v4280 = vsub.s32 0, %v4279
    %v4281 = vrot.slane %v3361, %v4280
    %v4282 = vlaneseq
    %v4283 = vshrl.u32 %v4282, 7
    %v4284 = vsub.s32 2, %v4283
    %v4285 = vrot.slane %v3361, %v4284
    %v4286 = vlaneseq
    %v4287 = vshrl.u32 %v4286, 7
    %v4288 = vsub.s32 0, %v4287
    %v4289 = vrot.slane %v3362, %v4288
    %v4290 = vlaneseq
    %v4291 = vshrl.u32 %v4290, 7
    %v4292 = vsub.s32 2, %v4291
    %v4293 = vrot.slane %v3362, %v4292
    %v4294 = vlaneseq
    %v4295 = vshrl.u32 %v4294, 7
    %v4296 = vsub.s32 0, %v4295
    %v4297 = vrot.slane %v3363, %v4296
    %v4298 = vlaneseq
    %v4299 = vshrl.u32 %v4298, 7
    %v4300 = vsub.s32 2, %v4299
    %v4301 = vrot.slane %v3363, %v4300
    %v4302 = vlaneseq
    %v4303 = vshrl.u32 %v4302, 7
    %v4304 = vsub.s32 0, %v4303
    %v4305 = vrot.slane %v3364, %v4304
    %v4306 = vlaneseq
    %v4307 = vshrl.u32 %v4306, 7
    %v4308 = vsub.s32 2, %v4307
    %v4309 = vrot.slane %v3364, %v4308
    %v4310 = vlaneseq
    %v4311 = vshrl.u32 %v4310, 7
    %v4312 = vsub.s32 0, %v4311
    %v4313 = vrot.slane %v3365, %v4312
    %v4314 = vlaneseq
    %v4315 = vshrl.u32 %v4314, 7
    %v4316 = vsub.s32 2, %v4315
    %v4317 = vrot.slane %v3365, %v4316
    %v4318 = vlaneseq
    %v4319 = vshrl.u32 %v4318, 7
    %v4320 = vsub.s32 0, %v4319
    %v4321 = vrot.slane %v3366, %v4320
    %v4322 = vlaneseq
    %v4323 = vshrl.u32 %v4322, 7
    %v4324 = vsub.s32 2, %v4323
    %v4325 = vrot.slane %v3366, %v4324
    %v4326 = vlaneseq
    %v4327 = vshrl.u32 %v4326, 7
    %v4328 = vsub.s32 0, %v4327
    %v4329 = vrot.slane %v3367, %v4328
    %v4330 = vlaneseq
    %v4331 = vshrl.u32 %v4330, 7
    %v4332 = vsub.s32 2, %v4331
    %v4333 = vrot.slane %v3367, %v4332
    %v4334 = vlaneseq
    %v4335 = vshrl.u32 %v4334, 7
    %v4336 = vsub.s32 0, %v4335
    %v4337 = vrot.slane %v3368, %v4336
    %v4338 = vlaneseq
    %v4339 = vshrl.u32 %v4338, 7
    %v4340 = vsub.s32 2, %v4339
    %v4341 = vrot.slane %v3368, %v4340
    %v4342 = vlaneseq
    %v4343 = vshrl.u32 %v4342, 7
    %v4344 = vsub.s32 0, %v4343
    %v4345 = vrot.slane %v3369, %v4344
    %v4346 = vlaneseq
    %v4347 = vshrl.u32 %v4346, 7
    %v4348 = vsub.s32 2, %v4347
    %v4349 = vrot.slane %v3369, %v4348
    %v4350 = vlaneseq
    %v4351 = vshrl.u32 %v4350, 7
    %v4352 = vsub.s32 0, %v4351
    %v4353 = vrot.slane %v3370, %v4352
    %v4354 = vlaneseq
    %v4355 = vshrl.u32 %v4354, 7
    %v4356 = vsub.s32 2, %v4355
    %v4357 = vrot.slane %v3370, %v4356
    %v4358 = vlaneseq
    %v4359 = vshrl.u32 %v4358, 7
    %v4360 = vsub.s32 0, %v4359
    %v4361 = vrot.slane %v3371, %v4360
    %v4362 = vlaneseq
    %v4363 = vshrl.u32 %v4362, 7
    %v4364 = vsub.s32 2, %v4363
    %v4365 = vrot.slane %v3371, %v4364
    %v4366 = vlaneseq
    %v4367 = vshrl.u32 %v4366, 7
    %v4368 = vsub.s32 0, %v4367
    %v4369 = vrot.slane %v3372, %v4368
    %v4370 = vlaneseq
    %v4371 = vshrl.u32 %v4370, 7
    %v4372 = vsub.s32 2, %v4371
    %v4373 = vrot.slane %v3372, %v4372
    %v4374 = vlaneseq
    %v4375 = vshrl.u32 %v4374, 7
    %v4376 = vsub.s32 0, %v4375
    %v4377 = vrot.slane %v3373, %v4376
    %v4378 = vlaneseq
    %v4379 = vshrl.u32 %v4378, 7
    %v4380 = vsub.s32 2, %v4379
    %v4381 = vrot.slane %v3373, %v4380
    %v4382 = vlaneseq
    %v4383 = vshrl.u32 %v4382, 7
    %v4384 = vsub.s32 0, %v4383
    %v4385 = vrot.slane %v3374, %v4384
    %v4386 = vlaneseq
    %v4387 = vshrl.u32 %v4386, 7
    %v4388 = vsub.s32 2, %v4387
    %v4389 = vrot.slane %v3374, %v4388
    %v4390 = vlaneseq
    %v4391 = vshrl.u32 %v4390, 7
    %v4392 = vsub.s32 0, %v4391
    %v4393 = vrot.slane %v3375, %v4392
    %v4394 = vlaneseq
    %v4395 = vshrl.u32 %v4394, 7
    %v4396 = vsub.s32 2, %v4395
    %v4397 = vrot.slane %v3375, %v4396
    %v4398 = vlaneseq
    %v4399 = vshrl.u32 %v4398, 7
    %v4400 = vsub.s32 0, %v4399
    %v4401 = vrot.slane %v3376, %v4400
    %v4402 = vlaneseq
    %v4403 = vshrl.u32 %v4402, 7
    %v4404 = vsub.s32 2, %v4403
    %v4405 = vrot.slane %v3376, %v4404
    %v4406 = vlaneseq
    %v4407 = vshrl.u32 %v4406, 7
    %v4408 = vsub.s32 0, %v4407
    %v4409 = vrot.slane %v3377, %v4408
    %v4410 = vlaneseq
    %v4411 = vshrl.u32 %v4410, 7
    %v4412 = vsub.s32 2, %v4411
    %v4413 = vrot.slane %v3377, %v4412
    %v4414 = vlaneseq
    %v4415 = vshrl.u32 %v4414, 7
    %v4416 = vsub.s32 0, %v4415
    %v4417 = vrot.slane %v3378, %v4416
    %v4418 = vlaneseq
    %v4419 = vshrl.u32 %v4418, 7
    %v4420 = vsub.s32 2, %v4419
    %v4421 = vrot.slane %v3378, %v4420
    %v4422 = vlaneseq
    %v4423 = vshrl.u32 %v4422, 7
    %v4424 = vsub.s32 0, %v4423
    %v4425 = vrot.slane %v3379, %v4424
    %v4426 = vlaneseq
    %v4427 = vshrl.u32 %v4426, 7
    %v4428 = vsub.s32 2, %v4427
    %v4429 = vrot.slane %v3379, %v4428
    %v4430 = vlaneseq
    %v4431 = vshrl.u32 %v4430, 7
    %v4432 = vsub.s32 0, %v4431
    %v4433 = vrot.slane %v3380, %v4432
    %v4434 = vlaneseq
    %v4435 = vshrl.u32 %v4434, 7
    %v4436 = vsub.s32 2, %v4435
    %v4437 = vrot.slane %v3380, %v4436
    %v4438 = vlaneseq
    %v4439 = vshrl.u32 %v4438, 7
    %v4440 = vsub.s32 0, %v4439
    %v4441 = vrot.slane %v3381, %v4440
    %v4442 = vlaneseq
    %v4443 = vshrl.u32 %v4442, 7
    %v4444 = vsub.s32 2, %v4443
    %v4445 = vrot.slane %v3381, %v4444
    %v4446 = vlaneseq
    %v4447 = vshrl.u32 %v4446, 7
    %v4448 = vsub.s32 0, %v4447
    %v4449 = vrot.slane %v3382, %v4448
    %v4450 = vlaneseq
    %v4451 = vshrl.u32 %v4450, 7
    %v4452 = vsub.s32 2, %v4451
    %v4453 = vrot.slane %v3382, %v4452
    %v4454 = vlaneseq
    %v4455 = vshrl.u32 %v4454, 7
    %v4456 = vsub.s32 0, %v4455
    %v4457 = vrot.slane %v3383, %v4456
    %v4458 = vlaneseq
    %v4459 = vshrl.u32 %v4458, 7
    %v4460 = vsub.s32 2, %v4459
    %v4461 = vrot.slane %v3383, %v4460
    %v4462 = vlaneseq
    %v4463 = vshrl.u32 %v4462, 7
    %v4464 = vsub.s32 0, %v4463
    %v4465 = vrot.slane %v3384, %v4464
    %v4466 = vlaneseq
    %v4467 = vshrl.u32 %v4466, 7
    %v4468 = vsub.s32 2, %v4467
    %v4469 = vrot.slane %v3384, %v4468
    %v4470 = vlaneseq
    %v4471 = vshrl.u32 %v4470, 7
    %v4472 = vsub.s32 0, %v4471
    %v4473 = vrot.slane %v3385, %v4472
    %v4474 = vlaneseq
    %v4475 = vshrl.u32 %v4474, 7
    %v4476 = vsub.s32 2, %v4475
    %v4477 = vrot.slane %v3385, %v4476
    %v4478 = vlaneseq
    %v4479 = vshrl.u32 %v4478, 7
    %v4480 = vsub.s32 0, %v4479
    %v4481 = vrot.slane %v3386, %v4480
    %v4482 = vlaneseq
    %v4483 = vshrl.u32 %v4482, 7
    %v4484 = vsub.s32 2, %v4483
    %v4485 = vrot.slane %v3386, %v4484
    %v4486 = vlaneseq
    %v4487 = vshrl.u32 %v4486, 7
    %v4488 = vsub.s32 0, %v4487
    %v4489 = vrot.slane %v3387, %v4488
    %v4490 = vlaneseq
    %v4491 = vshrl.u32 %v4490, 7
    %v4492 = vsub.s32 2, %v4491
    %v4493 = vrot.slane %v3387, %v4492
    %v4494 = vlaneseq
    %v4495 = vshrl.u32 %v4494, 7
    %v4496 = vsub.s32 0, %v4495
    %v4497 = vrot.slane %v3388, %v4496
    %v4498 = vlaneseq
    %v4499 = vshrl.u32 %v4498, 7
    %v4500 = vsub.s32 2, %v4499
    %v4501 = vrot.slane %v3388, %v4500
    %v4502 = vlaneseq
    %v4503 = vshrl.u32 %v4502, 7
    %v4504 = vsub.s32 0, %v4503
    %v4505 = vrot.slane %v3389, %v4504
    %v4506 = vlaneseq
    %v4507 = vshrl.u32 %v4506, 7
    %v4508 = vsub.s32 2, %v4507
    %v4509 = vrot.slane %v3389, %v4508
    %v4510 = vlaneseq
    %v4511 = vshrl.u32 %v4510, 7
    %v4512 = vsub.s32 0, %v4511
    %v4513 = vrot.slane %v3390, %v4512
    %v4514 = vlaneseq
    %v4515 = vshrl.u32 %v4514, 7
    %v4516 = vsub.s32 2, %v4515
    %v4517 = vrot.slane %v3390, %v4516
    %v4518 = vlaneseq
    %v4519 = vshrl.u32 %v4518, 7
    %v4520 = vsub.s32 0, %v4519
    %v4521 = vrot.slane %v3391, %v4520
    %v4522 = vlaneseq
    %v4523 = vshrl.u32 %v4522, 7
    %v4524 = vsub.s32 2, %v4523
    %v4525 = vrot.slane %v3391, %v4524
    %v4526 = vlaneseq
    %v4527 = vshrl.u32 %v4526, 7
    %v4528 = vsub.s32 0, %v4527
    %v4529 = vrot.slane %v3392, %v4528
    %v4530 = vlaneseq
    %v4531 = vshrl.u32 %v4530, 7
    %v4532 = vsub.s32 2, %v4531
    %v4533 = vrot.slane %v3392, %v4532
    %v4534 = vlaneseq
    %v4535 = vshrl.u32 %v4534, 7
    %v4536 = vsub.s32 0, %v4535
    %v4537 = vrot.slane %v3393, %v4536
    %v4538 = vlaneseq
    %v4539 = vshrl.u32 %v4538, 7
    %v4540 = vsub.s32 2, %v4539
    %v4541 = vrot.slane %v3393, %v4540
    %v4542 = vlaneseq
    %v4543 = vshrl.u32 %v4542, 7
    %v4544 = vsub.s32 0, %v4543
    %v4545 = vrot.slane %v3394, %v4544
    %v4546 = vlaneseq
    %v4547 = vshrl.u32 %v4546, 7
    %v4548 = vsub.s32 2, %v4547
    %v4549 = vrot.slane %v3394, %v4548
    %v4550 = vlaneseq
    %v4551 = vshrl.u32 %v4550, 7
    %v4552 = vsub.s32 0, %v4551
    %v4553 = vrot.slane %v3395, %v4552
    %v4554 = vlaneseq
    %v4555 = vshrl.u32 %v4554, 7
    %v4556 = vsub.s32 2, %v4555
    %v4557 = vrot.slane %v3395, %v4556
    %v4558 = vlaneseq
    %v4559 = vshrl.u32 %v4558, 7
    %v4560 = vsub.s32 0, %v4559
    %v4561 = vrot.slane %v3396, %v4560
    %v4562 = vlaneseq
    %v4563 = vshrl.u32 %v4562, 7
    %v4564 = vsub.s32 2, %v4563
    %v4565 = vrot.slane %v3396, %v4564
    %v4566 = vlaneseq
    %v4567 = vshrl.u32 %v4566, 7
    %v4568 = vsub.s32 0, %v4567
    %v4569 = vrot.slane %v3397, %v4568
    %v4570 = vlaneseq
    %v4571 = vshrl.u32 %v4570, 7
    %v4572 = vsub.s32 2, %v4571
    %v4573 = vrot.slane %v3397, %v4572
    %v4574 = vlaneseq
    %v4575 = vshrl.u32 %v4574, 7
    %v4576 = vsub.s32 0, %v4575
    %v4577 = vrot.slane %v3398, %v4576
    %v4578 = vlaneseq
    %v4579 = vshrl.u32 %v4578, 7
    %v4580 = vsub.s32 2, %v4579
    %v4581 = vrot.slane %v3398, %v4580
    %v4582 = vlaneseq
    %v4583 = vshrl.u32 %v4582, 7
    %v4584 = vsub.s32 0, %v4583
    %v4585 = vrot.slane %v3399, %v4584
    %v4586 = vlaneseq
    %v4587 = vshrl.u32 %v4586, 7
    %v4588 = vsub.s32 2, %v4587
    %v4589 = vrot.slane %v3399, %v4588
    %v4590 = vlaneseq
    %v4591 = vshrl.u32 %v4590, 7
    %v4592 = vsub.s32 0, %v4591
    %v4593 = vrot.slane %v3400, %v4592
    %v4594 = vlaneseq
    %v4595 = vshrl.u32 %v4594, 7
    %v4596 = vsub.s32 2, %v4595
    %v4597 = vrot.slane %v3400, %v4596
    %v4598 = vlaneseq
    %v4599 = vshrl.u32 %v4598, 7
    %v4600 = vsub.s32 0, %v4599
    %v4601 = vrot.slane %v3401, %v4600
    %v4602 = vlaneseq
    %v4603 = vshrl.u32 %v4602, 7
    %v4604 = vsub.s32 2, %v4603
    %v4605 = vrot.slane %v3401, %v4604
    %v4606 = vlaneseq
    %v4607 = vshrl.u32 %v4606, 7
    %v4608 = vsub.s32 0, %v4607
    %v4609 = vrot.slane %v3402, %v4608
    %v4610 = vlaneseq
    %v4611 = vshrl.u32 %v4610, 7
    %v4612 = vsub.s32 2, %v4611
    %v4613 = vrot.slane %v3402, %v4612
    %v4614 = vlaneseq
    %v4615 = vshrl.u32 %v4614, 7
    %v4616 = vsub.s32 0, %v4615
    %v4617 = vrot.slane %v3403, %v4616
    %v4618 = vlaneseq
    %v4619 = vshrl.u32 %v4618, 7
    %v4620 = vsub.s32 2, %v4619
    %v4621 = vrot.slane %v3403, %v4620
    %v4622 = vlaneseq
    %v4623 = vshrl.u32 %v4622, 7
    %v4624 = vsub.s32 0, %v4623
    %v4625 = vrot.slane %v3404, %v4624
    %v4626 = vlaneseq
    %v4627 = vshrl.u32 %v4626, 7
    %v4628 = vsub.s32 2, %v4627
    %v4629 = vrot.slane %v3404, %v4628
    %v4630 = vlaneseq
    %v4631 = vshrl.u32 %v4630, 7
    %v4632 = vsub.s32 0, %v4631
    %v4633 = vrot.slane %v3405, %v4632
    %v4634 = vlaneseq
    %v4635 = vshrl.u32 %v4634, 7
    %v4636 = vsub.s32 2, %v4635
    %v4637 = vrot.slane %v3405, %v4636
    %vm4638 = vcmask 1042434
    %v4639 = vsel %vm4638, %v3625, %v3617
    %vm4640 = vcmask 1043459
    %v4641 = vsel %vm4640, %v3633, %v4639
    %vm4642 = vcmask 1044484
    %v4643 = vsel %vm4642, %v3641, %v4641
    %vm4644 = vcmask 1045509
    %v4645 = vsel %vm4644, %v3649, %v4643
    %vm4646 = vcmask 1046534
    %v4647 = vsel %vm4646, %v3657, %v4645
    %vm4648 = vcmask 1047559
    %v4649 = vsel %vm4648, %v3665, %v4647
    %v4650 = vsel %vm4638, %v3629, %v3621
    %v4651 = vsel %vm4640, %v3637, %v4650
    %v4652 = vsel %vm4642, %v3645, %v4651
    %v4653 = vsel %vm4644, %v3653, %v4652
    %v4654 = vsel %vm4646, %v3661, %v4653
    %v4655 = vsel %vm4648, %v3669, %v4654
    %v4656 = vsel %vm4638, %v3689, %v3681
    %v4657 = vsel %vm4640, %v3697, %v4656
    %v4658 = vsel %vm4642, %v3705, %v4657
    %v4659 = vsel %vm4644, %v3713, %v4658
    %v4660 = vsel %vm4646, %v3721, %v4659
    %v4661 = vsel %vm4648, %v3729, %v4660
    %v4662 = vsel %vm4638, %v3693, %v3685
    %v4663 = vsel %vm4640, %v3701, %v4662
    %v4664 = vsel %vm4642, %v3709, %v4663
    %v4665 = vsel %vm4644, %v3717, %v4664
    %v4666 = vsel %vm4646, %v3725, %v4665
    %v4667 = vsel %vm4648, %v3733, %v4666
    %v4668 = vsel %vm4638, %v3753, %v3745
    %v4669 = vsel %vm4640, %v3761, %v4668
    %v4670 = vsel %vm4642, %v3769, %v4669
    %v4671 = vsel %vm4644, %v3777, %v4670
    %v4672 = vsel %vm4646, %v3785, %v4671
    %v4673 = vsel %vm4648, %v3793, %v4672
    %v4674 = vsel %vm4638, %v3757, %v3749
    %v4675 = vsel %vm4640, %v3765, %v4674
    %v4676 = vsel %vm4642, %v3773, %v4675
    %v4677 = vsel %vm4644, %v3781, %v4676
    %v4678 = vsel %vm4646, %v3789, %v4677
    %v4679 = vsel %vm4648, %v3797, %v4678
    %v4680 = vsel %vm4638, %v3817, %v3809
    %v4681 = vsel %vm4640, %v3825, %v4680
    %v4682 = vsel %vm4642, %v3833, %v4681
    %v4683 = vsel %vm4644, %v3841, %v4682
    %v4684 = vsel %vm4646, %v3849, %v4683
    %v4685 = vsel %vm4648, %v3857, %v4684
    %v4686 = vsel %vm4638, %v3821, %v3813
    %v4687 = vsel %vm4640, %v3829, %v4686
    %v4688 = vsel %vm4642, %v3837, %v4687
    %v4689 = vsel %vm4644, %v3845, %v4688
    %v4690 = vsel %vm4646, %v3853, %v4689
    %v4691 = vsel %vm4648, %v3861, %v4690
    %v4692 = vsel %vm4638, %v3881, %v3873
    %v4693 = vsel %vm4640, %v3889, %v4692
    %v4694 = vsel %vm4642, %v3897, %v4693
    %v4695 = vsel %vm4644, %v3905, %v4694
    %v4696 = vsel %vm4646, %v3913, %v4695
    %v4697 = vsel %vm4648, %v3921, %v4696
    %v4698 = vsel %vm4638, %v3885, %v3877
    %v4699 = vsel %vm4640, %v3893, %v4698
    %v4700 = vsel %vm4642, %v3901, %v4699
    %v4701 = vsel %vm4644, %v3909, %v4700
    %v4702 = vsel %vm4646, %v3917, %v4701
    %v4703 = vsel %vm4648, %v3925, %v4702
    %v4704 = vsel %vm4638, %v3945, %v3937
    %v4705 = vsel %vm4640, %v3953, %v4704
    %v4706 = vsel %vm4642, %v3961, %v4705
    %v4707 = vsel %vm4644, %v3969, %v4706
    %v4708 = vsel %vm4646, %v3977, %v4707
    %v4709 = vsel %vm4648, %v3985, %v4708
    %v4710 = vsel %vm4638, %v3949, %v3941
    %v4711 = vsel %vm4640, %v3957, %v4710
    %v4712 = vsel %vm4642, %v3965, %v4711
    %v4713 = vsel %vm4644, %v3973, %v4712
    %v4714 = vsel %vm4646, %v3981, %v4713
    %v4715 = vsel %vm4648, %v3989, %v4714
    %v4716 = vsel %vm4638, %v4009, %v4001
    %v4717 = vsel %vm4640, %v4017, %v4716
    %v4718 = vsel %vm4642, %v4025, %v4717
    %v4719 = vsel %vm4644, %v4033, %v4718
    %v4720 = vsel %vm4646, %v4041, %v4719
    %v4721 = vsel %vm4648, %v4049, %v4720
    %v4722 = vsel %vm4638, %v4013, %v4005
    %v4723 = vsel %vm4640, %v4021, %v4722
    %v4724 = vsel %vm4642, %v4029, %v4723
    %v4725 = vsel %vm4644, %v4037, %v4724
    %v4726 = vsel %vm4646, %v4045, %v4725
    %v4727 = vsel %vm4648, %v4053, %v4726
    %v4728 = vsel %vm4638, %v4073, %v4065
    %v4729 = vsel %vm4640, %v4081, %v4728
    %v4730 = vsel %vm4642, %v4089, %v4729
    %v4731 = vsel %vm4644, %v4097, %v4730
    %v4732 = vsel %vm4646, %v4105, %v4731
    %v4733 = vsel %vm4648, %v4113, %v4732
    %v4734 = vsel %vm4638, %v4077, %v4069
    %v4735 = vsel %vm4640, %v4085, %v4734
    %v4736 = vsel %vm4642, %v4093, %v4735
    %v4737 = vsel %vm4644, %v4101, %v4736
    %v4738 = vsel %vm4646, %v4109, %v4737
    %v4739 = vsel %vm4648, %v4117, %v4738
    %v4740 = vsel %vm4638, %v4137, %v4129
    %v4741 = vsel %vm4640, %v4145, %v4740
    %v4742 = vsel %vm4642, %v4153, %v4741
    %v4743 = vsel %vm4644, %v4161, %v4742
    %v4744 = vsel %vm4646, %v4169, %v4743
    %v4745 = vsel %vm4648, %v4177, %v4744
    %v4746 = vsel %vm4638, %v4141, %v4133
    %v4747 = vsel %vm4640, %v4149, %v4746
    %v4748 = vsel %vm4642, %v4157, %v4747
    %v4749 = vsel %vm4644, %v4165, %v4748
    %v4750 = vsel %vm4646, %v4173, %v4749
    %v4751 = vsel %vm4648, %v4181, %v4750
    %v4752 = vsel %vm4638, %v4201, %v4193
    %v4753 = vsel %vm4640, %v4209, %v4752
    %v4754 = vsel %vm4642, %v4217, %v4753
    %v4755 = vsel %vm4644, %v4225, %v4754
    %v4756 = vsel %vm4646, %v4233, %v4755
    %v4757 = vsel %vm4648, %v4241, %v4756
    %v4758 = vsel %vm4638, %v4205, %v4197
    %v4759 = vsel %vm4640, %v4213, %v4758
    %v4760 = vsel %vm4642, %v4221, %v4759
    %v4761 = vsel %vm4644, %v4229, %v4760
    %v4762 = vsel %vm4646, %v4237, %v4761
    %v4763 = vsel %vm4648, %v4245, %v4762
    %v4764 = vsel %vm4638, %v4265, %v4257
    %v4765 = vsel %vm4640, %v4273, %v4764
    %v4766 = vsel %vm4642, %v4281, %v4765
    %v4767 = vsel %vm4644, %v4289, %v4766
    %v4768 = vsel %vm4646, %v4297, %v4767
    %v4769 = vsel %vm4648, %v4305, %v4768
    %v4770 = vsel %vm4638, %v4269, %v4261
    %v4771 = vsel %vm4640, %v4277, %v4770
    %v4772 = vsel %vm4642, %v4285, %v4771
    %v4773 = vsel %vm4644, %v4293, %v4772
    %v4774 = vsel %vm4646, %v4301, %v4773
    %v4775 = vsel %vm4648, %v4309, %v4774
    %v4776 = vsel %vm4638, %v4329, %v4321
    %v4777 = vsel %vm4640, %v4337, %v4776
    %v4778 = vsel %vm4642, %v4345, %v4777
    %v4779 = vsel %vm4644, %v4353, %v4778
    %v4780 = vsel %vm4646, %v4361, %v4779
    %v4781 = vsel %vm4648, %v4369, %v4780
    %v4782 = vsel %vm4638, %v4333, %v4325
    %v4783 = vsel %vm4640, %v4341, %v4782
    %v4784 = vsel %vm4642, %v4349, %v4783
    %v4785 = vsel %vm4644, %v4357, %v4784
    %v4786 = vsel %vm4646, %v4365, %v4785
    %v4787 = vsel %vm4648, %v4373, %v4786
    %v4788 = vsel %vm4638, %v4393, %v4385
    %v4789 = vsel %vm4640, %v4401, %v4788
    %v4790 = vsel %vm4642, %v4409, %v4789
    %v4791 = vsel %vm4644, %v4417, %v4790
    %v4792 = vsel %vm4646, %v4425, %v4791
    %v4793 = vsel %vm4648, %v4433, %v4792
    %v4794 = vsel %vm4638, %v4397, %v4389
    %v4795 = vsel %vm4640, %v4405, %v4794
    %v4796 = vsel %vm4642, %v4413, %v4795
    %v4797 = vsel %vm4644, %v4421, %v4796
    %v4798 = vsel %vm4646, %v4429, %v4797
    %v4799 = vsel %vm4648, %v4437, %v4798
    %v4800 = vsel %vm4638, %v4457, %v4449
    %v4801 = vsel %vm4640, %v4465, %v4800
    %v4802 = vsel %vm4642, %v4473, %v4801
    %v4803 = vsel %vm4644, %v4481, %v4802
    %v4804 = vsel %vm4646, %v4489, %v4803
    %v4805 = vsel %vm4648, %v4497, %v4804
    %v4806 = vsel %vm4638, %v4461, %v4453
    %v4807 = vsel %vm4640, %v4469, %v4806
    %v4808 = vsel %vm4642, %v4477, %v4807
    %v4809 = vsel %vm4644, %v4485, %v4808
    %v4810 = vsel %vm4646, %v4493, %v4809
    %v4811 = vsel %vm4648, %v4501, %v4810
    %v4812 = vsel %vm4638, %v4521, %v4513
    %v4813 = vsel %vm4640, %v4529, %v4812
    %v4814 = vsel %vm4642, %v4537, %v4813
    %v4815 = vsel %vm4644, %v4545, %v4814
    %v4816 = vsel %vm4646, %v4553, %v4815
    %v4817 = vsel %vm4648, %v4561, %v4816
    %v4818 = vsel %vm4638, %v4525, %v4517
    %v4819 = vsel %vm4640, %v4533, %v4818
    %v4820 = vsel %vm4642, %v4541, %v4819
    %v4821 = vsel %vm4644, %v4549, %v4820
    %v4822 = vsel %vm4646, %v4557, %v4821
    %v4823 = vsel %vm4648, %v4565, %v4822
    %v4824 = vsel %vm4638, %v4585, %v4577
    %v4825 = vsel %vm4640, %v4593, %v4824
    %v4826 = vsel %vm4642, %v4601, %v4825
    %v4827 = vsel %vm4644, %v4609, %v4826
    %v4828 = vsel %vm4646, %v4617, %v4827
    %v4829 = vsel %vm4648, %v4625, %v4828
    %v4830 = vsel %vm4638, %v4589, %v4581
    %v4831 = vsel %vm4640, %v4597, %v4830
    %v4832 = vsel %vm4642, %v4605, %v4831
    %v4833 = vsel %vm4644, %v4613, %v4832
    %v4834 = vsel %vm4646, %v4621, %v4833
    %v4835 = vsel %vm4648, %v4629, %v4834
    %s4900 = scalar_lea.vmem [#allocation2], 32
    %4901 = vst [vmem:[%s4900] sm:$0xfe] %v4649
    %4902 = vst [vmem:[%s4900 + $0x8] sm:$0xfe] %v4655
    %4903 = vst [vmem:[%s4900 + $0x10] sm:$0x1] %v3673
    %4904 = vst [vmem:[%s4900 + $0x18] sm:$0x1] %v3677
    %4905 = vst [vmem:[%s4900 + $0x20] sm:$0xfe] %v4661
    %4906 = vst [vmem:[%s4900 + $0x28] sm:$0xfe] %v4667
    %4907 = vst [vmem:[%s4900 + $0x30] sm:$0x1] %v3737
    %4908 = vst [vmem:[%s4900 + $0x38] sm:$0x1] %v3741
    %4909 = vst [vmem:[%s4900 + $0x40] sm:$0xfe] %v4673
    %4910 = vst [vmem:[%s4900 + $0x48] sm:$0xfe] %v4679
    %4911 = vst [vmem:[%s4900 + $0x50] sm:$0x1] %v3801
    %4912 = vst [vmem:[%s4900 + $0x58] sm:$0x1] %v3805
    %4913 = vst [vmem:[%s4900 + $0x60] sm:$0xfe] %v4685
    %4914 = vst [vmem:[%s4900 + $0x68] sm:$0xfe] %v4691
    %4915 = vst [vmem:[%s4900 + $0x70] sm:$0x1] %v3865
    %4916 = vst [vmem:[%s4900 + $0x78] sm:$0x1] %v3869
    %4917 = vst [vmem:[%s4900 + $0x80] sm:$0xfe] %v4697
    %4918 = vst [vmem:[%s4900 + $0x88] sm:$0xfe] %v4703
    %4919 = vst [vmem:[%s4900 + $0x90] sm:$0x1] %v3929
    %4920 = vst [vmem:[%s4900 + $0x98] sm:$0x1] %v3933
    %4921 = vst [vmem:[%s4900 + $0xa0] sm:$0xfe] %v4709
    %4922 = vst [vmem:[%s4900 + $0xa8] sm:$0xfe] %v4715
    %4923 = vst [vmem:[%s4900 + $0xb0] sm:$0x1] %v3993
    %4924 = vst [vmem:[%s4900 + $0xb8] sm:$0x1] %v3997
    %4925 = vst [vmem:[%s4900 + $0xc0] sm:$0xfe] %v4721
    %4926 = vst [vmem:[%s4900 + $0xc8] sm:$0xfe] %v4727
    %4927 = vst [vmem:[%s4900 + $0xd0] sm:$0x1] %v4057
    %4928 = vst [vmem:[%s4900 + $0xd8] sm:$0x1] %v4061
    %4929 = vst [vmem:[%s4900 + $0xe0] sm:$0xfe] %v4733
    %4930 = vst [vmem:[%s4900 + $0xe8] sm:$0xfe] %v4739
    %4931 = vst [vmem:[%s4900 + $0xf0] sm:$0x1] %v4121
    %4932 = vst [vmem:[%s4900 + $0xf8] sm:$0x1] %v4125
    %4933 = vst [vmem:[%s4900 + $0x140] sm:$0xfe] %v4745
    %4934 = vst [vmem:[%s4900 + $0x148] sm:$0xfe] %v4751
    %4935 = vst [vmem:[%s4900 + $0x150] sm:$0x1] %v4185
    %4936 = vst [vmem:[%s4900 + $0x158] sm:$0x1] %v4189
    %4937 = vst [vmem:[%s4900 + $0x160] sm:$0xfe] %v4757
    %4938 = vst [vmem:[%s4900 + $0x168] sm:$0xfe] %v4763
    %4939 = vst [vmem:[%s4900 + $0x170] sm:$0x1] %v4249
    %4940 = vst [vmem:[%s4900 + $0x178] sm:$0x1] %v4253
    %4941 = vst [vmem:[%s4900 + $0x180] sm:$0xfe] %v4769
    %4942 = vst [vmem:[%s4900 + $0x188] sm:$0xfe] %v4775
    %4943 = vst [vmem:[%s4900 + $0x190] sm:$0x1] %v4313
    %4944 = vst [vmem:[%s4900 + $0x198] sm:$0x1] %v4317
    %4945 = vst [vmem:[%s4900 + $0x1a0] sm:$0xfe] %v4781
    %4946 = vst [vmem:[%s4900 + $0x1a8] sm:$0xfe] %v4787
    %4947 = vst [vmem:[%s4900 + $0x1b0] sm:$0x1] %v4377
    %4948 = vst [vmem:[%s4900 + $0x1b8] sm:$0x1] %v4381
    %4949 = vst [vmem:[%s4900 + $0x1c0] sm:$0xfe] %v4793
    %4950 = vst [vmem:[%s4900 + $0x1c8] sm:$0xfe] %v4799
    %4951 = vst [vmem:[%s4900 + $0x1d0] sm:$0x1] %v4441
    %4952 = vst [vmem:[%s4900 + $0x1d8] sm:$0x1] %v4445
    %4953 = vst [vmem:[%s4900 + $0x1e0] sm:$0xfe] %v4805
    %4954 = vst [vmem:[%s4900 + $0x1e8] sm:$0xfe] %v4811
    %4955 = vst [vmem:[%s4900 + $0x1f0] sm:$0x1] %v4505
    %4956 = vst [vmem:[%s4900 + $0x1f8] sm:$0x1] %v4509
    %4957 = vst [vmem:[%s4900 + $0x200] sm:$0xfe] %v4817
    %4958 = vst [vmem:[%s4900 + $0x208] sm:$0xfe] %v4823
    %4959 = vst [vmem:[%s4900 + $0x210] sm:$0x1] %v4569
    %4960 = vst [vmem:[%s4900 + $0x218] sm:$0x1] %v4573
    %4961 = vst [vmem:[%s4900 + $0x220] sm:$0xfe] %v4829
    %4962 = vst [vmem:[%s4900 + $0x228] sm:$0xfe] %v4835
    %4963 = vst [vmem:[%s4900 + $0x230] sm:$0x1] %v4633
    %4964 = vst [vmem:[%s4900 + $0x238] sm:$0x1] %v4637
    %v4965 = vld [vmem:[#allocation2] sm:$0xff]
    %v4966 = vld [vmem:[#allocation2 + $0x8] sm:$0xff]
    %v4967 = vld [vmem:[#allocation2 + $0x20] sm:$0xff]
    %v4968 = vld [vmem:[#allocation2 + $0x28] sm:$0xff]
    %v4969 = vld [vmem:[#allocation2 + $0x40] sm:$0xff]
    %v4970 = vld [vmem:[#allocation2 + $0x48] sm:$0xff]
    %v4971 = vld [vmem:[#allocation2 + $0x60] sm:$0xff]
    %v4972 = vld [vmem:[#allocation2 + $0x68] sm:$0xff]
    %v4973 = vld [vmem:[#allocation2 + $0x80] sm:$0xff]
    %v4974 = vld [vmem:[#allocation2 + $0x88] sm:$0xff]
    %v4975 = vld [vmem:[#allocation2 + $0xa0] sm:$0xff]
    %v4976 = vld [vmem:[#allocation2 + $0xa8] sm:$0xff]
    %v4977 = vld [vmem:[#allocation2 + $0xc0] sm:$0xff]
    %v4978 = vld [vmem:[#allocation2 + $0xc8] sm:$0xff]
    %v4979 = vld [vmem:[#allocation2 + $0xe0] sm:$0xff]
    %v4980 = vld [vmem:[#allocation2 + $0xe8] sm:$0xff]
    %v4981 = vld [vmem:[#allocation2 + $0x140] sm:$0xff]
    %v4982 = vld [vmem:[#allocation2 + $0x148] sm:$0xff]
    %v4983 = vld [vmem:[#allocation2 + $0x160] sm:$0xff]
    %v4984 = vld [vmem:[#allocation2 + $0x168] sm:$0xff]
    %v4985 = vld [vmem:[#allocation2 + $0x180] sm:$0xff]
    %v4986 = vld [vmem:[#allocation2 + $0x188] sm:$0xff]
    %v4987 = vld [vmem:[#allocation2 + $0x1a0] sm:$0xff]
    %v4988 = vld [vmem:[#allocation2 + $0x1a8] sm:$0xff]
    %v4989 = vld [vmem:[#allocation2 + $0x1c0] sm:$0xff]
    %v4990 = vld [vmem:[#allocation2 + $0x1c8] sm:$0xff]
    %v4991 = vld [vmem:[#allocation2 + $0x1e0] sm:$0xff]
    %v4992 = vld [vmem:[#allocation2 + $0x1e8] sm:$0xff]
    %v4993 = vld [vmem:[#allocation2 + $0x200] sm:$0xff]
    %v4994 = vld [vmem:[#allocation2 + $0x208] sm:$0xff]
    %v4995 = vld [vmem:[#allocation2 + $0x220] sm:$0xff]
    %v4996 = vld [vmem:[#allocation2 + $0x228] sm:$0xff]
    %v4997 = vld [vmem:[%s3] sm:$0xff]
    %v4998 = vld [vmem:[%s3 + $0x8] sm:$0xff]
    %v4999 = vld [vmem:[%s3 + $0x10] sm:$0xff]
    %v5000 = vld [vmem:[%s3 + $0x18] sm:$0xff]
    %v5001 = vld [vmem:[%s3 + $0x20] sm:$0xff]
    %v5002 = vld [vmem:[%s3 + $0x28] sm:$0xff]
    %v5003 = vld [vmem:[%s3 + $0x30] sm:$0xff]
    %v5004 = vld [vmem:[%s3 + $0x38] sm:$0xff]
    %v5005 = vld [vmem:[%s3 + $0x40] sm:$0xff]
    %v5006 = vld [vmem:[%s3 + $0x48] sm:$0xff]
    %v5007 = vld [vmem:[%s3 + $0x50] sm:$0xff]
    %v5008 = vld [vmem:[%s3 + $0x58] sm:$0xff]
    %v5009 = vld [vmem:[%s3 + $0x60] sm:$0xff]
    %v5010 = vld [vmem:[%s3 + $0x68] sm:$0xff]
    %v5011 = vld [vmem:[%s3 + $0x70] sm:$0xff]
    %v5012 = vld [vmem:[%s3 + $0x78] sm:$0xff]
    %v5013 = vld [vmem:[%s3 + $0x80] sm:$0xff]
    %v5014 = vld [vmem:[%s3 + $0x88] sm:$0xff]
    %v5015 = vld [vmem:[%s3 + $0x90] sm:$0xff]
    %v5016 = vld [vmem:[%s3 + $0x98] sm:$0xff]
    %v5017 = vld [vmem:[%s3 + $0xa0] sm:$0xff]
    %v5018 = vld [vmem:[%s3 + $0xa8] sm:$0xff]
    %v5019 = vld [vmem:[%s3 + $0xb0] sm:$0xff]
    %v5020 = vld [vmem:[%s3 + $0xb8] sm:$0xff]
    %v5021 = vld [vmem:[%s3 + $0xc0] sm:$0xff]
    %v5022 = vld [vmem:[%s3 + $0xc8] sm:$0xff]
    %v5023 = vld [vmem:[%s3 + $0xd0] sm:$0xff]
    %v5024 = vld [vmem:[%s3 + $0xd8] sm:$0xff]
    %v5025 = vld [vmem:[%s3 + $0xe0] sm:$0xff]
    %v5026 = vld [vmem:[%s3 + $0xe8] sm:$0xff]
    %v5027 = vld [vmem:[%s3 + $0xf0] sm:$0xff]
    %v5028 = vld [vmem:[%s3 + $0xf8] sm:$0xff]
    %v5029 = vld [vmem:[#allocation2] sm:$0xfe]
    %v5030 = vld [vmem:[#allocation2 + $0x8] sm:$0xfe]
    %v5031 = vld [vmem:[#allocation2 + $0x10] sm:$0x1]
    %v5032 = vld [vmem:[#allocation2 + $0x18] sm:$0x1]
    %v5033 = vld [vmem:[#allocation2 + $0x20] sm:$0xfe]
    %v5034 = vld [vmem:[#allocation2 + $0x28] sm:$0xfe]
    %v5035 = vld [vmem:[#allocation2 + $0x30] sm:$0x1]
    %v5036 = vld [vmem:[#allocation2 + $0x38] sm:$0x1]
    %v5037 = vld [vmem:[#allocation2 + $0x40] sm:$0xfe]
    %v5038 = vld [vmem:[#allocation2 + $0x48] sm:$0xfe]
    %v5039 = vld [vmem:[#allocation2 + $0x50] sm:$0x1]
    %v5040 = vld [vmem:[#allocation2 + $0x58] sm:$0x1]
    %v5041 = vld [vmem:[#allocation2 + $0x60] sm:$0xfe]
    %v5042 = vld [vmem:[#allocation2 + $0x68] sm:$0xfe]
    %v5043 = vld [vmem:[#allocation2 + $0x70] sm:$0x1]
    %v5044 = vld [vmem:[#allocation2 + $0x78] sm:$0x1]
    %v5045 = vld [vmem:[#allocation2 + $0x80] sm:$0xfe]
    %v5046 = vld [vmem:[#allocation2 + $0x88] sm:$0xfe]
    %v5047 = vld [vmem:[#allocation2 + $0x90] sm:$0x1]
    %v5048 = vld [vmem:[#allocation2 + $0x98] sm:$0x1]
    %v5049 = vld [vmem:[#allocation2 + $0xa0] sm:$0xfe]
    %v5050 = vld [vmem:[#allocation2 + $0xa8] sm:$0xfe]
    %v5051 = vld [vmem:[#allocation2 + $0xb0] sm:$0x1]
    %v5052 = vld [vmem:[#allocation2 + $0xb8] sm:$0x1]
    %v5053 = vld [vmem:[#allocation2 + $0xc0] sm:$0xfe]
    %v5054 = vld [vmem:[#allocation2 + $0xc8] sm:$0xfe]
    %v5055 = vld [vmem:[#allocation2 + $0xd0] sm:$0x1]
    %v5056 = vld [vmem:[#allocation2 + $0xd8] sm:$0x1]
    %v5057 = vld [vmem:[#allocation2 + $0xe0] sm:$0xfe]
    %v5058 = vld [vmem:[#allocation2 + $0xe8] sm:$0xfe]
    %v5059 = vld [vmem:[#allocation2 + $0xf0] sm:$0x1]
    %v5060 = vld [vmem:[#allocation2 + $0xf8] sm:$0x1]
    %v5061 = vld [vmem:[#allocation2 + $0x140] sm:$0xfe]
    %v5062 = vld [vmem:[#allocation2 + $0x148] sm:$0xfe]
    %v5063 = vld [vmem:[#allocation2 + $0x150] sm:$0x1]
    %v5064 = vld [vmem:[#allocation2 + $0x158] sm:$0x1]
    %v5065 = vld [vmem:[#allocation2 + $0x160] sm:$0xfe]
    %v5066 = vld [vmem:[#allocation2 + $0x168] sm:$0xfe]
    %v5067 = vld [vmem:[#allocation2 + $0x170] sm:$0x1]
    %v5068 = vld [vmem:[#allocation2 + $0x178] sm:$0x1]
    %v5069 = vld [vmem:[#allocation2 + $0x180] sm:$0xfe]
    %v5070 = vld [vmem:[#allocation2 + $0x188] sm:$0xfe]
    %v5071 = vld [vmem:[#allocation2 + $0x190] sm:$0x1]
    %v5072 = vld [vmem:[#allocation2 + $0x198] sm:$0x1]
    %v5073 = vld [vmem:[#allocation2 + $0x1a0] sm:$0xfe]
    %v5074 = vld [vmem:[#allocation2 + $0x1a8] sm:$0xfe]
    %v5075 = vld [vmem:[#allocation2 + $0x1b0] sm:$0x1]
    %v5076 = vld [vmem:[#allocation2 + $0x1b8] sm:$0x1]
    %v5077 = vld [vmem:[#allocation2 + $0x1c0] sm:$0xfe]
    %v5078 = vld [vmem:[#allocation2 + $0x1c8] sm:$0xfe]
    %v5079 = vld [vmem:[#allocation2 + $0x1d0] sm:$0x1]
    %v5080 = vld [vmem:[#allocation2 + $0x1d8] sm:$0x1]
    %v5081 = vld [vmem:[#allocation2 + $0x1e0] sm:$0xfe]
    %v5082 = vld [vmem:[#allocation2 + $0x1e8] sm:$0xfe]
    %v5083 = vld [vmem:[#allocation2 + $0x1f0] sm:$0x1]
    %v5084 = vld [vmem:[#allocation2 + $0x1f8] sm:$0x1]
    %v5085 = vld [vmem:[#allocation2 + $0x200] sm:$0xfe]
    %v5086 = vld [vmem:[#allocation2 + $0x208] sm:$0xfe]
    %v5087 = vld [vmem:[#allocation2 + $0x210] sm:$0x1]
    %v5088 = vld [vmem:[#allocation2 + $0x218] sm:$0x1]
    %v5089 = vld [vmem:[#allocation2 + $0x220] sm:$0xfe]
    %v5090 = vld [vmem:[#allocation2 + $0x228] sm:$0xfe]
    %v5091 = vld [vmem:[#allocation2 + $0x230] sm:$0x1]
    %v5092 = vld [vmem:[#allocation2 + $0x238] sm:$0x1]
    %vm5157 = vcmask 1046528
    %v5158 = vrot.slane %v5029, 1
    %v5159 = vrot.slane %v5031, 1
    %v5160 = vsel %vm5157, %v5158, %v5159
    %v5161 = vrot.slane %v5030, 1
    %v5162 = vrot.slane %v5032, 1
    %v5163 = vsel %vm5157, %v5161, %v5162
    %v5164 = vrot.slane %v5033, 1
    %v5165 = vrot.slane %v5035, 1
    %v5166 = vsel %vm5157, %v5164, %v5165
    %v5167 = vrot.slane %v5034, 1
    %v5168 = vrot.slane %v5036, 1
    %v5169 = vsel %vm5157, %v5167, %v5168
    %v5170 = vrot.slane %v5037, 1
    %v5171 = vrot.slane %v5039, 1
    %v5172 = vsel %vm5157, %v5170, %v5171
    %v5173 = vrot.slane %v5038, 1
    %v5174 = vrot.slane %v5040, 1
    %v5175 = vsel %vm5157, %v5173, %v5174
    %v5176 = vrot.slane %v5041, 1
    %v5177 = vrot.slane %v5043, 1
    %v5178 = vsel %vm5157, %v5176, %v5177
    %v5179 = vrot.slane %v5042, 1
    %v5180 = vrot.slane %v5044, 1
    %v5181 = vsel %vm5157, %v5179, %v5180
    %v5182 = vrot.slane %v5045, 1
    %v5183 = vrot.slane %v5047, 1
    %v5184 = vsel %vm5157, %v5182, %v5183
    %v5185 = vrot.slane %v5046, 1
    %v5186 = vrot.slane %v5048, 1
    %v5187 = vsel %vm5157, %v5185, %v5186
    %v5188 = vrot.slane %v5049, 1
    %v5189 = vrot.slane %v5051, 1
    %v5190 = vsel %vm5157, %v5188, %v5189
    %v5191 = vrot.slane %v5050, 1
    %v5192 = vrot.slane %v5052, 1
    %v5193 = vsel %vm5157, %v5191, %v5192
    %v5194 = vrot.slane %v5053, 1
    %v5195 = vrot.slane %v5055, 1
    %v5196 = vsel %vm5157, %v5194, %v5195
    %v5197 = vrot.slane %v5054, 1
    %v5198 = vrot.slane %v5056, 1
    %v5199 = vsel %vm5157, %v5197, %v5198
    %v5200 = vrot.slane %v5057, 1
    %v5201 = vrot.slane %v5059, 1
    %v5202 = vsel %vm5157, %v5200, %v5201
    %v5203 = vrot.slane %v5058, 1
    %v5204 = vrot.slane %v5060, 1
    %v5205 = vsel %vm5157, %v5203, %v5204
    %v5206 = vrot.slane %v5061, 1
    %v5207 = vrot.slane %v5063, 1
    %v5208 = vsel %vm5157, %v5206, %v5207
    %v5209 = vrot.slane %v5062, 1
    %v5210 = vrot.slane %v5064, 1
    %v5211 = vsel %vm5157, %v5209, %v5210
    %v5212 = vrot.slane %v5065, 1
    %v5213 = vrot.slane %v5067, 1
    %v5214 = vsel %vm5157, %v5212, %v5213
    %v5215 = vrot.slane %v5066, 1
    %v5216 = vrot.slane %v5068, 1
    %v5217 = vsel %vm5157, %v5215, %v5216
    %v5218 = vrot.slane %v5069, 1
    %v5219 = vrot.slane %v5071, 1
    %v5220 = vsel %vm5157, %v5218, %v5219
    %v5221 = vrot.slane %v5070, 1
    %v5222 = vrot.slane %v5072, 1
    %v5223 = vsel %vm5157, %v5221, %v5222
    %v5224 = vrot.slane %v5073, 1
    %v5225 = vrot.slane %v5075, 1
    %v5226 = vsel %vm5157, %v5224, %v5225
    %v5227 = vrot.slane %v5074, 1
    %v5228 = vrot.slane %v5076, 1
    %v5229 = vsel %vm5157, %v5227, %v5228
    %v5230 = vrot.slane %v5077, 1
    %v5231 = vrot.slane %v5079, 1
    %v5232 = vsel %vm5157, %v5230, %v5231
    %v5233 = vrot.slane %v5078, 1
    %v5234 = vrot.slane %v5080, 1
    %v5235 = vsel %vm5157, %v5233, %v5234
    %v5236 = vrot.slane %v5081, 1
    %v5237 = vrot.slane %v5083, 1
    %v5238 = vsel %vm5157, %v5236, %v5237
    %v5239 = vrot.slane %v5082, 1
    %v5240 = vrot.slane %v5084, 1
    %v5241 = vsel %vm5157, %v5239, %v5240
    %v5242 = vrot.slane %v5085, 1
    %v5243 = vrot.slane %v5087, 1
    %v5244 = vsel %vm5157, %v5242, %v5243
    %v5245 = vrot.slane %v5086, 1
    %v5246 = vrot.slane %v5088, 1
    %v5247 = vsel %vm5157, %v5245, %v5246
    %v5248 = vrot.slane %v5089, 1
    %v5249 = vrot.slane %v5091, 1
    %v5250 = vsel %vm5157, %v5248, %v5249
    %v5251 = vrot.slane %v5090, 1
    %v5252 = vrot.slane %v5092, 1
    %v5253 = vsel %vm5157, %v5251, %v5252
    %s5286 = scalar_lea.vmem %s3, 256
    %v5287 = vld [vmem:[%s5286] sm:$0xff]
    %v5288 = vld [vmem:[%s5286 + $0x8] sm:$0xff]
    %v5289 = vld [vmem:[%s5286 + $0x10] sm:$0xff]
    %v5290 = vld [vmem:[%s5286 + $0x18] sm:$0xff]
    %v5291 = vld [vmem:[%s5286 + $0x20] sm:$0xff]
    %v5292 = vld [vmem:[%s5286 + $0x28] sm:$0xff]
    %v5293 = vld [vmem:[%s5286 + $0x30] sm:$0xff]
    %v5294 = vld [vmem:[%s5286 + $0x38] sm:$0xff]
    %v5295 = vld [vmem:[%s5286 + $0x40] sm:$0xff]
    %v5296 = vld [vmem:[%s5286 + $0x48] sm:$0xff]
    %v5297 = vld [vmem:[%s5286 + $0x50] sm:$0xff]
    %v5298 = vld [vmem:[%s5286 + $0x58] sm:$0xff]
    %v5299 = vld [vmem:[%s5286 + $0x60] sm:$0xff]
    %v5300 = vld [vmem:[%s5286 + $0x68] sm:$0xff]
    %v5301 = vld [vmem:[%s5286 + $0x70] sm:$0xff]
    %v5302 = vld [vmem:[%s5286 + $0x78] sm:$0xff]
    %v5303 = vld [vmem:[%s5286 + $0x80] sm:$0xff]
    %v5304 = vld [vmem:[%s5286 + $0x88] sm:$0xff]
    %v5305 = vld [vmem:[%s5286 + $0x90] sm:$0xff]
    %v5306 = vld [vmem:[%s5286 + $0x98] sm:$0xff]
    %v5307 = vld [vmem:[%s5286 + $0xa0] sm:$0xff]
    %v5308 = vld [vmem:[%s5286 + $0xa8] sm:$0xff]
    %v5309 = vld [vmem:[%s5286 + $0xb0] sm:$0xff]
    %v5310 = vld [vmem:[%s5286 + $0xb8] sm:$0xff]
    %v5311 = vld [vmem:[%s5286 + $0xc0] sm:$0xff]
    %v5312 = vld [vmem:[%s5286 + $0xc8] sm:$0xff]
    %v5313 = vld [vmem:[%s5286 + $0xd0] sm:$0xff]
    %v5314 = vld [vmem:[%s5286 + $0xd8] sm:$0xff]
    %v5315 = vld [vmem:[%s5286 + $0xe0] sm:$0xff]
    %v5316 = vld [vmem:[%s5286 + $0xe8] sm:$0xff]
    %v5317 = vld [vmem:[%s5286 + $0xf0] sm:$0xff]
    %v5318 = vld [vmem:[%s5286 + $0xf8] sm:$0xff]
    %5319 = vmatprep.subr.mxu0 0.0
    %5320 = vmatpush1.msra.mxu0 %v5287
    %5321 = vmatprep.subr.mxu0 0.0
    %5322 = vmatpush1.msra.mxu0 %v5288
    %5323 = vmatprep.subr.mxu0 0.0
    %5324 = vmatpush1.msra.mxu0 %v5289
    %5325 = vmatprep.subr.mxu0 0.0
    %5326 = vmatpush1.msra.mxu0 %v5290
    %5327 = vmatprep.subr.mxu0 0.0
    %5328 = vmatpush1.msra.mxu0 %v5291
    %5329 = vmatprep.subr.mxu0 0.0
    %5330 = vmatpush1.msra.mxu0 %v5292
    %5331 = vmatprep.subr.mxu0 0.0
    %5332 = vmatpush1.msra.mxu0 %v5293
    %5333 = vmatprep.subr.mxu0 0.0
    %5334 = vmatpush1.msra.mxu0 %v5294
    %5335 = vmatprep.subr.mxu0 0.0
    %5336 = vmatpush1.msra.mxu0 %v5295
    %5337 = vmatprep.subr.mxu0 0.0
    %5338 = vmatpush1.msra.mxu0 %v5296
    %5339 = vmatprep.subr.mxu0 0.0
    %5340 = vmatpush1.msra.mxu0 %v5297
    %5341 = vmatprep.subr.mxu0 0.0
    %5342 = vmatpush1.msra.mxu0 %v5298
    %5343 = vmatprep.subr.mxu0 0.0
    %5344 = vmatpush1.msra.mxu0 %v5299
    %5345 = vmatprep.subr.mxu0 0.0
    %5346 = vmatpush1.msra.mxu0 %v5300
    %5347 = vmatprep.subr.mxu0 0.0
    %5348 = vmatpush1.msra.mxu0 %v5301
    %5349 = vmatprep.subr.mxu0 0.0
    %5350 = vmatpush1.msra.mxu0 %v5302
    %5351 = vmatprep.subr.mxu0 0.0
    %5352 = vmatpush1.msra.mxu0 %v5303
    %5353 = vmatprep.subr.mxu0 0.0
    %5354 = vmatpush1.msra.mxu0 %v5304
    %5355 = vmatprep.subr.mxu0 0.0
    %5356 = vmatpush1.msra.mxu0 %v5305
    %5357 = vmatprep.subr.mxu0 0.0
    %5358 = vmatpush1.msra.mxu0 %v5306
    %5359 = vmatprep.subr.mxu0 0.0
    %5360 = vmatpush1.msra.mxu0 %v5307
    %5361 = vmatprep.subr.mxu0 0.0
    %5362 = vmatpush1.msra.mxu0 %v5308
    %5363 = vmatprep.subr.mxu0 0.0
    %5364 = vmatpush1.msra.mxu0 %v5309
    %5365 = vmatprep.subr.mxu0 0.0
    %5366 = vmatpush1.msra.mxu0 %v5310
    %5367 = vmatprep.subr.mxu0 0.0
    %5368 = vmatpush1.msra.mxu0 %v5311
    %5369 = vmatprep.subr.mxu0 0.0
    %5370 = vmatpush1.msra.mxu0 %v5312
    %5371 = vmatprep.subr.mxu0 0.0
    %5372 = vmatpush1.msra.mxu0 %v5313
    %5373 = vmatprep.subr.mxu0 0.0
    %5374 = vmatpush1.msra.mxu0 %v5314
    %5375 = vmatprep.subr.mxu0 0.0
    %5376 = vmatpush1.msra.mxu0 %v5315
    %5377 = vmatprep.subr.mxu0 0.0
    %5378 = vmatpush1.msra.mxu0 %v5316
    %5379 = vmatprep.subr.mxu0 0.0
    %5380 = vmatpush1.msra.mxu0 %v5317
    %5381 = vmatprep.subr.mxu0 0.0
    %5382 = vmatpush1.msra.mxu0 %v5318
    %5383 = vmatprep.mubr.f32.mxu0 %v5163
    %5384 = vmatmul.mubr.f32.gmra.mrb[0].mxu0 %v5160
    %v5385 = vpop.f32.mrb[0].mxu0
    %v5386 = vadd.f32 0.0, %v5385
    %v5387 = vpop.f32.mrb[0].mxu0
    %5388 = vmatprep.mubr.f32.mxu0 %v5169
    %5389 = vmatmul.mubr.f32.gmra.mrb[0].mxu0 %v5166
    %v5390 = vpop.f32.mrb[0].mxu0
    %v5391 = vadd.f32 0.0, %v5390
    %v5392 = vpop.f32.mrb[0].mxu0
    %5393 = vmatprep.mubr.f32.mxu0 %v5175
    %5394 = vmatmul.mubr.f32.gmra.mrb[0].mxu0 %v5172
    %v5395 = vpop.f32.mrb[0].mxu0
    %v5396 = vadd.f32 0.0, %v5395
    %v5397 = vpop.f32.mrb[0].mxu0
    %5398 = vmatprep.mubr.f32.mxu0 %v5181
    %5399 = vmatmul.mubr.f32.gmra.mrb[0].mxu0 %v5178
    %v5400 = vpop.f32.mrb[0].mxu0
    %v5401 = vadd.f32 0.0, %v5400
    %v5402 = vpop.f32.mrb[0].mxu0
    %5403 = vmatprep.mubr.f32.mxu0 %v5187
    %5404 = vmatmul.mubr.f32.gmra.mrb[0].mxu0 %v5184
    %v5405 = vpop.f32.mrb[0].mxu0
    %v5406 = vadd.f32 0.0, %v5405
    %v5407 = vpop.f32.mrb[0].mxu0
    %5408 = vmatprep.mubr.f32.mxu0 %v5193
    %5409 = vmatmul.mubr.f32.gmra.mrb[0].mxu0 %v5190
    %v5410 = vpop.f32.mrb[0].mxu0
    %v5411 = vadd.f32 0.0, %v5410
    %v5412 = vpop.f32.mrb[0].mxu0
    %5413 = vmatprep.mubr.f32.mxu0 %v5199
    %5414 = vmatmul.mubr.f32.gmra.mrb[0].mxu0 %v5196
    %v5415 = vpop.f32.mrb[0].mxu0
    %v5416 = vadd.f32 0.0, %v5415
    %v5417 = vpop.f32.mrb[0].mxu0
    %5418 = vmatprep.mubr.f32.mxu0 %v5205
    %5419 = vmatmul.mubr.f32.gmra.mrb[0].mxu0 %v5202
    %v5420 = vpop.f32.mrb[0].mxu0
    %v5421 = vadd.f32 0.0, %v5420
    %v5422 = vpop.f32.mrb[0].mxu0
    %5423 = vmatprep.mubr.f32.mxu0 %v5211
    %5424 = vmatmul.mubr.f32.gmra.mrb[0].mxu0 %v5208
    %v5425 = vpop.f32.mrb[0].mxu0
    %v5426 = vadd.f32 0.0, %v5425
    %v5427 = vpop.f32.mrb[0].mxu0
    %5428 = vmatprep.mubr.f32.mxu0 %v5217
    %5429 = vmatmul.mubr.f32.gmra.mrb[0].mxu0 %v5214
    %v5430 = vpop.f32.mrb[0].mxu0
    %v5431 = vadd.f32 0.0, %v5430
    %v5432 = vpop.f32.mrb[0].mxu0
    %5433 = vmatprep.mubr.f32.mxu0 %v5223
    %5434 = vmatmul.mubr.f32.gmra.mrb[0].mxu0 %v5220
    %v5435 = vpop.f32.mrb[0].mxu0
    %v5436 = vadd.f32 0.0, %v5435
    %v5437 = vpop.f32.mrb[0].mxu0
    %5438 = vmatprep.mubr.f32.mxu0 %v5229
    %5439 = vmatmul.mubr.f32.gmra.mrb[0].mxu0 %v5226
    %v5440 = vpop.f32.mrb[0].mxu0
    %v5441 = vadd.f32 0.0, %v5440
    %v5442 = vpop.f32.mrb[0].mxu0
    %5443 = vmatprep.mubr.f32.mxu0 %v5235
    %5444 = vmatmul.mubr.f32.gmra.mrb[0].mxu0 %v5232
    %v5445 = vpop.f32.mrb[0].mxu0
    %v5446 = vadd.f32 0.0, %v5445
    %v5447 = vpop.f32.mrb[0].mxu0
    %5448 = vmatprep.mubr.f32.mxu0 %v5241
    %5449 = vmatmul.mubr.f32.gmra.mrb[0].mxu0 %v5238
    %v5450 = vpop.f32.mrb[0].mxu0
    %v5451 = vadd.f32 0.0, %v5450
    %v5452 = vpop.f32.mrb[0].mxu0
    %5453 = vmatprep.mubr.f32.mxu0 %v5247
    %5454 = vmatmul.mubr.f32.gmra.mrb[0].mxu0 %v5244
    %v5455 = vpop.f32.mrb[0].mxu0
    %v5456 = vadd.f32 0.0, %v5455
    %v5457 = vpop.f32.mrb[0].mxu0
    %5458 = vmatprep.mubr.f32.mxu0 %v5253
    %5459 = vmatmul.mubr.f32.gmra.mrb[0].mxu0 %v5250
    %v5460 = vpop.f32.mrb[0].mxu0
    %v5461 = vadd.f32 0.0, %v5460
    %v5462 = vpop.f32.mrb[0].mxu0
    %5463 = vdwg.mxu0
    %5464 = vmatprep.subr.mxu0 0.0
    %5465 = vmatpush1.msra.mxu0 %v4997
    %5466 = vmatprep.subr.mxu0 0.0
    %5467 = vmatpush1.msra.mxu0 %v4998
    %5468 = vmatprep.subr.mxu0 0.0
    %5469 = vmatpush1.msra.mxu0 %v4999
    %5470 = vmatprep.subr.mxu0 0.0
    %5471 = vmatpush1.msra.mxu0 %v5000
    %5472 = vmatprep.subr.mxu0 0.0
    %5473 = vmatpush1.msra.mxu0 %v5001
    %5474 = vmatprep.subr.mxu0 0.0
    %5475 = vmatpush1.msra.mxu0 %v5002
    %5476 = vmatprep.subr.mxu0 0.0
    %5477 = vmatpush1.msra.mxu0 %v5003
    %5478 = vmatprep.subr.mxu0 0.0
    %5479 = vmatpush1.msra.mxu0 %v5004
    %5480 = vmatprep.subr.mxu0 0.0
    %5481 = vmatpush1.msra.mxu0 %v5005
    %5482 = vmatprep.subr.mxu0 0.0
    %5483 = vmatpush1.msra.mxu0 %v5006
    %5484 = vmatprep.subr.mxu0 0.0
    %5485 = vmatpush1.msra.mxu0 %v5007
    %5486 = vmatprep.subr.mxu0 0.0
    %5487 = vmatpush1.msra.mxu0 %v5008
    %5488 = vmatprep.subr.mxu0 0.0
    %5489 = vmatpush1.msra.mxu0 %v5009
    %5490 = vmatprep.subr.mxu0 0.0
    %5491 = vmatpush1.msra.mxu0 %v5010
    %5492 = vmatprep.subr.mxu0 0.0
    %5493 = vmatpush1.msra.mxu0 %v5011
    %5494 = vmatprep.subr.mxu0 0.0
    %5495 = vmatpush1.msra.mxu0 %v5012
    %5496 = vmatprep.subr.mxu0 0.0
    %5497 = vmatpush1.msra.mxu0 %v5013
    %5498 = vmatprep.subr.mxu0 0.0
    %5499 = vmatpush1.msra.mxu0 %v5014
    %5500 = vmatprep.subr.mxu0 0.0
    %5501 = vmatpush1.msra.mxu0 %v5015
    %5502 = vmatprep.subr.mxu0 0.0
    %5503 = vmatpush1.msra.mxu0 %v5016
    %5504 = vmatprep.subr.mxu0 0.0
    %5505 = vmatpush1.msra.mxu0 %v5017
    %5506 = vmatprep.subr.mxu0 0.0
    %5507 = vmatpush1.msra.mxu0 %v5018
    %5508 = vmatprep.subr.mxu0 0.0
    %5509 = vmatpush1.msra.mxu0 %v5019
    %5510 = vmatprep.subr.mxu0 0.0
    %5511 = vmatpush1.msra.mxu0 %v5020
    %5512 = vmatprep.subr.mxu0 0.0
    %5513 = vmatpush1.msra.mxu0 %v5021
    %5514 = vmatprep.subr.mxu0 0.0
    %5515 = vmatpush1.msra.mxu0 %v5022
    %5516 = vmatprep.subr.mxu0 0.0
    %5517 = vmatpush1.msra.mxu0 %v5023
    %5518 = vmatprep.subr.mxu0 0.0
    %5519 = vmatpush1.msra.mxu0 %v5024
    %5520 = vmatprep.subr.mxu0 0.0
    %5521 = vmatpush1.msra.mxu0 %v5025
    %5522 = vmatprep.subr.mxu0 0.0
    %5523 = vmatpush1.msra.mxu0 %v5026
    %5524 = vmatprep.subr.mxu0 0.0
    %5525 = vmatpush1.msra.mxu0 %v5027
    %5526 = vmatprep.subr.mxu0 0.0
    %5527 = vmatpush1.msra.mxu0 %v5028
    %5528 = vmatprep.mubr.f32.mxu0 %v4966
    %5529 = vmatmul.mubr.f32.gmra.mrb[0].mxu0 %v4965
    %v5530 = vpop.f32.mrb[0].mxu0
    %v5531 = vadd.f32 %v5386, %v5530
    %v5532 = vpop.f32.mrb[0].mxu0
    %5533 = vmatprep.mubr.f32.mxu0 %v4968
    %5534 = vmatmul.mubr.f32.gmra.mrb[0].mxu0 %v4967
    %v5535 = vpop.f32.mrb[0].mxu0
    %v5536 = vadd.f32 %v5391, %v5535
    %v5537 = vpop.f32.mrb[0].mxu0
    %5538 = vmatprep.mubr.f32.mxu0 %v4970
    %5539 = vmatmul.mubr.f32.gmra.mrb[0].mxu0 %v4969
    %v5540 = vpop.f32.mrb[0].mxu0
    %v5541 = vadd.f32 %v5396, %v5540
    %v5542 = vpop.f32.mrb[0].mxu0
    %5543 = vmatprep.mubr.f32.mxu0 %v4972
    %5544 = vmatmul.mubr.f32.gmra.mrb[0].mxu0 %v4971
    %v5545 = vpop.f32.mrb[0].mxu0
    %v5546 = vadd.f32 %v5401, %v5545
    %v5547 = vpop.f32.mrb[0].mxu0
    %5548 = vmatprep.mubr.f32.mxu0 %v4974
    %5549 = vmatmul.mubr.f32.gmra.mrb[0].mxu0 %v4973
    %v5550 = vpop.f32.mrb[0].mxu0
    %v5551 = vadd.f32 %v5406, %v5550
    %v5552 = vpop.f32.mrb[0].mxu0
    %5553 = vmatprep.mubr.f32.mxu0 %v4976
    %5554 = vmatmul.mubr.f32.gmra.mrb[0].mxu0 %v4975
    %v5555 = vpop.f32.mrb[0].mxu0
    %v5556 = vadd.f32 %v5411, %v5555
    %v5557 = vpop.f32.mrb[0].mxu0
    %5558 = vmatprep.mubr.f32.mxu0 %v4978
    %5559 = vmatmul.mubr.f32.gmra.mrb[0].mxu0 %v4977
    %v5560 = vpop.f32.mrb[0].mxu0
    %v5561 = vadd.f32 %v5416, %v5560
    %v5562 = vpop.f32.mrb[0].mxu0
    %5563 = vmatprep.mubr.f32.mxu0 %v4980
    %5564 = vmatmul.mubr.f32.gmra.mrb[0].mxu0 %v4979
    %v5565 = vpop.f32.mrb[0].mxu0
    %v5566 = vadd.f32 %v5421, %v5565
    %v5567 = vpop.f32.mrb[0].mxu0
    %5568 = vmatprep.mubr.f32.mxu0 %v4982
    %5569 = vmatmul.mubr.f32.gmra.mrb[0].mxu0 %v4981
    %v5570 = vpop.f32.mrb[0].mxu0
    %v5571 = vadd.f32 %v5426, %v5570
    %v5572 = vpop.f32.mrb[0].mxu0
    %5573 = vmatprep.mubr.f32.mxu0 %v4984
    %5574 = vmatmul.mubr.f32.gmra.mrb[0].mxu0 %v4983
    %v5575 = vpop.f32.mrb[0].mxu0
    %v5576 = vadd.f32 %v5431, %v5575
    %v5577 = vpop.f32.mrb[0].mxu0
    %5578 = vmatprep.mubr.f32.mxu0 %v4986
    %5579 = vmatmul.mubr.f32.gmra.mrb[0].mxu0 %v4985
    %v5580 = vpop.f32.mrb[0].mxu0
    %v5581 = vadd.f32 %v5436, %v5580
    %v5582 = vpop.f32.mrb[0].mxu0
    %5583 = vmatprep.mubr.f32.mxu0 %v4988
    %5584 = vmatmul.mubr.f32.gmra.mrb[0].mxu0 %v4987
    %v5585 = vpop.f32.mrb[0].mxu0
    %v5586 = vadd.f32 %v5441, %v5585
    %v5587 = vpop.f32.mrb[0].mxu0
    %5588 = vmatprep.mubr.f32.mxu0 %v4990
    %5589 = vmatmul.mubr.f32.gmra.mrb[0].mxu0 %v4989
    %v5590 = vpop.f32.mrb[0].mxu0
    %v5591 = vadd.f32 %v5446, %v5590
    %v5592 = vpop.f32.mrb[0].mxu0
    %5593 = vmatprep.mubr.f32.mxu0 %v4992
    %5594 = vmatmul.mubr.f32.gmra.mrb[0].mxu0 %v4991
    %v5595 = vpop.f32.mrb[0].mxu0
    %v5596 = vadd.f32 %v5451, %v5595
    %v5597 = vpop.f32.mrb[0].mxu0
    %5598 = vmatprep.mubr.f32.mxu0 %v4994
    %5599 = vmatmul.mubr.f32.gmra.mrb[0].mxu0 %v4993
    %v5600 = vpop.f32.mrb[0].mxu0
    %v5601 = vadd.f32 %v5456, %v5600
    %v5602 = vpop.f32.mrb[0].mxu0
    %5603 = vmatprep.mubr.f32.mxu0 %v4996
    %5604 = vmatmul.mubr.f32.gmra.mrb[0].mxu0 %v4995
    %v5605 = vpop.f32.mrb[0].mxu0
    %v5606 = vadd.f32 %v5461, %v5605
    %v5607 = vpop.f32.mrb[0].mxu0
    %5608 = vdwg.mxu0
    %v5609 = vld [vmem:[#allocation2] sm:$0xfc]
    %v5610 = vld [vmem:[#allocation2 + $0x8] sm:$0xfc]
    %v5611 = vld [vmem:[#allocation2 + $0x10] sm:$0x3]
    %v5612 = vld [vmem:[#allocation2 + $0x18] sm:$0x3]
    %v5613 = vld [vmem:[#allocation2 + $0x20] sm:$0xfc]
    %v5614 = vld [vmem:[#allocation2 + $0x28] sm:$0xfc]
    %v5615 = vld [vmem:[#allocation2 + $0x30] sm:$0x3]
    %v5616 = vld [vmem:[#allocation2 + $0x38] sm:$0x3]
    %v5617 = vld [vmem:[#allocation2 + $0x40] sm:$0xfc]
    %v5618 = vld [vmem:[#allocation2 + $0x48] sm:$0xfc]
    %v5619 = vld [vmem:[#allocation2 + $0x50] sm:$0x3]
    %v5620 = vld [vmem:[#allocation2 + $0x58] sm:$0x3]
    %v5621 = vld [vmem:[#allocation2 + $0x60] sm:$0xfc]
    %v5622 = vld [vmem:[#allocation2 + $0x68] sm:$0xfc]
    %v5623 = vld [vmem:[#allocation2 + $0x70] sm:$0x3]
    %v5624 = vld [vmem:[#allocation2 + $0x78] sm:$0x3]
    %v5625 = vld [vmem:[#allocation2 + $0x80] sm:$0xfc]
    %v5626 = vld [vmem:[#allocation2 + $0x88] sm:$0xfc]
    %v5627 = vld [vmem:[#allocation2 + $0x90] sm:$0x3]
    %v5628 = vld [vmem:[#allocation2 + $0x98] sm:$0x3]
    %v5629 = vld [vmem:[#allocation2 + $0xa0] sm:$0xfc]
    %v5630 = vld [vmem:[#allocation2 + $0xa8] sm:$0xfc]
    %v5631 = vld [vmem:[#allocation2 + $0xb0] sm:$0x3]
    %v5632 = vld [vmem:[#allocation2 + $0xb8] sm:$0x3]
    %v5633 = vld [vmem:[#allocation2 + $0xc0] sm:$0xfc]
    %v5634 = vld [vmem:[#allocation2 + $0xc8] sm:$0xfc]
    %v5635 = vld [vmem:[#allocation2 + $0xd0] sm:$0x3]
    %v5636 = vld [vmem:[#allocation2 + $0xd8] sm:$0x3]
    %v5637 = vld [vmem:[#allocation2 + $0xe0] sm:$0xfc]
    %v5638 = vld [vmem:[#allocation2 + $0xe8] sm:$0xfc]
    %v5639 = vld [vmem:[#allocation2 + $0xf0] sm:$0x3]
    %v5640 = vld [vmem:[#allocation2 + $0xf8] sm:$0x3]
    %v5641 = vld [vmem:[#allocation2 + $0x140] sm:$0xfc]
    %v5642 = vld [vmem:[#allocation2 + $0x148] sm:$0xfc]
    %v5643 = vld [vmem:[#allocation2 + $0x150] sm:$0x3]
    %v5644 = vld [vmem:[#allocation2 + $0x158] sm:$0x3]
    %v5645 = vld [vmem:[#allocation2 + $0x160] sm:$0xfc]
    %v5646 = vld [vmem:[#allocation2 + $0x168] sm:$0xfc]
    %v5647 = vld [vmem:[#allocation2 + $0x170] sm:$0x3]
    %v5648 = vld [vmem:[#allocation2 + $0x178] sm:$0x3]
    %v5649 = vld [vmem:[#allocation2 + $0x180] sm:$0xfc]
    %v5650 = vld [vmem:[#allocation2 + $0x188] sm:$0xfc]
    %v5651 = vld [vmem:[#allocation2 + $0x190] sm:$0x3]
    %v5652 = vld [vmem:[#allocation2 + $0x198] sm:$0x3]
    %v5653 = vld [vmem:[#allocation2 + $0x1a0] sm:$0xfc]
    %v5654 = vld [vmem:[#allocation2 + $0x1a8] sm:$0xfc]
    %v5655 = vld [vmem:[#allocation2 + $0x1b0] sm:$0x3]
    %v5656 = vld [vmem:[#allocation2 + $0x1b8] sm:$0x3]
    %v5657 = vld [vmem:[#allocation2 + $0x1c0] sm:$0xfc]
    %v5658 = vld [vmem:[#allocation2 + $0x1c8] sm:$0xfc]
    %v5659 = vld [vmem:[#allocation2 + $0x1d0] sm:$0x3]
    %v5660 = vld [vmem:[#allocation2 + $0x1d8] sm:$0x3]
    %v5661 = vld [vmem:[#allocation2 + $0x1e0] sm:$0xfc]
    %v5662 = vld [vmem:[#allocation2 + $0x1e8] sm:$0xfc]
    %v5663 = vld [vmem:[#allocation2 + $0x1f0] sm:$0x3]
    %v5664 = vld [vmem:[#allocation2 + $0x1f8] sm:$0x3]
    %v5665 = vld [vmem:[#allocation2 + $0x200] sm:$0xfc]
    %v5666 = vld [vmem:[#allocation2 + $0x208] sm:$0xfc]
    %v5667 = vld [vmem:[#allocation2 + $0x210] sm:$0x3]
    %v5668 = vld [vmem:[#allocation2 + $0x218] sm:$0x3]
    %v5669 = vld [vmem:[#allocation2 + $0x220] sm:$0xfc]
    %v5670 = vld [vmem:[#allocation2 + $0x228] sm:$0xfc]
    %v5671 = vld [vmem:[#allocation2 + $0x230] sm:$0x3]
    %v5672 = vld [vmem:[#allocation2 + $0x238] sm:$0x3]
    %vm5737 = vcmask 1045504
    %v5738 = vrot.slane %v5609, 2
    %v5739 = vrot.slane %v5611, 2
    %v5740 = vsel %vm5737, %v5738, %v5739
    %v5741 = vrot.slane %v5610, 2
    %v5742 = vrot.slane %v5612, 2
    %v5743 = vsel %vm5737, %v5741, %v5742
    %v5744 = vrot.slane %v5613, 2
    %v5745 = vrot.slane %v5615, 2
    %v5746 = vsel %vm5737, %v5744, %v5745
    %v5747 = vrot.slane %v5614, 2
    %v5748 = vrot.slane %v5616, 2
    %v5749 = vsel %vm5737, %v5747, %v5748
    %v5750 = vrot.slane %v5617, 2
    %v5751 = vrot.slane %v5619, 2
    %v5752 = vsel %vm5737, %v5750, %v5751
    %v5753 = vrot.slane %v5618, 2
    %v5754 = vrot.slane %v5620, 2
    %v5755 = vsel %vm5737, %v5753, %v5754
    %v5756 = vrot.slane %v5621, 2
    %v5757 = vrot.slane %v5623, 2
    %v5758 = vsel %vm5737, %v5756, %v5757
    %v5759 = vrot.slane %v5622, 2
    %v5760 = vrot.slane %v5624, 2
    %v5761 = vsel %vm5737, %v5759, %v5760
    %v5762 = vrot.slane %v5625, 2
    %v5763 = vrot.slane %v5627, 2
    %v5764 = vsel %vm5737, %v5762, %v5763
    %v5765 = vrot.slane %v5626, 2
    %v5766 = vrot.slane %v5628, 2
    %v5767 = vsel %vm5737, %v5765, %v5766
    %v5768 = vrot.slane %v5629, 2
    %v5769 = vrot.slane %v5631, 2
    %v5770 = vsel %vm5737, %v5768, %v5769
    %v5771 = vrot.slane %v5630, 2
    %v5772 = vrot.slane %v5632, 2
    %v5773 = vsel %vm5737, %v5771, %v5772
    %v5774 = vrot.slane %v5633, 2
    %v5775 = vrot.slane %v5635, 2
    %v5776 = vsel %vm5737, %v5774, %v5775
    %v5777 = vrot.slane %v5634, 2
    %v5778 = vrot.slane %v5636, 2
    %v5779 = vsel %vm5737, %v5777, %v5778
    %v5780 = vrot.slane %v5637, 2
    %v5781 = vrot.slane %v5639, 2
    %v5782 = vsel %vm5737, %v5780, %v5781
    %v5783 = vrot.slane %v5638, 2
    %v5784 = vrot.slane %v5640, 2
    %v5785 = vsel %vm5737, %v5783, %v5784
    %v5786 = vrot.slane %v5641, 2
    %v5787 = vrot.slane %v5643, 2
    %v5788 = vsel %vm5737, %v5786, %v5787
    %v5789 = vrot.slane %v5642, 2
    %v5790 = vrot.slane %v5644, 2
    %v5791 = vsel %vm5737, %v5789, %v5790
    %v5792 = vrot.slane %v5645, 2
    %v5793 = vrot.slane %v5647, 2
    %v5794 = vsel %vm5737, %v5792, %v5793
    %v5795 = vrot.slane %v5646, 2
    %v5796 = vrot.slane %v5648, 2
    %v5797 = vsel %vm5737, %v5795, %v5796
    %v5798 = vrot.slane %v5649, 2
    %v5799 = vrot.slane %v5651, 2
    %v5800 = vsel %vm5737, %v5798, %v5799
    %v5801 = vrot.slane %v5650, 2
    %v5802 = vrot.slane %v5652, 2
    %v5803 = vsel %vm5737, %v5801, %v5802
    %v5804 = vrot.slane %v5653, 2
    %v5805 = vrot.slane %v5655, 2
    %v5806 = vsel %vm5737, %v5804, %v5805
    %v5807 = vrot.slane %v5654, 2
    %v5808 = vrot.slane %v5656, 2
    %v5809 = vsel %vm5737, %v5807, %v5808
    %v5810 = vrot.slane %v5657, 2
    %v5811 = vrot.slane %v5659, 2
    %v5812 = vsel %vm5737, %v5810, %v5811
    %v5813 = vrot.slane %v5658, 2
    %v5814 = vrot.slane %v5660, 2
    %v5815 = vsel %vm5737, %v5813, %v5814
    %v5816 = vrot.slane %v5661, 2
    %v5817 = vrot.slane %v5663, 2
    %v5818 = vsel %vm5737, %v5816, %v5817
    %v5819 = vrot.slane %v5662, 2
    %v5820 = vrot.slane %v5664, 2
    %v5821 = vsel %vm5737, %v5819, %v5820
    %v5822 = vrot.slane %v5665, 2
    %v5823 = vrot.slane %v5667, 2
    %v5824 = vsel %vm5737, %v5822, %v5823
    %v5825 = vrot.slane %v5666, 2
    %v5826 = vrot.slane %v5668, 2
    %v5827 = vsel %vm5737, %v5825, %v5826
    %v5828 = vrot.slane %v5669, 2
    %v5829 = vrot.slane %v5671, 2
    %v5830 = vsel %vm5737, %v5828, %v5829
    %v5831 = vrot.slane %v5670, 2
    %v5832 = vrot.slane %v5672, 2
    %v5833 = vsel %vm5737, %v5831, %v5832
    %s5866 = scalar_lea.vmem %s3, 512
    %v5867 = vld [vmem:[%s5866] sm:$0xff]
    %v5868 = vld [vmem:[%s5866 + $0x8] sm:$0xff]
    %v5869 = vld [vmem:[%s5866 + $0x10] sm:$0xff]
    %v5870 = vld [vmem:[%s5866 + $0x18] sm:$0xff]
    %v5871 = vld [vmem:[%s5866 + $0x20] sm:$0xff]
    %v5872 = vld [vmem:[%s5866 + $0x28] sm:$0xff]
    %v5873 = vld [vmem:[%s5866 + $0x30] sm:$0xff]
    %v5874 = vld [vmem:[%s5866 + $0x38] sm:$0xff]
    %v5875 = vld [vmem:[%s5866 + $0x40] sm:$0xff]
    %v5876 = vld [vmem:[%s5866 + $0x48] sm:$0xff]
    %v5877 = vld [vmem:[%s5866 + $0x50] sm:$0xff]
    %v5878 = vld [vmem:[%s5866 + $0x58] sm:$0xff]
    %v5879 = vld [vmem:[%s5866 + $0x60] sm:$0xff]
    %v5880 = vld [vmem:[%s5866 + $0x68] sm:$0xff]
    %v5881 = vld [vmem:[%s5866 + $0x70] sm:$0xff]
    %v5882 = vld [vmem:[%s5866 + $0x78] sm:$0xff]
    %v5883 = vld [vmem:[%s5866 + $0x80] sm:$0xff]
    %v5884 = vld [vmem:[%s5866 + $0x88] sm:$0xff]
    %v5885 = vld [vmem:[%s5866 + $0x90] sm:$0xff]
    %v5886 = vld [vmem:[%s5866 + $0x98] sm:$0xff]
    %v5887 = vld [vmem:[%s5866 + $0xa0] sm:$0xff]
    %v5888 = vld [vmem:[%s5866 + $0xa8] sm:$0xff]
    %v5889 = vld [vmem:[%s5866 + $0xb0] sm:$0xff]
    %v5890 = vld [vmem:[%s5866 + $0xb8] sm:$0xff]
    %v5891 = vld [vmem:[%s5866 + $0xc0] sm:$0xff]
    %v5892 = vld [vmem:[%s5866 + $0xc8] sm:$0xff]
    %v5893 = vld [vmem:[%s5866 + $0xd0] sm:$0xff]
    %v5894 = vld [vmem:[%s5866 + $0xd8] sm:$0xff]
    %v5895 = vld [vmem:[%s5866 + $0xe0] sm:$0xff]
    %v5896 = vld [vmem:[%s5866 + $0xe8] sm:$0xff]
    %v5897 = vld [vmem:[%s5866 + $0xf0] sm:$0xff]
    %v5898 = vld [vmem:[%s5866 + $0xf8] sm:$0xff]
    %5899 = vmatprep.subr.mxu0 0.0
    %5900 = vmatpush1.msra.mxu0 %v5867
    %5901 = vmatprep.subr.mxu0 0.0
    %5902 = vmatpush1.msra.mxu0 %v5868
    %5903 = vmatprep.subr.mxu0 0.0
    %5904 = vmatpush1.msra.mxu0 %v5869
    %5905 = vmatprep.subr.mxu0 0.0
    %5906 = vmatpush1.msra.mxu0 %v5870
    %5907 = vmatprep.subr.mxu0 0.0
    %5908 = vmatpush1.msra.mxu0 %v5871
    %5909 = vmatprep.subr.mxu0 0.0
    %5910 = vmatpush1.msra.mxu0 %v5872
    %5911 = vmatprep.subr.mxu0 0.0
    %5912 = vmatpush1.msra.mxu0 %v5873
    %5913 = vmatprep.subr.mxu0 0.0
    %5914 = vmatpush1.msra.mxu0 %v5874
    %5915 = vmatprep.subr.mxu0 0.0
    %5916 = vmatpush1.msra.mxu0 %v5875
    %5917 = vmatprep.subr.mxu0 0.0
    %5918 = vmatpush1.msra.mxu0 %v5876
    %5919 = vmatprep.subr.mxu0 0.0
    %5920 = vmatpush1.msra.mxu0 %v5877
    %5921 = vmatprep.subr.mxu0 0.0
    %5922 = vmatpush1.msra.mxu0 %v5878
    %5923 = vmatprep.subr.mxu0 0.0
    %5924 = vmatpush1.msra.mxu0 %v5879
    %5925 = vmatprep.subr.mxu0 0.0
    %5926 = vmatpush1.msra.mxu0 %v5880
    %5927 = vmatprep.subr.mxu0 0.0
    %5928 = vmatpush1.msra.mxu0 %v5881
    %5929 = vmatprep.subr.mxu0 0.0
    %5930 = vmatpush1.msra.mxu0 %v5882
    %5931 = vmatprep.subr.mxu0 0.0
    %5932 = vmatpush1.msra.mxu0 %v5883
    %5933 = vmatprep.subr.mxu0 0.0
    %5934 = vmatpush1.msra.mxu0 %v5884
    %5935 = vmatprep.subr.mxu0 0.0
    %5936 = vmatpush1.msra.mxu0 %v5885
    %5937 = vmatprep.subr.mxu0 0.0
    %5938 = vmatpush1.msra.mxu0 %v5886
    %5939 = vmatprep.subr.mxu0 0.0
    %5940 = vmatpush1.msra.mxu0 %v5887
    %5941 = vmatprep.subr.mxu0 0.0
    %5942 = vmatpush1.msra.mxu0 %v5888
    %5943 = vmatprep.subr.mxu0 0.0
    %5944 = vmatpush1.msra.mxu0 %v5889
    %5945 = vmatprep.subr.mxu0 0.0
    %5946 = vmatpush1.msra.mxu0 %v5890
    %5947 = vmatprep.subr.mxu0 0.0
    %5948 = vmatpush1.msra.mxu0 %v5891
    %5949 = vmatprep.subr.mxu0 0.0
    %5950 = vmatpush1.msra.mxu0 %v5892
    %5951 = vmatprep.subr.mxu0 0.0
    %5952 = vmatpush1.msra.mxu0 %v5893
    %5953 = vmatprep.subr.mxu0 0.0
    %5954 = vmatpush1.msra.mxu0 %v5894
    %5955 = vmatprep.subr.mxu0 0.0
    %5956 = vmatpush1.msra.mxu0 %v5895
    %5957 = vmatprep.subr.mxu0 0.0
    %5958 = vmatpush1.msra.mxu0 %v5896
    %5959 = vmatprep.subr.mxu0 0.0
    %5960 = vmatpush1.msra.mxu0 %v5897
    %5961 = vmatprep.subr.mxu0 0.0
    %5962 = vmatpush1.msra.mxu0 %v5898
    %5963 = vmatprep.mubr.f32.mxu0 %v5743
    %5964 = vmatmul.mubr.f32.gmra.mrb[0].mxu0 %v5740
    %v5965 = vpop.f32.mrb[0].mxu0
    %v5966 = vadd.f32 0.0, %v5965
    %v5967 = vpop.f32.mrb[0].mxu0
    %5968 = vmatprep.mubr.f32.mxu0 %v5749
    %5969 = vmatmul.mubr.f32.gmra.mrb[0].mxu0 %v5746
    %v5970 = vpop.f32.mrb[0].mxu0
    %v5971 = vadd.f32 0.0, %v5970
    %v5972 = vpop.f32.mrb[0].mxu0
    %5973 = vmatprep.mubr.f32.mxu0 %v5755
    %5974 = vmatmul.mubr.f32.gmra.mrb[0].mxu0 %v5752
    %v5975 = vpop.f32.mrb[0].mxu0
    %v5976 = vadd.f32 0.0, %v5975
    %v5977 = vpop.f32.mrb[0].mxu0
    %5978 = vmatprep.mubr.f32.mxu0 %v5761
    %5979 = vmatmul.mubr.f32.gmra.mrb[0].mxu0 %v5758
    %v5980 = vpop.f32.mrb[0].mxu0
    %v5981 = vadd.f32 0.0, %v5980
    %v5982 = vpop.f32.mrb[0].mxu0
    %5983 = vmatprep.mubr.f32.mxu0 %v5767
    %5984 = vmatmul.mubr.f32.gmra.mrb[0].mxu0 %v5764
    %v5985 = vpop.f32.mrb[0].mxu0
    %v5986 = vadd.f32 0.0, %v5985
    %v5987 = vpop.f32.mrb[0].mxu0
    %5988 = vmatprep.mubr.f32.mxu0 %v5773
    %5989 = vmatmul.mubr.f32.gmra.mrb[0].mxu0 %v5770
    %v5990 = vpop.f32.mrb[0].mxu0
    %v5991 = vadd.f32 0.0, %v5990
    %v5992 = vpop.f32.mrb[0].mxu0
    %5993 = vmatprep.mubr.f32.mxu0 %v5779
    %5994 = vmatmul.mubr.f32.gmra.mrb[0].mxu0 %v5776
    %v5995 = vpop.f32.mrb[0].mxu0
    %v5996 = vadd.f32 0.0, %v5995
    %v5997 = vpop.f32.mrb[0].mxu0
    %5998 = vmatprep.mubr.f32.mxu0 %v5785
    %5999 = vmatmul.mubr.f32.gmra.mrb[0].mxu0 %v5782
    %v6000 = vpop.f32.mrb[0].mxu0
    %v6001 = vadd.f32 0.0, %v6000
    %v6002 = vpop.f32.mrb[0].mxu0
    %6003 = vmatprep.mubr.f32.mxu0 %v5791
    %6004 = vmatmul.mubr.f32.gmra.mrb[0].mxu0 %v5788
    %v6005 = vpop.f32.mrb[0].mxu0
    %v6006 = vadd.f32 0.0, %v6005
    %v6007 = vpop.f32.mrb[0].mxu0
    %6008 = vmatprep.mubr.f32.mxu0 %v5797
    %6009 = vmatmul.mubr.f32.gmra.mrb[0].mxu0 %v5794
    %v6010 = vpop.f32.mrb[0].mxu0
    %v6011 = vadd.f32 0.0, %v6010
    %v6012 = vpop.f32.mrb[0].mxu0
    %6013 = vmatprep.mubr.f32.mxu0 %v5803
    %6014 = vmatmul.mubr.f32.gmra.mrb[0].mxu0 %v5800
    %v6015 = vpop.f32.mrb[0].mxu0
    %v6016 = vadd.f32 0.0, %v6015
    %v6017 = vpop.f32.mrb[0].mxu0
    %6018 = vmatprep.mubr.f32.mxu0 %v5809
    %6019 = vmatmul.mubr.f32.gmra.mrb[0].mxu0 %v5806
    %v6020 = vpop.f32.mrb[0].mxu0
    %v6021 = vadd.f32 0.0, %v6020
    %v6022 = vpop.f32.mrb[0].mxu0
    %6023 = vmatprep.mubr.f32.mxu0 %v5815
    %6024 = vmatmul.mubr.f32.gmra.mrb[0].mxu0 %v5812
    %v6025 = vpop.f32.mrb[0].mxu0
    %v6026 = vadd.f32 0.0, %v6025
    %v6027 = vpop.f32.mrb[0].mxu0
    %6028 = vmatprep.mubr.f32.mxu0 %v5821
    %6029 = vmatmul.mubr.f32.gmra.mrb[0].mxu0 %v5818
    %v6030 = vpop.f32.mrb[0].mxu0
    %v6031 = vadd.f32 0.0, %v6030
    %v6032 = vpop.f32.mrb[0].mxu0
    %6033 = vmatprep.mubr.f32.mxu0 %v5827
    %6034 = vmatmul.mubr.f32.gmra.mrb[0].mxu0 %v5824
    %v6035 = vpop.f32.mrb[0].mxu0
    %v6036 = vadd.f32 0.0, %v6035
    %v6037 = vpop.f32.mrb[0].mxu0
    %6038 = vmatprep.mubr.f32.mxu0 %v5833
    %6039 = vmatmul.mubr.f32.gmra.mrb[0].mxu0 %v5830
    %v6040 = vpop.f32.mrb[0].mxu0
    %v6041 = vadd.f32 0.0, %v6040
    %v6042 = vpop.f32.mrb[0].mxu0
    %6043 = vdwg.mxu0
    %v6044 = vadd.f32 %v5531, %v5966
    %v6045 = vadd.f32 %v5536, %v5971
    %v6046 = vadd.f32 %v5541, %v5976
    %v6047 = vadd.f32 %v5546, %v5981
    %v6048 = vadd.f32 %v5551, %v5986
    %v6049 = vadd.f32 %v5556, %v5991
    %v6050 = vadd.f32 %v5561, %v5996
    %v6051 = vadd.f32 %v5566, %v6001
    %v6052 = vadd.f32 %v5571, %v6006
    %v6053 = vadd.f32 %v5576, %v6011
    %v6054 = vadd.f32 %v5581, %v6016
    %v6055 = vadd.f32 %v5586, %v6021
    %v6056 = vadd.f32 %v5591, %v6026
    %v6057 = vadd.f32 %v5596, %v6031
    %v6058 = vadd.f32 %v5601, %v6036
    %v6059 = vadd.f32 %v5606, %v6041
    %v6060 = vld [vmem:[%s4900] sm:$0xff]
    %v6061 = vld [vmem:[%s4900 + $0x8] sm:$0xff]
    %v6062 = vld [vmem:[%s4900 + $0x20] sm:$0xff]
    %v6063 = vld [vmem:[%s4900 + $0x28] sm:$0xff]
    %v6064 = vld [vmem:[%s4900 + $0x40] sm:$0xff]
    %v6065 = vld [vmem:[%s4900 + $0x48] sm:$0xff]
    %v6066 = vld [vmem:[%s4900 + $0x60] sm:$0xff]
    %v6067 = vld [vmem:[%s4900 + $0x68] sm:$0xff]
    %v6068 = vld [vmem:[%s4900 + $0x80] sm:$0xff]
    %v6069 = vld [vmem:[%s4900 + $0x88] sm:$0xff]
    %v6070 = vld [vmem:[%s4900 + $0xa0] sm:$0xff]
    %v6071 = vld [vmem:[%s4900 + $0xa8] sm:$0xff]
    %v6072 = vld [vmem:[%s4900 + $0xc0] sm:$0xff]
    %v6073 = vld [vmem:[%s4900 + $0xc8] sm:$0xff]
    %v6074 = vld [vmem:[%s4900 + $0xe0] sm:$0xff]
    %v6075 = vld [vmem:[%s4900 + $0xe8] sm:$0xff]
    %v6076 = vld [vmem:[%s4900 + $0x140] sm:$0xff]
    %v6077 = vld [vmem:[%s4900 + $0x148] sm:$0xff]
    %v6078 = vld [vmem:[%s4900 + $0x160] sm:$0xff]
    %v6079 = vld [vmem:[%s4900 + $0x168] sm:$0xff]
    %v6080 = vld [vmem:[%s4900 + $0x180] sm:$0xff]
    %v6081 = vld [vmem:[%s4900 + $0x188] sm:$0xff]
    %v6082 = vld [vmem:[%s4900 + $0x1a0] sm:$0xff]
    %v6083 = vld [vmem:[%s4900 + $0x1a8] sm:$0xff]
    %v6084 = vld [vmem:[%s4900 + $0x1c0] sm:$0xff]
    %v6085 = vld [vmem:[%s4900 + $0x1c8] sm:$0xff]
    %v6086 = vld [vmem:[%s4900 + $0x1e0] sm:$0xff]
    %v6087 = vld [vmem:[%s4900 + $0x1e8] sm:$0xff]
    %v6088 = vld [vmem:[%s4900 + $0x200] sm:$0xff]
    %v6089 = vld [vmem:[%s4900 + $0x208] sm:$0xff]
    %v6090 = vld [vmem:[%s4900 + $0x220] sm:$0xff]
    %v6091 = vld [vmem:[%s4900 + $0x228] sm:$0xff]
    %s6092 = scalar_lea.vmem %s3, 768
    %v6093 = vld [vmem:[%s6092] sm:$0xff]
    %v6094 = vld [vmem:[%s6092 + $0x8] sm:$0xff]
    %v6095 = vld [vmem:[%s6092 + $0x10] sm:$0xff]
    %v6096 = vld [vmem:[%s6092 + $0x18] sm:$0xff]
    %v6097 = vld [vmem:[%s6092 + $0x20] sm:$0xff]
    %v6098 = vld [vmem:[%s6092 + $0x28] sm:$0xff]
    %v6099 = vld [vmem:[%s6092 + $0x30] sm:$0xff]
    %v6100 = vld [vmem:[%s6092 + $0x38] sm:$0xff]
    %v6101 = vld [vmem:[%s6092 + $0x40] sm:$0xff]
    %v6102 = vld [vmem:[%s6092 + $0x48] sm:$0xff]
    %v6103 = vld [vmem:[%s6092 + $0x50] sm:$0xff]
    %v6104 = vld [vmem:[%s6092 + $0x58] sm:$0xff]
    %v6105 = vld [vmem:[%s6092 + $0x60] sm:$0xff]
    %v6106 = vld [vmem:[%s6092 + $0x68] sm:$0xff]
    %v6107 = vld [vmem:[%s6092 + $0x70] sm:$0xff]
    %v6108 = vld [vmem:[%s6092 + $0x78] sm:$0xff]
    %v6109 = vld [vmem:[%s6092 + $0x80] sm:$0xff]
    %v6110 = vld [vmem:[%s6092 + $0x88] sm:$0xff]
    %v6111 = vld [vmem:[%s6092 + $0x90] sm:$0xff]
    %v6112 = vld [vmem:[%s6092 + $0x98] sm:$0xff]
    %v6113 = vld [vmem:[%s6092 + $0xa0] sm:$0xff]
    %v6114 = vld [vmem:[%s6092 + $0xa8] sm:$0xff]
    %v6115 = vld [vmem:[%s6092 + $0xb0] sm:$0xff]
    %v6116 = vld [vmem:[%s6092 + $0xb8] sm:$0xff]
    %v6117 = vld [vmem:[%s6092 + $0xc0] sm:$0xff]
    %v6118 = vld [vmem:[%s6092 + $0xc8] sm:$0xff]
    %v6119 = vld [vmem:[%s6092 + $0xd0] sm:$0xff]
    %v6120 = vld [vmem:[%s6092 + $0xd8] sm:$0xff]
    %v6121 = vld [vmem:[%s6092 + $0xe0] sm:$0xff]
    %v6122 = vld [vmem:[%s6092 + $0xe8] sm:$0xff]
    %v6123 = vld [vmem:[%s6092 + $0xf0] sm:$0xff]
    %v6124 = vld [vmem:[%s6092 + $0xf8] sm:$0xff]
    %6125 = vmatprep.subr.mxu0 0.0
    %6126 = vmatpush1.msra.mxu0 %v6093
    %6127 = vmatprep.subr.mxu0 0.0
    %6128 = vmatpush1.msra.mxu0 %v6094
    %6129 = vmatprep.subr.mxu0 0.0
    %6130 = vmatpush1.msra.mxu0 %v6095
    %6131 = vmatprep.subr.mxu0 0.0
    %6132 = vmatpush1.msra.mxu0 %v6096
    %6133 = vmatprep.subr.mxu0 0.0
    %6134 = vmatpush1.msra.mxu0 %v6097
    %6135 = vmatprep.subr.mxu0 0.0
    %6136 = vmatpush1.msra.mxu0 %v6098
    %6137 = vmatprep.subr.mxu0 0.0
    %6138 = vmatpush1.msra.mxu0 %v6099
    %6139 = vmatprep.subr.mxu0 0.0
    %6140 = vmatpush1.msra.mxu0 %v6100
    %6141 = vmatprep.subr.mxu0 0.0
    %6142 = vmatpush1.msra.mxu0 %v6101
    %6143 = vmatprep.subr.mxu0 0.0
    %6144 = vmatpush1.msra.mxu0 %v6102
    %6145 = vmatprep.subr.mxu0 0.0
    %6146 = vmatpush1.msra.mxu0 %v6103
    %6147 = vmatprep.subr.mxu0 0.0
    %6148 = vmatpush1.msra.mxu0 %v6104
    %6149 = vmatprep.subr.mxu0 0.0
    %6150 = vmatpush1.msra.mxu0 %v6105
    %6151 = vmatprep.subr.mxu0 0.0
    %6152 = vmatpush1.msra.mxu0 %v6106
    %6153 = vmatprep.subr.mxu0 0.0
    %6154 = vmatpush1.msra.mxu0 %v6107
    %6155 = vmatprep.subr.mxu0 0.0
    %6156 = vmatpush1.msra.mxu0 %v6108
    %6157 = vmatprep.subr.mxu0 0.0
    %6158 = vmatpush1.msra.mxu0 %v6109
    %6159 = vmatprep.subr.mxu0 0.0
    %6160 = vmatpush1.msra.mxu0 %v6110
    %6161 = vmatprep.subr.mxu0 0.0
    %6162 = vmatpush1.msra.mxu0 %v6111
    %6163 = vmatprep.subr.mxu0 0.0
    %6164 = vmatpush1.msra.mxu0 %v6112
    %6165 = vmatprep.subr.mxu0 0.0
    %6166 = vmatpush1.msra.mxu0 %v6113
    %6167 = vmatprep.subr.mxu0 0.0
    %6168 = vmatpush1.msra.mxu0 %v6114
    %6169 = vmatprep.subr.mxu0 0.0
    %6170 = vmatpush1.msra.mxu0 %v6115
    %6171 = vmatprep.subr.mxu0 0.0
    %6172 = vmatpush1.msra.mxu0 %v6116
    %6173 = vmatprep.subr.mxu0 0.0
    %6174 = vmatpush1.msra.mxu0 %v6117
    %6175 = vmatprep.subr.mxu0 0.0
    %6176 = vmatpush1.msra.mxu0 %v6118
    %6177 = vmatprep.subr.mxu0 0.0
    %6178 = vmatpush1.msra.mxu0 %v6119
    %6179 = vmatprep.subr.mxu0 0.0
    %6180 = vmatpush1.msra.mxu0 %v6120
    %6181 = vmatprep.subr.mxu0 0.0
    %6182 = vmatpush1.msra.mxu0 %v6121
    %6183 = vmatprep.subr.mxu0 0.0
    %6184 = vmatpush1.msra.mxu0 %v6122
    %6185 = vmatprep.subr.mxu0 0.0
    %6186 = vmatpush1.msra.mxu0 %v6123
    %6187 = vmatprep.subr.mxu0 0.0
    %6188 = vmatpush1.msra.mxu0 %v6124
    %6189 = vmatprep.mubr.f32.mxu0 %v6061
    %6190 = vmatmul.mubr.f32.gmra.mrb[0].mxu0 %v6060
    %v6191 = vpop.f32.mrb[0].mxu0
    %v6192 = vadd.f32 0.0, %v6191
    %v6193 = vpop.f32.mrb[0].mxu0
    %6194 = vmatprep.mubr.f32.mxu0 %v6063
    %6195 = vmatmul.mubr.f32.gmra.mrb[0].mxu0 %v6062
    %v6196 = vpop.f32.mrb[0].mxu0
    %v6197 = vadd.f32 0.0, %v6196
    %v6198 = vpop.f32.mrb[0].mxu0
    %6199 = vmatprep.mubr.f32.mxu0 %v6065
    %6200 = vmatmul.mubr.f32.gmra.mrb[0].mxu0 %v6064
    %v6201 = vpop.f32.mrb[0].mxu0
    %v6202 = vadd.f32 0.0, %v6201
    %v6203 = vpop.f32.mrb[0].mxu0
    %6204 = vmatprep.mubr.f32.mxu0 %v6067
    %6205 = vmatmul.mubr.f32.gmra.mrb[0].mxu0 %v6066
    %v6206 = vpop.f32.mrb[0].mxu0
    %v6207 = vadd.f32 0.0, %v6206
    %v6208 = vpop.f32.mrb[0].mxu0
    %6209 = vmatprep.mubr.f32.mxu0 %v6069
    %6210 = vmatmul.mubr.f32.gmra.mrb[0].mxu0 %v6068
    %v6211 = vpop.f32.mrb[0].mxu0
    %v6212 = vadd.f32 0.0, %v6211
    %v6213 = vpop.f32.mrb[0].mxu0
    %6214 = vmatprep.mubr.f32.mxu0 %v6071
    %6215 = vmatmul.mubr.f32.gmra.mrb[0].mxu0 %v6070
    %v6216 = vpop.f32.mrb[0].mxu0
    %v6217 = vadd.f32 0.0, %v6216
    %v6218 = vpop.f32.mrb[0].mxu0
    %6219 = vmatprep.mubr.f32.mxu0 %v6073
    %6220 = vmatmul.mubr.f32.gmra.mrb[0].mxu0 %v6072
    %v6221 = vpop.f32.mrb[0].mxu0
    %v6222 = vadd.f32 0.0, %v6221
    %v6223 = vpop.f32.mrb[0].mxu0
    %6224 = vmatprep.mubr.f32.mxu0 %v6075
    %6225 = vmatmul.mubr.f32.gmra.mrb[0].mxu0 %v6074
    %v6226 = vpop.f32.mrb[0].mxu0
    %v6227 = vadd.f32 0.0, %v6226
    %v6228 = vpop.f32.mrb[0].mxu0
    %6229 = vmatprep.mubr.f32.mxu0 %v6077
    %6230 = vmatmul.mubr.f32.gmra.mrb[0].mxu0 %v6076
    %v6231 = vpop.f32.mrb[0].mxu0
    %v6232 = vadd.f32 0.0, %v6231
    %v6233 = vpop.f32.mrb[0].mxu0
    %6234 = vmatprep.mubr.f32.mxu0 %v6079
    %6235 = vmatmul.mubr.f32.gmra.mrb[0].mxu0 %v6078
    %v6236 = vpop.f32.mrb[0].mxu0
    %v6237 = vadd.f32 0.0, %v6236
    %v6238 = vpop.f32.mrb[0].mxu0
    %6239 = vmatprep.mubr.f32.mxu0 %v6081
    %6240 = vmatmul.mubr.f32.gmra.mrb[0].mxu0 %v6080
    %v6241 = vpop.f32.mrb[0].mxu0
    %v6242 = vadd.f32 0.0, %v6241
    %v6243 = vpop.f32.mrb[0].mxu0
    %6244 = vmatprep.mubr.f32.mxu0 %v6083
    %6245 = vmatmul.mubr.f32.gmra.mrb[0].mxu0 %v6082
    %v6246 = vpop.f32.mrb[0].mxu0
    %v6247 = vadd.f32 0.0, %v6246
    %v6248 = vpop.f32.mrb[0].mxu0
    %6249 = vmatprep.mubr.f32.mxu0 %v6085
    %6250 = vmatmul.mubr.f32.gmra.mrb[0].mxu0 %v6084
    %v6251 = vpop.f32.mrb[0].mxu0
    %v6252 = vadd.f32 0.0, %v6251
    %v6253 = vpop.f32.mrb[0].mxu0
    %6254 = vmatprep.mubr.f32.mxu0 %v6087
    %6255 = vmatmul.mubr.f32.gmra.mrb[0].mxu0 %v6086
    %v6256 = vpop.f32.mrb[0].mxu0
    %v6257 = vadd.f32 0.0, %v6256
    %v6258 = vpop.f32.mrb[0].mxu0
    %6259 = vmatprep.mubr.f32.mxu0 %v6089
    %6260 = vmatmul.mubr.f32.gmra.mrb[0].mxu0 %v6088
    %v6261 = vpop.f32.mrb[0].mxu0
    %v6262 = vadd.f32 0.0, %v6261
    %v6263 = vpop.f32.mrb[0].mxu0
    %6264 = vmatprep.mubr.f32.mxu0 %v6091
    %6265 = vmatmul.mubr.f32.gmra.mrb[0].mxu0 %v6090
    %v6266 = vpop.f32.mrb[0].mxu0
    %v6267 = vadd.f32 0.0, %v6266
    %v6268 = vpop.f32.mrb[0].mxu0
    %6269 = vdwg.mxu0
    %v6270 = vadd.f32 %v6044, %v6192
    %v6271 = vadd.f32 %v6045, %v6197
    %v6272 = vadd.f32 %v6046, %v6202
    %v6273 = vadd.f32 %v6047, %v6207
    %v6274 = vadd.f32 %v6048, %v6212
    %v6275 = vadd.f32 %v6049, %v6217
    %v6276 = vadd.f32 %v6050, %v6222
    %v6277 = vadd.f32 %v6051, %v6227
    %v6278 = vadd.f32 %v6052, %v6232
    %v6279 = vadd.f32 %v6053, %v6237
    %v6280 = vadd.f32 %v6054, %v6242
    %v6281 = vadd.f32 %v6055, %v6247
    %v6282 = vadd.f32 %v6056, %v6252
    %v6283 = vadd.f32 %v6057, %v6257
    %v6284 = vadd.f32 %v6058, %v6262
    %v6285 = vadd.f32 %v6059, %v6267
    %v6286 = vld [vmem:[%s4900] sm:$0xfe]
    %v6287 = vld [vmem:[%s4900 + $0x8] sm:$0xfe]
    %v6288 = vld [vmem:[%s4900 + $0x10] sm:$0x1]
    %v6289 = vld [vmem:[%s4900 + $0x18] sm:$0x1]
    %v6290 = vld [vmem:[%s4900 + $0x20] sm:$0xfe]
    %v6291 = vld [vmem:[%s4900 + $0x28] sm:$0xfe]
    %v6292 = vld [vmem:[%s4900 + $0x30] sm:$0x1]
    %v6293 = vld [vmem:[%s4900 + $0x38] sm:$0x1]
    %v6294 = vld [vmem:[%s4900 + $0x40] sm:$0xfe]
    %v6295 = vld [vmem:[%s4900 + $0x48] sm:$0xfe]
    %v6296 = vld [vmem:[%s4900 + $0x50] sm:$0x1]
    %v6297 = vld [vmem:[%s4900 + $0x58] sm:$0x1]
    %v6298 = vld [vmem:[%s4900 + $0x60] sm:$0xfe]
    %v6299 = vld [vmem:[%s4900 + $0x68] sm:$0xfe]
    %v6300 = vld [vmem:[%s4900 + $0x70] sm:$0x1]
    %v6301 = vld [vmem:[%s4900 + $0x78] sm:$0x1]
    %v6302 = vld [vmem:[%s4900 + $0x80] sm:$0xfe]
    %v6303 = vld [vmem:[%s4900 + $0x88] sm:$0xfe]
    %v6304 = vld [vmem:[%s4900 + $0x90] sm:$0x1]
    %v6305 = vld [vmem:[%s4900 + $0x98] sm:$0x1]
    %v6306 = vld [vmem:[%s4900 + $0xa0] sm:$0xfe]
    %v6307 = vld [vmem:[%s4900 + $0xa8] sm:$0xfe]
    %v6308 = vld [vmem:[%s4900 + $0xb0] sm:$0x1]
    %v6309 = vld [vmem:[%s4900 + $0xb8] sm:$0x1]
    %v6310 = vld [vmem:[%s4900 + $0xc0] sm:$0xfe]
    %v6311 = vld [vmem:[%s4900 + $0xc8] sm:$0xfe]
    %v6312 = vld [vmem:[%s4900 + $0xd0] sm:$0x1]
    %v6313 = vld [vmem:[%s4900 + $0xd8] sm:$0x1]
    %v6314 = vld [vmem:[%s4900 + $0xe0] sm:$0xfe]
    %v6315 = vld [vmem:[%s4900 + $0xe8] sm:$0xfe]
    %v6316 = vld [vmem:[%s4900 + $0xf0] sm:$0x1]
    %v6317 = vld [vmem:[%s4900 + $0xf8] sm:$0x1]
    %v6318 = vld [vmem:[%s4900 + $0x140] sm:$0xfe]
    %v6319 = vld [vmem:[%s4900 + $0x148] sm:$0xfe]
    %v6320 = vld [vmem:[%s4900 + $0x150] sm:$0x1]
    %v6321 = vld [vmem:[%s4900 + $0x158] sm:$0x1]
    %v6322 = vld [vmem:[%s4900 + $0x160] sm:$0xfe]
    %v6323 = vld [vmem:[%s4900 + $0x168] sm:$0xfe]
    %v6324 = vld [vmem:[%s4900 + $0x170] sm:$0x1]
    %v6325 = vld [vmem:[%s4900 + $0x178] sm:$0x1]
    %v6326 = vld [vmem:[%s4900 + $0x180] sm:$0xfe]
    %v6327 = vld [vmem:[%s4900 + $0x188] sm:$0xfe]
    %v6328 = vld [vmem:[%s4900 + $0x190] sm:$0x1]
    %v6329 = vld [vmem:[%s4900 + $0x198] sm:$0x1]
    %v6330 = vld [vmem:[%s4900 + $0x1a0] sm:$0xfe]
    %v6331 = vld [vmem:[%s4900 + $0x1a8] sm:$0xfe]
    %v6332 = vld [vmem:[%s4900 + $0x1b0] sm:$0x1]
    %v6333 = vld [vmem:[%s4900 + $0x1b8] sm:$0x1]
    %v6334 = vld [vmem:[%s4900 + $0x1c0] sm:$0xfe]
    %v6335 = vld [vmem:[%s4900 + $0x1c8] sm:$0xfe]
    %v6336 = vld [vmem:[%s4900 + $0x1d0] sm:$0x1]
    %v6337 = vld [vmem:[%s4900 + $0x1d8] sm:$0x1]
    %v6338 = vld [vmem:[%s4900 + $0x1e0] sm:$0xfe]
    %v6339 = vld [vmem:[%s4900 + $0x1e8] sm:$0xfe]
    %v6340 = vld [vmem:[%s4900 + $0x1f0] sm:$0x1]
    %v6341 = vld [vmem:[%s4900 + $0x1f8] sm:$0x1]
    %v6342 = vld [vmem:[%s4900 + $0x200] sm:$0xfe]
    %v6343 = vld [vmem:[%s4900 + $0x208] sm:$0xfe]
    %v6344 = vld [vmem:[%s4900 + $0x210] sm:$0x1]
    %v6345 = vld [vmem:[%s4900 + $0x218] sm:$0x1]
    %v6346 = vld [vmem:[%s4900 + $0x220] sm:$0xfe]
    %v6347 = vld [vmem:[%s4900 + $0x228] sm:$0xfe]
    %v6348 = vld [vmem:[%s4900 + $0x230] sm:$0x1]
    %v6349 = vld [vmem:[%s4900 + $0x238] sm:$0x1]
    %v6414 = vrot.slane %v6286, 1
    %v6415 = vrot.slane %v6288, 1
    %v6416 = vsel %vm5157, %v6414, %v6415
    %v6417 = vrot.slane %v6287, 1
    %v6418 = vrot.slane %v6289, 1
    %v6419 = vsel %vm5157, %v6417, %v6418
    %v6420 = vrot.slane %v6290, 1
    %v6421 = vrot.slane %v6292, 1
    %v6422 = vsel %vm5157, %v6420, %v6421
    %v6423 = vrot.slane %v6291, 1
    %v6424 = vrot.slane %v6293, 1
    %v6425 = vsel %vm5157, %v6423, %v6424
    %v6426 = vrot.slane %v6294, 1
    %v6427 = vrot.slane %v6296, 1
    %v6428 = vsel %vm5157, %v6426, %v6427
    %v6429 = vrot.slane %v6295, 1
    %v6430 = vrot.slane %v6297, 1
    %v6431 = vsel %vm5157, %v6429, %v6430
    %v6432 = vrot.slane %v6298, 1
    %v6433 = vrot.slane %v6300, 1
    %v6434 = vsel %vm5157, %v6432, %v6433
    %v6435 = vrot.slane %v6299, 1
    %v6436 = vrot.slane %v6301, 1
    %v6437 = vsel %vm5157, %v6435, %v6436
    %v6438 = vrot.slane %v6302, 1
    %v6439 = vrot.slane %v6304, 1
    %v6440 = vsel %vm5157, %v6438, %v6439
    %v6441 = vrot.slane %v6303, 1
    %v6442 = vrot.slane %v6305, 1
    %v6443 = vsel %vm5157, %v6441, %v6442
    %v6444 = vrot.slane %v6306, 1
    %v6445 = vrot.slane %v6308, 1
    %v6446 = vsel %vm5157, %v6444, %v6445
    %v6447 = vrot.slane %v6307, 1
    %v6448 = vrot.slane %v6309, 1
    %v6449 = vsel %vm5157, %v6447, %v6448
    %v6450 = vrot.slane %v6310, 1
    %v6451 = vrot.slane %v6312, 1
    %v6452 = vsel %vm5157, %v6450, %v6451
    %v6453 = vrot.slane %v6311, 1
    %v6454 = vrot.slane %v6313, 1
    %v6455 = vsel %vm5157, %v6453, %v6454
    %v6456 = vrot.slane %v6314, 1
    %v6457 = vrot.slane %v6316, 1
    %v6458 = vsel %vm5157, %v6456, %v6457
    %v6459 = vrot.slane %v6315, 1
    %v6460 = vrot.slane %v6317, 1
    %v6461 = vsel %vm5157, %v6459, %v6460
    %v6462 = vrot.slane %v6318, 1
    %v6463 = vrot.slane %v6320, 1
    %v6464 = vsel %vm5157, %v6462, %v6463
    %v6465 = vrot.slane %v6319, 1
    %v6466 = vrot.slane %v6321, 1
    %v6467 = vsel %vm5157, %v6465, %v6466
    %v6468 = vrot.slane %v6322, 1
    %v6469 = vrot.slane %v6324, 1
    %v6470 = vsel %vm5157, %v6468, %v6469
    %v6471 = vrot.slane %v6323, 1
    %v6472 = vrot.slane %v6325, 1
    %v6473 = vsel %vm5157, %v6471, %v6472
    %v6474 = vrot.slane %v6326, 1
    %v6475 = vrot.slane %v6328, 1
    %v6476 = vsel %vm5157, %v6474, %v6475
    %v6477 = vrot.slane %v6327, 1
    %v6478 = vrot.slane %v6329, 1
    %v6479 = vsel %vm5157, %v6477, %v6478
    %v6480 = vrot.slane %v6330, 1
    %v6481 = vrot.slane %v6332, 1
    %v6482 = vsel %vm5157, %v6480, %v6481
    %v6483 = vrot.slane %v6331, 1
    %v6484 = vrot.slane %v6333, 1
    %v6485 = vsel %vm5157, %v6483, %v6484
    %v6486 = vrot.slane %v6334, 1
    %v6487 = vrot.slane %v6336, 1
    %v6488 = vsel %vm5157, %v6486, %v6487
    %v6489 = vrot.slane %v6335, 1
    %v6490 = vrot.slane %v6337, 1
    %v6491 = vsel %vm5157, %v6489, %v6490
    %v6492 = vrot.slane %v6338, 1
    %v6493 = vrot.slane %v6340, 1
    %v6494 = vsel %vm5157, %v6492, %v6493
    %v6495 = vrot.slane %v6339, 1
    %v6496 = vrot.slane %v6341, 1
    %v6497 = vsel %vm5157, %v6495, %v6496
    %v6498 = vrot.slane %v6342, 1
    %v6499 = vrot.slane %v6344, 1
    %v6500 = vsel %vm5157, %v6498, %v6499
    %v6501 = vrot.slane %v6343, 1
    %v6502 = vrot.slane %v6345, 1
    %v6503 = vsel %vm5157, %v6501, %v6502
    %v6504 = vrot.slane %v6346, 1
    %v6505 = vrot.slane %v6348, 1
    %v6506 = vsel %vm5157, %v6504, %v6505
    %v6507 = vrot.slane %v6347, 1
    %v6508 = vrot.slane %v6349, 1
    %v6509 = vsel %vm5157, %v6507, %v6508
    %s6542 = scalar_lea.vmem %s3, 1024
    %v6543 = vld [vmem:[%s6542] sm:$0xff]
    %v6544 = vld [vmem:[%s6542 + $0x8] sm:$0xff]
    %v6545 = vld [vmem:[%s6542 + $0x10] sm:$0xff]
    %v6546 = vld [vmem:[%s6542 + $0x18] sm:$0xff]
    %v6547 = vld [vmem:[%s6542 + $0x20] sm:$0xff]
    %v6548 = vld [vmem:[%s6542 + $0x28] sm:$0xff]
    %v6549 = vld [vmem:[%s6542 + $0x30] sm:$0xff]
    %v6550 = vld [vmem:[%s6542 + $0x38] sm:$0xff]
    %v6551 = vld [vmem:[%s6542 + $0x40] sm:$0xff]
    %v6552 = vld [vmem:[%s6542 + $0x48] sm:$0xff]
    %v6553 = vld [vmem:[%s6542 + $0x50] sm:$0xff]
    %v6554 = vld [vmem:[%s6542 + $0x58] sm:$0xff]
    %v6555 = vld [vmem:[%s6542 + $0x60] sm:$0xff]
    %v6556 = vld [vmem:[%s6542 + $0x68] sm:$0xff]
    %v6557 = vld [vmem:[%s6542 + $0x70] sm:$0xff]
    %v6558 = vld [vmem:[%s6542 + $0x78] sm:$0xff]
    %v6559 = vld [vmem:[%s6542 + $0x80] sm:$0xff]
    %v6560 = vld [vmem:[%s6542 + $0x88] sm:$0xff]
    %v6561 = vld [vmem:[%s6542 + $0x90] sm:$0xff]
    %v6562 = vld [vmem:[%s6542 + $0x98] sm:$0xff]
    %v6563 = vld [vmem:[%s6542 + $0xa0] sm:$0xff]
    %v6564 = vld [vmem:[%s6542 + $0xa8] sm:$0xff]
    %v6565 = vld [vmem:[%s6542 + $0xb0] sm:$0xff]
    %v6566 = vld [vmem:[%s6542 + $0xb8] sm:$0xff]
    %v6567 = vld [vmem:[%s6542 + $0xc0] sm:$0xff]
    %v6568 = vld [vmem:[%s6542 + $0xc8] sm:$0xff]
    %v6569 = vld [vmem:[%s6542 + $0xd0] sm:$0xff]
    %v6570 = vld [vmem:[%s6542 + $0xd8] sm:$0xff]
    %v6571 = vld [vmem:[%s6542 + $0xe0] sm:$0xff]
    %v6572 = vld [vmem:[%s6542 + $0xe8] sm:$0xff]
    %v6573 = vld [vmem:[%s6542 + $0xf0] sm:$0xff]
    %v6574 = vld [vmem:[%s6542 + $0xf8] sm:$0xff]
    %6575 = vmatprep.subr.mxu0 0.0
    %6576 = vmatpush1.msra.mxu0 %v6543
    %6577 = vmatprep.subr.mxu0 0.0
    %6578 = vmatpush1.msra.mxu0 %v6544
    %6579 = vmatprep.subr.mxu0 0.0
    %6580 = vmatpush1.msra.mxu0 %v6545
    %6581 = vmatprep.subr.mxu0 0.0
    %6582 = vmatpush1.msra.mxu0 %v6546
    %6583 = vmatprep.subr.mxu0 0.0
    %6584 = vmatpush1.msra.mxu0 %v6547
    %6585 = vmatprep.subr.mxu0 0.0
    %6586 = vmatpush1.msra.mxu0 %v6548
    %6587 = vmatprep.subr.mxu0 0.0
    %6588 = vmatpush1.msra.mxu0 %v6549
    %6589 = vmatprep.subr.mxu0 0.0
    %6590 = vmatpush1.msra.mxu0 %v6550
    %6591 = vmatprep.subr.mxu0 0.0
    %6592 = vmatpush1.msra.mxu0 %v6551
    %6593 = vmatprep.subr.mxu0 0.0
    %6594 = vmatpush1.msra.mxu0 %v6552
    %6595 = vmatprep.subr.mxu0 0.0
    %6596 = vmatpush1.msra.mxu0 %v6553
    %6597 = vmatprep.subr.mxu0 0.0
    %6598 = vmatpush1.msra.mxu0 %v6554
    %6599 = vmatprep.subr.mxu0 0.0
    %6600 = vmatpush1.msra.mxu0 %v6555
    %6601 = vmatprep.subr.mxu0 0.0
    %6602 = vmatpush1.msra.mxu0 %v6556
    %6603 = vmatprep.subr.mxu0 0.0
    %6604 = vmatpush1.msra.mxu0 %v6557
    %6605 = vmatprep.subr.mxu0 0.0
    %6606 = vmatpush1.msra.mxu0 %v6558
    %6607 = vmatprep.subr.mxu0 0.0
    %6608 = vmatpush1.msra.mxu0 %v6559
    %6609 = vmatprep.subr.mxu0 0.0
    %6610 = vmatpush1.msra.mxu0 %v6560
    %6611 = vmatprep.subr.mxu0 0.0
    %6612 = vmatpush1.msra.mxu0 %v6561
    %6613 = vmatprep.subr.mxu0 0.0
    %6614 = vmatpush1.msra.mxu0 %v6562
    %6615 = vmatprep.subr.mxu0 0.0
    %6616 = vmatpush1.msra.mxu0 %v6563
    %6617 = vmatprep.subr.mxu0 0.0
    %6618 = vmatpush1.msra.mxu0 %v6564
    %6619 = vmatprep.subr.mxu0 0.0
    %6620 = vmatpush1.msra.mxu0 %v6565
    %6621 = vmatprep.subr.mxu0 0.0
    %6622 = vmatpush1.msra.mxu0 %v6566
    %6623 = vmatprep.subr.mxu0 0.0
    %6624 = vmatpush1.msra.mxu0 %v6567
    %6625 = vmatprep.subr.mxu0 0.0
    %6626 = vmatpush1.msra.mxu0 %v6568
    %6627 = vmatprep.subr.mxu0 0.0
    %6628 = vmatpush1.msra.mxu0 %v6569
    %6629 = vmatprep.subr.mxu0 0.0
    %6630 = vmatpush1.msra.mxu0 %v6570
    %6631 = vmatprep.subr.mxu0 0.0
    %6632 = vmatpush1.msra.mxu0 %v6571
    %6633 = vmatprep.subr.mxu0 0.0
    %6634 = vmatpush1.msra.mxu0 %v6572
    %6635 = vmatprep.subr.mxu0 0.0
    %6636 = vmatpush1.msra.mxu0 %v6573
    %6637 = vmatprep.subr.mxu0 0.0
    %6638 = vmatpush1.msra.mxu0 %v6574
    %6639 = vmatprep.mubr.f32.mxu0 %v6419
    %6640 = vmatmul.mubr.f32.gmra.mrb[0].mxu0 %v6416
    %v6641 = vpop.f32.mrb[0].mxu0
    %v6642 = vadd.f32 0.0, %v6641
    %v6643 = vpop.f32.mrb[0].mxu0
    %6644 = vmatprep.mubr.f32.mxu0 %v6425
    %6645 = vmatmul.mubr.f32.gmra.mrb[0].mxu0 %v6422
    %v6646 = vpop.f32.mrb[0].mxu0
    %v6647 = vadd.f32 0.0, %v6646
    %v6648 = vpop.f32.mrb[0].mxu0
    %6649 = vmatprep.mubr.f32.mxu0 %v6431
    %6650 = vmatmul.mubr.f32.gmra.mrb[0].mxu0 %v6428
    %v6651 = vpop.f32.mrb[0].mxu0
    %v6652 = vadd.f32 0.0, %v6651
    %v6653 = vpop.f32.mrb[0].mxu0
    %6654 = vmatprep.mubr.f32.mxu0 %v6437
    %6655 = vmatmul.mubr.f32.gmra.mrb[0].mxu0 %v6434
    %v6656 = vpop.f32.mrb[0].mxu0
    %v6657 = vadd.f32 0.0, %v6656
    %v6658 = vpop.f32.mrb[0].mxu0
    %6659 = vmatprep.mubr.f32.mxu0 %v6443
    %6660 = vmatmul.mubr.f32.gmra.mrb[0].mxu0 %v6440
    %v6661 = vpop.f32.mrb[0].mxu0
    %v6662 = vadd.f32 0.0, %v6661
    %v6663 = vpop.f32.mrb[0].mxu0
    %6664 = vmatprep.mubr.f32.mxu0 %v6449
    %6665 = vmatmul.mubr.f32.gmra.mrb[0].mxu0 %v6446
    %v6666 = vpop.f32.mrb[0].mxu0
    %v6667 = vadd.f32 0.0, %v6666
    %v6668 = vpop.f32.mrb[0].mxu0
    %6669 = vmatprep.mubr.f32.mxu0 %v6455
    %6670 = vmatmul.mubr.f32.gmra.mrb[0].mxu0 %v6452
    %v6671 = vpop.f32.mrb[0].mxu0
    %v6672 = vadd.f32 0.0, %v6671
    %v6673 = vpop.f32.mrb[0].mxu0
    %6674 = vmatprep.mubr.f32.mxu0 %v6461
    %6675 = vmatmul.mubr.f32.gmra.mrb[0].mxu0 %v6458
    %v6676 = vpop.f32.mrb[0].mxu0
    %v6677 = vadd.f32 0.0, %v6676
    %v6678 = vpop.f32.mrb[0].mxu0
    %6679 = vmatprep.mubr.f32.mxu0 %v6467
    %6680 = vmatmul.mubr.f32.gmra.mrb[0].mxu0 %v6464
    %v6681 = vpop.f32.mrb[0].mxu0
    %v6682 = vadd.f32 0.0, %v6681
    %v6683 = vpop.f32.mrb[0].mxu0
    %6684 = vmatprep.mubr.f32.mxu0 %v6473
    %6685 = vmatmul.mubr.f32.gmra.mrb[0].mxu0 %v6470
    %v6686 = vpop.f32.mrb[0].mxu0
    %v6687 = vadd.f32 0.0, %v6686
    %v6688 = vpop.f32.mrb[0].mxu0
    %6689 = vmatprep.mubr.f32.mxu0 %v6479
    %6690 = vmatmul.mubr.f32.gmra.mrb[0].mxu0 %v6476
    %v6691 = vpop.f32.mrb[0].mxu0
    %v6692 = vadd.f32 0.0, %v6691
    %v6693 = vpop.f32.mrb[0].mxu0
    %6694 = vmatprep.mubr.f32.mxu0 %v6485
    %6695 = vmatmul.mubr.f32.gmra.mrb[0].mxu0 %v6482
    %v6696 = vpop.f32.mrb[0].mxu0
    %v6697 = vadd.f32 0.0, %v6696
    %v6698 = vpop.f32.mrb[0].mxu0
    %6699 = vmatprep.mubr.f32.mxu0 %v6491
    %6700 = vmatmul.mubr.f32.gmra.mrb[0].mxu0 %v6488
    %v6701 = vpop.f32.mrb[0].mxu0
    %v6702 = vadd.f32 0.0, %v6701
    %v6703 = vpop.f32.mrb[0].mxu0
    %6704 = vmatprep.mubr.f32.mxu0 %v6497
    %6705 = vmatmul.mubr.f32.gmra.mrb[0].mxu0 %v6494
    %v6706 = vpop.f32.mrb[0].mxu0
    %v6707 = vadd.f32 0.0, %v6706
    %v6708 = vpop.f32.mrb[0].mxu0
    %6709 = vmatprep.mubr.f32.mxu0 %v6503
    %6710 = vmatmul.mubr.f32.gmra.mrb[0].mxu0 %v6500
    %v6711 = vpop.f32.mrb[0].mxu0
    %v6712 = vadd.f32 0.0, %v6711
    %v6713 = vpop.f32.mrb[0].mxu0
    %6714 = vmatprep.mubr.f32.mxu0 %v6509
    %6715 = vmatmul.mubr.f32.gmra.mrb[0].mxu0 %v6506
    %v6716 = vpop.f32.mrb[0].mxu0
    %v6717 = vadd.f32 0.0, %v6716
    %v6718 = vpop.f32.mrb[0].mxu0
    %6719 = vdwg.mxu0
    %v6720 = vadd.f32 %v6270, %v6642
    %v6721 = vadd.f32 %v6271, %v6647
    %v6722 = vadd.f32 %v6272, %v6652
    %v6723 = vadd.f32 %v6273, %v6657
    %v6724 = vadd.f32 %v6274, %v6662
    %v6725 = vadd.f32 %v6275, %v6667
    %v6726 = vadd.f32 %v6276, %v6672
    %v6727 = vadd.f32 %v6277, %v6677
    %v6728 = vadd.f32 %v6278, %v6682
    %v6729 = vadd.f32 %v6279, %v6687
    %v6730 = vadd.f32 %v6280, %v6692
    %v6731 = vadd.f32 %v6281, %v6697
    %v6732 = vadd.f32 %v6282, %v6702
    %v6733 = vadd.f32 %v6283, %v6707
    %v6734 = vadd.f32 %v6284, %v6712
    %v6735 = vadd.f32 %v6285, %v6717
    %v6736 = vld [vmem:[%s4900] sm:$0xfc]
    %v6737 = vld [vmem:[%s4900 + $0x8] sm:$0xfc]
    %v6738 = vld [vmem:[%s4900 + $0x10] sm:$0x3]
    %v6739 = vld [vmem:[%s4900 + $0x18] sm:$0x3]
    %v6740 = vld [vmem:[%s4900 + $0x20] sm:$0xfc]
    %v6741 = vld [vmem:[%s4900 + $0x28] sm:$0xfc]
    %v6742 = vld [vmem:[%s4900 + $0x30] sm:$0x3]
    %v6743 = vld [vmem:[%s4900 + $0x38] sm:$0x3]
    %v6744 = vld [vmem:[%s4900 + $0x40] sm:$0xfc]
    %v6745 = vld [vmem:[%s4900 + $0x48] sm:$0xfc]
    %v6746 = vld [vmem:[%s4900 + $0x50] sm:$0x3]
    %v6747 = vld [vmem:[%s4900 + $0x58] sm:$0x3]
    %v6748 = vld [vmem:[%s4900 + $0x60] sm:$0xfc]
    %v6749 = vld [vmem:[%s4900 + $0x68] sm:$0xfc]
    %v6750 = vld [vmem:[%s4900 + $0x70] sm:$0x3]
    %v6751 = vld [vmem:[%s4900 + $0x78] sm:$0x3]
    %v6752 = vld [vmem:[%s4900 + $0x80] sm:$0xfc]
    %v6753 = vld [vmem:[%s4900 + $0x88] sm:$0xfc]
    %v6754 = vld [vmem:[%s4900 + $0x90] sm:$0x3]
    %v6755 = vld [vmem:[%s4900 + $0x98] sm:$0x3]
    %v6756 = vld [vmem:[%s4900 + $0xa0] sm:$0xfc]
    %v6757 = vld [vmem:[%s4900 + $0xa8] sm:$0xfc]
    %v6758 = vld [vmem:[%s4900 + $0xb0] sm:$0x3]
    %v6759 = vld [vmem:[%s4900 + $0xb8] sm:$0x3]
    %v6760 = vld [vmem:[%s4900 + $0xc0] sm:$0xfc]
    %v6761 = vld [vmem:[%s4900 + $0xc8] sm:$0xfc]
    %v6762 = vld [vmem:[%s4900 + $0xd0] sm:$0x3]
    %v6763 = vld [vmem:[%s4900 + $0xd8] sm:$0x3]
    %v6764 = vld [vmem:[%s4900 + $0xe0] sm:$0xfc]
    %v6765 = vld [vmem:[%s4900 + $0xe8] sm:$0xfc]
    %v6766 = vld [vmem:[%s4900 + $0xf0] sm:$0x3]
    %v6767 = vld [vmem:[%s4900 + $0xf8] sm:$0x3]
    %v6768 = vld [vmem:[%s4900 + $0x140] sm:$0xfc]
    %v6769 = vld [vmem:[%s4900 + $0x148] sm:$0xfc]
    %v6770 = vld [vmem:[%s4900 + $0x150] sm:$0x3]
    %v6771 = vld [vmem:[%s4900 + $0x158] sm:$0x3]
    %v6772 = vld [vmem:[%s4900 + $0x160] sm:$0xfc]
    %v6773 = vld [vmem:[%s4900 + $0x168] sm:$0xfc]
    %v6774 = vld [vmem:[%s4900 + $0x170] sm:$0x3]
    %v6775 = vld [vmem:[%s4900 + $0x178] sm:$0x3]
    %v6776 = vld [vmem:[%s4900 + $0x180] sm:$0xfc]
    %v6777 = vld [vmem:[%s4900 + $0x188] sm:$0xfc]
    %v6778 = vld [vmem:[%s4900 + $0x190] sm:$0x3]
    %v6779 = vld [vmem:[%s4900 + $0x198] sm:$0x3]
    %v6780 = vld [vmem:[%s4900 + $0x1a0] sm:$0xfc]
    %v6781 = vld [vmem:[%s4900 + $0x1a8] sm:$0xfc]
    %v6782 = vld [vmem:[%s4900 + $0x1b0] sm:$0x3]
    %v6783 = vld [vmem:[%s4900 + $0x1b8] sm:$0x3]
    %v6784 = vld [vmem:[%s4900 + $0x1c0] sm:$0xfc]
    %v6785 = vld [vmem:[%s4900 + $0x1c8] sm:$0xfc]
    %v6786 = vld [vmem:[%s4900 + $0x1d0] sm:$0x3]
    %v6787 = vld [vmem:[%s4900 + $0x1d8] sm:$0x3]
    %v6788 = vld [vmem:[%s4900 + $0x1e0] sm:$0xfc]
    %v6789 = vld [vmem:[%s4900 + $0x1e8] sm:$0xfc]
    %v6790 = vld [vmem:[%s4900 + $0x1f0] sm:$0x3]
    %v6791 = vld [vmem:[%s4900 + $0x1f8] sm:$0x3]
    %v6792 = vld [vmem:[%s4900 + $0x200] sm:$0xfc]
    %v6793 = vld [vmem:[%s4900 + $0x208] sm:$0xfc]
    %v6794 = vld [vmem:[%s4900 + $0x210] sm:$0x3]
    %v6795 = vld [vmem:[%s4900 + $0x218] sm:$0x3]
    %v6796 = vld [vmem:[%s4900 + $0x220] sm:$0xfc]
    %v6797 = vld [vmem:[%s4900 + $0x228] sm:$0xfc]
    %v6798 = vld [vmem:[%s4900 + $0x230] sm:$0x3]
    %v6799 = vld [vmem:[%s4900 + $0x238] sm:$0x3]
    %v6864 = vrot.slane %v6736, 2
    %v6865 = vrot.slane %v6738, 2
    %v6866 = vsel %vm5737, %v6864, %v6865
    %v6867 = vrot.slane %v6737, 2
    %v6868 = vrot.slane %v6739, 2
    %v6869 = vsel %vm5737, %v6867, %v6868
    %v6870 = vrot.slane %v6740, 2
    %v6871 = vrot.slane %v6742, 2
    %v6872 = vsel %vm5737, %v6870, %v6871
    %v6873 = vrot.slane %v6741, 2
    %v6874 = vrot.slane %v6743, 2
    %v6875 = vsel %vm5737, %v6873, %v6874
    %v6876 = vrot.slane %v6744, 2
    %v6877 = vrot.slane %v6746, 2
    %v6878 = vsel %vm5737, %v6876, %v6877
    %v6879 = vrot.slane %v6745, 2
    %v6880 = vrot.slane %v6747, 2
    %v6881 = vsel %vm5737, %v6879, %v6880
    %v6882 = vrot.slane %v6748, 2
    %v6883 = vrot.slane %v6750, 2
    %v6884 = vsel %vm5737, %v6882, %v6883
    %v6885 = vrot.slane %v6749, 2
    %v6886 = vrot.slane %v6751, 2
    %v6887 = vsel %vm5737, %v6885, %v6886
    %v6888 = vrot.slane %v6752, 2
    %v6889 = vrot.slane %v6754, 2
    %v6890 = vsel %vm5737, %v6888, %v6889
    %v6891 = vrot.slane %v6753, 2
    %v6892 = vrot.slane %v6755, 2
    %v6893 = vsel %vm5737, %v6891, %v6892
    %v6894 = vrot.slane %v6756, 2
    %v6895 = vrot.slane %v6758, 2
    %v6896 = vsel %vm5737, %v6894, %v6895
    %v6897 = vrot.slane %v6757, 2
    %v6898 = vrot.slane %v6759, 2
    %v6899 = vsel %vm5737, %v6897, %v6898
    %v6900 = vrot.slane %v6760, 2
    %v6901 = vrot.slane %v6762, 2
    %v6902 = vsel %vm5737, %v6900, %v6901
    %v6903 = vrot.slane %v6761, 2
    %v6904 = vrot.slane %v6763, 2
    %v6905 = vsel %vm5737, %v6903, %v6904
    %v6906 = vrot.slane %v6764, 2
    %v6907 = vrot.slane %v6766, 2
    %v6908 = vsel %vm5737, %v6906, %v6907
    %v6909 = vrot.slane %v6765, 2
    %v6910 = vrot.slane %v6767, 2
    %v6911 = vsel %vm5737, %v6909, %v6910
    %v6912 = vrot.slane %v6768, 2
    %v6913 = vrot.slane %v6770, 2
    %v6914 = vsel %vm5737, %v6912, %v6913
    %v6915 = vrot.slane %v6769, 2
    %v6916 = vrot.slane %v6771, 2
    %v6917 = vsel %vm5737, %v6915, %v6916
    %v6918 = vrot.slane %v6772, 2
    %v6919 = vrot.slane %v6774, 2
    %v6920 = vsel %vm5737, %v6918, %v6919
    %v6921 = vrot.slane %v6773, 2
    %v6922 = vrot.slane %v6775, 2
    %v6923 = vsel %vm5737, %v6921, %v6922
    %v6924 = vrot.slane %v6776, 2
    %v6925 = vrot.slane %v6778, 2
    %v6926 = vsel %vm5737, %v6924, %v6925
    %v6927 = vrot.slane %v6777, 2
    %v6928 = vrot.slane %v6779, 2
    %v6929 = vsel %vm5737, %v6927, %v6928
    %v6930 = vrot.slane %v6780, 2
    %v6931 = vrot.slane %v6782, 2
    %v6932 = vsel %vm5737, %v6930, %v6931
    %v6933 = vrot.slane %v6781, 2
    %v6934 = vrot.slane %v6783, 2
    %v6935 = vsel %vm5737, %v6933, %v6934
    %v6936 = vrot.slane %v6784, 2
    %v6937 = vrot.slane %v6786, 2
    %v6938 = vsel %vm5737, %v6936, %v6937
    %v6939 = vrot.slane %v6785, 2
    %v6940 = vrot.slane %v6787, 2
    %v6941 = vsel %vm5737, %v6939, %v6940
    %v6942 = vrot.slane %v6788, 2
    %v6943 = vrot.slane %v6790, 2
    %v6944 = vsel %vm5737, %v6942, %v6943
    %v6945 = vrot.slane %v6789, 2
    %v6946 = vrot.slane %v6791, 2
    %v6947 = vsel %vm5737, %v6945, %v6946
    %v6948 = vrot.slane %v6792, 2
    %v6949 = vrot.slane %v6794, 2
    %v6950 = vsel %vm5737, %v6948, %v6949
    %v6951 = vrot.slane %v6793, 2
    %v6952 = vrot.slane %v6795, 2
    %v6953 = vsel %vm5737, %v6951, %v6952
    %v6954 = vrot.slane %v6796, 2
    %v6955 = vrot.slane %v6798, 2
    %v6956 = vsel %vm5737, %v6954, %v6955
    %v6957 = vrot.slane %v6797, 2
    %v6958 = vrot.slane %v6799, 2
    %v6959 = vsel %vm5737, %v6957, %v6958
    %s6992 = scalar_lea.vmem %s3, 1280
    %v6993 = vld [vmem:[%s6992] sm:$0xff]
    %v6994 = vld [vmem:[%s6992 + $0x8] sm:$0xff]
    %v6995 = vld [vmem:[%s6992 + $0x10] sm:$0xff]
    %v6996 = vld [vmem:[%s6992 + $0x18] sm:$0xff]
    %v6997 = vld [vmem:[%s6992 + $0x20] sm:$0xff]
    %v6998 = vld [vmem:[%s6992 + $0x28] sm:$0xff]
    %v6999 = vld [vmem:[%s6992 + $0x30] sm:$0xff]
    %v7000 = vld [vmem:[%s6992 + $0x38] sm:$0xff]
    %v7001 = vld [vmem:[%s6992 + $0x40] sm:$0xff]
    %v7002 = vld [vmem:[%s6992 + $0x48] sm:$0xff]
    %v7003 = vld [vmem:[%s6992 + $0x50] sm:$0xff]
    %v7004 = vld [vmem:[%s6992 + $0x58] sm:$0xff]
    %v7005 = vld [vmem:[%s6992 + $0x60] sm:$0xff]
    %v7006 = vld [vmem:[%s6992 + $0x68] sm:$0xff]
    %v7007 = vld [vmem:[%s6992 + $0x70] sm:$0xff]
    %v7008 = vld [vmem:[%s6992 + $0x78] sm:$0xff]
    %v7009 = vld [vmem:[%s6992 + $0x80] sm:$0xff]
    %v7010 = vld [vmem:[%s6992 + $0x88] sm:$0xff]
    %v7011 = vld [vmem:[%s6992 + $0x90] sm:$0xff]
    %v7012 = vld [vmem:[%s6992 + $0x98] sm:$0xff]
    %v7013 = vld [vmem:[%s6992 + $0xa0] sm:$0xff]
    %v7014 = vld [vmem:[%s6992 + $0xa8] sm:$0xff]
    %v7015 = vld [vmem:[%s6992 + $0xb0] sm:$0xff]
    %v7016 = vld [vmem:[%s6992 + $0xb8] sm:$0xff]
    %v7017 = vld [vmem:[%s6992 + $0xc0] sm:$0xff]
    %v7018 = vld [vmem:[%s6992 + $0xc8] sm:$0xff]
    %v7019 = vld [vmem:[%s6992 + $0xd0] sm:$0xff]
    %v7020 = vld [vmem:[%s6992 + $0xd8] sm:$0xff]
    %v7021 = vld [vmem:[%s6992 + $0xe0] sm:$0xff]
    %v7022 = vld [vmem:[%s6992 + $0xe8] sm:$0xff]
    %v7023 = vld [vmem:[%s6992 + $0xf0] sm:$0xff]
    %v7024 = vld [vmem:[%s6992 + $0xf8] sm:$0xff]
    %7025 = vmatprep.subr.mxu0 0.0
    %7026 = vmatpush1.msra.mxu0 %v6993
    %7027 = vmatprep.subr.mxu0 0.0
    %7028 = vmatpush1.msra.mxu0 %v6994
    %7029 = vmatprep.subr.mxu0 0.0
    %7030 = vmatpush1.msra.mxu0 %v6995
    %7031 = vmatprep.subr.mxu0 0.0
    %7032 = vmatpush1.msra.mxu0 %v6996
    %7033 = vmatprep.subr.mxu0 0.0
    %7034 = vmatpush1.msra.mxu0 %v6997
    %7035 = vmatprep.subr.mxu0 0.0
    %7036 = vmatpush1.msra.mxu0 %v6998
    %7037 = vmatprep.subr.mxu0 0.0
    %7038 = vmatpush1.msra.mxu0 %v6999
    %7039 = vmatprep.subr.mxu0 0.0
    %7040 = vmatpush1.msra.mxu0 %v7000
    %7041 = vmatprep.subr.mxu0 0.0
    %7042 = vmatpush1.msra.mxu0 %v7001
    %7043 = vmatprep.subr.mxu0 0.0
    %7044 = vmatpush1.msra.mxu0 %v7002
    %7045 = vmatprep.subr.mxu0 0.0
    %7046 = vmatpush1.msra.mxu0 %v7003
    %7047 = vmatprep.subr.mxu0 0.0
    %7048 = vmatpush1.msra.mxu0 %v7004
    %7049 = vmatprep.subr.mxu0 0.0
    %7050 = vmatpush1.msra.mxu0 %v7005
    %7051 = vmatprep.subr.mxu0 0.0
    %7052 = vmatpush1.msra.mxu0 %v7006
    %7053 = vmatprep.subr.mxu0 0.0
    %7054 = vmatpush1.msra.mxu0 %v7007
    %7055 = vmatprep.subr.mxu0 0.0
    %7056 = vmatpush1.msra.mxu0 %v7008
    %7057 = vmatprep.subr.mxu0 0.0
    %7058 = vmatpush1.msra.mxu0 %v7009
    %7059 = vmatprep.subr.mxu0 0.0
    %7060 = vmatpush1.msra.mxu0 %v7010
    %7061 = vmatprep.subr.mxu0 0.0
    %7062 = vmatpush1.msra.mxu0 %v7011
    %7063 = vmatprep.subr.mxu0 0.0
    %7064 = vmatpush1.msra.mxu0 %v7012
    %7065 = vmatprep.subr.mxu0 0.0
    %7066 = vmatpush1.msra.mxu0 %v7013
    %7067 = vmatprep.subr.mxu0 0.0
    %7068 = vmatpush1.msra.mxu0 %v7014
    %7069 = vmatprep.subr.mxu0 0.0
    %7070 = vmatpush1.msra.mxu0 %v7015
    %7071 = vmatprep.subr.mxu0 0.0
    %7072 = vmatpush1.msra.mxu0 %v7016
    %7073 = vmatprep.subr.mxu0 0.0
    %7074 = vmatpush1.msra.mxu0 %v7017
    %7075 = vmatprep.subr.mxu0 0.0
    %7076 = vmatpush1.msra.mxu0 %v7018
    %7077 = vmatprep.subr.mxu0 0.0
    %7078 = vmatpush1.msra.mxu0 %v7019
    %7079 = vmatprep.subr.mxu0 0.0
    %7080 = vmatpush1.msra.mxu0 %v7020
    %7081 = vmatprep.subr.mxu0 0.0
    %7082 = vmatpush1.msra.mxu0 %v7021
    %7083 = vmatprep.subr.mxu0 0.0
    %7084 = vmatpush1.msra.mxu0 %v7022
    %7085 = vmatprep.subr.mxu0 0.0
    %7086 = vmatpush1.msra.mxu0 %v7023
    %7087 = vmatprep.subr.mxu0 0.0
    %7088 = vmatpush1.msra.mxu0 %v7024
    %7089 = vmatprep.mubr.f32.mxu0 %v6869
    %7090 = vmatmul.mubr.f32.gmra.mrb[0].mxu0 %v6866
    %v7091 = vpop.f32.mrb[0].mxu0
    %v7092 = vadd.f32 0.0, %v7091
    %v7093 = vpop.f32.mrb[0].mxu0
    %7094 = vmatprep.mubr.f32.mxu0 %v6875
    %7095 = vmatmul.mubr.f32.gmra.mrb[0].mxu0 %v6872
    %v7096 = vpop.f32.mrb[0].mxu0
    %v7097 = vadd.f32 0.0, %v7096
    %v7098 = vpop.f32.mrb[0].mxu0
    %7099 = vmatprep.mubr.f32.mxu0 %v6881
    %7100 = vmatmul.mubr.f32.gmra.mrb[0].mxu0 %v6878
    %v7101 = vpop.f32.mrb[0].mxu0
    %v7102 = vadd.f32 0.0, %v7101
    %v7103 = vpop.f32.mrb[0].mxu0
    %7104 = vmatprep.mubr.f32.mxu0 %v6887
    %7105 = vmatmul.mubr.f32.gmra.mrb[0].mxu0 %v6884
    %v7106 = vpop.f32.mrb[0].mxu0
    %v7107 = vadd.f32 0.0, %v7106
    %v7108 = vpop.f32.mrb[0].mxu0
    %7109 = vmatprep.mubr.f32.mxu0 %v6893
    %7110 = vmatmul.mubr.f32.gmra.mrb[0].mxu0 %v6890
    %v7111 = vpop.f32.mrb[0].mxu0
    %v7112 = vadd.f32 0.0, %v7111
    %v7113 = vpop.f32.mrb[0].mxu0
    %7114 = vmatprep.mubr.f32.mxu0 %v6899
    %7115 = vmatmul.mubr.f32.gmra.mrb[0].mxu0 %v6896
    %v7116 = vpop.f32.mrb[0].mxu0
    %v7117 = vadd.f32 0.0, %v7116
    %v7118 = vpop.f32.mrb[0].mxu0
    %7119 = vmatprep.mubr.f32.mxu0 %v6905
    %7120 = vmatmul.mubr.f32.gmra.mrb[0].mxu0 %v6902
    %v7121 = vpop.f32.mrb[0].mxu0
    %v7122 = vadd.f32 0.0, %v7121
    %v7123 = vpop.f32.mrb[0].mxu0
    %7124 = vmatprep.mubr.f32.mxu0 %v6911
    %7125 = vmatmul.mubr.f32.gmra.mrb[0].mxu0 %v6908
    %v7126 = vpop.f32.mrb[0].mxu0
    %v7127 = vadd.f32 0.0, %v7126
    %v7128 = vpop.f32.mrb[0].mxu0
    %7129 = vmatprep.mubr.f32.mxu0 %v6917
    %7130 = vmatmul.mubr.f32.gmra.mrb[0].mxu0 %v6914
    %v7131 = vpop.f32.mrb[0].mxu0
    %v7132 = vadd.f32 0.0, %v7131
    %v7133 = vpop.f32.mrb[0].mxu0
    %7134 = vmatprep.mubr.f32.mxu0 %v6923
    %7135 = vmatmul.mubr.f32.gmra.mrb[0].mxu0 %v6920
    %v7136 = vpop.f32.mrb[0].mxu0
    %v7137 = vadd.f32 0.0, %v7136
    %v7138 = vpop.f32.mrb[0].mxu0
    %7139 = vmatprep.mubr.f32.mxu0 %v6929
    %7140 = vmatmul.mubr.f32.gmra.mrb[0].mxu0 %v6926
    %v7141 = vpop.f32.mrb[0].mxu0
    %v7142 = vadd.f32 0.0, %v7141
    %v7143 = vpop.f32.mrb[0].mxu0
    %7144 = vmatprep.mubr.f32.mxu0 %v6935
    %7145 = vmatmul.mubr.f32.gmra.mrb[0].mxu0 %v6932
    %v7146 = vpop.f32.mrb[0].mxu0
    %v7147 = vadd.f32 0.0, %v7146
    %v7148 = vpop.f32.mrb[0].mxu0
    %7149 = vmatprep.mubr.f32.mxu0 %v6941
    %7150 = vmatmul.mubr.f32.gmra.mrb[0].mxu0 %v6938
    %v7151 = vpop.f32.mrb[0].mxu0
    %v7152 = vadd.f32 0.0, %v7151
    %v7153 = vpop.f32.mrb[0].mxu0
    %7154 = vmatprep.mubr.f32.mxu0 %v6947
    %7155 = vmatmul.mubr.f32.gmra.mrb[0].mxu0 %v6944
    %v7156 = vpop.f32.mrb[0].mxu0
    %v7157 = vadd.f32 0.0, %v7156
    %v7158 = vpop.f32.mrb[0].mxu0
    %7159 = vmatprep.mubr.f32.mxu0 %v6953
    %7160 = vmatmul.mubr.f32.gmra.mrb[0].mxu0 %v6950
    %v7161 = vpop.f32.mrb[0].mxu0
    %v7162 = vadd.f32 0.0, %v7161
    %v7163 = vpop.f32.mrb[0].mxu0
    %7164 = vmatprep.mubr.f32.mxu0 %v6959
    %7165 = vmatmul.mubr.f32.gmra.mrb[0].mxu0 %v6956
    %v7166 = vpop.f32.mrb[0].mxu0
    %v7167 = vadd.f32 0.0, %v7166
    %v7168 = vpop.f32.mrb[0].mxu0
    %7169 = vdwg.mxu0
    %v7170 = vadd.f32 %v6720, %v7092
    %v7171 = vadd.f32 %v6721, %v7097
    %v7172 = vadd.f32 %v6722, %v7102
    %v7173 = vadd.f32 %v6723, %v7107
    %v7174 = vadd.f32 %v6724, %v7112
    %v7175 = vadd.f32 %v6725, %v7117
    %v7176 = vadd.f32 %v6726, %v7122
    %v7177 = vadd.f32 %v6727, %v7127
    %v7178 = vadd.f32 %v6728, %v7132
    %v7179 = vadd.f32 %v6729, %v7137
    %v7180 = vadd.f32 %v6730, %v7142
    %v7181 = vadd.f32 %v6731, %v7147
    %v7182 = vadd.f32 %v6732, %v7152
    %v7183 = vadd.f32 %v6733, %v7157
    %v7184 = vadd.f32 %v6734, %v7162
    %v7185 = vadd.f32 %v6735, %v7167
    %s7186 = scalar_lea.vmem [#allocation2], 64
    %v7187 = vld [vmem:[%s7186] sm:$0xff]
    %v7188 = vld [vmem:[%s7186 + $0x8] sm:$0xff]
    %v7189 = vld [vmem:[%s7186 + $0x20] sm:$0xff]
    %v7190 = vld [vmem:[%s7186 + $0x28] sm:$0xff]
    %v7191 = vld [vmem:[%s7186 + $0x40] sm:$0xff]
    %v7192 = vld [vmem:[%s7186 + $0x48] sm:$0xff]
    %v7193 = vld [vmem:[%s7186 + $0x60] sm:$0xff]
    %v7194 = vld [vmem:[%s7186 + $0x68] sm:$0xff]
    %v7195 = vld [vmem:[%s7186 + $0x80] sm:$0xff]
    %v7196 = vld [vmem:[%s7186 + $0x88] sm:$0xff]
    %v7197 = vld [vmem:[%s7186 + $0xa0] sm:$0xff]
    %v7198 = vld [vmem:[%s7186 + $0xa8] sm:$0xff]
    %v7199 = vld [vmem:[%s7186 + $0xc0] sm:$0xff]
    %v7200 = vld [vmem:[%s7186 + $0xc8] sm:$0xff]
    %v7201 = vld [vmem:[%s7186 + $0xe0] sm:$0xff]
    %v7202 = vld [vmem:[%s7186 + $0xe8] sm:$0xff]
    %v7203 = vld [vmem:[%s7186 + $0x140] sm:$0xff]
    %v7204 = vld [vmem:[%s7186 + $0x148] sm:$0xff]
    %v7205 = vld [vmem:[%s7186 + $0x160] sm:$0xff]
    %v7206 = vld [vmem:[%s7186 + $0x168] sm:$0xff]
    %v7207 = vld [vmem:[%s7186 + $0x180] sm:$0xff]
    %v7208 = vld [vmem:[%s7186 + $0x188] sm:$0xff]
    %v7209 = vld [vmem:[%s7186 + $0x1a0] sm:$0xff]
    %v7210 = vld [vmem:[%s7186 + $0x1a8] sm:$0xff]
    %v7211 = vld [vmem:[%s7186 + $0x1c0] sm:$0xff]
    %v7212 = vld [vmem:[%s7186 + $0x1c8] sm:$0xff]
    %v7213 = vld [vmem:[%s7186 + $0x1e0] sm:$0xff]
    %v7214 = vld [vmem:[%s7186 + $0x1e8] sm:$0xff]
    %v7215 = vld [vmem:[%s7186 + $0x200] sm:$0xff]
    %v7216 = vld [vmem:[%s7186 + $0x208] sm:$0xff]
    %v7217 = vld [vmem:[%s7186 + $0x220] sm:$0xff]
    %v7218 = vld [vmem:[%s7186 + $0x228] sm:$0xff]
    %s7219 = scalar_lea.vmem %s3, 1536
    %v7220 = vld [vmem:[%s7219] sm:$0xff]
    %v7221 = vld [vmem:[%s7219 + $0x8] sm:$0xff]
    %v7222 = vld [vmem:[%s7219 + $0x10] sm:$0xff]
    %v7223 = vld [vmem:[%s7219 + $0x18] sm:$0xff]
    %v7224 = vld [vmem:[%s7219 + $0x20] sm:$0xff]
    %v7225 = vld [vmem:[%s7219 + $0x28] sm:$0xff]
    %v7226 = vld [vmem:[%s7219 + $0x30] sm:$0xff]
    %v7227 = vld [vmem:[%s7219 + $0x38] sm:$0xff]
    %v7228 = vld [vmem:[%s7219 + $0x40] sm:$0xff]
    %v7229 = vld [vmem:[%s7219 + $0x48] sm:$0xff]
    %v7230 = vld [vmem:[%s7219 + $0x50] sm:$0xff]
    %v7231 = vld [vmem:[%s7219 + $0x58] sm:$0xff]
    %v7232 = vld [vmem:[%s7219 + $0x60] sm:$0xff]
    %v7233 = vld [vmem:[%s7219 + $0x68] sm:$0xff]
    %v7234 = vld [vmem:[%s7219 + $0x70] sm:$0xff]
    %v7235 = vld [vmem:[%s7219 + $0x78] sm:$0xff]
    %v7236 = vld [vmem:[%s7219 + $0x80] sm:$0xff]
    %v7237 = vld [vmem:[%s7219 + $0x88] sm:$0xff]
    %v7238 = vld [vmem:[%s7219 + $0x90] sm:$0xff]
    %v7239 = vld [vmem:[%s7219 + $0x98] sm:$0xff]
    %v7240 = vld [vmem:[%s7219 + $0xa0] sm:$0xff]
    %v7241 = vld [vmem:[%s7219 + $0xa8] sm:$0xff]
    %v7242 = vld [vmem:[%s7219 + $0xb0] sm:$0xff]
    %v7243 = vld [vmem:[%s7219 + $0xb8] sm:$0xff]
    %v7244 = vld [vmem:[%s7219 + $0xc0] sm:$0xff]
    %v7245 = vld [vmem:[%s7219 + $0xc8] sm:$0xff]
    %v7246 = vld [vmem:[%s7219 + $0xd0] sm:$0xff]
    %v7247 = vld [vmem:[%s7219 + $0xd8] sm:$0xff]
    %v7248 = vld [vmem:[%s7219 + $0xe0] sm:$0xff]
    %v7249 = vld [vmem:[%s7219 + $0xe8] sm:$0xff]
    %v7250 = vld [vmem:[%s7219 + $0xf0] sm:$0xff]
    %v7251 = vld [vmem:[%s7219 + $0xf8] sm:$0xff]
    %7252 = vmatprep.subr.mxu0 0.0
    %7253 = vmatpush1.msra.mxu0 %v7220
    %7254 = vmatprep.subr.mxu0 0.0
    %7255 = vmatpush1.msra.mxu0 %v7221
    %7256 = vmatprep.subr.mxu0 0.0
    %7257 = vmatpush1.msra.mxu0 %v7222
    %7258 = vmatprep.subr.mxu0 0.0
    %7259 = vmatpush1.msra.mxu0 %v7223
    %7260 = vmatprep.subr.mxu0 0.0
    %7261 = vmatpush1.msra.mxu0 %v7224
    %7262 = vmatprep.subr.mxu0 0.0
    %7263 = vmatpush1.msra.mxu0 %v7225
    %7264 = vmatprep.subr.mxu0 0.0
    %7265 = vmatpush1.msra.mxu0 %v7226
    %7266 = vmatprep.subr.mxu0 0.0
    %7267 = vmatpush1.msra.mxu0 %v7227
    %7268 = vmatprep.subr.mxu0 0.0
    %7269 = vmatpush1.msra.mxu0 %v7228
    %7270 = vmatprep.subr.mxu0 0.0
    %7271 = vmatpush1.msra.mxu0 %v7229
    %7272 = vmatprep.subr.mxu0 0.0
    %7273 = vmatpush1.msra.mxu0 %v7230
    %7274 = vmatprep.subr.mxu0 0.0
    %7275 = vmatpush1.msra.mxu0 %v7231
    %7276 = vmatprep.subr.mxu0 0.0
    %7277 = vmatpush1.msra.mxu0 %v7232
    %7278 = vmatprep.subr.mxu0 0.0
    %7279 = vmatpush1.msra.mxu0 %v7233
    %7280 = vmatprep.subr.mxu0 0.0
    %7281 = vmatpush1.msra.mxu0 %v7234
    %7282 = vmatprep.subr.mxu0 0.0
    %7283 = vmatpush1.msra.mxu0 %v7235
    %7284 = vmatprep.subr.mxu0 0.0
    %7285 = vmatpush1.msra.mxu0 %v7236
    %7286 = vmatprep.subr.mxu0 0.0
    %7287 = vmatpush1.msra.mxu0 %v7237
    %7288 = vmatprep.subr.mxu0 0.0
    %7289 = vmatpush1.msra.mxu0 %v7238
    %7290 = vmatprep.subr.mxu0 0.0
    %7291 = vmatpush1.msra.mxu0 %v7239
    %7292 = vmatprep.subr.mxu0 0.0
    %7293 = vmatpush1.msra.mxu0 %v7240
    %7294 = vmatprep.subr.mxu0 0.0
    %7295 = vmatpush1.msra.mxu0 %v7241
    %7296 = vmatprep.subr.mxu0 0.0
    %7297 = vmatpush1.msra.mxu0 %v7242
    %7298 = vmatprep.subr.mxu0 0.0
    %7299 = vmatpush1.msra.mxu0 %v7243
    %7300 = vmatprep.subr.mxu0 0.0
    %7301 = vmatpush1.msra.mxu0 %v7244
    %7302 = vmatprep.subr.mxu0 0.0
    %7303 = vmatpush1.msra.mxu0 %v7245
    %7304 = vmatprep.subr.mxu0 0.0
    %7305 = vmatpush1.msra.mxu0 %v7246
    %7306 = vmatprep.subr.mxu0 0.0
    %7307 = vmatpush1.msra.mxu0 %v7247
    %7308 = vmatprep.subr.mxu0 0.0
    %7309 = vmatpush1.msra.mxu0 %v7248
    %7310 = vmatprep.subr.mxu0 0.0
    %7311 = vmatpush1.msra.mxu0 %v7249
    %7312 = vmatprep.subr.mxu0 0.0
    %7313 = vmatpush1.msra.mxu0 %v7250
    %7314 = vmatprep.subr.mxu0 0.0
    %7315 = vmatpush1.msra.mxu0 %v7251
    %7316 = vmatprep.mubr.f32.mxu0 %v7188
    %7317 = vmatmul.mubr.f32.gmra.mrb[0].mxu0 %v7187
    %v7318 = vpop.f32.mrb[0].mxu0
    %v7319 = vadd.f32 0.0, %v7318
    %v7320 = vpop.f32.mrb[0].mxu0
    %7321 = vmatprep.mubr.f32.mxu0 %v7190
    %7322 = vmatmul.mubr.f32.gmra.mrb[0].mxu0 %v7189
    %v7323 = vpop.f32.mrb[0].mxu0
    %v7324 = vadd.f32 0.0, %v7323
    %v7325 = vpop.f32.mrb[0].mxu0
    %7326 = vmatprep.mubr.f32.mxu0 %v7192
    %7327 = vmatmul.mubr.f32.gmra.mrb[0].mxu0 %v7191
    %v7328 = vpop.f32.mrb[0].mxu0
    %v7329 = vadd.f32 0.0, %v7328
    %v7330 = vpop.f32.mrb[0].mxu0
    %7331 = vmatprep.mubr.f32.mxu0 %v7194
    %7332 = vmatmul.mubr.f32.gmra.mrb[0].mxu0 %v7193
    %v7333 = vpop.f32.mrb[0].mxu0
    %v7334 = vadd.f32 0.0, %v7333
    %v7335 = vpop.f32.mrb[0].mxu0
    %7336 = vmatprep.mubr.f32.mxu0 %v7196
    %7337 = vmatmul.mubr.f32.gmra.mrb[0].mxu0 %v7195
    %v7338 = vpop.f32.mrb[0].mxu0
    %v7339 = vadd.f32 0.0, %v7338
    %v7340 = vpop.f32.mrb[0].mxu0
    %7341 = vmatprep.mubr.f32.mxu0 %v7198
    %7342 = vmatmul.mubr.f32.gmra.mrb[0].mxu0 %v7197
    %v7343 = vpop.f32.mrb[0].mxu0
    %v7344 = vadd.f32 0.0, %v7343
    %v7345 = vpop.f32.mrb[0].mxu0
    %7346 = vmatprep.mubr.f32.mxu0 %v7200
    %7347 = vmatmul.mubr.f32.gmra.mrb[0].mxu0 %v7199
    %v7348 = vpop.f32.mrb[0].mxu0
    %v7349 = vadd.f32 0.0, %v7348
    %v7350 = vpop.f32.mrb[0].mxu0
    %7351 = vmatprep.mubr.f32.mxu0 %v7202
    %7352 = vmatmul.mubr.f32.gmra.mrb[0].mxu0 %v7201
    %v7353 = vpop.f32.mrb[0].mxu0
    %v7354 = vadd.f32 0.0, %v7353
    %v7355 = vpop.f32.mrb[0].mxu0
    %7356 = vmatprep.mubr.f32.mxu0 %v7204
    %7357 = vmatmul.mubr.f32.gmra.mrb[0].mxu0 %v7203
    %v7358 = vpop.f32.mrb[0].mxu0
    %v7359 = vadd.f32 0.0, %v7358
    %v7360 = vpop.f32.mrb[0].mxu0
    %7361 = vmatprep.mubr.f32.mxu0 %v7206
    %7362 = vmatmul.mubr.f32.gmra.mrb[0].mxu0 %v7205
    %v7363 = vpop.f32.mrb[0].mxu0
    %v7364 = vadd.f32 0.0, %v7363
    %v7365 = vpop.f32.mrb[0].mxu0
    %7366 = vmatprep.mubr.f32.mxu0 %v7208
    %7367 = vmatmul.mubr.f32.gmra.mrb[0].mxu0 %v7207
    %v7368 = vpop.f32.mrb[0].mxu0
    %v7369 = vadd.f32 0.0, %v7368
    %v7370 = vpop.f32.mrb[0].mxu0
    %7371 = vmatprep.mubr.f32.mxu0 %v7210
    %7372 = vmatmul.mubr.f32.gmra.mrb[0].mxu0 %v7209
    %v7373 = vpop.f32.mrb[0].mxu0
    %v7374 = vadd.f32 0.0, %v7373
    %v7375 = vpop.f32.mrb[0].mxu0
    %7376 = vmatprep.mubr.f32.mxu0 %v7212
    %7377 = vmatmul.mubr.f32.gmra.mrb[0].mxu0 %v7211
    %v7378 = vpop.f32.mrb[0].mxu0
    %v7379 = vadd.f32 0.0, %v7378
    %v7380 = vpop.f32.mrb[0].mxu0
    %7381 = vmatprep.mubr.f32.mxu0 %v7214
    %7382 = vmatmul.mubr.f32.gmra.mrb[0].mxu0 %v7213
    %v7383 = vpop.f32.mrb[0].mxu0
    %v7384 = vadd.f32 0.0, %v7383
    %v7385 = vpop.f32.mrb[0].mxu0
    %7386 = vmatprep.mubr.f32.mxu0 %v7216
    %7387 = vmatmul.mubr.f32.gmra.mrb[0].mxu0 %v7215
    %v7388 = vpop.f32.mrb[0].mxu0
    %v7389 = vadd.f32 0.0, %v7388
    %v7390 = vpop.f32.mrb[0].mxu0
    %7391 = vmatprep.mubr.f32.mxu0 %v7218
    %7392 = vmatmul.mubr.f32.gmra.mrb[0].mxu0 %v7217
    %v7393 = vpop.f32.mrb[0].mxu0
    %v7394 = vadd.f32 0.0, %v7393
    %v7395 = vpop.f32.mrb[0].mxu0
    %7396 = vdwg.mxu0
    %v7397 = vadd.f32 %v7170, %v7319
    %v7398 = vadd.f32 %v7171, %v7324
    %v7399 = vadd.f32 %v7172, %v7329
    %v7400 = vadd.f32 %v7173, %v7334
    %v7401 = vadd.f32 %v7174, %v7339
    %v7402 = vadd.f32 %v7175, %v7344
    %v7403 = vadd.f32 %v7176, %v7349
    %v7404 = vadd.f32 %v7177, %v7354
    %v7405 = vadd.f32 %v7178, %v7359
    %v7406 = vadd.f32 %v7179, %v7364
    %v7407 = vadd.f32 %v7180, %v7369
    %v7408 = vadd.f32 %v7181, %v7374
    %v7409 = vadd.f32 %v7182, %v7379
    %v7410 = vadd.f32 %v7183, %v7384
    %v7411 = vadd.f32 %v7184, %v7389
    %v7412 = vadd.f32 %v7185, %v7394
    %v7413 = vld [vmem:[%s7186] sm:$0xfe]
    %v7414 = vld [vmem:[%s7186 + $0x8] sm:$0xfe]
    %v7415 = vld [vmem:[%s7186 + $0x10] sm:$0x1]
    %v7416 = vld [vmem:[%s7186 + $0x18] sm:$0x1]
    %v7417 = vld [vmem:[%s7186 + $0x20] sm:$0xfe]
    %v7418 = vld [vmem:[%s7186 + $0x28] sm:$0xfe]
    %v7419 = vld [vmem:[%s7186 + $0x30] sm:$0x1]
    %v7420 = vld [vmem:[%s7186 + $0x38] sm:$0x1]
    %v7421 = vld [vmem:[%s7186 + $0x40] sm:$0xfe]
    %v7422 = vld [vmem:[%s7186 + $0x48] sm:$0xfe]
    %v7423 = vld [vmem:[%s7186 + $0x50] sm:$0x1]
    %v7424 = vld [vmem:[%s7186 + $0x58] sm:$0x1]
    %v7425 = vld [vmem:[%s7186 + $0x60] sm:$0xfe]
    %v7426 = vld [vmem:[%s7186 + $0x68] sm:$0xfe]
    %v7427 = vld [vmem:[%s7186 + $0x70] sm:$0x1]
    %v7428 = vld [vmem:[%s7186 + $0x78] sm:$0x1]
    %v7429 = vld [vmem:[%s7186 + $0x80] sm:$0xfe]
    %v7430 = vld [vmem:[%s7186 + $0x88] sm:$0xfe]
    %v7431 = vld [vmem:[%s7186 + $0x90] sm:$0x1]
    %v7432 = vld [vmem:[%s7186 + $0x98] sm:$0x1]
    %v7433 = vld [vmem:[%s7186 + $0xa0] sm:$0xfe]
    %v7434 = vld [vmem:[%s7186 + $0xa8] sm:$0xfe]
    %v7435 = vld [vmem:[%s7186 + $0xb0] sm:$0x1]
    %v7436 = vld [vmem:[%s7186 + $0xb8] sm:$0x1]
    %v7437 = vld [vmem:[%s7186 + $0xc0] sm:$0xfe]
    %v7438 = vld [vmem:[%s7186 + $0xc8] sm:$0xfe]
    %v7439 = vld [vmem:[%s7186 + $0xd0] sm:$0x1]
    %v7440 = vld [vmem:[%s7186 + $0xd8] sm:$0x1]
    %v7441 = vld [vmem:[%s7186 + $0xe0] sm:$0xfe]
    %v7442 = vld [vmem:[%s7186 + $0xe8] sm:$0xfe]
    %v7443 = vld [vmem:[%s7186 + $0xf0] sm:$0x1]
    %v7444 = vld [vmem:[%s7186 + $0xf8] sm:$0x1]
    %v7445 = vld [vmem:[%s7186 + $0x140] sm:$0xfe]
    %v7446 = vld [vmem:[%s7186 + $0x148] sm:$0xfe]
    %v7447 = vld [vmem:[%s7186 + $0x150] sm:$0x1]
    %v7448 = vld [vmem:[%s7186 + $0x158] sm:$0x1]
    %v7449 = vld [vmem:[%s7186 + $0x160] sm:$0xfe]
    %v7450 = vld [vmem:[%s7186 + $0x168] sm:$0xfe]
    %v7451 = vld [vmem:[%s7186 + $0x170] sm:$0x1]
    %v7452 = vld [vmem:[%s7186 + $0x178] sm:$0x1]
    %v7453 = vld [vmem:[%s7186 + $0x180] sm:$0xfe]
    %v7454 = vld [vmem:[%s7186 + $0x188] sm:$0xfe]
    %v7455 = vld [vmem:[%s7186 + $0x190] sm:$0x1]
    %v7456 = vld [vmem:[%s7186 + $0x198] sm:$0x1]
    %v7457 = vld [vmem:[%s7186 + $0x1a0] sm:$0xfe]
    %v7458 = vld [vmem:[%s7186 + $0x1a8] sm:$0xfe]
    %v7459 = vld [vmem:[%s7186 + $0x1b0] sm:$0x1]
    %v7460 = vld [vmem:[%s7186 + $0x1b8] sm:$0x1]
    %v7461 = vld [vmem:[%s7186 + $0x1c0] sm:$0xfe]
    %v7462 = vld [vmem:[%s7186 + $0x1c8] sm:$0xfe]
    %v7463 = vld [vmem:[%s7186 + $0x1d0] sm:$0x1]
    %v7464 = vld [vmem:[%s7186 + $0x1d8] sm:$0x1]
    %v7465 = vld [vmem:[%s7186 + $0x1e0] sm:$0xfe]
    %v7466 = vld [vmem:[%s7186 + $0x1e8] sm:$0xfe]
    %v7467 = vld [vmem:[%s7186 + $0x1f0] sm:$0x1]
    %v7468 = vld [vmem:[%s7186 + $0x1f8] sm:$0x1]
    %v7469 = vld [vmem:[%s7186 + $0x200] sm:$0xfe]
    %v7470 = vld [vmem:[%s7186 + $0x208] sm:$0xfe]
    %v7471 = vld [vmem:[%s7186 + $0x210] sm:$0x1]
    %v7472 = vld [vmem:[%s7186 + $0x218] sm:$0x1]
    %v7473 = vld [vmem:[%s7186 + $0x220] sm:$0xfe]
    %v7474 = vld [vmem:[%s7186 + $0x228] sm:$0xfe]
    %v7475 = vld [vmem:[%s7186 + $0x230] sm:$0x1]
    %v7476 = vld [vmem:[%s7186 + $0x238] sm:$0x1]
    %v7541 = vrot.slane %v7413, 1
    %v7542 = vrot.slane %v7415, 1
    %v7543 = vsel %vm5157, %v7541, %v7542
    %v7544 = vrot.slane %v7414, 1
    %v7545 = vrot.slane %v7416, 1
    %v7546 = vsel %vm5157, %v7544, %v7545
    %v7547 = vrot.slane %v7417, 1
    %v7548 = vrot.slane %v7419, 1
    %v7549 = vsel %vm5157, %v7547, %v7548
    %v7550 = vrot.slane %v7418, 1
    %v7551 = vrot.slane %v7420, 1
    %v7552 = vsel %vm5157, %v7550, %v7551
    %v7553 = vrot.slane %v7421, 1
    %v7554 = vrot.slane %v7423, 1
    %v7555 = vsel %vm5157, %v7553, %v7554
    %v7556 = vrot.slane %v7422, 1
    %v7557 = vrot.slane %v7424, 1
    %v7558 = vsel %vm5157, %v7556, %v7557
    %v7559 = vrot.slane %v7425, 1
    %v7560 = vrot.slane %v7427, 1
    %v7561 = vsel %vm5157, %v7559, %v7560
    %v7562 = vrot.slane %v7426, 1
    %v7563 = vrot.slane %v7428, 1
    %v7564 = vsel %vm5157, %v7562, %v7563
    %v7565 = vrot.slane %v7429, 1
    %v7566 = vrot.slane %v7431, 1
    %v7567 = vsel %vm5157, %v7565, %v7566
    %v7568 = vrot.slane %v7430, 1
    %v7569 = vrot.slane %v7432, 1
    %v7570 = vsel %vm5157, %v7568, %v7569
    %v7571 = vrot.slane %v7433, 1
    %v7572 = vrot.slane %v7435, 1
    %v7573 = vsel %vm5157, %v7571, %v7572
    %v7574 = vrot.slane %v7434, 1
    %v7575 = vrot.slane %v7436, 1
    %v7576 = vsel %vm5157, %v7574, %v7575
    %v7577 = vrot.slane %v7437, 1
    %v7578 = vrot.slane %v7439, 1
    %v7579 = vsel %vm5157, %v7577, %v7578
    %v7580 = vrot.slane %v7438, 1
    %v7581 = vrot.slane %v7440, 1
    %v7582 = vsel %vm5157, %v7580, %v7581
    %v7583 = vrot.slane %v7441, 1
    %v7584 = vrot.slane %v7443, 1
    %v7585 = vsel %vm5157, %v7583, %v7584
    %v7586 = vrot.slane %v7442, 1
    %v7587 = vrot.slane %v7444, 1
    %v7588 = vsel %vm5157, %v7586, %v7587
    %v7589 = vrot.slane %v7445, 1
    %v7590 = vrot.slane %v7447, 1
    %v7591 = vsel %vm5157, %v7589, %v7590
    %v7592 = vrot.slane %v7446, 1
    %v7593 = vrot.slane %v7448, 1
    %v7594 = vsel %vm5157, %v7592, %v7593
    %v7595 = vrot.slane %v7449, 1
    %v7596 = vrot.slane %v7451, 1
    %v7597 = vsel %vm5157, %v7595, %v7596
    %v7598 = vrot.slane %v7450, 1
    %v7599 = vrot.slane %v7452, 1
    %v7600 = vsel %vm5157, %v7598, %v7599
    %v7601 = vrot.slane %v7453, 1
    %v7602 = vrot.slane %v7455, 1
    %v7603 = vsel %vm5157, %v7601, %v7602
    %v7604 = vrot.slane %v7454, 1
    %v7605 = vrot.slane %v7456, 1
    %v7606 = vsel %vm5157, %v7604, %v7605
    %v7607 = vrot.slane %v7457, 1
    %v7608 = vrot.slane %v7459, 1
    %v7609 = vsel %vm5157, %v7607, %v7608
    %v7610 = vrot.slane %v7458, 1
    %v7611 = vrot.slane %v7460, 1
    %v7612 = vsel %vm5157, %v7610, %v7611
    %v7613 = vrot.slane %v7461, 1
    %v7614 = vrot.slane %v7463, 1
    %v7615 = vsel %vm5157, %v7613, %v7614
    %v7616 = vrot.slane %v7462, 1
    %v7617 = vrot.slane %v7464, 1
    %v7618 = vsel %vm5157, %v7616, %v7617
    %v7619 = vrot.slane %v7465, 1
    %v7620 = vrot.slane %v7467, 1
    %v7621 = vsel %vm5157, %v7619, %v7620
    %v7622 = vrot.slane %v7466, 1
    %v7623 = vrot.slane %v7468, 1
    %v7624 = vsel %vm5157, %v7622, %v7623
    %v7625 = vrot.slane %v7469, 1
    %v7626 = vrot.slane %v7471, 1
    %v7627 = vsel %vm5157, %v7625, %v7626
    %v7628 = vrot.slane %v7470, 1
    %v7629 = vrot.slane %v7472, 1
    %v7630 = vsel %vm5157, %v7628, %v7629
    %v7631 = vrot.slane %v7473, 1
    %v7632 = vrot.slane %v7475, 1
    %v7633 = vsel %vm5157, %v7631, %v7632
    %v7634 = vrot.slane %v7474, 1
    %v7635 = vrot.slane %v7476, 1
    %v7636 = vsel %vm5157, %v7634, %v7635
    %s7669 = scalar_lea.vmem %s3, 1792
    %v7670 = vld [vmem:[%s7669] sm:$0xff]
    %v7671 = vld [vmem:[%s7669 + $0x8] sm:$0xff]
    %v7672 = vld [vmem:[%s7669 + $0x10] sm:$0xff]
    %v7673 = vld [vmem:[%s7669 + $0x18] sm:$0xff]
    %v7674 = vld [vmem:[%s7669 + $0x20] sm:$0xff]
    %v7675 = vld [vmem:[%s7669 + $0x28] sm:$0xff]
    %v7676 = vld [vmem:[%s7669 + $0x30] sm:$0xff]
    %v7677 = vld [vmem:[%s7669 + $0x38] sm:$0xff]
    %v7678 = vld [vmem:[%s7669 + $0x40] sm:$0xff]
    %v7679 = vld [vmem:[%s7669 + $0x48] sm:$0xff]
    %v7680 = vld [vmem:[%s7669 + $0x50] sm:$0xff]
    %v7681 = vld [vmem:[%s7669 + $0x58] sm:$0xff]
    %v7682 = vld [vmem:[%s7669 + $0x60] sm:$0xff]
    %v7683 = vld [vmem:[%s7669 + $0x68] sm:$0xff]
    %v7684 = vld [vmem:[%s7669 + $0x70] sm:$0xff]
    %v7685 = vld [vmem:[%s7669 + $0x78] sm:$0xff]
    %v7686 = vld [vmem:[%s7669 + $0x80] sm:$0xff]
    %v7687 = vld [vmem:[%s7669 + $0x88] sm:$0xff]
    %v7688 = vld [vmem:[%s7669 + $0x90] sm:$0xff]
    %v7689 = vld [vmem:[%s7669 + $0x98] sm:$0xff]
    %v7690 = vld [vmem:[%s7669 + $0xa0] sm:$0xff]
    %v7691 = vld [vmem:[%s7669 + $0xa8] sm:$0xff]
    %v7692 = vld [vmem:[%s7669 + $0xb0] sm:$0xff]
    %v7693 = vld [vmem:[%s7669 + $0xb8] sm:$0xff]
    %v7694 = vld [vmem:[%s7669 + $0xc0] sm:$0xff]
    %v7695 = vld [vmem:[%s7669 + $0xc8] sm:$0xff]
    %v7696 = vld [vmem:[%s7669 + $0xd0] sm:$0xff]
    %v7697 = vld [vmem:[%s7669 + $0xd8] sm:$0xff]
    %v7698 = vld [vmem:[%s7669 + $0xe0] sm:$0xff]
    %v7699 = vld [vmem:[%s7669 + $0xe8] sm:$0xff]
    %v7700 = vld [vmem:[%s7669 + $0xf0] sm:$0xff]
    %v7701 = vld [vmem:[%s7669 + $0xf8] sm:$0xff]
    %7702 = vmatprep.subr.mxu0 0.0
    %7703 = vmatpush1.msra.mxu0 %v7670
    %7704 = vmatprep.subr.mxu0 0.0
    %7705 = vmatpush1.msra.mxu0 %v7671
    %7706 = vmatprep.subr.mxu0 0.0
    %7707 = vmatpush1.msra.mxu0 %v7672
    %7708 = vmatprep.subr.mxu0 0.0
    %7709 = vmatpush1.msra.mxu0 %v7673
    %7710 = vmatprep.subr.mxu0 0.0
    %7711 = vmatpush1.msra.mxu0 %v7674
    %7712 = vmatprep.subr.mxu0 0.0
    %7713 = vmatpush1.msra.mxu0 %v7675
    %7714 = vmatprep.subr.mxu0 0.0
    %7715 = vmatpush1.msra.mxu0 %v7676
    %7716 = vmatprep.subr.mxu0 0.0
    %7717 = vmatpush1.msra.mxu0 %v7677
    %7718 = vmatprep.subr.mxu0 0.0
    %7719 = vmatpush1.msra.mxu0 %v7678
    %7720 = vmatprep.subr.mxu0 0.0
    %7721 = vmatpush1.msra.mxu0 %v7679
    %7722 = vmatprep.subr.mxu0 0.0
    %7723 = vmatpush1.msra.mxu0 %v7680
    %7724 = vmatprep.subr.mxu0 0.0
    %7725 = vmatpush1.msra.mxu0 %v7681
    %7726 = vmatprep.subr.mxu0 0.0
    %7727 = vmatpush1.msra.mxu0 %v7682
    %7728 = vmatprep.subr.mxu0 0.0
    %7729 = vmatpush1.msra.mxu0 %v7683
    %7730 = vmatprep.subr.mxu0 0.0
    %7731 = vmatpush1.msra.mxu0 %v7684
    %7732 = vmatprep.subr.mxu0 0.0
    %7733 = vmatpush1.msra.mxu0 %v7685
    %7734 = vmatprep.subr.mxu0 0.0
    %7735 = vmatpush1.msra.mxu0 %v7686
    %7736 = vmatprep.subr.mxu0 0.0
    %7737 = vmatpush1.msra.mxu0 %v7687
    %7738 = vmatprep.subr.mxu0 0.0
    %7739 = vmatpush1.msra.mxu0 %v7688
    %7740 = vmatprep.subr.mxu0 0.0
    %7741 = vmatpush1.msra.mxu0 %v7689
    %7742 = vmatprep.subr.mxu0 0.0
    %7743 = vmatpush1.msra.mxu0 %v7690
    %7744 = vmatprep.subr.mxu0 0.0
    %7745 = vmatpush1.msra.mxu0 %v7691
    %7746 = vmatprep.subr.mxu0 0.0
    %7747 = vmatpush1.msra.mxu0 %v7692
    %7748 = vmatprep.subr.mxu0 0.0
    %7749 = vmatpush1.msra.mxu0 %v7693
    %7750 = vmatprep.subr.mxu0 0.0
    %7751 = vmatpush1.msra.mxu0 %v7694
    %7752 = vmatprep.subr.mxu0 0.0
    %7753 = vmatpush1.msra.mxu0 %v7695
    %7754 = vmatprep.subr.mxu0 0.0
    %7755 = vmatpush1.msra.mxu0 %v7696
    %7756 = vmatprep.subr.mxu0 0.0
    %7757 = vmatpush1.msra.mxu0 %v7697
    %7758 = vmatprep.subr.mxu0 0.0
    %7759 = vmatpush1.msra.mxu0 %v7698
    %7760 = vmatprep.subr.mxu0 0.0
    %7761 = vmatpush1.msra.mxu0 %v7699
    %7762 = vmatprep.subr.mxu0 0.0
    %7763 = vmatpush1.msra.mxu0 %v7700
    %7764 = vmatprep.subr.mxu0 0.0
    %7765 = vmatpush1.msra.mxu0 %v7701
    %7766 = vmatprep.mubr.f32.mxu0 %v7546
    %7767 = vmatmul.mubr.f32.gmra.mrb[0].mxu0 %v7543
    %v7768 = vpop.f32.mrb[0].mxu0
    %v7769 = vadd.f32 0.0, %v7768
    %v7770 = vpop.f32.mrb[0].mxu0
    %7771 = vmatprep.mubr.f32.mxu0 %v7552
    %7772 = vmatmul.mubr.f32.gmra.mrb[0].mxu0 %v7549
    %v7773 = vpop.f32.mrb[0].mxu0
    %v7774 = vadd.f32 0.0, %v7773
    %v7775 = vpop.f32.mrb[0].mxu0
    %7776 = vmatprep.mubr.f32.mxu0 %v7558
    %7777 = vmatmul.mubr.f32.gmra.mrb[0].mxu0 %v7555
    %v7778 = vpop.f32.mrb[0].mxu0
    %v7779 = vadd.f32 0.0, %v7778
    %v7780 = vpop.f32.mrb[0].mxu0
    %7781 = vmatprep.mubr.f32.mxu0 %v7564
    %7782 = vmatmul.mubr.f32.gmra.mrb[0].mxu0 %v7561
    %v7783 = vpop.f32.mrb[0].mxu0
    %v7784 = vadd.f32 0.0, %v7783
    %v7785 = vpop.f32.mrb[0].mxu0
    %7786 = vmatprep.mubr.f32.mxu0 %v7570
    %7787 = vmatmul.mubr.f32.gmra.mrb[0].mxu0 %v7567
    %v7788 = vpop.f32.mrb[0].mxu0
    %v7789 = vadd.f32 0.0, %v7788
    %v7790 = vpop.f32.mrb[0].mxu0
    %7791 = vmatprep.mubr.f32.mxu0 %v7576
    %7792 = vmatmul.mubr.f32.gmra.mrb[0].mxu0 %v7573
    %v7793 = vpop.f32.mrb[0].mxu0
    %v7794 = vadd.f32 0.0, %v7793
    %v7795 = vpop.f32.mrb[0].mxu0
    %7796 = vmatprep.mubr.f32.mxu0 %v7582
    %7797 = vmatmul.mubr.f32.gmra.mrb[0].mxu0 %v7579
    %v7798 = vpop.f32.mrb[0].mxu0
    %v7799 = vadd.f32 0.0, %v7798
    %v7800 = vpop.f32.mrb[0].mxu0
    %7801 = vmatprep.mubr.f32.mxu0 %v7588
    %7802 = vmatmul.mubr.f32.gmra.mrb[0].mxu0 %v7585
    %v7803 = vpop.f32.mrb[0].mxu0
    %v7804 = vadd.f32 0.0, %v7803
    %v7805 = vpop.f32.mrb[0].mxu0
    %7806 = vmatprep.mubr.f32.mxu0 %v7594
    %7807 = vmatmul.mubr.f32.gmra.mrb[0].mxu0 %v7591
    %v7808 = vpop.f32.mrb[0].mxu0
    %v7809 = vadd.f32 0.0, %v7808
    %v7810 = vpop.f32.mrb[0].mxu0
    %7811 = vmatprep.mubr.f32.mxu0 %v7600
    %7812 = vmatmul.mubr.f32.gmra.mrb[0].mxu0 %v7597
    %v7813 = vpop.f32.mrb[0].mxu0
    %v7814 = vadd.f32 0.0, %v7813
    %v7815 = vpop.f32.mrb[0].mxu0
    %7816 = vmatprep.mubr.f32.mxu0 %v7606
    %7817 = vmatmul.mubr.f32.gmra.mrb[0].mxu0 %v7603
    %v7818 = vpop.f32.mrb[0].mxu0
    %v7819 = vadd.f32 0.0, %v7818
    %v7820 = vpop.f32.mrb[0].mxu0
    %7821 = vmatprep.mubr.f32.mxu0 %v7612
    %7822 = vmatmul.mubr.f32.gmra.mrb[0].mxu0 %v7609
    %v7823 = vpop.f32.mrb[0].mxu0
    %v7824 = vadd.f32 0.0, %v7823
    %v7825 = vpop.f32.mrb[0].mxu0
    %7826 = vmatprep.mubr.f32.mxu0 %v7618
    %7827 = vmatmul.mubr.f32.gmra.mrb[0].mxu0 %v7615
    %v7828 = vpop.f32.mrb[0].mxu0
    %v7829 = vadd.f32 0.0, %v7828
    %v7830 = vpop.f32.mrb[0].mxu0
    %7831 = vmatprep.mubr.f32.mxu0 %v7624
    %7832 = vmatmul.mubr.f32.gmra.mrb[0].mxu0 %v7621
    %v7833 = vpop.f32.mrb[0].mxu0
    %v7834 = vadd.f32 0.0, %v7833
    %v7835 = vpop.f32.mrb[0].mxu0
    %7836 = vmatprep.mubr.f32.mxu0 %v7630
    %7837 = vmatmul.mubr.f32.gmra.mrb[0].mxu0 %v7627
    %v7838 = vpop.f32.mrb[0].mxu0
    %v7839 = vadd.f32 0.0, %v7838
    %v7840 = vpop.f32.mrb[0].mxu0
    %7841 = vmatprep.mubr.f32.mxu0 %v7636
    %7842 = vmatmul.mubr.f32.gmra.mrb[0].mxu0 %v7633
    %v7843 = vpop.f32.mrb[0].mxu0
    %v7844 = vadd.f32 0.0, %v7843
    %v7845 = vpop.f32.mrb[0].mxu0
    %7846 = vdwg.mxu0
    %v7847 = vadd.f32 %v7397, %v7769
    %v7848 = vadd.f32 %v7398, %v7774
    %v7849 = vadd.f32 %v7399, %v7779
    %v7850 = vadd.f32 %v7400, %v7784
    %v7851 = vadd.f32 %v7401, %v7789
    %v7852 = vadd.f32 %v7402, %v7794
    %v7853 = vadd.f32 %v7403, %v7799
    %v7854 = vadd.f32 %v7404, %v7804
    %v7855 = vadd.f32 %v7405, %v7809
    %v7856 = vadd.f32 %v7406, %v7814
    %v7857 = vadd.f32 %v7407, %v7819
    %v7858 = vadd.f32 %v7408, %v7824
    %v7859 = vadd.f32 %v7409, %v7829
    %v7860 = vadd.f32 %v7410, %v7834
    %v7861 = vadd.f32 %v7411, %v7839
    %v7862 = vadd.f32 %v7412, %v7844
    %v7863 = vld [vmem:[%s7186] sm:$0xfc]
    %v7864 = vld [vmem:[%s7186 + $0x8] sm:$0xfc]
    %v7865 = vld [vmem:[%s7186 + $0x10] sm:$0x3]
    %v7866 = vld [vmem:[%s7186 + $0x18] sm:$0x3]
    %v7867 = vld [vmem:[%s7186 + $0x20] sm:$0xfc]
    %v7868 = vld [vmem:[%s7186 + $0x28] sm:$0xfc]
    %v7869 = vld [vmem:[%s7186 + $0x30] sm:$0x3]
    %v7870 = vld [vmem:[%s7186 + $0x38] sm:$0x3]
    %v7871 = vld [vmem:[%s7186 + $0x40] sm:$0xfc]
    %v7872 = vld [vmem:[%s7186 + $0x48] sm:$0xfc]
    %v7873 = vld [vmem:[%s7186 + $0x50] sm:$0x3]
    %v7874 = vld [vmem:[%s7186 + $0x58] sm:$0x3]
    %v7875 = vld [vmem:[%s7186 + $0x60] sm:$0xfc]
    %v7876 = vld [vmem:[%s7186 + $0x68] sm:$0xfc]
    %v7877 = vld [vmem:[%s7186 + $0x70] sm:$0x3]
    %v7878 = vld [vmem:[%s7186 + $0x78] sm:$0x3]
    %v7879 = vld [vmem:[%s7186 + $0x80] sm:$0xfc]
    %v7880 = vld [vmem:[%s7186 + $0x88] sm:$0xfc]
    %v7881 = vld [vmem:[%s7186 + $0x90] sm:$0x3]
    %v7882 = vld [vmem:[%s7186 + $0x98] sm:$0x3]
    %v7883 = vld [vmem:[%s7186 + $0xa0] sm:$0xfc]
    %v7884 = vld [vmem:[%s7186 + $0xa8] sm:$0xfc]
    %v7885 = vld [vmem:[%s7186 + $0xb0] sm:$0x3]
    %v7886 = vld [vmem:[%s7186 + $0xb8] sm:$0x3]
    %v7887 = vld [vmem:[%s7186 + $0xc0] sm:$0xfc]
    %v7888 = vld [vmem:[%s7186 + $0xc8] sm:$0xfc]
    %v7889 = vld [vmem:[%s7186 + $0xd0] sm:$0x3]
    %v7890 = vld [vmem:[%s7186 + $0xd8] sm:$0x3]
    %v7891 = vld [vmem:[%s7186 + $0xe0] sm:$0xfc]
    %v7892 = vld [vmem:[%s7186 + $0xe8] sm:$0xfc]
    %v7893 = vld [vmem:[%s7186 + $0xf0] sm:$0x3]
    %v7894 = vld [vmem:[%s7186 + $0xf8] sm:$0x3]
    %v7895 = vld [vmem:[%s7186 + $0x140] sm:$0xfc]
    %v7896 = vld [vmem:[%s7186 + $0x148] sm:$0xfc]
    %v7897 = vld [vmem:[%s7186 + $0x150] sm:$0x3]
    %v7898 = vld [vmem:[%s7186 + $0x158] sm:$0x3]
    %v7899 = vld [vmem:[%s7186 + $0x160] sm:$0xfc]
    %v7900 = vld [vmem:[%s7186 + $0x168] sm:$0xfc]
    %v7901 = vld [vmem:[%s7186 + $0x170] sm:$0x3]
    %v7902 = vld [vmem:[%s7186 + $0x178] sm:$0x3]
    %v7903 = vld [vmem:[%s7186 + $0x180] sm:$0xfc]
    %v7904 = vld [vmem:[%s7186 + $0x188] sm:$0xfc]
    %v7905 = vld [vmem:[%s7186 + $0x190] sm:$0x3]
    %v7906 = vld [vmem:[%s7186 + $0x198] sm:$0x3]
    %v7907 = vld [vmem:[%s7186 + $0x1a0] sm:$0xfc]
    %v7908 = vld [vmem:[%s7186 + $0x1a8] sm:$0xfc]
    %v7909 = vld [vmem:[%s7186 + $0x1b0] sm:$0x3]
    %v7910 = vld [vmem:[%s7186 + $0x1b8] sm:$0x3]
    %v7911 = vld [vmem:[%s7186 + $0x1c0] sm:$0xfc]
    %v7912 = vld [vmem:[%s7186 + $0x1c8] sm:$0xfc]
    %v7913 = vld [vmem:[%s7186 + $0x1d0] sm:$0x3]
    %v7914 = vld [vmem:[%s7186 + $0x1d8] sm:$0x3]
    %v7915 = vld [vmem:[%s7186 + $0x1e0] sm:$0xfc]
    %v7916 = vld [vmem:[%s7186 + $0x1e8] sm:$0xfc]
    %v7917 = vld [vmem:[%s7186 + $0x1f0] sm:$0x3]
    %v7918 = vld [vmem:[%s7186 + $0x1f8] sm:$0x3]
    %v7919 = vld [vmem:[%s7186 + $0x200] sm:$0xfc]
    %v7920 = vld [vmem:[%s7186 + $0x208] sm:$0xfc]
    %v7921 = vld [vmem:[%s7186 + $0x210] sm:$0x3]
    %v7922 = vld [vmem:[%s7186 + $0x218] sm:$0x3]
    %v7923 = vld [vmem:[%s7186 + $0x220] sm:$0xfc]
    %v7924 = vld [vmem:[%s7186 + $0x228] sm:$0xfc]
    %v7925 = vld [vmem:[%s7186 + $0x230] sm:$0x3]
    %v7926 = vld [vmem:[%s7186 + $0x238] sm:$0x3]
    %v7991 = vrot.slane %v7863, 2
    %v7992 = vrot.slane %v7865, 2
    %v7993 = vsel %vm5737, %v7991, %v7992
    %v7994 = vrot.slane %v7864, 2
    %v7995 = vrot.slane %v7866, 2
    %v7996 = vsel %vm5737, %v7994, %v7995
    %v7997 = vrot.slane %v7867, 2
    %v7998 = vrot.slane %v7869, 2
    %v7999 = vsel %vm5737, %v7997, %v7998
    %v8000 = vrot.slane %v7868, 2
    %v8001 = vrot.slane %v7870, 2
    %v8002 = vsel %vm5737, %v8000, %v8001
    %v8003 = vrot.slane %v7871, 2
    %v8004 = vrot.slane %v7873, 2
    %v8005 = vsel %vm5737, %v8003, %v8004
    %v8006 = vrot.slane %v7872, 2
    %v8007 = vrot.slane %v7874, 2
    %v8008 = vsel %vm5737, %v8006, %v8007
    %v8009 = vrot.slane %v7875, 2
    %v8010 = vrot.slane %v7877, 2
    %v8011 = vsel %vm5737, %v8009, %v8010
    %v8012 = vrot.slane %v7876, 2
    %v8013 = vrot.slane %v7878, 2
    %v8014 = vsel %vm5737, %v8012, %v8013
    %v8015 = vrot.slane %v7879, 2
    %v8016 = vrot.slane %v7881, 2
    %v8017 = vsel %vm5737, %v8015, %v8016
    %v8018 = vrot.slane %v7880, 2
    %v8019 = vrot.slane %v7882, 2
    %v8020 = vsel %vm5737, %v8018, %v8019
    %v8021 = vrot.slane %v7883, 2
    %v8022 = vrot.slane %v7885, 2
    %v8023 = vsel %vm5737, %v8021, %v8022
    %v8024 = vrot.slane %v7884, 2
    %v8025 = vrot.slane %v7886, 2
    %v8026 = vsel %vm5737, %v8024, %v8025
    %v8027 = vrot.slane %v7887, 2
    %v8028 = vrot.slane %v7889, 2
    %v8029 = vsel %vm5737, %v8027, %v8028
    %v8030 = vrot.slane %v7888, 2
    %v8031 = vrot.slane %v7890, 2
    %v8032 = vsel %vm5737, %v8030, %v8031
    %v8033 = vrot.slane %v7891, 2
    %v8034 = vrot.slane %v7893, 2
    %v8035 = vsel %vm5737, %v8033, %v8034
    %v8036 = vrot.slane %v7892, 2
    %v8037 = vrot.slane %v7894, 2
    %v8038 = vsel %vm5737, %v8036, %v8037
    %v8039 = vrot.slane %v7895, 2
    %v8040 = vrot.slane %v7897, 2
    %v8041 = vsel %vm5737, %v8039, %v8040
    %v8042 = vrot.slane %v7896, 2
    %v8043 = vrot.slane %v7898, 2
    %v8044 = vsel %vm5737, %v8042, %v8043
    %v8045 = vrot.slane %v7899, 2
    %v8046 = vrot.slane %v7901, 2
    %v8047 = vsel %vm5737, %v8045, %v8046
    %v8048 = vrot.slane %v7900, 2
    %v8049 = vrot.slane %v7902, 2
    %v8050 = vsel %vm5737, %v8048, %v8049
    %v8051 = vrot.slane %v7903, 2
    %v8052 = vrot.slane %v7905, 2
    %v8053 = vsel %vm5737, %v8051, %v8052
    %v8054 = vrot.slane %v7904, 2
    %v8055 = vrot.slane %v7906, 2
    %v8056 = vsel %vm5737, %v8054, %v8055
    %v8057 = vrot.slane %v7907, 2
    %v8058 = vrot.slane %v7909, 2
    %v8059 = vsel %vm5737, %v8057, %v8058
    %v8060 = vrot.slane %v7908, 2
    %v8061 = vrot.slane %v7910, 2
    %v8062 = vsel %vm5737, %v8060, %v8061
    %v8063 = vrot.slane %v7911, 2
    %v8064 = vrot.slane %v7913, 2
    %v8065 = vsel %vm5737, %v8063, %v8064
    %v8066 = vrot.slane %v7912, 2
    %v8067 = vrot.slane %v7914, 2
    %v8068 = vsel %vm5737, %v8066, %v8067
    %v8069 = vrot.slane %v7915, 2
    %v8070 = vrot.slane %v7917, 2
    %v8071 = vsel %vm5737, %v8069, %v8070
    %v8072 = vrot.slane %v7916, 2
    %v8073 = vrot.slane %v7918, 2
    %v8074 = vsel %vm5737, %v8072, %v8073
    %v8075 = vrot.slane %v7919, 2
    %v8076 = vrot.slane %v7921, 2
    %v8077 = vsel %vm5737, %v8075, %v8076
    %v8078 = vrot.slane %v7920, 2
    %v8079 = vrot.slane %v7922, 2
    %v8080 = vsel %vm5737, %v8078, %v8079
    %v8081 = vrot.slane %v7923, 2
    %v8082 = vrot.slane %v7925, 2
    %v8083 = vsel %vm5737, %v8081, %v8082
    %v8084 = vrot.slane %v7924, 2
    %v8085 = vrot.slane %v7926, 2
    %v8086 = vsel %vm5737, %v8084, %v8085
    %s8119 = scalar_lea.vmem %s3, 2048
    %v8120 = vld [vmem:[%s8119] sm:$0xff]
    %v8121 = vld [vmem:[%s8119 + $0x8] sm:$0xff]
    %v8122 = vld [vmem:[%s8119 + $0x10] sm:$0xff]
    %v8123 = vld [vmem:[%s8119 + $0x18] sm:$0xff]
    %v8124 = vld [vmem:[%s8119 + $0x20] sm:$0xff]
    %v8125 = vld [vmem:[%s8119 + $0x28] sm:$0xff]
    %v8126 = vld [vmem:[%s8119 + $0x30] sm:$0xff]
    %v8127 = vld [vmem:[%s8119 + $0x38] sm:$0xff]
    %v8128 = vld [vmem:[%s8119 + $0x40] sm:$0xff]
    %v8129 = vld [vmem:[%s8119 + $0x48] sm:$0xff]
    %v8130 = vld [vmem:[%s8119 + $0x50] sm:$0xff]
    %v8131 = vld [vmem:[%s8119 + $0x58] sm:$0xff]
    %v8132 = vld [vmem:[%s8119 + $0x60] sm:$0xff]
    %v8133 = vld [vmem:[%s8119 + $0x68] sm:$0xff]
    %v8134 = vld [vmem:[%s8119 + $0x70] sm:$0xff]
    %v8135 = vld [vmem:[%s8119 + $0x78] sm:$0xff]
    %v8136 = vld [vmem:[%s8119 + $0x80] sm:$0xff]
    %v8137 = vld [vmem:[%s8119 + $0x88] sm:$0xff]
    %v8138 = vld [vmem:[%s8119 + $0x90] sm:$0xff]
    %v8139 = vld [vmem:[%s8119 + $0x98] sm:$0xff]
    %v8140 = vld [vmem:[%s8119 + $0xa0] sm:$0xff]
    %v8141 = vld [vmem:[%s8119 + $0xa8] sm:$0xff]
    %v8142 = vld [vmem:[%s8119 + $0xb0] sm:$0xff]
    %v8143 = vld [vmem:[%s8119 + $0xb8] sm:$0xff]
    %v8144 = vld [vmem:[%s8119 + $0xc0] sm:$0xff]
    %v8145 = vld [vmem:[%s8119 + $0xc8] sm:$0xff]
    %v8146 = vld [vmem:[%s8119 + $0xd0] sm:$0xff]
    %v8147 = vld [vmem:[%s8119 + $0xd8] sm:$0xff]
    %v8148 = vld [vmem:[%s8119 + $0xe0] sm:$0xff]
    %v8149 = vld [vmem:[%s8119 + $0xe8] sm:$0xff]
    %v8150 = vld [vmem:[%s8119 + $0xf0] sm:$0xff]
    %v8151 = vld [vmem:[%s8119 + $0xf8] sm:$0xff]
    %8152 = vmatprep.subr.mxu0 0.0
    %8153 = vmatpush1.msra.mxu0 %v8120
    %8154 = vmatprep.subr.mxu0 0.0
    %8155 = vmatpush1.msra.mxu0 %v8121
    %8156 = vmatprep.subr.mxu0 0.0
    %8157 = vmatpush1.msra.mxu0 %v8122
    %8158 = vmatprep.subr.mxu0 0.0
    %8159 = vmatpush1.msra.mxu0 %v8123
    %8160 = vmatprep.subr.mxu0 0.0
    %8161 = vmatpush1.msra.mxu0 %v8124
    %8162 = vmatprep.subr.mxu0 0.0
    %8163 = vmatpush1.msra.mxu0 %v8125
    %8164 = vmatprep.subr.mxu0 0.0
    %8165 = vmatpush1.msra.mxu0 %v8126
    %8166 = vmatprep.subr.mxu0 0.0
    %8167 = vmatpush1.msra.mxu0 %v8127
    %8168 = vmatprep.subr.mxu0 0.0
    %8169 = vmatpush1.msra.mxu0 %v8128
    %8170 = vmatprep.subr.mxu0 0.0
    %8171 = vmatpush1.msra.mxu0 %v8129
    %8172 = vmatprep.subr.mxu0 0.0
    %8173 = vmatpush1.msra.mxu0 %v8130
    %8174 = vmatprep.subr.mxu0 0.0
    %8175 = vmatpush1.msra.mxu0 %v8131
    %8176 = vmatprep.subr.mxu0 0.0
    %8177 = vmatpush1.msra.mxu0 %v8132
    %8178 = vmatprep.subr.mxu0 0.0
    %8179 = vmatpush1.msra.mxu0 %v8133
    %8180 = vmatprep.subr.mxu0 0.0
    %8181 = vmatpush1.msra.mxu0 %v8134
    %8182 = vmatprep.subr.mxu0 0.0
    %8183 = vmatpush1.msra.mxu0 %v8135
    %8184 = vmatprep.subr.mxu0 0.0
    %8185 = vmatpush1.msra.mxu0 %v8136
    %8186 = vmatprep.subr.mxu0 0.0
    %8187 = vmatpush1.msra.mxu0 %v8137
    %8188 = vmatprep.subr.mxu0 0.0
    %8189 = vmatpush1.msra.mxu0 %v8138
    %8190 = vmatprep.subr.mxu0 0.0
    %8191 = vmatpush1.msra.mxu0 %v8139
    %8192 = vmatprep.subr.mxu0 0.0
    %8193 = vmatpush1.msra.mxu0 %v8140
    %8194 = vmatprep.subr.mxu0 0.0
    %8195 = vmatpush1.msra.mxu0 %v8141
    %8196 = vmatprep.subr.mxu0 0.0
    %8197 = vmatpush1.msra.mxu0 %v8142
    %8198 = vmatprep.subr.mxu0 0.0
    %8199 = vmatpush1.msra.mxu0 %v8143
    %8200 = vmatprep.subr.mxu0 0.0
    %8201 = vmatpush1.msra.mxu0 %v8144
    %8202 = vmatprep.subr.mxu0 0.0
    %8203 = vmatpush1.msra.mxu0 %v8145
    %8204 = vmatprep.subr.mxu0 0.0
    %8205 = vmatpush1.msra.mxu0 %v8146
    %8206 = vmatprep.subr.mxu0 0.0
    %8207 = vmatpush1.msra.mxu0 %v8147
    %8208 = vmatprep.subr.mxu0 0.0
    %8209 = vmatpush1.msra.mxu0 %v8148
    %8210 = vmatprep.subr.mxu0 0.0
    %8211 = vmatpush1.msra.mxu0 %v8149
    %8212 = vmatprep.subr.mxu0 0.0
    %8213 = vmatpush1.msra.mxu0 %v8150
    %8214 = vmatprep.subr.mxu0 0.0
    %8215 = vmatpush1.msra.mxu0 %v8151
    %8216 = vmatprep.mubr.f32.mxu0 %v7996
    %8217 = vmatmul.mubr.f32.gmra.mrb[0].mxu0 %v7993
    %v8218 = vpop.f32.mrb[0].mxu0
    %v8219 = vadd.f32 0.0, %v8218
    %v8220 = vpop.f32.mrb[0].mxu0
    %8221 = vmatprep.mubr.f32.mxu0 %v8002
    %8222 = vmatmul.mubr.f32.gmra.mrb[0].mxu0 %v7999
    %v8223 = vpop.f32.mrb[0].mxu0
    %v8224 = vadd.f32 0.0, %v8223
    %v8225 = vpop.f32.mrb[0].mxu0
    %8226 = vmatprep.mubr.f32.mxu0 %v8008
    %8227 = vmatmul.mubr.f32.gmra.mrb[0].mxu0 %v8005
    %v8228 = vpop.f32.mrb[0].mxu0
    %v8229 = vadd.f32 0.0, %v8228
    %v8230 = vpop.f32.mrb[0].mxu0
    %8231 = vmatprep.mubr.f32.mxu0 %v8014
    %8232 = vmatmul.mubr.f32.gmra.mrb[0].mxu0 %v8011
    %v8233 = vpop.f32.mrb[0].mxu0
    %v8234 = vadd.f32 0.0, %v8233
    %v8235 = vpop.f32.mrb[0].mxu0
    %8236 = vmatprep.mubr.f32.mxu0 %v8020
    %8237 = vmatmul.mubr.f32.gmra.mrb[0].mxu0 %v8017
    %v8238 = vpop.f32.mrb[0].mxu0
    %v8239 = vadd.f32 0.0, %v8238
    %v8240 = vpop.f32.mrb[0].mxu0
    %8241 = vmatprep.mubr.f32.mxu0 %v8026
    %8242 = vmatmul.mubr.f32.gmra.mrb[0].mxu0 %v8023
    %v8243 = vpop.f32.mrb[0].mxu0
    %v8244 = vadd.f32 0.0, %v8243
    %v8245 = vpop.f32.mrb[0].mxu0
    %8246 = vmatprep.mubr.f32.mxu0 %v8032
    %8247 = vmatmul.mubr.f32.gmra.mrb[0].mxu0 %v8029
    %v8248 = vpop.f32.mrb[0].mxu0
    %v8249 = vadd.f32 0.0, %v8248
    %v8250 = vpop.f32.mrb[0].mxu0
    %8251 = vmatprep.mubr.f32.mxu0 %v8038
    %8252 = vmatmul.mubr.f32.gmra.mrb[0].mxu0 %v8035
    %v8253 = vpop.f32.mrb[0].mxu0
    %v8254 = vadd.f32 0.0, %v8253
    %v8255 = vpop.f32.mrb[0].mxu0
    %8256 = vmatprep.mubr.f32.mxu0 %v8044
    %8257 = vmatmul.mubr.f32.gmra.mrb[0].mxu0 %v8041
    %v8258 = vpop.f32.mrb[0].mxu0
    %v8259 = vadd.f32 0.0, %v8258
    %v8260 = vpop.f32.mrb[0].mxu0
    %8261 = vmatprep.mubr.f32.mxu0 %v8050
    %8262 = vmatmul.mubr.f32.gmra.mrb[0].mxu0 %v8047
    %v8263 = vpop.f32.mrb[0].mxu0
    %v8264 = vadd.f32 0.0, %v8263
    %v8265 = vpop.f32.mrb[0].mxu0
    %8266 = vmatprep.mubr.f32.mxu0 %v8056
    %8267 = vmatmul.mubr.f32.gmra.mrb[0].mxu0 %v8053
    %v8268 = vpop.f32.mrb[0].mxu0
    %v8269 = vadd.f32 0.0, %v8268
    %v8270 = vpop.f32.mrb[0].mxu0
    %8271 = vmatprep.mubr.f32.mxu0 %v8062
    %8272 = vmatmul.mubr.f32.gmra.mrb[0].mxu0 %v8059
    %v8273 = vpop.f32.mrb[0].mxu0
    %v8274 = vadd.f32 0.0, %v8273
    %v8275 = vpop.f32.mrb[0].mxu0
    %8276 = vmatprep.mubr.f32.mxu0 %v8068
    %8277 = vmatmul.mubr.f32.gmra.mrb[0].mxu0 %v8065
    %v8278 = vpop.f32.mrb[0].mxu0
    %v8279 = vadd.f32 0.0, %v8278
    %v8280 = vpop.f32.mrb[0].mxu0
    %8281 = vmatprep.mubr.f32.mxu0 %v8074
    %8282 = vmatmul.mubr.f32.gmra.mrb[0].mxu0 %v8071
    %v8283 = vpop.f32.mrb[0].mxu0
    %v8284 = vadd.f32 0.0, %v8283
    %v8285 = vpop.f32.mrb[0].mxu0
    %8286 = vmatprep.mubr.f32.mxu0 %v8080
    %8287 = vmatmul.mubr.f32.gmra.mrb[0].mxu0 %v8077
    %v8288 = vpop.f32.mrb[0].mxu0
    %v8289 = vadd.f32 0.0, %v8288
    %v8290 = vpop.f32.mrb[0].mxu0
    %8291 = vmatprep.mubr.f32.mxu0 %v8086
    %8292 = vmatmul.mubr.f32.gmra.mrb[0].mxu0 %v8083
    %v8293 = vpop.f32.mrb[0].mxu0
    %v8294 = vadd.f32 0.0, %v8293
    %v8295 = vpop.f32.mrb[0].mxu0
    %8296 = vdwg.mxu0
    %v8297 = vadd.f32 %v7847, %v8219
    %v8298 = vadd.f32 %v7848, %v8224
    %v8299 = vadd.f32 %v7849, %v8229
    %v8300 = vadd.f32 %v7850, %v8234
    %v8301 = vadd.f32 %v7851, %v8239
    %v8302 = vadd.f32 %v7852, %v8244
    %v8303 = vadd.f32 %v7853, %v8249
    %v8304 = vadd.f32 %v7854, %v8254
    %v8305 = vadd.f32 %v7855, %v8259
    %v8306 = vadd.f32 %v7856, %v8264
    %v8307 = vadd.f32 %v7857, %v8269
    %v8308 = vadd.f32 %v7858, %v8274
    %v8309 = vadd.f32 %v7859, %v8279
    %v8310 = vadd.f32 %v7860, %v8284
    %v8311 = vadd.f32 %v7861, %v8289
    %v8312 = vadd.f32 %v7862, %v8294
    %v8313 = vld [vmem:[%s4] sm:$0x1]
    %v8315 = vlaneseq
    %v8316 = vshrl.u32 %v8315, 7
    %v8317 = vsub.s32 0, %v8316
    %v8318 = vrot.slane %v8313, %v8317
    %v8320 = vadd.f32 %v8297, %v8318
    %v8321 = vadd.f32 %v8298, %v8318
    %v8322 = vadd.f32 %v8299, %v8318
    %v8323 = vadd.f32 %v8300, %v8318
    %v8324 = vadd.f32 %v8301, %v8318
    %v8325 = vadd.f32 %v8302, %v8318
    %v8326 = vadd.f32 %v8303, %v8318
    %v8327 = vadd.f32 %v8304, %v8318
    %v8328 = vadd.f32 %v8305, %v8318
    %v8329 = vadd.f32 %v8306, %v8318
    %v8330 = vadd.f32 %v8307, %v8318
    %v8331 = vadd.f32 %v8308, %v8318
    %v8332 = vadd.f32 %v8309, %v8318
    %v8333 = vadd.f32 %v8310, %v8318
    %v8334 = vadd.f32 %v8311, %v8318
    %v8335 = vadd.f32 %v8312, %v8318
    %v8336 = vmax.f32 %v8320, 0.0
    %v8337 = vmax.f32 %v8321, 0.0
    %v8338 = vmax.f32 %v8322, 0.0
    %v8339 = vmax.f32 %v8323, 0.0
    %v8340 = vmax.f32 %v8324, 0.0
    %v8341 = vmax.f32 %v8325, 0.0
    %v8342 = vmax.f32 %v8326, 0.0
    %v8343 = vmax.f32 %v8327, 0.0
    %v8344 = vmax.f32 %v8328, 0.0
    %v8345 = vmax.f32 %v8329, 0.0
    %v8346 = vmax.f32 %v8330, 0.0
    %v8347 = vmax.f32 %v8331, 0.0
    %v8348 = vmax.f32 %v8332, 0.0
    %v8349 = vmax.f32 %v8333, 0.0
    %v8350 = vmax.f32 %v8334, 0.0
    %v8351 = vmax.f32 %v8335, 0.0
    %v8368 = vcombine.high %v8336, %v8336
    %v8370 = vunpack.c.l.s4 1983009808
    %v8371 = vunpack.c.0.s8 %v8370
    %v8372 = vlaneseq
    %v8373 = vshrl.u32 %v8372, 7
    %v8374 = vsub.s32 %v8371, %v8373
    %v8375 = vrot.slane %v8336, %v8374
    %v8377 = vunpack.c.l.s4 1983009808
    %v8378 = vunpack.c.0.s8 %v8377
    %v8379 = vlaneseq
    %v8380 = vshrl.u32 %v8379, 7
    %v8381 = vsub.s32 %v8378, %v8380
    %v8382 = vrot.slane %v8368, %v8381
    %v8383 = vcombine.high %v8375, %v8375
    %v8384 = vcombine.high %v8382, %v8382
    %v8385 = vcombine.high %v8337, %v8337
    %v8387 = vunpack.c.l.s4 1983009808
    %v8388 = vunpack.c.0.s8 %v8387
    %v8389 = vlaneseq
    %v8390 = vshrl.u32 %v8389, 7
    %v8391 = vsub.s32 %v8388, %v8390
    %v8392 = vrot.slane %v8337, %v8391
    %v8394 = vunpack.c.l.s4 1983009808
    %v8395 = vunpack.c.0.s8 %v8394
    %v8396 = vlaneseq
    %v8397 = vshrl.u32 %v8396, 7
    %v8398 = vsub.s32 %v8395, %v8397
    %v8399 = vrot.slane %v8385, %v8398
    %v8400 = vcombine.high %v8392, %v8392
    %v8401 = vcombine.high %v8399, %v8399
    %v8402 = vcombine.high %v8338, %v8338
    %v8404 = vunpack.c.l.s4 1983009808
    %v8405 = vunpack.c.0.s8 %v8404
    %v8406 = vlaneseq
    %v8407 = vshrl.u32 %v8406, 7
    %v8408 = vsub.s32 %v8405, %v8407
    %v8409 = vrot.slane %v8338, %v8408
    %v8411 = vunpack.c.l.s4 1983009808
    %v8412 = vunpack.c.0.s8 %v8411
    %v8413 = vlaneseq
    %v8414 = vshrl.u32 %v8413, 7
    %v8415 = vsub.s32 %v8412, %v8414
    %v8416 = vrot.slane %v8402, %v8415
    %v8417 = vcombine.high %v8409, %v8409
    %v8418 = vcombine.high %v8416, %v8416
    %v8419 = vcombine.high %v8339, %v8339
    %v8421 = vunpack.c.l.s4 1983009808
    %v8422 = vunpack.c.0.s8 %v8421
    %v8423 = vlaneseq
    %v8424 = vshrl.u32 %v8423, 7
    %v8425 = vsub.s32 %v8422, %v8424
    %v8426 = vrot.slane %v8339, %v8425
    %v8428 = vunpack.c.l.s4 1983009808
    %v8429 = vunpack.c.0.s8 %v8428
    %v8430 = vlaneseq
    %v8431 = vshrl.u32 %v8430, 7
    %v8432 = vsub.s32 %v8429, %v8431
    %v8433 = vrot.slane %v8419, %v8432
    %v8434 = vcombine.high %v8426, %v8426
    %v8435 = vcombine.high %v8433, %v8433
    %v8436 = vcombine.high %v8340, %v8340
    %v8438 = vunpack.c.l.s4 1983009808
    %v8439 = vunpack.c.0.s8 %v8438
    %v8440 = vlaneseq
    %v8441 = vshrl.u32 %v8440, 7
    %v8442 = vsub.s32 %v8439, %v8441
    %v8443 = vrot.slane %v8340, %v8442
    %v8445 = vunpack.c.l.s4 1983009808
    %v8446 = vunpack.c.0.s8 %v8445
    %v8447 = vlaneseq
    %v8448 = vshrl.u32 %v8447, 7
    %v8449 = vsub.s32 %v8446, %v8448
    %v8450 = vrot.slane %v8436, %v8449
    %v8451 = vcombine.high %v8443, %v8443
    %v8452 = vcombine.high %v8450, %v8450
    %v8453 = vcombine.high %v8341, %v8341
    %v8455 = vunpack.c.l.s4 1983009808
    %v8456 = vunpack.c.0.s8 %v8455
    %v8457 = vlaneseq
    %v8458 = vshrl.u32 %v8457, 7
    %v8459 = vsub.s32 %v8456, %v8458
    %v8460 = vrot.slane %v8341, %v8459
    %v8462 = vunpack.c.l.s4 1983009808
    %v8463 = vunpack.c.0.s8 %v8462
    %v8464 = vlaneseq
    %v8465 = vshrl.u32 %v8464, 7
    %v8466 = vsub.s32 %v8463, %v8465
    %v8467 = vrot.slane %v8453, %v8466
    %v8468 = vcombine.high %v8460, %v8460
    %v8469 = vcombine.high %v8467, %v8467
    %v8470 = vcombine.high %v8342, %v8342
    %v8472 = vunpack.c.l.s4 1983009808
    %v8473 = vunpack.c.0.s8 %v8472
    %v8474 = vlaneseq
    %v8475 = vshrl.u32 %v8474, 7
    %v8476 = vsub.s32 %v8473, %v8475
    %v8477 = vrot.slane %v8342, %v8476
    %v8479 = vunpack.c.l.s4 1983009808
    %v8480 = vunpack.c.0.s8 %v8479
    %v8481 = vlaneseq
    %v8482 = vshrl.u32 %v8481, 7
    %v8483 = vsub.s32 %v8480, %v8482
    %v8484 = vrot.slane %v8470, %v8483
    %v8485 = vcombine.high %v8477, %v8477
    %v8486 = vcombine.high %v8484, %v8484
    %v8487 = vcombine.high %v8343, %v8343
    %v8489 = vunpack.c.l.s4 1983009808
    %v8490 = vunpack.c.0.s8 %v8489
    %v8491 = vlaneseq
    %v8492 = vshrl.u32 %v8491, 7
    %v8493 = vsub.s32 %v8490, %v8492
    %v8494 = vrot.slane %v8343, %v8493
    %v8496 = vunpack.c.l.s4 1983009808
    %v8497 = vunpack.c.0.s8 %v8496
    %v8498 = vlaneseq
    %v8499 = vshrl.u32 %v8498, 7
    %v8500 = vsub.s32 %v8497, %v8499
    %v8501 = vrot.slane %v8487, %v8500
    %v8502 = vcombine.high %v8494, %v8494
    %v8503 = vcombine.high %v8501, %v8501
    %v8504 = vcombine.high %v8344, %v8344
    %v8506 = vunpack.c.l.s4 1983009808
    %v8507 = vunpack.c.0.s8 %v8506
    %v8508 = vlaneseq
    %v8509 = vshrl.u32 %v8508, 7
    %v8510 = vsub.s32 %v8507, %v8509
    %v8511 = vrot.slane %v8344, %v8510
    %v8513 = vunpack.c.l.s4 1983009808
    %v8514 = vunpack.c.0.s8 %v8513
    %v8515 = vlaneseq
    %v8516 = vshrl.u32 %v8515, 7
    %v8517 = vsub.s32 %v8514, %v8516
    %v8518 = vrot.slane %v8504, %v8517
    %v8519 = vcombine.high %v8511, %v8511
    %v8520 = vcombine.high %v8518, %v8518
    %v8521 = vcombine.high %v8345, %v8345
    %v8523 = vunpack.c.l.s4 1983009808
    %v8524 = vunpack.c.0.s8 %v8523
    %v8525 = vlaneseq
    %v8526 = vshrl.u32 %v8525, 7
    %v8527 = vsub.s32 %v8524, %v8526
    %v8528 = vrot.slane %v8345, %v8527
    %v8530 = vunpack.c.l.s4 1983009808
    %v8531 = vunpack.c.0.s8 %v8530
    %v8532 = vlaneseq
    %v8533 = vshrl.u32 %v8532, 7
    %v8534 = vsub.s32 %v8531, %v8533
    %v8535 = vrot.slane %v8521, %v8534
    %v8536 = vcombine.high %v8528, %v8528
    %v8537 = vcombine.high %v8535, %v8535
    %v8538 = vcombine.high %v8346, %v8346
    %v8540 = vunpack.c.l.s4 1983009808
    %v8541 = vunpack.c.0.s8 %v8540
    %v8542 = vlaneseq
    %v8543 = vshrl.u32 %v8542, 7
    %v8544 = vsub.s32 %v8541, %v8543
    %v8545 = vrot.slane %v8346, %v8544
    %v8547 = vunpack.c.l.s4 1983009808
    %v8548 = vunpack.c.0.s8 %v8547
    %v8549 = vlaneseq
    %v8550 = vshrl.u32 %v8549, 7
    %v8551 = vsub.s32 %v8548, %v8550
    %v8552 = vrot.slane %v8538, %v8551
    %v8553 = vcombine.high %v8545, %v8545
    %v8554 = vcombine.high %v8552, %v8552
    %v8555 = vcombine.high %v8347, %v8347
    %v8557 = vunpack.c.l.s4 1983009808
    %v8558 = vunpack.c.0.s8 %v8557
    %v8559 = vlaneseq
    %v8560 = vshrl.u32 %v8559, 7
    %v8561 = vsub.s32 %v8558, %v8560
    %v8562 = vrot.slane %v8347, %v8561
    %v8564 = vunpack.c.l.s4 1983009808
    %v8565 = vunpack.c.0.s8 %v8564
    %v8566 = vlaneseq
    %v8567 = vshrl.u32 %v8566, 7
    %v8568 = vsub.s32 %v8565, %v8567
    %v8569 = vrot.slane %v8555, %v8568
    %v8570 = vcombine.high %v8562, %v8562
    %v8571 = vcombine.high %v8569, %v8569
    %v8572 = vcombine.high %v8348, %v8348
    %v8574 = vunpack.c.l.s4 1983009808
    %v8575 = vunpack.c.0.s8 %v8574
    %v8576 = vlaneseq
    %v8577 = vshrl.u32 %v8576, 7
    %v8578 = vsub.s32 %v8575, %v8577
    %v8579 = vrot.slane %v8348, %v8578
    %v8581 = vunpack.c.l.s4 1983009808
    %v8582 = vunpack.c.0.s8 %v8581
    %v8583 = vlaneseq
    %v8584 = vshrl.u32 %v8583, 7
    %v8585 = vsub.s32 %v8582, %v8584
    %v8586 = vrot.slane %v8572, %v8585
    %v8587 = vcombine.high %v8579, %v8579
    %v8588 = vcombine.high %v8586, %v8586
    %v8589 = vcombine.high %v8349, %v8349
    %v8591 = vunpack.c.l.s4 1983009808
    %v8592 = vunpack.c.0.s8 %v8591
    %v8593 = vlaneseq
    %v8594 = vshrl.u32 %v8593, 7
    %v8595 = vsub.s32 %v8592, %v8594
    %v8596 = vrot.slane %v8349, %v8595
    %v8598 = vunpack.c.l.s4 1983009808
    %v8599 = vunpack.c.0.s8 %v8598
    %v8600 = vlaneseq
    %v8601 = vshrl.u32 %v8600, 7
    %v8602 = vsub.s32 %v8599, %v8601
    %v8603 = vrot.slane %v8589, %v8602
    %v8604 = vcombine.high %v8596, %v8596
    %v8605 = vcombine.high %v8603, %v8603
    %v8606 = vcombine.high %v8350, %v8350
    %v8608 = vunpack.c.l.s4 1983009808
    %v8609 = vunpack.c.0.s8 %v8608
    %v8610 = vlaneseq
    %v8611 = vshrl.u32 %v8610, 7
    %v8612 = vsub.s32 %v8609, %v8611
    %v8613 = vrot.slane %v8350, %v8612
    %v8615 = vunpack.c.l.s4 1983009808
    %v8616 = vunpack.c.0.s8 %v8615
    %v8617 = vlaneseq
    %v8618 = vshrl.u32 %v8617, 7
    %v8619 = vsub.s32 %v8616, %v8618
    %v8620 = vrot.slane %v8606, %v8619
    %v8621 = vcombine.high %v8613, %v8613
    %v8622 = vcombine.high %v8620, %v8620
    %v8623 = vcombine.high %v8351, %v8351
    %v8625 = vunpack.c.l.s4 1983009808
    %v8626 = vunpack.c.0.s8 %v8625
    %v8627 = vlaneseq
    %v8628 = vshrl.u32 %v8627, 7
    %v8629 = vsub.s32 %v8626, %v8628
    %v8630 = vrot.slane %v8351, %v8629
    %v8632 = vunpack.c.l.s4 1983009808
    %v8633 = vunpack.c.0.s8 %v8632
    %v8634 = vlaneseq
    %v8635 = vshrl.u32 %v8634, 7
    %v8636 = vsub.s32 %v8633, %v8635
    %v8637 = vrot.slane %v8623, %v8636
    %v8638 = vcombine.high %v8630, %v8630
    %v8639 = vcombine.high %v8637, %v8637
    %v8704 = vrot.slane %v8375, 7
    %v8705 = vrot.slane %v8704, 2
    %v8706 = vrot.slane %v8383, 7
    %v8707 = vrot.slane %v8706, 2
    %v8708 = vrot.slane %v8382, 7
    %v8709 = vrot.slane %v8708, 2
    %v8710 = vrot.slane %v8384, 7
    %v8711 = vrot.slane %v8710, 2
    %v8712 = vrot.slane %v8392, 7
    %v8713 = vrot.slane %v8712, 2
    %v8714 = vrot.slane %v8400, 7
    %v8715 = vrot.slane %v8714, 2
    %v8716 = vrot.slane %v8399, 7
    %v8717 = vrot.slane %v8716, 2
    %v8718 = vrot.slane %v8401, 7
    %v8719 = vrot.slane %v8718, 2
    %v8720 = vrot.slane %v8409, 7
    %v8721 = vrot.slane %v8720, 2
    %v8722 = vrot.slane %v8417, 7
    %v8723 = vrot.slane %v8722, 2
    %v8724 = vrot.slane %v8416, 7
    %v8725 = vrot.slane %v8724, 2
    %v8726 = vrot.slane %v8418, 7
    %v8727 = vrot.slane %v8726, 2
    %v8728 = vrot.slane %v8426, 7
    %v8729 = vrot.slane %v8728, 2
    %v8730 = vrot.slane %v8434, 7
    %v8731 = vrot.slane %v8730, 2
    %v8732 = vrot.slane %v8433, 7
    %v8733 = vrot.slane %v8732, 2
    %v8734 = vrot.slane %v8435, 7
    %v8735 = vrot.slane %v8734, 2
    %v8736 = vrot.slane %v8443, 7
    %v8737 = vrot.slane %v8736, 2
    %v8738 = vrot.slane %v8451, 7
    %v8739 = vrot.slane %v8738, 2
    %v8740 = vrot.slane %v8450, 7
    %v8741 = vrot.slane %v8740, 2
    %v8742 = vrot.slane %v8452, 7
    %v8743 = vrot.slane %v8742, 2
    %v8744 = vrot.slane %v8460, 7
    %v8745 = vrot.slane %v8744, 2
    %v8746 = vrot.slane %v8468, 7
    %v8747 = vrot.slane %v8746, 2
    %v8748 = vrot.slane %v8467, 7
    %v8749 = vrot.slane %v8748, 2
    %v8750 = vrot.slane %v8469, 7
    %v8751 = vrot.slane %v8750, 2
    %v8752 = vrot.slane %v8477, 7
    %v8753 = vrot.slane %v8752, 2
    %v8754 = vrot.slane %v8485, 7
    %v8755 = vrot.slane %v8754, 2
    %v8756 = vrot.slane %v8484, 7
    %v8757 = vrot.slane %v8756, 2
    %v8758 = vrot.slane %v8486, 7
    %v8759 = vrot.slane %v8758, 2
    %v8760 = vrot.slane %v8494, 7
    %v8761 = vrot.slane %v8760, 2
    %v8762 = vrot.slane %v8502, 7
    %v8763 = vrot.slane %v8762, 2
    %v8764 = vrot.slane %v8501, 7
    %v8765 = vrot.slane %v8764, 2
    %v8766 = vrot.slane %v8503, 7
    %v8767 = vrot.slane %v8766, 2
    %v8768 = vrot.slane %v8511, 7
    %v8769 = vrot.slane %v8768, 2
    %v8770 = vrot.slane %v8519, 7
    %v8771 = vrot.slane %v8770, 2
    %v8772 = vrot.slane %v8518, 7
    %v8773 = vrot.slane %v8772, 2
    %v8774 = vrot.slane %v8520, 7
    %v8775 = vrot.slane %v8774, 2
    %v8776 = vrot.slane %v8528, 7
    %v8777 = vrot.slane %v8776, 2
    %v8778 = vrot.slane %v8536, 7
    %v8779 = vrot.slane %v8778, 2
    %v8780 = vrot.slane %v8535, 7
    %v8781 = vrot.slane %v8780, 2
    %v8782 = vrot.slane %v8537, 7
    %v8783 = vrot.slane %v8782, 2
    %v8784 = vrot.slane %v8545, 7
    %v8785 = vrot.slane %v8784, 2
    %v8786 = vrot.slane %v8553, 7
    %v8787 = vrot.slane %v8786, 2
    %v8788 = vrot.slane %v8552, 7
    %v8789 = vrot.slane %v8788, 2
    %v8790 = vrot.slane %v8554, 7
    %v8791 = vrot.slane %v8790, 2
    %v8792 = vrot.slane %v8562, 7
    %v8793 = vrot.slane %v8792, 2
    %v8794 = vrot.slane %v8570, 7
    %v8795 = vrot.slane %v8794, 2
    %v8796 = vrot.slane %v8569, 7
    %v8797 = vrot.slane %v8796, 2
    %v8798 = vrot.slane %v8571, 7
    %v8799 = vrot.slane %v8798, 2
    %v8800 = vrot.slane %v8579, 7
    %v8801 = vrot.slane %v8800, 2
    %v8802 = vrot.slane %v8587, 7
    %v8803 = vrot.slane %v8802, 2
    %v8804 = vrot.slane %v8586, 7
    %v8805 = vrot.slane %v8804, 2
    %v8806 = vrot.slane %v8588, 7
    %v8807 = vrot.slane %v8806, 2
    %v8808 = vrot.slane %v8596, 7
    %v8809 = vrot.slane %v8808, 2
    %v8810 = vrot.slane %v8604, 7
    %v8811 = vrot.slane %v8810, 2
    %v8812 = vrot.slane %v8603, 7
    %v8813 = vrot.slane %v8812, 2
    %v8814 = vrot.slane %v8605, 7
    %v8815 = vrot.slane %v8814, 2
    %v8816 = vrot.slane %v8613, 7
    %v8817 = vrot.slane %v8816, 2
    %v8818 = vrot.slane %v8621, 7
    %v8819 = vrot.slane %v8818, 2
    %v8820 = vrot.slane %v8620, 7
    %v8821 = vrot.slane %v8820, 2
    %v8822 = vrot.slane %v8622, 7
    %v8823 = vrot.slane %v8822, 2
    %v8824 = vrot.slane %v8630, 7
    %v8825 = vrot.slane %v8824, 2
    %v8826 = vrot.slane %v8638, 7
    %v8827 = vrot.slane %v8826, 2
    %v8828 = vrot.slane %v8637, 7
    %v8829 = vrot.slane %v8828, 2
    %v8830 = vrot.slane %v8639, 7
    %v8831 = vrot.slane %v8830, 2
    %v8896 = vmax.f32 %v8375, %v8705
    %v8897 = vmax.f32 %v8383, %v8707
    %v8898 = vmax.f32 %v8382, %v8709
    %v8899 = vmax.f32 %v8384, %v8711
    %v8900 = vmax.f32 %v8392, %v8713
    %v8901 = vmax.f32 %v8400, %v8715
    %v8902 = vmax.f32 %v8399, %v8717
    %v8903 = vmax.f32 %v8401, %v8719
    %v8904 = vmax.f32 %v8409, %v8721
    %v8905 = vmax.f32 %v8417, %v8723
    %v8906 = vmax.f32 %v8416, %v8725
    %v8907 = vmax.f32 %v8418, %v8727
    %v8908 = vmax.f32 %v8426, %v8729
    %v8909 = vmax.f32 %v8434, %v8731
    %v8910 = vmax.f32 %v8433, %v8733
    %v8911 = vmax.f32 %v8435, %v8735
    %v8912 = vmax.f32 %v8443, %v8737
    %v8913 = vmax.f32 %v8451, %v8739
    %v8914 = vmax.f32 %v8450, %v8741
    %v8915 = vmax.f32 %v8452, %v8743
    %v8916 = vmax.f32 %v8460, %v8745
    %v8917 = vmax.f32 %v8468, %v8747
    %v8918 = vmax.f32 %v8467, %v8749
    %v8919 = vmax.f32 %v8469, %v8751
    %v8920 = vmax.f32 %v8477, %v8753
    %v8921 = vmax.f32 %v8485, %v8755
    %v8922 = vmax.f32 %v8484, %v8757
    %v8923 = vmax.f32 %v8486, %v8759
    %v8924 = vmax.f32 %v8494, %v8761
    %v8925 = vmax.f32 %v8502, %v8763
    %v8926 = vmax.f32 %v8501, %v8765
    %v8927 = vmax.f32 %v8503, %v8767
    %v8928 = vmax.f32 %v8511, %v8769
    %v8929 = vmax.f32 %v8519, %v8771
    %v8930 = vmax.f32 %v8518, %v8773
    %v8931 = vmax.f32 %v8520, %v8775
    %v8932 = vmax.f32 %v8528, %v8777
    %v8933 = vmax.f32 %v8536, %v8779
    %v8934 = vmax.f32 %v8535, %v8781
    %v8935 = vmax.f32 %v8537, %v8783
    %v8936 = vmax.f32 %v8545, %v8785
    %v8937 = vmax.f32 %v8553, %v8787
    %v8938 = vmax.f32 %v8552, %v8789
    %v8939 = vmax.f32 %v8554, %v8791
    %v8940 = vmax.f32 %v8562, %v8793
    %v8941 = vmax.f32 %v8570, %v8795
    %v8942 = vmax.f32 %v8569, %v8797
    %v8943 = vmax.f32 %v8571, %v8799
    %v8944 = vmax.f32 %v8579, %v8801
    %v8945 = vmax.f32 %v8587, %v8803
    %v8946 = vmax.f32 %v8586, %v8805
    %v8947 = vmax.f32 %v8588, %v8807
    %v8948 = vmax.f32 %v8596, %v8809
    %v8949 = vmax.f32 %v8604, %v8811
    %v8950 = vmax.f32 %v8603, %v8813
    %v8951 = vmax.f32 %v8605, %v8815
    %v8952 = vmax.f32 %v8613, %v8817
    %v8953 = vmax.f32 %v8621, %v8819
    %v8954 = vmax.f32 %v8620, %v8821
    %v8955 = vmax.f32 %v8622, %v8823
    %v8956 = vmax.f32 %v8630, %v8825
    %v8957 = vmax.f32 %v8638, %v8827
    %v8958 = vmax.f32 %v8637, %v8829
    %v8959 = vmax.f32 %v8639, %v8831
    %v8960 = vmax.f32 %v8896, %v8900
    %v8961 = vmax.f32 %v8897, %v8901
    %v8962 = vmax.f32 %v8898, %v8902
    %v8963 = vmax.f32 %v8899, %v8903
    %v8964 = vmax.f32 %v8904, %v8908
    %v8965 = vmax.f32 %v8905, %v8909
    %v8966 = vmax.f32 %v8906, %v8910
    %v8967 = vmax.f32 %v8907, %v8911
    %v8968 = vmax.f32 %v8912, %v8916
    %v8969 = vmax.f32 %v8913, %v8917
    %v8970 = vmax.f32 %v8914, %v8918
    %v8971 = vmax.f32 %v8915, %v8919
    %v8972 = vmax.f32 %v8920, %v8924
    %v8973 = vmax.f32 %v8921, %v8925
    %v8974 = vmax.f32 %v8922, %v8926
    %v8975 = vmax.f32 %v8923, %v8927
    %v8976 = vmax.f32 %v8928, %v8932
    %v8977 = vmax.f32 %v8929, %v8933
    %v8978 = vmax.f32 %v8930, %v8934
    %v8979 = vmax.f32 %v8931, %v8935
    %v8980 = vmax.f32 %v8936, %v8940
    %v8981 = vmax.f32 %v8937, %v8941
    %v8982 = vmax.f32 %v8938, %v8942
    %v8983 = vmax.f32 %v8939, %v8943
    %v8984 = vmax.f32 %v8944, %v8948
    %v8985 = vmax.f32 %v8945, %v8949
    %v8986 = vmax.f32 %v8946, %v8950
    %v8987 = vmax.f32 %v8947, %v8951
    %v8988 = vmax.f32 %v8952, %v8956
    %v8989 = vmax.f32 %v8953, %v8957
    %v8990 = vmax.f32 %v8954, %v8958
    %v8991 = vmax.f32 %v8955, %v8959
    %8992 = vst [vmem:[#allocation3] sm:$0x3f] 0.0
    %8993 = vst [vmem:[#allocation3 + $0x8] sm:$0x3f] 0.0
    %8994 = vst [vmem:[#allocation3 + $0x10] sm:$0x3f] 0.0
    %8995 = vst [vmem:[#allocation3 + $0x18] sm:$0x3f] 0.0
    %8996 = vst [vmem:[#allocation3 + $0x20] sm:$0x3f] 0.0
    %8997 = vst [vmem:[#allocation3 + $0x28] sm:$0x3f] 0.0
    %8998 = vst [vmem:[#allocation3 + $0x30] sm:$0x3f] 0.0
    %8999 = vst [vmem:[#allocation3 + $0x38] sm:$0x3f] 0.0
    %9000 = vst [vmem:[#allocation3 + $0x40] sm:$0x3f] 0.0
    %9001 = vst [vmem:[#allocation3 + $0x48] sm:$0x3f] 0.0
    %9002 = vst [vmem:[#allocation3 + $0x50] sm:$0x3f] 0.0
    %9003 = vst [vmem:[#allocation3 + $0x58] sm:$0x3f] 0.0
    %v9036 = vlaneseq
    %v9037 = vshrl.u32 %v9036, 7
    %v9038 = vsub.s32 0, %v9037
    %v9039 = vrot.slane %v8960, %v9038
    %v9040 = vlaneseq
    %v9041 = vshrl.u32 %v9040, 7
    %v9042 = vsub.s32 0, %v9041
    %v9043 = vrot.slane %v8961, %v9042
    %v9044 = vlaneseq
    %v9045 = vshrl.u32 %v9044, 7
    %v9046 = vsub.s32 0, %v9045
    %v9047 = vrot.slane %v8962, %v9046
    %v9048 = vlaneseq
    %v9049 = vshrl.u32 %v9048, 7
    %v9050 = vsub.s32 0, %v9049
    %v9051 = vrot.slane %v8963, %v9050
    %v9052 = vlaneseq
    %v9053 = vshrl.u32 %v9052, 7
    %v9054 = vsub.s32 0, %v9053
    %v9055 = vrot.slane %v8964, %v9054
    %v9056 = vlaneseq
    %v9057 = vshrl.u32 %v9056, 7
    %v9058 = vsub.s32 0, %v9057
    %v9059 = vrot.slane %v8965, %v9058
    %v9060 = vlaneseq
    %v9061 = vshrl.u32 %v9060, 7
    %v9062 = vsub.s32 0, %v9061
    %v9063 = vrot.slane %v8966, %v9062
    %v9064 = vlaneseq
    %v9065 = vshrl.u32 %v9064, 7
    %v9066 = vsub.s32 0, %v9065
    %v9067 = vrot.slane %v8967, %v9066
    %v9068 = vlaneseq
    %v9069 = vshrl.u32 %v9068, 7
    %v9070 = vsub.s32 0, %v9069
    %v9071 = vrot.slane %v8968, %v9070
    %v9072 = vlaneseq
    %v9073 = vshrl.u32 %v9072, 7
    %v9074 = vsub.s32 0, %v9073
    %v9075 = vrot.slane %v8969, %v9074
    %v9076 = vlaneseq
    %v9077 = vshrl.u32 %v9076, 7
    %v9078 = vsub.s32 0, %v9077
    %v9079 = vrot.slane %v8970, %v9078
    %v9080 = vlaneseq
    %v9081 = vshrl.u32 %v9080, 7
    %v9082 = vsub.s32 0, %v9081
    %v9083 = vrot.slane %v8971, %v9082
    %v9084 = vlaneseq
    %v9085 = vshrl.u32 %v9084, 7
    %v9086 = vsub.s32 0, %v9085
    %v9087 = vrot.slane %v8972, %v9086
    %v9088 = vlaneseq
    %v9089 = vshrl.u32 %v9088, 7
    %v9090 = vsub.s32 0, %v9089
    %v9091 = vrot.slane %v8973, %v9090
    %v9092 = vlaneseq
    %v9093 = vshrl.u32 %v9092, 7
    %v9094 = vsub.s32 0, %v9093
    %v9095 = vrot.slane %v8974, %v9094
    %v9096 = vlaneseq
    %v9097 = vshrl.u32 %v9096, 7
    %v9098 = vsub.s32 0, %v9097
    %v9099 = vrot.slane %v8975, %v9098
    %v9100 = vlaneseq
    %v9101 = vshrl.u32 %v9100, 7
    %v9102 = vsub.s32 0, %v9101
    %v9103 = vrot.slane %v8976, %v9102
    %v9104 = vlaneseq
    %v9105 = vshrl.u32 %v9104, 7
    %v9106 = vsub.s32 0, %v9105
    %v9107 = vrot.slane %v8977, %v9106
    %v9108 = vlaneseq
    %v9109 = vshrl.u32 %v9108, 7
    %v9110 = vsub.s32 0, %v9109
    %v9111 = vrot.slane %v8978, %v9110
    %v9112 = vlaneseq
    %v9113 = vshrl.u32 %v9112, 7
    %v9114 = vsub.s32 0, %v9113
    %v9115 = vrot.slane %v8979, %v9114
    %v9116 = vlaneseq
    %v9117 = vshrl.u32 %v9116, 7
    %v9118 = vsub.s32 0, %v9117
    %v9119 = vrot.slane %v8980, %v9118
    %v9120 = vlaneseq
    %v9121 = vshrl.u32 %v9120, 7
    %v9122 = vsub.s32 0, %v9121
    %v9123 = vrot.slane %v8981, %v9122
    %v9124 = vlaneseq
    %v9125 = vshrl.u32 %v9124, 7
    %v9126 = vsub.s32 0, %v9125
    %v9127 = vrot.slane %v8982, %v9126
    %v9128 = vlaneseq
    %v9129 = vshrl.u32 %v9128, 7
    %v9130 = vsub.s32 0, %v9129
    %v9131 = vrot.slane %v8983, %v9130
    %v9132 = vlaneseq
    %v9133 = vshrl.u32 %v9132, 7
    %v9134 = vsub.s32 0, %v9133
    %v9135 = vrot.slane %v8984, %v9134
    %v9136 = vlaneseq
    %v9137 = vshrl.u32 %v9136, 7
    %v9138 = vsub.s32 0, %v9137
    %v9139 = vrot.slane %v8985, %v9138
    %v9140 = vlaneseq
    %v9141 = vshrl.u32 %v9140, 7
    %v9142 = vsub.s32 0, %v9141
    %v9143 = vrot.slane %v8986, %v9142
    %v9144 = vlaneseq
    %v9145 = vshrl.u32 %v9144, 7
    %v9146 = vsub.s32 0, %v9145
    %v9147 = vrot.slane %v8987, %v9146
    %v9148 = vlaneseq
    %v9149 = vshrl.u32 %v9148, 7
    %v9150 = vsub.s32 0, %v9149
    %v9151 = vrot.slane %v8988, %v9150
    %v9152 = vlaneseq
    %v9153 = vshrl.u32 %v9152, 7
    %v9154 = vsub.s32 0, %v9153
    %v9155 = vrot.slane %v8989, %v9154
    %v9156 = vlaneseq
    %v9157 = vshrl.u32 %v9156, 7
    %v9158 = vsub.s32 0, %v9157
    %v9159 = vrot.slane %v8990, %v9158
    %v9160 = vlaneseq
    %v9161 = vshrl.u32 %v9160, 7
    %v9162 = vsub.s32 0, %v9161
    %v9163 = vrot.slane %v8991, %v9162
    %vm9164 = vcmask 1041409
    %v9165 = vsel %vm9164, %v9043, %v9039
    %v9166 = vsel %vm4638, %v9047, %v9165
    %v9167 = vsel %vm4640, %v9051, %v9166
    %v9168 = vsel %vm9164, %v9059, %v9055
    %v9169 = vsel %vm4638, %v9063, %v9168
    %v9170 = vsel %vm4640, %v9067, %v9169
    %v9171 = vsel %vm9164, %v9075, %v9071
    %v9172 = vsel %vm4638, %v9079, %v9171
    %v9173 = vsel %vm4640, %v9083, %v9172
    %v9174 = vsel %vm9164, %v9091, %v9087
    %v9175 = vsel %vm4638, %v9095, %v9174
    %v9176 = vsel %vm4640, %v9099, %v9175
    %v9177 = vsel %vm9164, %v9107, %v9103
    %v9178 = vsel %vm4638, %v9111, %v9177
    %v9179 = vsel %vm4640, %v9115, %v9178
    %v9180 = vsel %vm9164, %v9123, %v9119
    %v9181 = vsel %vm4638, %v9127, %v9180
    %v9182 = vsel %vm4640, %v9131, %v9181
    %v9183 = vsel %vm9164, %v9139, %v9135
    %v9184 = vsel %vm4638, %v9143, %v9183
    %v9185 = vsel %vm4640, %v9147, %v9184
    %v9186 = vsel %vm9164, %v9155, %v9151
    %v9187 = vsel %vm4638, %v9159, %v9186
    %v9188 = vsel %vm4640, %v9163, %v9187
    %s9197 = scalar_lea.vmem [#allocation3], 8
    %9198 = vst [vmem:[%s9197 + $0x1] sm:$0xf] %v9167
    %9199 = vst [vmem:[%s9197 + $0x9] sm:$0xf] %v9170
    %9200 = vst [vmem:[%s9197 + $0x11] sm:$0xf] %v9173
    %9201 = vst [vmem:[%s9197 + $0x19] sm:$0xf] %v9176
    %9202 = vst [vmem:[%s9197 + $0x31] sm:$0xf] %v9179
    %9203 = vst [vmem:[%s9197 + $0x39] sm:$0xf] %v9182
    %9204 = vst [vmem:[%s9197 + $0x41] sm:$0xf] %v9185
    %9205 = vst [vmem:[%s9197 + $0x49] sm:$0xf] %v9188
    %v9206 = vld [vmem:[#allocation3] sm:$0xf]
    %v9207 = vld [vmem:[#allocation3 + $0x8] sm:$0xf]
    %v9208 = vld [vmem:[#allocation3 + $0x10] sm:$0xf]
    %v9209 = vld [vmem:[#allocation3 + $0x18] sm:$0xf]
    %v9210 = vld [vmem:[#allocation3 + $0x30] sm:$0xf]
    %v9211 = vld [vmem:[#allocation3 + $0x38] sm:$0xf]
    %v9212 = vld [vmem:[#allocation3 + $0x40] sm:$0xf]
    %v9213 = vld [vmem:[#allocation3 + $0x48] sm:$0xf]
    %v9214 = vld [vmem:[%s5] sm:$0xff]
    %v9215 = vld [vmem:[%s5 + $0x8] sm:$0xff]
    %v9216 = vld [vmem:[%s5 + $0x10] sm:$0xff]
    %v9217 = vld [vmem:[%s5 + $0x18] sm:$0xff]
    %v9218 = vld [vmem:[%s5 + $0x20] sm:$0xff]
    %v9219 = vld [vmem:[%s5 + $0x28] sm:$0xff]
    %v9220 = vld [vmem:[%s5 + $0x30] sm:$0xff]
    %v9221 = vld [vmem:[%s5 + $0x38] sm:$0xff]
    %v9222 = vld [vmem:[%s5 + $0x40] sm:$0xff]
    %v9223 = vld [vmem:[%s5 + $0x48] sm:$0xff]
    %v9224 = vld [vmem:[%s5 + $0x50] sm:$0xff]
    %v9225 = vld [vmem:[%s5 + $0x58] sm:$0xff]
    %v9226 = vld [vmem:[%s5 + $0x60] sm:$0xff]
    %v9227 = vld [vmem:[%s5 + $0x68] sm:$0xff]
    %v9228 = vld [vmem:[%s5 + $0x70] sm:$0xff]
    %v9229 = vld [vmem:[%s5 + $0x78] sm:$0xff]
    %v9230 = vld [vmem:[#allocation3 + $0x1] sm:$0xf]
    %v9231 = vld [vmem:[#allocation3 + $0x9] sm:$0xf]
    %v9232 = vld [vmem:[#allocation3 + $0x11] sm:$0xf]
    %v9233 = vld [vmem:[#allocation3 + $0x19] sm:$0xf]
    %v9234 = vld [vmem:[#allocation3 + $0x31] sm:$0xf]
    %v9235 = vld [vmem:[#allocation3 + $0x39] sm:$0xf]
    %v9236 = vld [vmem:[#allocation3 + $0x41] sm:$0xf]
    %v9237 = vld [vmem:[#allocation3 + $0x49] sm:$0xf]
    %s9238 = scalar_lea.vmem %s5, 128
    %v9239 = vld [vmem:[%s9238] sm:$0xff]
    %v9240 = vld [vmem:[%s9238 + $0x8] sm:$0xff]
    %v9241 = vld [vmem:[%s9238 + $0x10] sm:$0xff]
    %v9242 = vld [vmem:[%s9238 + $0x18] sm:$0xff]
    %v9243 = vld [vmem:[%s9238 + $0x20] sm:$0xff]
    %v9244 = vld [vmem:[%s9238 + $0x28] sm:$0xff]
    %v9245 = vld [vmem:[%s9238 + $0x30] sm:$0xff]
    %v9246 = vld [vmem:[%s9238 + $0x38] sm:$0xff]
    %v9247 = vld [vmem:[%s9238 + $0x40] sm:$0xff]
    %v9248 = vld [vmem:[%s9238 + $0x48] sm:$0xff]
    %v9249 = vld [vmem:[%s9238 + $0x50] sm:$0xff]
    %v9250 = vld [vmem:[%s9238 + $0x58] sm:$0xff]
    %v9251 = vld [vmem:[%s9238 + $0x60] sm:$0xff]
    %v9252 = vld [vmem:[%s9238 + $0x68] sm:$0xff]
    %v9253 = vld [vmem:[%s9238 + $0x70] sm:$0xff]
    %v9254 = vld [vmem:[%s9238 + $0x78] sm:$0xff]
    %v9263 = vcombine.low %v9230, %v9231
    %v9264 = vcombine.low %v9232, %v9233
    %v9265 = vcombine.low %v9234, %v9235
    %v9266 = vcombine.low %v9236, %v9237
    %9271 = vmatprep.subr.mxu0 0.0
    %9272 = vmatpush1.msra.mxu0 %v9239
    %9273 = vmatprep.subr.mxu0 0.0
    %9274 = vmatpush1.msra.mxu0 %v9240
    %9275 = vmatprep.subr.mxu0 0.0
    %9276 = vmatpush1.msra.mxu0 %v9241
    %9277 = vmatprep.subr.mxu0 0.0
    %9278 = vmatpush1.msra.mxu0 %v9242
    %9279 = vmatprep.subr.mxu0 0.0
    %9280 = vmatpush1.msra.mxu0 %v9243
    %9281 = vmatprep.subr.mxu0 0.0
    %9282 = vmatpush1.msra.mxu0 %v9244
    %9283 = vmatprep.subr.mxu0 0.0
    %9284 = vmatpush1.msra.mxu0 %v9245
    %9285 = vmatprep.subr.mxu0 0.0
    %9286 = vmatpush1.msra.mxu0 %v9246
    %9287 = vmatprep.subr.mxu0 0.0
    %9288 = vmatpush1.msra.mxu0 %v9247
    %9289 = vmatprep.subr.mxu0 0.0
    %9290 = vmatpush1.msra.mxu0 %v9248
    %9291 = vmatprep.subr.mxu0 0.0
    %9292 = vmatpush1.msra.mxu0 %v9249
    %9293 = vmatprep.subr.mxu0 0.0
    %9294 = vmatpush1.msra.mxu0 %v9250
    %9295 = vmatprep.subr.mxu0 0.0
    %9296 = vmatpush1.msra.mxu0 %v9251
    %9297 = vmatprep.subr.mxu0 0.0
    %9298 = vmatpush1.msra.mxu0 %v9252
    %9299 = vmatprep.subr.mxu0 0.0
    %9300 = vmatpush1.msra.mxu0 %v9253
    %9301 = vmatprep.subr.mxu0 0.0
    %9302 = vmatpush1.msra.mxu0 %v9254
    %9303 = vmatprep.subr.mxu0 0.0
    %9304 = vmatpush1.msra.mxu0 0.0
    %9305 = vmatprep.subr.mxu0 0.0
    %9306 = vmatpush1.msra.mxu0 0.0
    %9307 = vmatprep.subr.mxu0 0.0
    %9308 = vmatpush1.msra.mxu0 0.0
    %9309 = vmatprep.subr.mxu0 0.0
    %9310 = vmatpush1.msra.mxu0 0.0
    %9311 = vmatprep.subr.mxu0 0.0
    %9312 = vmatpush1.msra.mxu0 0.0
    %9313 = vmatprep.subr.mxu0 0.0
    %9314 = vmatpush1.msra.mxu0 0.0
    %9315 = vmatprep.subr.mxu0 0.0
    %9316 = vmatpush1.msra.mxu0 0.0
    %9317 = vmatprep.subr.mxu0 0.0
    %9318 = vmatpush1.msra.mxu0 0.0
    %9319 = vmatprep.subr.mxu0 0.0
    %9320 = vmatpush1.msra.mxu0 0.0
    %9321 = vmatprep.subr.mxu0 0.0
    %9322 = vmatpush1.msra.mxu0 0.0
    %9323 = vmatprep.subr.mxu0 0.0
    %9324 = vmatpush1.msra.mxu0 0.0
    %9325 = vmatprep.subr.mxu0 0.0
    %9326 = vmatpush1.msra.mxu0 0.0
    %9327 = vmatprep.subr.mxu0 0.0
    %9328 = vmatpush1.msra.mxu0 0.0
    %9329 = vmatprep.subr.mxu0 0.0
    %9330 = vmatpush1.msra.mxu0 0.0
    %9331 = vmatprep.subr.mxu0 0.0
    %9332 = vmatpush1.msra.mxu0 0.0
    %9333 = vmatprep.subr.mxu0 0.0
    %9334 = vmatpush1.msra.mxu0 0.0
    %9335 = vmatprep.mubr.f32.mxu0 0.0
    %9336 = vmatmul.mubr.f32.gmra.mrb[0].mxu0 %v9263
    %v9337 = vpop.f32.mrb[0].mxu0
    %v9338 = vadd.f32 0.0, %v9337
    %v9339 = vpop.f32.mrb[0].mxu0
    %9340 = vmatprep.mubr.f32.mxu0 0.0
    %9341 = vmatmul.mubr.f32.gmra.mrb[0].mxu0 %v9264
    %v9342 = vpop.f32.mrb[0].mxu0
    %v9343 = vadd.f32 0.0, %v9342
    %v9344 = vpop.f32.mrb[0].mxu0
    %9345 = vmatprep.mubr.f32.mxu0 0.0
    %9346 = vmatmul.mubr.f32.gmra.mrb[0].mxu0 %v9265
    %v9347 = vpop.f32.mrb[0].mxu0
    %v9348 = vadd.f32 0.0, %v9347
    %v9349 = vpop.f32.mrb[0].mxu0
    %9350 = vmatprep.mubr.f32.mxu0 0.0
    %9351 = vmatmul.mubr.f32.gmra.mrb[0].mxu0 %v9266
    %v9352 = vpop.f32.mrb[0].mxu0
    %v9353 = vadd.f32 0.0, %v9352
    %v9354 = vpop.f32.mrb[0].mxu0
    %9355 = vdwg.mxu0
    %v9364 = vcombine.low %v9206, %v9207
    %v9365 = vcombine.low %v9208, %v9209
    %v9366 = vcombine.low %v9210, %v9211
    %v9367 = vcombine.low %v9212, %v9213
    %9372 = vmatprep.subr.mxu0 0.0
    %9373 = vmatpush1.msra.mxu0 %v9214
    %9374 = vmatprep.subr.mxu0 0.0
    %9375 = vmatpush1.msra.mxu0 %v9215
    %9376 = vmatprep.subr.mxu0 0.0
    %9377 = vmatpush1.msra.mxu0 %v9216
    %9378 = vmatprep.subr.mxu0 0.0
    %9379 = vmatpush1.msra.mxu0 %v9217
    %9380 = vmatprep.subr.mxu0 0.0
    %9381 = vmatpush1.msra.mxu0 %v9218
    %9382 = vmatprep.subr.mxu0 0.0
    %9383 = vmatpush1.msra.mxu0 %v9219
    %9384 = vmatprep.subr.mxu0 0.0
    %9385 = vmatpush1.msra.mxu0 %v9220
    %9386 = vmatprep.subr.mxu0 0.0
    %9387 = vmatpush1.msra.mxu0 %v9221
    %9388 = vmatprep.subr.mxu0 0.0
    %9389 = vmatpush1.msra.mxu0 %v9222
    %9390 = vmatprep.subr.mxu0 0.0
    %9391 = vmatpush1.msra.mxu0 %v9223
    %9392 = vmatprep.subr.mxu0 0.0
    %9393 = vmatpush1.msra.mxu0 %v9224
    %9394 = vmatprep.subr.mxu0 0.0
    %9395 = vmatpush1.msra.mxu0 %v9225
    %9396 = vmatprep.subr.mxu0 0.0
    %9397 = vmatpush1.msra.mxu0 %v9226
    %9398 = vmatprep.subr.mxu0 0.0
    %9399 = vmatpush1.msra.mxu0 %v9227
    %9400 = vmatprep.subr.mxu0 0.0
    %9401 = vmatpush1.msra.mxu0 %v9228
    %9402 = vmatprep.subr.mxu0 0.0
    %9403 = vmatpush1.msra.mxu0 %v9229
    %9404 = vmatprep.subr.mxu0 0.0
    %9405 = vmatpush1.msra.mxu0 0.0
    %9406 = vmatprep.subr.mxu0 0.0
    %9407 = vmatpush1.msra.mxu0 0.0
    %9408 = vmatprep.subr.mxu0 0.0
    %9409 = vmatpush1.msra.mxu0 0.0
    %9410 = vmatprep.subr.mxu0 0.0
    %9411 = vmatpush1.msra.mxu0 0.0
    %9412 = vmatprep.subr.mxu0 0.0
    %9413 = vmatpush1.msra.mxu0 0.0
    %9414 = vmatprep.subr.mxu0 0.0
    %9415 = vmatpush1.msra.mxu0 0.0
    %9416 = vmatprep.subr.mxu0 0.0
    %9417 = vmatpush1.msra.mxu0 0.0
    %9418 = vmatprep.subr.mxu0 0.0
    %9419 = vmatpush1.msra.mxu0 0.0
    %9420 = vmatprep.subr.mxu0 0.0
    %9421 = vmatpush1.msra.mxu0 0.0
    %9422 = vmatprep.subr.mxu0 0.0
    %9423 = vmatpush1.msra.mxu0 0.0
    %9424 = vmatprep.subr.mxu0 0.0
    %9425 = vmatpush1.msra.mxu0 0.0
    %9426 = vmatprep.subr.mxu0 0.0
    %9427 = vmatpush1.msra.mxu0 0.0
    %9428 = vmatprep.subr.mxu0 0.0
    %9429 = vmatpush1.msra.mxu0 0.0
    %9430 = vmatprep.subr.mxu0 0.0
    %9431 = vmatpush1.msra.mxu0 0.0
    %9432 = vmatprep.subr.mxu0 0.0
    %9433 = vmatpush1.msra.mxu0 0.0
    %9434 = vmatprep.subr.mxu0 0.0
    %9435 = vmatpush1.msra.mxu0 0.0
    %9436 = vmatprep.mubr.f32.mxu0 0.0
    %9437 = vmatmul.mubr.f32.gmra.mrb[0].mxu0 %v9364
    %v9438 = vpop.f32.mrb[0].mxu0
    %v9439 = vadd.f32 %v9338, %v9438
    %v9440 = vpop.f32.mrb[0].mxu0
    %9441 = vmatprep.mubr.f32.mxu0 0.0
    %9442 = vmatmul.mubr.f32.gmra.mrb[0].mxu0 %v9365
    %v9443 = vpop.f32.mrb[0].mxu0
    %v9444 = vadd.f32 %v9343, %v9443
    %v9445 = vpop.f32.mrb[0].mxu0
    %9446 = vmatprep.mubr.f32.mxu0 0.0
    %9447 = vmatmul.mubr.f32.gmra.mrb[0].mxu0 %v9366
    %v9448 = vpop.f32.mrb[0].mxu0
    %v9449 = vadd.f32 %v9348, %v9448
    %v9450 = vpop.f32.mrb[0].mxu0
    %9451 = vmatprep.mubr.f32.mxu0 0.0
    %9452 = vmatmul.mubr.f32.gmra.mrb[0].mxu0 %v9367
    %v9453 = vpop.f32.mrb[0].mxu0
    %v9454 = vadd.f32 %v9353, %v9453
    %v9455 = vpop.f32.mrb[0].mxu0
    %9456 = vdwg.mxu0
    %v9457 = vld [vmem:[#allocation3 + $0x2] sm:$0xf]
    %v9458 = vld [vmem:[#allocation3 + $0xa] sm:$0xf]
    %v9459 = vld [vmem:[#allocation3 + $0x12] sm:$0xf]
    %v9460 = vld [vmem:[#allocation3 + $0x1a] sm:$0xf]
    %v9461 = vld [vmem:[#allocation3 + $0x32] sm:$0xf]
    %v9462 = vld [vmem:[#allocation3 + $0x3a] sm:$0xf]
    %v9463 = vld [vmem:[#allocation3 + $0x42] sm:$0xf]
    %v9464 = vld [vmem:[#allocation3 + $0x4a] sm:$0xf]
    %s9465 = scalar_lea.vmem %s5, 256
    %v9466 = vld [vmem:[%s9465] sm:$0xff]
    %v9467 = vld [vmem:[%s9465 + $0x8] sm:$0xff]
    %v9468 = vld [vmem:[%s9465 + $0x10] sm:$0xff]
    %v9469 = vld [vmem:[%s9465 + $0x18] sm:$0xff]
    %v9470 = vld [vmem:[%s9465 + $0x20] sm:$0xff]
    %v9471 = vld [vmem:[%s9465 + $0x28] sm:$0xff]
    %v9472 = vld [vmem:[%s9465 + $0x30] sm:$0xff]
    %v9473 = vld [vmem:[%s9465 + $0x38] sm:$0xff]
    %v9474 = vld [vmem:[%s9465 + $0x40] sm:$0xff]
    %v9475 = vld [vmem:[%s9465 + $0x48] sm:$0xff]
    %v9476 = vld [vmem:[%s9465 + $0x50] sm:$0xff]
    %v9477 = vld [vmem:[%s9465 + $0x58] sm:$0xff]
    %v9478 = vld [vmem:[%s9465 + $0x60] sm:$0xff]
    %v9479 = vld [vmem:[%s9465 + $0x68] sm:$0xff]
    %v9480 = vld [vmem:[%s9465 + $0x70] sm:$0xff]
    %v9481 = vld [vmem:[%s9465 + $0x78] sm:$0xff]
    %v9490 = vcombine.low %v9457, %v9458
    %v9491 = vcombine.low %v9459, %v9460
    %v9492 = vcombine.low %v9461, %v9462
    %v9493 = vcombine.low %v9463, %v9464
    %9498 = vmatprep.subr.mxu0 0.0
    %9499 = vmatpush1.msra.mxu0 %v9466
    %9500 = vmatprep.subr.mxu0 0.0
    %9501 = vmatpush1.msra.mxu0 %v9467
    %9502 = vmatprep.subr.mxu0 0.0
    %9503 = vmatpush1.msra.mxu0 %v9468
    %9504 = vmatprep.subr.mxu0 0.0
    %9505 = vmatpush1.msra.mxu0 %v9469
    %9506 = vmatprep.subr.mxu0 0.0
    %9507 = vmatpush1.msra.mxu0 %v9470
    %9508 = vmatprep.subr.mxu0 0.0
    %9509 = vmatpush1.msra.mxu0 %v9471
    %9510 = vmatprep.subr.mxu0 0.0
    %9511 = vmatpush1.msra.mxu0 %v9472
    %9512 = vmatprep.subr.mxu0 0.0
    %9513 = vmatpush1.msra.mxu0 %v9473
    %9514 = vmatprep.subr.mxu0 0.0
    %9515 = vmatpush1.msra.mxu0 %v9474
    %9516 = vmatprep.subr.mxu0 0.0
    %9517 = vmatpush1.msra.mxu0 %v9475
    %9518 = vmatprep.subr.mxu0 0.0
    %9519 = vmatpush1.msra.mxu0 %v9476
    %9520 = vmatprep.subr.mxu0 0.0
    %9521 = vmatpush1.msra.mxu0 %v9477
    %9522 = vmatprep.subr.mxu0 0.0
    %9523 = vmatpush1.msra.mxu0 %v9478
    %9524 = vmatprep.subr.mxu0 0.0
    %9525 = vmatpush1.msra.mxu0 %v9479
    %9526 = vmatprep.subr.mxu0 0.0
    %9527 = vmatpush1.msra.mxu0 %v9480
    %9528 = vmatprep.subr.mxu0 0.0
    %9529 = vmatpush1.msra.mxu0 %v9481
    %9530 = vmatprep.subr.mxu0 0.0
    %9531 = vmatpush1.msra.mxu0 0.0
    %9532 = vmatprep.subr.mxu0 0.0
    %9533 = vmatpush1.msra.mxu0 0.0
    %9534 = vmatprep.subr.mxu0 0.0
    %9535 = vmatpush1.msra.mxu0 0.0
    %9536 = vmatprep.subr.mxu0 0.0
    %9537 = vmatpush1.msra.mxu0 0.0
    %9538 = vmatprep.subr.mxu0 0.0
    %9539 = vmatpush1.msra.mxu0 0.0
    %9540 = vmatprep.subr.mxu0 0.0
    %9541 = vmatpush1.msra.mxu0 0.0
    %9542 = vmatprep.subr.mxu0 0.0
    %9543 = vmatpush1.msra.mxu0 0.0
    %9544 = vmatprep.subr.mxu0 0.0
    %9545 = vmatpush1.msra.mxu0 0.0
    %9546 = vmatprep.subr.mxu0 0.0
    %9547 = vmatpush1.msra.mxu0 0.0
    %9548 = vmatprep.subr.mxu0 0.0
    %9549 = vmatpush1.msra.mxu0 0.0
    %9550 = vmatprep.subr.mxu0 0.0
    %9551 = vmatpush1.msra.mxu0 0.0
    %9552 = vmatprep.subr.mxu0 0.0
    %9553 = vmatpush1.msra.mxu0 0.0
    %9554 = vmatprep.subr.mxu0 0.0
    %9555 = vmatpush1.msra.mxu0 0.0
    %9556 = vmatprep.subr.mxu0 0.0
    %9557 = vmatpush1.msra.mxu0 0.0
    %9558 = vmatprep.subr.mxu0 0.0
    %9559 = vmatpush1.msra.mxu0 0.0
    %9560 = vmatprep.subr.mxu0 0.0
    %9561 = vmatpush1.msra.mxu0 0.0
    %9562 = vmatprep.mubr.f32.mxu0 0.0
    %9563 = vmatmul.mubr.f32.gmra.mrb[0].mxu0 %v9490
    %v9564 = vpop.f32.mrb[0].mxu0
    %v9565 = vadd.f32 0.0, %v9564
    %v9566 = vpop.f32.mrb[0].mxu0
    %9567 = vmatprep.mubr.f32.mxu0 0.0
    %9568 = vmatmul.mubr.f32.gmra.mrb[0].mxu0 %v9491
    %v9569 = vpop.f32.mrb[0].mxu0
    %v9570 = vadd.f32 0.0, %v9569
    %v9571 = vpop.f32.mrb[0].mxu0
    %9572 = vmatprep.mubr.f32.mxu0 0.0
    %9573 = vmatmul.mubr.f32.gmra.mrb[0].mxu0 %v9492
    %v9574 = vpop.f32.mrb[0].mxu0
    %v9575 = vadd.f32 0.0, %v9574
    %v9576 = vpop.f32.mrb[0].mxu0
    %9577 = vmatprep.mubr.f32.mxu0 0.0
    %9578 = vmatmul.mubr.f32.gmra.mrb[0].mxu0 %v9493
    %v9579 = vpop.f32.mrb[0].mxu0
    %v9580 = vadd.f32 0.0, %v9579
    %v9581 = vpop.f32.mrb[0].mxu0
    %9582 = vdwg.mxu0
    %v9583 = vadd.f32 %v9439, %v9565
    %v9584 = vadd.f32 %v9444, %v9570
    %v9585 = vadd.f32 %v9449, %v9575
    %v9586 = vadd.f32 %v9454, %v9580
    %v9587 = vld [vmem:[%s9197] sm:$0xf]
    %v9588 = vld [vmem:[%s9197 + $0x8] sm:$0xf]
    %v9589 = vld [vmem:[%s9197 + $0x10] sm:$0xf]
    %v9590 = vld [vmem:[%s9197 + $0x18] sm:$0xf]
    %v9591 = vld [vmem:[%s9197 + $0x30] sm:$0xf]
    %v9592 = vld [vmem:[%s9197 + $0x38] sm:$0xf]
    %v9593 = vld [vmem:[%s9197 + $0x40] sm:$0xf]
    %v9594 = vld [vmem:[%s9197 + $0x48] sm:$0xf]
    %s9595 = scalar_lea.vmem %s5, 384
    %v9596 = vld [vmem:[%s9595] sm:$0xff]
    %v9597 = vld [vmem:[%s9595 + $0x8] sm:$0xff]
    %v9598 = vld [vmem:[%s9595 + $0x10] sm:$0xff]
    %v9599 = vld [vmem:[%s9595 + $0x18] sm:$0xff]
    %v9600 = vld [vmem:[%s9595 + $0x20] sm:$0xff]
    %v9601 = vld [vmem:[%s9595 + $0x28] sm:$0xff]
    %v9602 = vld [vmem:[%s9595 + $0x30] sm:$0xff]
    %v9603 = vld [vmem:[%s9595 + $0x38] sm:$0xff]
    %v9604 = vld [vmem:[%s9595 + $0x40] sm:$0xff]
    %v9605 = vld [vmem:[%s9595 + $0x48] sm:$0xff]
    %v9606 = vld [vmem:[%s9595 + $0x50] sm:$0xff]
    %v9607 = vld [vmem:[%s9595 + $0x58] sm:$0xff]
    %v9608 = vld [vmem:[%s9595 + $0x60] sm:$0xff]
    %v9609 = vld [vmem:[%s9595 + $0x68] sm:$0xff]
    %v9610 = vld [vmem:[%s9595 + $0x70] sm:$0xff]
    %v9611 = vld [vmem:[%s9595 + $0x78] sm:$0xff]
    %v9620 = vcombine.low %v9587, %v9588
    %v9621 = vcombine.low %v9589, %v9590
    %v9622 = vcombine.low %v9591, %v9592
    %v9623 = vcombine.low %v9593, %v9594
    %9628 = vmatprep.subr.mxu0 0.0
    %9629 = vmatpush1.msra.mxu0 %v9596
    %9630 = vmatprep.subr.mxu0 0.0
    %9631 = vmatpush1.msra.mxu0 %v9597
    %9632 = vmatprep.subr.mxu0 0.0
    %9633 = vmatpush1.msra.mxu0 %v9598
    %9634 = vmatprep.subr.mxu0 0.0
    %9635 = vmatpush1.msra.mxu0 %v9599
    %9636 = vmatprep.subr.mxu0 0.0
    %9637 = vmatpush1.msra.mxu0 %v9600
    %9638 = vmatprep.subr.mxu0 0.0
    %9639 = vmatpush1.msra.mxu0 %v9601
    %9640 = vmatprep.subr.mxu0 0.0
    %9641 = vmatpush1.msra.mxu0 %v9602
    %9642 = vmatprep.subr.mxu0 0.0
    %9643 = vmatpush1.msra.mxu0 %v9603
    %9644 = vmatprep.subr.mxu0 0.0
    %9645 = vmatpush1.msra.mxu0 %v9604
    %9646 = vmatprep.subr.mxu0 0.0
    %9647 = vmatpush1.msra.mxu0 %v9605
    %9648 = vmatprep.subr.mxu0 0.0
    %9649 = vmatpush1.msra.mxu0 %v9606
    %9650 = vmatprep.subr.mxu0 0.0
    %9651 = vmatpush1.msra.mxu0 %v9607
    %9652 = vmatprep.subr.mxu0 0.0
    %9653 = vmatpush1.msra.mxu0 %v9608
    %9654 = vmatprep.subr.mxu0 0.0
    %9655 = vmatpush1.msra.mxu0 %v9609
    %9656 = vmatprep.subr.mxu0 0.0
    %9657 = vmatpush1.msra.mxu0 %v9610
    %9658 = vmatprep.subr.mxu0 0.0
    %9659 = vmatpush1.msra.mxu0 %v9611
    %9660 = vmatprep.subr.mxu0 0.0
    %9661 = vmatpush1.msra.mxu0 0.0
    %9662 = vmatprep.subr.mxu0 0.0
    %9663 = vmatpush1.msra.mxu0 0.0
    %9664 = vmatprep.subr.mxu0 0.0
    %9665 = vmatpush1.msra.mxu0 0.0
    %9666 = vmatprep.subr.mxu0 0.0
    %9667 = vmatpush1.msra.mxu0 0.0
    %9668 = vmatprep.subr.mxu0 0.0
    %9669 = vmatpush1.msra.mxu0 0.0
    %9670 = vmatprep.subr.mxu0 0.0
    %9671 = vmatpush1.msra.mxu0 0.0
    %9672 = vmatprep.subr.mxu0 0.0
    %9673 = vmatpush1.msra.mxu0 0.0
    %9674 = vmatprep.subr.mxu0 0.0
    %9675 = vmatpush1.msra.mxu0 0.0
    %9676 = vmatprep.subr.mxu0 0.0
    %9677 = vmatpush1.msra.mxu0 0.0
    %9678 = vmatprep.subr.mxu0 0.0
    %9679 = vmatpush1.msra.mxu0 0.0
    %9680 = vmatprep.subr.mxu0 0.0
    %9681 = vmatpush1.msra.mxu0 0.0
    %9682 = vmatprep.subr.mxu0 0.0
    %9683 = vmatpush1.msra.mxu0 0.0
    %9684 = vmatprep.subr.mxu0 0.0
    %9685 = vmatpush1.msra.mxu0 0.0
    %9686 = vmatprep.subr.mxu0 0.0
    %9687 = vmatpush1.msra.mxu0 0.0
    %9688 = vmatprep.subr.mxu0 0.0
    %9689 = vmatpush1.msra.mxu0 0.0
    %9690 = vmatprep.subr.mxu0 0.0
    %9691 = vmatpush1.msra.mxu0 0.0
    %9692 = vmatprep.mubr.f32.mxu0 0.0
    %9693 = vmatmul.mubr.f32.gmra.mrb[0].mxu0 %v9620
    %v9694 = vpop.f32.mrb[0].mxu0
    %v9695 = vadd.f32 0.0, %v9694
    %v9696 = vpop.f32.mrb[0].mxu0
    %9697 = vmatprep.mubr.f32.mxu0 0.0
    %9698 = vmatmul.mubr.f32.gmra.mrb[0].mxu0 %v9621
    %v9699 = vpop.f32.mrb[0].mxu0
    %v9700 = vadd.f32 0.0, %v9699
    %v9701 = vpop.f32.mrb[0].mxu0
    %9702 = vmatprep.mubr.f32.mxu0 0.0
    %9703 = vmatmul.mubr.f32.gmra.mrb[0].mxu0 %v9622
    %v9704 = vpop.f32.mrb[0].mxu0
    %v9705 = vadd.f32 0.0, %v9704
    %v9706 = vpop.f32.mrb[0].mxu0
    %9707 = vmatprep.mubr.f32.mxu0 0.0
    %9708 = vmatmul.mubr.f32.gmra.mrb[0].mxu0 %v9623
    %v9709 = vpop.f32.mrb[0].mxu0
    %v9710 = vadd.f32 0.0, %v9709
    %v9711 = vpop.f32.mrb[0].mxu0
    %9712 = vdwg.mxu0
    %v9713 = vadd.f32 %v9583, %v9695
    %v9714 = vadd.f32 %v9584, %v9700
    %v9715 = vadd.f32 %v9585, %v9705
    %v9716 = vadd.f32 %v9586, %v9710
    %v9717 = vld [vmem:[%s9197 + $0x1] sm:$0xf]
    %v9718 = vld [vmem:[%s9197 + $0x9] sm:$0xf]
    %v9719 = vld [vmem:[%s9197 + $0x11] sm:$0xf]
    %v9720 = vld [vmem:[%s9197 + $0x19] sm:$0xf]
    %v9721 = vld [vmem:[%s9197 + $0x31] sm:$0xf]
    %v9722 = vld [vmem:[%s9197 + $0x39] sm:$0xf]
    %v9723 = vld [vmem:[%s9197 + $0x41] sm:$0xf]
    %v9724 = vld [vmem:[%s9197 + $0x49] sm:$0xf]
    %s9725 = scalar_lea.vmem %s5, 512
    %v9726 = vld [vmem:[%s9725] sm:$0xff]
    %v9727 = vld [vmem:[%s9725 + $0x8] sm:$0xff]
    %v9728 = vld [vmem:[%s9725 + $0x10] sm:$0xff]
    %v9729 = vld [vmem:[%s9725 + $0x18] sm:$0xff]
    %v9730 = vld [vmem:[%s9725 + $0x20] sm:$0xff]
    %v9731 = vld [vmem:[%s9725 + $0x28] sm:$0xff]
    %v9732 = vld [vmem:[%s9725 + $0x30] sm:$0xff]
    %v9733 = vld [vmem:[%s9725 + $0x38] sm:$0xff]
    %v9734 = vld [vmem:[%s9725 + $0x40] sm:$0xff]
    %v9735 = vld [vmem:[%s9725 + $0x48] sm:$0xff]
    %v9736 = vld [vmem:[%s9725 + $0x50] sm:$0xff]
    %v9737 = vld [vmem:[%s9725 + $0x58] sm:$0xff]
    %v9738 = vld [vmem:[%s9725 + $0x60] sm:$0xff]
    %v9739 = vld [vmem:[%s9725 + $0x68] sm:$0xff]
    %v9740 = vld [vmem:[%s9725 + $0x70] sm:$0xff]
    %v9741 = vld [vmem:[%s9725 + $0x78] sm:$0xff]
    %v9750 = vcombine.low %v9717, %v9718
    %v9751 = vcombine.low %v9719, %v9720
    %v9752 = vcombine.low %v9721, %v9722
    %v9753 = vcombine.low %v9723, %v9724
    %9758 = vmatprep.subr.mxu0 0.0
    %9759 = vmatpush1.msra.mxu0 %v9726
    %9760 = vmatprep.subr.mxu0 0.0
    %9761 = vmatpush1.msra.mxu0 %v9727
    %9762 = vmatprep.subr.mxu0 0.0
    %9763 = vmatpush1.msra.mxu0 %v9728
    %9764 = vmatprep.subr.mxu0 0.0
    %9765 = vmatpush1.msra.mxu0 %v9729
    %9766 = vmatprep.subr.mxu0 0.0
    %9767 = vmatpush1.msra.mxu0 %v9730
    %9768 = vmatprep.subr.mxu0 0.0
    %9769 = vmatpush1.msra.mxu0 %v9731
    %9770 = vmatprep.subr.mxu0 0.0
    %9771 = vmatpush1.msra.mxu0 %v9732
    %9772 = vmatprep.subr.mxu0 0.0
    %9773 = vmatpush1.msra.mxu0 %v9733
    %9774 = vmatprep.subr.mxu0 0.0
    %9775 = vmatpush1.msra.mxu0 %v9734
    %9776 = vmatprep.subr.mxu0 0.0
    %9777 = vmatpush1.msra.mxu0 %v9735
    %9778 = vmatprep.subr.mxu0 0.0
    %9779 = vmatpush1.msra.mxu0 %v9736
    %9780 = vmatprep.subr.mxu0 0.0
    %9781 = vmatpush1.msra.mxu0 %v9737
    %9782 = vmatprep.subr.mxu0 0.0
    %9783 = vmatpush1.msra.mxu0 %v9738
    %9784 = vmatprep.subr.mxu0 0.0
    %9785 = vmatpush1.msra.mxu0 %v9739
    %9786 = vmatprep.subr.mxu0 0.0
    %9787 = vmatpush1.msra.mxu0 %v9740
    %9788 = vmatprep.subr.mxu0 0.0
    %9789 = vmatpush1.msra.mxu0 %v9741
    %9790 = vmatprep.subr.mxu0 0.0
    %9791 = vmatpush1.msra.mxu0 0.0
    %9792 = vmatprep.subr.mxu0 0.0
    %9793 = vmatpush1.msra.mxu0 0.0
    %9794 = vmatprep.subr.mxu0 0.0
    %9795 = vmatpush1.msra.mxu0 0.0
    %9796 = vmatprep.subr.mxu0 0.0
    %9797 = vmatpush1.msra.mxu0 0.0
    %9798 = vmatprep.subr.mxu0 0.0
    %9799 = vmatpush1.msra.mxu0 0.0
    %9800 = vmatprep.subr.mxu0 0.0
    %9801 = vmatpush1.msra.mxu0 0.0
    %9802 = vmatprep.subr.mxu0 0.0
    %9803 = vmatpush1.msra.mxu0 0.0
    %9804 = vmatprep.subr.mxu0 0.0
    %9805 = vmatpush1.msra.mxu0 0.0
    %9806 = vmatprep.subr.mxu0 0.0
    %9807 = vmatpush1.msra.mxu0 0.0
    %9808 = vmatprep.subr.mxu0 0.0
    %9809 = vmatpush1.msra.mxu0 0.0
    %9810 = vmatprep.subr.mxu0 0.0
    %9811 = vmatpush1.msra.mxu0 0.0
    %9812 = vmatprep.subr.mxu0 0.0
    %9813 = vmatpush1.msra.mxu0 0.0
    %9814 = vmatprep.subr.mxu0 0.0
    %9815 = vmatpush1.msra.mxu0 0.0
    %9816 = vmatprep.subr.mxu0 0.0
    %9817 = vmatpush1.msra.mxu0 0.0
    %9818 = vmatprep.subr.mxu0 0.0
    %9819 = vmatpush1.msra.mxu0 0.0
    %9820 = vmatprep.subr.mxu0 0.0
    %9821 = vmatpush1.msra.mxu0 0.0
    %9822 = vmatprep.mubr.f32.mxu0 0.0
    %9823 = vmatmul.mubr.f32.gmra.mrb[0].mxu0 %v9750
    %v9824 = vpop.f32.mrb[0].mxu0
    %v9825 = vadd.f32 0.0, %v9824
    %v9826 = vpop.f32.mrb[0].mxu0
    %9827 = vmatprep.mubr.f32.mxu0 0.0
    %9828 = vmatmul.mubr.f32.gmra.mrb[0].mxu0 %v9751
    %v9829 = vpop.f32.mrb[0].mxu0
    %v9830 = vadd.f32 0.0, %v9829
    %v9831 = vpop.f32.mrb[0].mxu0
    %9832 = vmatprep.mubr.f32.mxu0 0.0
    %9833 = vmatmul.mubr.f32.gmra.mrb[0].mxu0 %v9752
    %v9834 = vpop.f32.mrb[0].mxu0
    %v9835 = vadd.f32 0.0, %v9834
    %v9836 = vpop.f32.mrb[0].mxu0
    %9837 = vmatprep.mubr.f32.mxu0 0.0
    %9838 = vmatmul.mubr.f32.gmra.mrb[0].mxu0 %v9753
    %v9839 = vpop.f32.mrb[0].mxu0
    %v9840 = vadd.f32 0.0, %v9839
    %v9841 = vpop.f32.mrb[0].mxu0
    %9842 = vdwg.mxu0
    %v9843 = vadd.f32 %v9713, %v9825
    %v9844 = vadd.f32 %v9714, %v9830
    %v9845 = vadd.f32 %v9715, %v9835
    %v9846 = vadd.f32 %v9716, %v9840
    %v9847 = vld [vmem:[%s9197 + $0x2] sm:$0xf]
    %v9848 = vld [vmem:[%s9197 + $0xa] sm:$0xf]
    %v9849 = vld [vmem:[%s9197 + $0x12] sm:$0xf]
    %v9850 = vld [vmem:[%s9197 + $0x1a] sm:$0xf]
    %v9851 = vld [vmem:[%s9197 + $0x32] sm:$0xf]
    %v9852 = vld [vmem:[%s9197 + $0x3a] sm:$0xf]
    %v9853 = vld [vmem:[%s9197 + $0x42] sm:$0xf]
    %v9854 = vld [vmem:[%s9197 + $0x4a] sm:$0xf]
    %s9855 = scalar_lea.vmem %s5, 640
    %v9856 = vld [vmem:[%s9855] sm:$0xff]
    %v9857 = vld [vmem:[%s9855 + $0x8] sm:$0xff]
    %v9858 = vld [vmem:[%s9855 + $0x10] sm:$0xff]
    %v9859 = vld [vmem:[%s9855 + $0x18] sm:$0xff]
    %v9860 = vld [vmem:[%s9855 + $0x20] sm:$0xff]
    %v9861 = vld [vmem:[%s9855 + $0x28] sm:$0xff]
    %v9862 = vld [vmem:[%s9855 + $0x30] sm:$0xff]
    %v9863 = vld [vmem:[%s9855 + $0x38] sm:$0xff]
    %v9864 = vld [vmem:[%s9855 + $0x40] sm:$0xff]
    %v9865 = vld [vmem:[%s9855 + $0x48] sm:$0xff]
    %v9866 = vld [vmem:[%s9855 + $0x50] sm:$0xff]
    %v9867 = vld [vmem:[%s9855 + $0x58] sm:$0xff]
    %v9868 = vld [vmem:[%s9855 + $0x60] sm:$0xff]
    %v9869 = vld [vmem:[%s9855 + $0x68] sm:$0xff]
    %v9870 = vld [vmem:[%s9855 + $0x70] sm:$0xff]
    %v9871 = vld [vmem:[%s9855 + $0x78] sm:$0xff]
    %v9880 = vcombine.low %v9847, %v9848
    %v9881 = vcombine.low %v9849, %v9850
    %v9882 = vcombine.low %v9851, %v9852
    %v9883 = vcombine.low %v9853, %v9854
    %9888 = vmatprep.subr.mxu0 0.0
    %9889 = vmatpush1.msra.mxu0 %v9856
    %9890 = vmatprep.subr.mxu0 0.0
    %9891 = vmatpush1.msra.mxu0 %v9857
    %9892 = vmatprep.subr.mxu0 0.0
    %9893 = vmatpush1.msra.mxu0 %v9858
    %9894 = vmatprep.subr.mxu0 0.0
    %9895 = vmatpush1.msra.mxu0 %v9859
    %9896 = vmatprep.subr.mxu0 0.0
    %9897 = vmatpush1.msra.mxu0 %v9860
    %9898 = vmatprep.subr.mxu0 0.0
    %9899 = vmatpush1.msra.mxu0 %v9861
    %9900 = vmatprep.subr.mxu0 0.0
    %9901 = vmatpush1.msra.mxu0 %v9862
    %9902 = vmatprep.subr.mxu0 0.0
    %9903 = vmatpush1.msra.mxu0 %v9863
    %9904 = vmatprep.subr.mxu0 0.0
    %9905 = vmatpush1.msra.mxu0 %v9864
    %9906 = vmatprep.subr.mxu0 0.0
    %9907 = vmatpush1.msra.mxu0 %v9865
    %9908 = vmatprep.subr.mxu0 0.0
    %9909 = vmatpush1.msra.mxu0 %v9866
    %9910 = vmatprep.subr.mxu0 0.0
    %9911 = vmatpush1.msra.mxu0 %v9867
    %9912 = vmatprep.subr.mxu0 0.0
    %9913 = vmatpush1.msra.mxu0 %v9868
    %9914 = vmatprep.subr.mxu0 0.0
    %9915 = vmatpush1.msra.mxu0 %v9869
    %9916 = vmatprep.subr.mxu0 0.0
    %9917 = vmatpush1.msra.mxu0 %v9870
    %9918 = vmatprep.subr.mxu0 0.0
    %9919 = vmatpush1.msra.mxu0 %v9871
    %9920 = vmatprep.subr.mxu0 0.0
    %9921 = vmatpush1.msra.mxu0 0.0
    %9922 = vmatprep.subr.mxu0 0.0
    %9923 = vmatpush1.msra.mxu0 0.0
    %9924 = vmatprep.subr.mxu0 0.0
    %9925 = vmatpush1.msra.mxu0 0.0
    %9926 = vmatprep.subr.mxu0 0.0
    %9927 = vmatpush1.msra.mxu0 0.0
    %9928 = vmatprep.subr.mxu0 0.0
    %9929 = vmatpush1.msra.mxu0 0.0
    %9930 = vmatprep.subr.mxu0 0.0
    %9931 = vmatpush1.msra.mxu0 0.0
    %9932 = vmatprep.subr.mxu0 0.0
    %9933 = vmatpush1.msra.mxu0 0.0
    %9934 = vmatprep.subr.mxu0 0.0
    %9935 = vmatpush1.msra.mxu0 0.0
    %9936 = vmatprep.subr.mxu0 0.0
    %9937 = vmatpush1.msra.mxu0 0.0
    %9938 = vmatprep.subr.mxu0 0.0
    %9939 = vmatpush1.msra.mxu0 0.0
    %9940 = vmatprep.subr.mxu0 0.0
    %9941 = vmatpush1.msra.mxu0 0.0
    %9942 = vmatprep.subr.mxu0 0.0
    %9943 = vmatpush1.msra.mxu0 0.0
    %9944 = vmatprep.subr.mxu0 0.0
    %9945 = vmatpush1.msra.mxu0 0.0
    %9946 = vmatprep.subr.mxu0 0.0
    %9947 = vmatpush1.msra.mxu0 0.0
    %9948 = vmatprep.subr.mxu0 0.0
    %9949 = vmatpush1.msra.mxu0 0.0
    %9950 = vmatprep.subr.mxu0 0.0
    %9951 = vmatpush1.msra.mxu0 0.0
    %9952 = vmatprep.mubr.f32.mxu0 0.0
    %9953 = vmatmul.mubr.f32.gmra.mrb[0].mxu0 %v9880
    %v9954 = vpop.f32.mrb[0].mxu0
    %v9955 = vadd.f32 0.0, %v9954
    %v9956 = vpop.f32.mrb[0].mxu0
    %9957 = vmatprep.mubr.f32.mxu0 0.0
    %9958 = vmatmul.mubr.f32.gmra.mrb[0].mxu0 %v9881
    %v9959 = vpop.f32.mrb[0].mxu0
    %v9960 = vadd.f32 0.0, %v9959
    %v9961 = vpop.f32.mrb[0].mxu0
    %9962 = vmatprep.mubr.f32.mxu0 0.0
    %9963 = vmatmul.mubr.f32.gmra.mrb[0].mxu0 %v9882
    %v9964 = vpop.f32.mrb[0].mxu0
    %v9965 = vadd.f32 0.0, %v9964
    %v9966 = vpop.f32.mrb[0].mxu0
    %9967 = vmatprep.mubr.f32.mxu0 0.0
    %9968 = vmatmul.mubr.f32.gmra.mrb[0].mxu0 %v9883
    %v9969 = vpop.f32.mrb[0].mxu0
    %v9970 = vadd.f32 0.0, %v9969
    %v9971 = vpop.f32.mrb[0].mxu0
    %9972 = vdwg.mxu0
    %v9973 = vadd.f32 %v9843, %v9955
    %v9974 = vadd.f32 %v9844, %v9960
    %v9975 = vadd.f32 %v9845, %v9965
    %v9976 = vadd.f32 %v9846, %v9970
    %s9977 = scalar_lea.vmem [#allocation3], 16
    %v9978 = vld [vmem:[%s9977] sm:$0xf]
    %v9979 = vld [vmem:[%s9977 + $0x8] sm:$0xf]
    %v9980 = vld [vmem:[%s9977 + $0x10] sm:$0xf]
    %v9981 = vld [vmem:[%s9977 + $0x18] sm:$0xf]
    %v9982 = vld [vmem:[%s9977 + $0x30] sm:$0xf]
    %v9983 = vld [vmem:[%s9977 + $0x38] sm:$0xf]
    %v9984 = vld [vmem:[%s9977 + $0x40] sm:$0xf]
    %v9985 = vld [vmem:[%s9977 + $0x48] sm:$0xf]
    %s9986 = scalar_lea.vmem %s5, 768
    %v9987 = vld [vmem:[%s9986] sm:$0xff]
    %v9988 = vld [vmem:[%s9986 + $0x8] sm:$0xff]
    %v9989 = vld [vmem:[%s9986 + $0x10] sm:$0xff]
    %v9990 = vld [vmem:[%s9986 + $0x18] sm:$0xff]
    %v9991 = vld [vmem:[%s9986 + $0x20] sm:$0xff]
    %v9992 = vld [vmem:[%s9986 + $0x28] sm:$0xff]
    %v9993 = vld [vmem:[%s9986 + $0x30] sm:$0xff]
    %v9994 = vld [vmem:[%s9986 + $0x38] sm:$0xff]
    %v9995 = vld [vmem:[%s9986 + $0x40] sm:$0xff]
    %v9996 = vld [vmem:[%s9986 + $0x48] sm:$0xff]
    %v9997 = vld [vmem:[%s9986 + $0x50] sm:$0xff]
    %v9998 = vld [vmem:[%s9986 + $0x58] sm:$0xff]
    %v9999 = vld [vmem:[%s9986 + $0x60] sm:$0xff]
    %v10000 = vld [vmem:[%s9986 + $0x68] sm:$0xff]
    %v10001 = vld [vmem:[%s9986 + $0x70] sm:$0xff]
    %v10002 = vld [vmem:[%s9986 + $0x78] sm:$0xff]
    %v10011 = vcombine.low %v9978, %v9979
    %v10012 = vcombine.low %v9980, %v9981
    %v10013 = vcombine.low %v9982, %v9983
    %v10014 = vcombine.low %v9984, %v9985
    %10019 = vmatprep.subr.mxu0 0.0
    %10020 = vmatpush1.msra.mxu0 %v9987
    %10021 = vmatprep.subr.mxu0 0.0
    %10022 = vmatpush1.msra.mxu0 %v9988
    %10023 = vmatprep.subr.mxu0 0.0
    %10024 = vmatpush1.msra.mxu0 %v9989
    %10025 = vmatprep.subr.mxu0 0.0
    %10026 = vmatpush1.msra.mxu0 %v9990
    %10027 = vmatprep.subr.mxu0 0.0
    %10028 = vmatpush1.msra.mxu0 %v9991
    %10029 = vmatprep.subr.mxu0 0.0
    %10030 = vmatpush1.msra.mxu0 %v9992
    %10031 = vmatprep.subr.mxu0 0.0
    %10032 = vmatpush1.msra.mxu0 %v9993
    %10033 = vmatprep.subr.mxu0 0.0
    %10034 = vmatpush1.msra.mxu0 %v9994
    %10035 = vmatprep.subr.mxu0 0.0
    %10036 = vmatpush1.msra.mxu0 %v9995
    %10037 = vmatprep.subr.mxu0 0.0
    %10038 = vmatpush1.msra.mxu0 %v9996
    %10039 = vmatprep.subr.mxu0 0.0
    %10040 = vmatpush1.msra.mxu0 %v9997
    %10041 = vmatprep.subr.mxu0 0.0
    %10042 = vmatpush1.msra.mxu0 %v9998
    %10043 = vmatprep.subr.mxu0 0.0
    %10044 = vmatpush1.msra.mxu0 %v9999
    %10045 = vmatprep.subr.mxu0 0.0
    %10046 = vmatpush1.msra.mxu0 %v10000
    %10047 = vmatprep.subr.mxu0 0.0
    %10048 = vmatpush1.msra.mxu0 %v10001
    %10049 = vmatprep.subr.mxu0 0.0
    %10050 = vmatpush1.msra.mxu0 %v10002
    %10051 = vmatprep.subr.mxu0 0.0
    %10052 = vmatpush1.msra.mxu0 0.0
    %10053 = vmatprep.subr.mxu0 0.0
    %10054 = vmatpush1.msra.mxu0 0.0
    %10055 = vmatprep.subr.mxu0 0.0
    %10056 = vmatpush1.msra.mxu0 0.0
    %10057 = vmatprep.subr.mxu0 0.0
    %10058 = vmatpush1.msra.mxu0 0.0
    %10059 = vmatprep.subr.mxu0 0.0
    %10060 = vmatpush1.msra.mxu0 0.0
    %10061 = vmatprep.subr.mxu0 0.0
    %10062 = vmatpush1.msra.mxu0 0.0
    %10063 = vmatprep.subr.mxu0 0.0
    %10064 = vmatpush1.msra.mxu0 0.0
    %10065 = vmatprep.subr.mxu0 0.0
    %10066 = vmatpush1.msra.mxu0 0.0
    %10067 = vmatprep.subr.mxu0 0.0
    %10068 = vmatpush1.msra.mxu0 0.0
    %10069 = vmatprep.subr.mxu0 0.0
    %10070 = vmatpush1.msra.mxu0 0.0
    %10071 = vmatprep.subr.mxu0 0.0
    %10072 = vmatpush1.msra.mxu0 0.0
    %10073 = vmatprep.subr.mxu0 0.0
    %10074 = vmatpush1.msra.mxu0 0.0
    %10075 = vmatprep.subr.mxu0 0.0
    %10076 = vmatpush1.msra.mxu0 0.0
    %10077 = vmatprep.subr.mxu0 0.0
    %10078 = vmatpush1.msra.mxu0 0.0
    %10079 = vmatprep.subr.mxu0 0.0
    %10080 = vmatpush1.msra.mxu0 0.0
    %10081 = vmatprep.subr.mxu0 0.0
    %10082 = vmatpush1.msra.mxu0 0.0
    %10083 = vmatprep.mubr.f32.mxu0 0.0
    %10084 = vmatmul.mubr.f32.gmra.mrb[0].mxu0 %v10011
    %v10085 = vpop.f32.mrb[0].mxu0
    %v10086 = vadd.f32 0.0, %v10085
    %v10087 = vpop.f32.mrb[0].mxu0
    %10088 = vmatprep.mubr.f32.mxu0 0.0
    %10089 = vmatmul.mubr.f32.gmra.mrb[0].mxu0 %v10012
    %v10090 = vpop.f32.mrb[0].mxu0
    %v10091 = vadd.f32 0.0, %v10090
    %v10092 = vpop.f32.mrb[0].mxu0
    %10093 = vmatprep.mubr.f32.mxu0 0.0
    %10094 = vmatmul.mubr.f32.gmra.mrb[0].mxu0 %v10013
    %v10095 = vpop.f32.mrb[0].mxu0
    %v10096 = vadd.f32 0.0, %v10095
    %v10097 = vpop.f32.mrb[0].mxu0
    %10098 = vmatprep.mubr.f32.mxu0 0.0
    %10099 = vmatmul.mubr.f32.gmra.mrb[0].mxu0 %v10014
    %v10100 = vpop.f32.mrb[0].mxu0
    %v10101 = vadd.f32 0.0, %v10100
    %v10102 = vpop.f32.mrb[0].mxu0
    %10103 = vdwg.mxu0
    %v10104 = vadd.f32 %v9973, %v10086
    %v10105 = vadd.f32 %v9974, %v10091
    %v10106 = vadd.f32 %v9975, %v10096
    %v10107 = vadd.f32 %v9976, %v10101
    %v10108 = vld [vmem:[%s9977 + $0x1] sm:$0xf]
    %v10109 = vld [vmem:[%s9977 + $0x9] sm:$0xf]
    %v10110 = vld [vmem:[%s9977 + $0x11] sm:$0xf]
    %v10111 = vld [vmem:[%s9977 + $0x19] sm:$0xf]
    %v10112 = vld [vmem:[%s9977 + $0x31] sm:$0xf]
    %v10113 = vld [vmem:[%s9977 + $0x39] sm:$0xf]
    %v10114 = vld [vmem:[%s9977 + $0x41] sm:$0xf]
    %v10115 = vld [vmem:[%s9977 + $0x49] sm:$0xf]
    %s10116 = scalar_lea.vmem %s5, 896
    %v10117 = vld [vmem:[%s10116] sm:$0xff]
    %v10118 = vld [vmem:[%s10116 + $0x8] sm:$0xff]
    %v10119 = vld [vmem:[%s10116 + $0x10] sm:$0xff]
    %v10120 = vld [vmem:[%s10116 + $0x18] sm:$0xff]
    %v10121 = vld [vmem:[%s10116 + $0x20] sm:$0xff]
    %v10122 = vld [vmem:[%s10116 + $0x28] sm:$0xff]
    %v10123 = vld [vmem:[%s10116 + $0x30] sm:$0xff]
    %v10124 = vld [vmem:[%s10116 + $0x38] sm:$0xff]
    %v10125 = vld [vmem:[%s10116 + $0x40] sm:$0xff]
    %v10126 = vld [vmem:[%s10116 + $0x48] sm:$0xff]
    %v10127 = vld [vmem:[%s10116 + $0x50] sm:$0xff]
    %v10128 = vld [vmem:[%s10116 + $0x58] sm:$0xff]
    %v10129 = vld [vmem:[%s10116 + $0x60] sm:$0xff]
    %v10130 = vld [vmem:[%s10116 + $0x68] sm:$0xff]
    %v10131 = vld [vmem:[%s10116 + $0x70] sm:$0xff]
    %v10132 = vld [vmem:[%s10116 + $0x78] sm:$0xff]
    %v10141 = vcombine.low %v10108, %v10109
    %v10142 = vcombine.low %v10110, %v10111
    %v10143 = vcombine.low %v10112, %v10113
    %v10144 = vcombine.low %v10114, %v10115
    %10149 = vmatprep.subr.mxu0 0.0
    %10150 = vmatpush1.msra.mxu0 %v10117
    %10151 = vmatprep.subr.mxu0 0.0
    %10152 = vmatpush1.msra.mxu0 %v10118
    %10153 = vmatprep.subr.mxu0 0.0
    %10154 = vmatpush1.msra.mxu0 %v10119
    %10155 = vmatprep.subr.mxu0 0.0
    %10156 = vmatpush1.msra.mxu0 %v10120
    %10157 = vmatprep.subr.mxu0 0.0
    %10158 = vmatpush1.msra.mxu0 %v10121
    %10159 = vmatprep.subr.mxu0 0.0
    %10160 = vmatpush1.msra.mxu0 %v10122
    %10161 = vmatprep.subr.mxu0 0.0
    %10162 = vmatpush1.msra.mxu0 %v10123
    %10163 = vmatprep.subr.mxu0 0.0
    %10164 = vmatpush1.msra.mxu0 %v10124
    %10165 = vmatprep.subr.mxu0 0.0
    %10166 = vmatpush1.msra.mxu0 %v10125
    %10167 = vmatprep.subr.mxu0 0.0
    %10168 = vmatpush1.msra.mxu0 %v10126
    %10169 = vmatprep.subr.mxu0 0.0
    %10170 = vmatpush1.msra.mxu0 %v10127
    %10171 = vmatprep.subr.mxu0 0.0
    %10172 = vmatpush1.msra.mxu0 %v10128
    %10173 = vmatprep.subr.mxu0 0.0
    %10174 = vmatpush1.msra.mxu0 %v10129
    %10175 = vmatprep.subr.mxu0 0.0
    %10176 = vmatpush1.msra.mxu0 %v10130
    %10177 = vmatprep.subr.mxu0 0.0
    %10178 = vmatpush1.msra.mxu0 %v10131
    %10179 = vmatprep.subr.mxu0 0.0
    %10180 = vmatpush1.msra.mxu0 %v10132
    %10181 = vmatprep.subr.mxu0 0.0
    %10182 = vmatpush1.msra.mxu0 0.0
    %10183 = vmatprep.subr.mxu0 0.0
    %10184 = vmatpush1.msra.mxu0 0.0
    %10185 = vmatprep.subr.mxu0 0.0
    %10186 = vmatpush1.msra.mxu0 0.0
    %10187 = vmatprep.subr.mxu0 0.0
    %10188 = vmatpush1.msra.mxu0 0.0
    %10189 = vmatprep.subr.mxu0 0.0
    %10190 = vmatpush1.msra.mxu0 0.0
    %10191 = vmatprep.subr.mxu0 0.0
    %10192 = vmatpush1.msra.mxu0 0.0
    %10193 = vmatprep.subr.mxu0 0.0
    %10194 = vmatpush1.msra.mxu0 0.0
    %10195 = vmatprep.subr.mxu0 0.0
    %10196 = vmatpush1.msra.mxu0 0.0
    %10197 = vmatprep.subr.mxu0 0.0
    %10198 = vmatpush1.msra.mxu0 0.0
    %10199 = vmatprep.subr.mxu0 0.0
    %10200 = vmatpush1.msra.mxu0 0.0
    %10201 = vmatprep.subr.mxu0 0.0
    %10202 = vmatpush1.msra.mxu0 0.0
    %10203 = vmatprep.subr.mxu0 0.0
    %10204 = vmatpush1.msra.mxu0 0.0
    %10205 = vmatprep.subr.mxu0 0.0
    %10206 = vmatpush1.msra.mxu0 0.0
    %10207 = vmatprep.subr.mxu0 0.0
    %10208 = vmatpush1.msra.mxu0 0.0
    %10209 = vmatprep.subr.mxu0 0.0
    %10210 = vmatpush1.msra.mxu0 0.0
    %10211 = vmatprep.subr.mxu0 0.0
    %10212 = vmatpush1.msra.mxu0 0.0
    %10213 = vmatprep.mubr.f32.mxu0 0.0
    %10214 = vmatmul.mubr.f32.gmra.mrb[0].mxu0 %v10141
    %v10215 = vpop.f32.mrb[0].mxu0
    %v10216 = vadd.f32 0.0, %v10215
    %v10217 = vpop.f32.mrb[0].mxu0
    %10218 = vmatprep.mubr.f32.mxu0 0.0
    %10219 = vmatmul.mubr.f32.gmra.mrb[0].mxu0 %v10142
    %v10220 = vpop.f32.mrb[0].mxu0
    %v10221 = vadd.f32 0.0, %v10220
    %v10222 = vpop.f32.mrb[0].mxu0
    %10223 = vmatprep.mubr.f32.mxu0 0.0
    %10224 = vmatmul.mubr.f32.gmra.mrb[0].mxu0 %v10143
    %v10225 = vpop.f32.mrb[0].mxu0
    %v10226 = vadd.f32 0.0, %v10225
    %v10227 = vpop.f32.mrb[0].mxu0
    %10228 = vmatprep.mubr.f32.mxu0 0.0
    %10229 = vmatmul.mubr.f32.gmra.mrb[0].mxu0 %v10144
    %v10230 = vpop.f32.mrb[0].mxu0
    %v10231 = vadd.f32 0.0, %v10230
    %v10232 = vpop.f32.mrb[0].mxu0
    %10233 = vdwg.mxu0
    %v10234 = vadd.f32 %v10104, %v10216
    %v10235 = vadd.f32 %v10105, %v10221
    %v10236 = vadd.f32 %v10106, %v10226
    %v10237 = vadd.f32 %v10107, %v10231
    %v10238 = vld [vmem:[%s9977 + $0x2] sm:$0xf]
    %v10239 = vld [vmem:[%s9977 + $0xa] sm:$0xf]
    %v10240 = vld [vmem:[%s9977 + $0x12] sm:$0xf]
    %v10241 = vld [vmem:[%s9977 + $0x1a] sm:$0xf]
    %v10242 = vld [vmem:[%s9977 + $0x32] sm:$0xf]
    %v10243 = vld [vmem:[%s9977 + $0x3a] sm:$0xf]
    %v10244 = vld [vmem:[%s9977 + $0x42] sm:$0xf]
    %v10245 = vld [vmem:[%s9977 + $0x4a] sm:$0xf]
    %s10246 = scalar_lea.vmem %s5, 1024
    %v10247 = vld [vmem:[%s10246] sm:$0xff]
    %v10248 = vld [vmem:[%s10246 + $0x8] sm:$0xff]
    %v10249 = vld [vmem:[%s10246 + $0x10] sm:$0xff]
    %v10250 = vld [vmem:[%s10246 + $0x18] sm:$0xff]
    %v10251 = vld [vmem:[%s10246 + $0x20] sm:$0xff]
    %v10252 = vld [vmem:[%s10246 + $0x28] sm:$0xff]
    %v10253 = vld [vmem:[%s10246 + $0x30] sm:$0xff]
    %v10254 = vld [vmem:[%s10246 + $0x38] sm:$0xff]
    %v10255 = vld [vmem:[%s10246 + $0x40] sm:$0xff]
    %v10256 = vld [vmem:[%s10246 + $0x48] sm:$0xff]
    %v10257 = vld [vmem:[%s10246 + $0x50] sm:$0xff]
    %v10258 = vld [vmem:[%s10246 + $0x58] sm:$0xff]
    %v10259 = vld [vmem:[%s10246 + $0x60] sm:$0xff]
    %v10260 = vld [vmem:[%s10246 + $0x68] sm:$0xff]
    %v10261 = vld [vmem:[%s10246 + $0x70] sm:$0xff]
    %v10262 = vld [vmem:[%s10246 + $0x78] sm:$0xff]
    %v10271 = vcombine.low %v10238, %v10239
    %v10272 = vcombine.low %v10240, %v10241
    %v10273 = vcombine.low %v10242, %v10243
    %v10274 = vcombine.low %v10244, %v10245
    %10279 = vmatprep.subr.mxu0 0.0
    %10280 = vmatpush1.msra.mxu0 %v10247
    %10281 = vmatprep.subr.mxu0 0.0
    %10282 = vmatpush1.msra.mxu0 %v10248
    %10283 = vmatprep.subr.mxu0 0.0
    %10284 = vmatpush1.msra.mxu0 %v10249
    %10285 = vmatprep.subr.mxu0 0.0
    %10286 = vmatpush1.msra.mxu0 %v10250
    %10287 = vmatprep.subr.mxu0 0.0
    %10288 = vmatpush1.msra.mxu0 %v10251
    %10289 = vmatprep.subr.mxu0 0.0
    %10290 = vmatpush1.msra.mxu0 %v10252
    %10291 = vmatprep.subr.mxu0 0.0
    %10292 = vmatpush1.msra.mxu0 %v10253
    %10293 = vmatprep.subr.mxu0 0.0
    %10294 = vmatpush1.msra.mxu0 %v10254
    %10295 = vmatprep.subr.mxu0 0.0
    %10296 = vmatpush1.msra.mxu0 %v10255
    %10297 = vmatprep.subr.mxu0 0.0
    %10298 = vmatpush1.msra.mxu0 %v10256
    %10299 = vmatprep.subr.mxu0 0.0
    %10300 = vmatpush1.msra.mxu0 %v10257
    %10301 = vmatprep.subr.mxu0 0.0
    %10302 = vmatpush1.msra.mxu0 %v10258
    %10303 = vmatprep.subr.mxu0 0.0
    %10304 = vmatpush1.msra.mxu0 %v10259
    %10305 = vmatprep.subr.mxu0 0.0
    %10306 = vmatpush1.msra.mxu0 %v10260
    %10307 = vmatprep.subr.mxu0 0.0
    %10308 = vmatpush1.msra.mxu0 %v10261
    %10309 = vmatprep.subr.mxu0 0.0
    %10310 = vmatpush1.msra.mxu0 %v10262
    %10311 = vmatprep.subr.mxu0 0.0
    %10312 = vmatpush1.msra.mxu0 0.0
    %10313 = vmatprep.subr.mxu0 0.0
    %10314 = vmatpush1.msra.mxu0 0.0
    %10315 = vmatprep.subr.mxu0 0.0
    %10316 = vmatpush1.msra.mxu0 0.0
    %10317 = vmatprep.subr.mxu0 0.0
    %10318 = vmatpush1.msra.mxu0 0.0
    %10319 = vmatprep.subr.mxu0 0.0
    %10320 = vmatpush1.msra.mxu0 0.0
    %10321 = vmatprep.subr.mxu0 0.0
    %10322 = vmatpush1.msra.mxu0 0.0
    %10323 = vmatprep.subr.mxu0 0.0
    %10324 = vmatpush1.msra.mxu0 0.0
    %10325 = vmatprep.subr.mxu0 0.0
    %10326 = vmatpush1.msra.mxu0 0.0
    %10327 = vmatprep.subr.mxu0 0.0
    %10328 = vmatpush1.msra.mxu0 0.0
    %10329 = vmatprep.subr.mxu0 0.0
    %10330 = vmatpush1.msra.mxu0 0.0
    %10331 = vmatprep.subr.mxu0 0.0
    %10332 = vmatpush1.msra.mxu0 0.0
    %10333 = vmatprep.subr.mxu0 0.0
    %10334 = vmatpush1.msra.mxu0 0.0
    %10335 = vmatprep.subr.mxu0 0.0
    %10336 = vmatpush1.msra.mxu0 0.0
    %10337 = vmatprep.subr.mxu0 0.0
    %10338 = vmatpush1.msra.mxu0 0.0
    %10339 = vmatprep.subr.mxu0 0.0
    %10340 = vmatpush1.msra.mxu0 0.0
    %10341 = vmatprep.subr.mxu0 0.0
    %10342 = vmatpush1.msra.mxu0 0.0
    %10343 = vmatprep.mubr.f32.mxu0 0.0
    %10344 = vmatmul.mubr.f32.gmra.mrb[0].mxu0 %v10271
    %v10345 = vpop.f32.mrb[0].mxu0
    %v10346 = vadd.f32 0.0, %v10345
    %v10347 = vpop.f32.mrb[0].mxu0
    %10348 = vmatprep.mubr.f32.mxu0 0.0
    %10349 = vmatmul.mubr.f32.gmra.mrb[0].mxu0 %v10272
    %v10350 = vpop.f32.mrb[0].mxu0
    %v10351 = vadd.f32 0.0, %v10350
    %v10352 = vpop.f32.mrb[0].mxu0
    %10353 = vmatprep.mubr.f32.mxu0 0.0
    %10354 = vmatmul.mubr.f32.gmra.mrb[0].mxu0 %v10273
    %v10355 = vpop.f32.mrb[0].mxu0
    %v10356 = vadd.f32 0.0, %v10355
    %v10357 = vpop.f32.mrb[0].mxu0
    %10358 = vmatprep.mubr.f32.mxu0 0.0
    %10359 = vmatmul.mubr.f32.gmra.mrb[0].mxu0 %v10274
    %v10360 = vpop.f32.mrb[0].mxu0
    %v10361 = vadd.f32 0.0, %v10360
    %v10362 = vpop.f32.mrb[0].mxu0
    %10363 = vdwg.mxu0
    %v10364 = vadd.f32 %v10234, %v10346
    %v10365 = vadd.f32 %v10235, %v10351
    %v10366 = vadd.f32 %v10236, %v10356
    %v10367 = vadd.f32 %v10237, %v10361
    %v10368 = vld [vmem:[%s6] sm:$0x1]
    %v10370 = vlaneseq
    %v10371 = vshrl.u32 %v10370, 7
    %v10372 = vsub.s32 0, %v10371
    %v10373 = vrot.slane %v10368, %v10372
    %v10375 = vadd.f32 %v10364, %v10373
    %v10376 = vadd.f32 %v10365, %v10373
    %v10377 = vadd.f32 %v10366, %v10373
    %v10378 = vadd.f32 %v10367, %v10373
    %v10379 = vmax.f32 %v10375, 0.0
    %v10380 = vmax.f32 %v10376, 0.0
    %v10381 = vmax.f32 %v10377, 0.0
    %v10382 = vmax.f32 %v10378, 0.0
    %v10387 = vcombine.high %v10379, %v10379
    %v10389 = vunpack.c.l.s4 1983009808
    %v10390 = vunpack.c.0.s8 %v10389
    %v10391 = vlaneseq
    %v10392 = vshrl.u32 %v10391, 7
    %v10393 = vsub.s32 %v10390, %v10392
    %v10394 = vrot.slane %v10379, %v10393
    %v10396 = vunpack.c.l.s4 1983009808
    %v10397 = vunpack.c.0.s8 %v10396
    %v10398 = vlaneseq
    %v10399 = vshrl.u32 %v10398, 7
    %v10400 = vsub.s32 %v10397, %v10399
    %v10401 = vrot.slane %v10387, %v10400
    %v10402 = vcombine.high %v10394, %v10394
    %v10403 = vcombine.high %v10401, %v10401
    %v10404 = vcombine.high %v10380, %v10380
    %v10406 = vunpack.c.l.s4 1983009808
    %v10407 = vunpack.c.0.s8 %v10406
    %v10408 = vlaneseq
    %v10409 = vshrl.u32 %v10408, 7
    %v10410 = vsub.s32 %v10407, %v10409
    %v10411 = vrot.slane %v10380, %v10410
    %v10413 = vunpack.c.l.s4 1983009808
    %v10414 = vunpack.c.0.s8 %v10413
    %v10415 = vlaneseq
    %v10416 = vshrl.u32 %v10415, 7
    %v10417 = vsub.s32 %v10414, %v10416
    %v10418 = vrot.slane %v10404, %v10417
    %v10419 = vcombine.high %v10411, %v10411
    %v10420 = vcombine.high %v10418, %v10418
    %v10421 = vcombine.high %v10381, %v10381
    %v10423 = vunpack.c.l.s4 1983009808
    %v10424 = vunpack.c.0.s8 %v10423
    %v10425 = vlaneseq
    %v10426 = vshrl.u32 %v10425, 7
    %v10427 = vsub.s32 %v10424, %v10426
    %v10428 = vrot.slane %v10381, %v10427
    %v10430 = vunpack.c.l.s4 1983009808
    %v10431 = vunpack.c.0.s8 %v10430
    %v10432 = vlaneseq
    %v10433 = vshrl.u32 %v10432, 7
    %v10434 = vsub.s32 %v10431, %v10433
    %v10435 = vrot.slane %v10421, %v10434
    %v10436 = vcombine.high %v10428, %v10428
    %v10437 = vcombine.high %v10435, %v10435
    %v10438 = vcombine.high %v10382, %v10382
    %v10440 = vunpack.c.l.s4 1983009808
    %v10441 = vunpack.c.0.s8 %v10440
    %v10442 = vlaneseq
    %v10443 = vshrl.u32 %v10442, 7
    %v10444 = vsub.s32 %v10441, %v10443
    %v10445 = vrot.slane %v10382, %v10444
    %v10447 = vunpack.c.l.s4 1983009808
    %v10448 = vunpack.c.0.s8 %v10447
    %v10449 = vlaneseq
    %v10450 = vshrl.u32 %v10449, 7
    %v10451 = vsub.s32 %v10448, %v10450
    %v10452 = vrot.slane %v10438, %v10451
    %v10453 = vcombine.high %v10445, %v10445
    %v10454 = vcombine.high %v10452, %v10452
    %v10471 = vrot.slane %v10394, 7
    %v10472 = vrot.slane %v10471, 2
    %v10473 = vrot.slane %v10402, 7
    %v10474 = vrot.slane %v10473, 2
    %v10475 = vrot.slane %v10401, 7
    %v10476 = vrot.slane %v10475, 2
    %v10477 = vrot.slane %v10403, 7
    %v10478 = vrot.slane %v10477, 2
    %v10479 = vrot.slane %v10411, 7
    %v10480 = vrot.slane %v10479, 2
    %v10481 = vrot.slane %v10419, 7
    %v10482 = vrot.slane %v10481, 2
    %v10483 = vrot.slane %v10418, 7
    %v10484 = vrot.slane %v10483, 2
    %v10485 = vrot.slane %v10420, 7
    %v10486 = vrot.slane %v10485, 2
    %v10487 = vrot.slane %v10428, 7
    %v10488 = vrot.slane %v10487, 2
    %v10489 = vrot.slane %v10436, 7
    %v10490 = vrot.slane %v10489, 2
    %v10491 = vrot.slane %v10435, 7
    %v10492 = vrot.slane %v10491, 2
    %v10493 = vrot.slane %v10437, 7
    %v10494 = vrot.slane %v10493, 2
    %v10495 = vrot.slane %v10445, 7
    %v10496 = vrot.slane %v10495, 2
    %v10497 = vrot.slane %v10453, 7
    %v10498 = vrot.slane %v10497, 2
    %v10499 = vrot.slane %v10452, 7
    %v10500 = vrot.slane %v10499, 2
    %v10501 = vrot.slane %v10454, 7
    %v10502 = vrot.slane %v10501, 2
    %v10519 = vmax.f32 %v10394, %v10472
    %v10520 = vmax.f32 %v10402, %v10474
    %v10521 = vmax.f32 %v10401, %v10476
    %v10522 = vmax.f32 %v10403, %v10478
    %v10523 = vmax.f32 %v10411, %v10480
    %v10524 = vmax.f32 %v10419, %v10482
    %v10525 = vmax.f32 %v10418, %v10484
    %v10526 = vmax.f32 %v10420, %v10486
    %v10527 = vmax.f32 %v10428, %v10488
    %v10528 = vmax.f32 %v10436, %v10490
    %v10529 = vmax.f32 %v10435, %v10492
    %v10530 = vmax.f32 %v10437, %v10494
    %v10531 = vmax.f32 %v10445, %v10496
    %v10532 = vmax.f32 %v10453, %v10498
    %v10533 = vmax.f32 %v10452, %v10500
    %v10534 = vmax.f32 %v10454, %v10502
    %v10535 = vmax.f32 %v10519, %v10521
    %v10536 = vmax.f32 %v10520, %v10522
    %v10537 = vmax.f32 %v10523, %v10525
    %v10538 = vmax.f32 %v10524, %v10526
    %v10539 = vmax.f32 %v10527, %v10529
    %v10540 = vmax.f32 %v10528, %v10530
    %v10541 = vmax.f32 %v10531, %v10533
    %v10542 = vmax.f32 %v10532, %v10534
    %vm10543 = vcmask 519168
    %10544 = vst.msk [vmem:[#allocation4] sm:$0xf] %vm10543, 0.0
    %10545 = vst.msk [vmem:[#allocation4 + $0x4] sm:$0xf] %vm10543, 0.0
    %10546 = vst.msk [vmem:[#allocation4 + $0x8] sm:$0xf] %vm10543, 0.0
    %10547 = vst.msk [vmem:[#allocation4 + $0xc] sm:$0xf] %vm10543, 0.0
    %10548 = vst.msk [vmem:[#allocation4 + $0x10] sm:$0xf] %vm10543, 0.0
    %10549 = vst.msk [vmem:[#allocation4 + $0x14] sm:$0xf] %vm10543, 0.0
    %10550 = vst.msk [vmem:[#allocation4 + $0x18] sm:$0xf] %vm10543, 0.0
    %10551 = vst.msk [vmem:[#allocation4 + $0x1c] sm:$0xf] %vm10543, 0.0
    %v10560 = vlaneseq
    %v10561 = vshrl.u32 %v10560, 7
    %v10562 = vsub.s32 0, %v10561
    %v10563 = vrot.slane %v10535, %v10562
    %v10564 = vlaneseq
    %v10565 = vshrl.u32 %v10564, 7
    %v10566 = vsub.s32 0, %v10565
    %v10567 = vrot.slane %v10536, %v10566
    %v10568 = vlaneseq
    %v10569 = vshrl.u32 %v10568, 7
    %v10570 = vsub.s32 0, %v10569
    %v10571 = vrot.slane %v10537, %v10570
    %v10572 = vlaneseq
    %v10573 = vshrl.u32 %v10572, 7
    %v10574 = vsub.s32 0, %v10573
    %v10575 = vrot.slane %v10538, %v10574
    %v10576 = vlaneseq
    %v10577 = vshrl.u32 %v10576, 7
    %v10578 = vsub.s32 0, %v10577
    %v10579 = vrot.slane %v10539, %v10578
    %v10580 = vlaneseq
    %v10581 = vshrl.u32 %v10580, 7
    %v10582 = vsub.s32 0, %v10581
    %v10583 = vrot.slane %v10540, %v10582
    %v10584 = vlaneseq
    %v10585 = vshrl.u32 %v10584, 7
    %v10586 = vsub.s32 0, %v10585
    %v10587 = vrot.slane %v10541, %v10586
    %v10588 = vlaneseq
    %v10589 = vshrl.u32 %v10588, 7
    %v10590 = vsub.s32 0, %v10589
    %v10591 = vrot.slane %v10542, %v10590
    %v10592 = vsel %vm9164, %v10567, %v10563
    %v10593 = vsel %vm9164, %v10575, %v10571
    %v10594 = vsel %vm9164, %v10583, %v10579
    %v10595 = vsel %vm9164, %v10591, %v10587
    %s10600 = scalar_lea.vmem [#allocation4], 4
    %vm10601 = vcmask 517120
    %10602 = vst.msk [vmem:[%s10600 + $0x1] sm:$0x3] %vm10601, %v10592
    %10603 = vst.msk [vmem:[%s10600 + $0x5] sm:$0x3] %vm10601, %v10593
    %10604 = vst.msk [vmem:[%s10600 + $0x11] sm:$0x3] %vm10601, %v10594
    %10605 = vst.msk [vmem:[%s10600 + $0x15] sm:$0x3] %vm10601, %v10595
    %v10606 = vld [vmem:[#allocation4] sm:$0x3]
    %v10607 = vld [vmem:[#allocation4 + $0x4] sm:$0x3]
    %v10608 = vld [vmem:[#allocation4 + $0x10] sm:$0x3]
    %v10609 = vld [vmem:[#allocation4 + $0x14] sm:$0x3]
    %v10610 = vld [vmem:[%s7] sm:$0xff]
    %v10611 = vld [vmem:[%s7 + $0x8] sm:$0xff]
    %v10612 = vld [vmem:[%s7 + $0x10] sm:$0xff]
    %v10613 = vld [vmem:[%s7 + $0x18] sm:$0xff]
    %v10614 = vld [vmem:[%s7 + $0x20] sm:$0xff]
    %v10615 = vld [vmem:[%s7 + $0x28] sm:$0xff]
    %v10616 = vld [vmem:[%s7 + $0x30] sm:$0xff]
    %v10617 = vld [vmem:[%s7 + $0x38] sm:$0xff]
    %v10618 = vld [vmem:[#allocation4 + $0x1] sm:$0x3]
    %v10619 = vld [vmem:[#allocation4 + $0x5] sm:$0x3]
    %v10620 = vld [vmem:[#allocation4 + $0x11] sm:$0x3]
    %v10621 = vld [vmem:[#allocation4 + $0x15] sm:$0x3]
    %s10622 = scalar_lea.vmem %s7, 64
    %v10623 = vld [vmem:[%s10622] sm:$0xff]
    %v10624 = vld [vmem:[%s10622 + $0x8] sm:$0xff]
    %v10625 = vld [vmem:[%s10622 + $0x10] sm:$0xff]
    %v10626 = vld [vmem:[%s10622 + $0x18] sm:$0xff]
    %v10627 = vld [vmem:[%s10622 + $0x20] sm:$0xff]
    %v10628 = vld [vmem:[%s10622 + $0x28] sm:$0xff]
    %v10629 = vld [vmem:[%s10622 + $0x30] sm:$0xff]
    %v10630 = vld [vmem:[%s10622 + $0x38] sm:$0xff]
    %v10635 = vcombine.low %v10618, %v10619
    %v10636 = vcombine.low %v10620, %v10621
    %v10638 = vunpack.c.l.s4 1983009808
    %v10639 = vunpack.c.0.s8 %v10638
    %v10640 = vlaneseq
    %v10641 = vshrl.u32 %v10640, 7
    %v10642 = vsub.s32 %v10639, %v10641
    %v10643 = vrot.slane %v10635, %v10642
    %v10645 = vunpack.c.l.s4 1983009808
    %v10646 = vunpack.c.0.s8 %v10645
    %v10647 = vlaneseq
    %v10648 = vshrl.u32 %v10647, 7
    %v10649 = vsub.s32 %v10646, %v10648
    %v10650 = vrot.slane %v10636, %v10649
    %v10651 = vcombine.low %v10643, %v10650
    %vm10652 = vcmask 523264
    %v10653 = vsel %vm10652, %v10651, 0
    %10655 = vmatprep.subr.mxu0 0.0
    %10656 = vmatpush1.msra.mxu0 %v10623
    %10657 = vmatprep.subr.mxu0 0.0
    %10658 = vmatpush1.msra.mxu0 %v10624
    %10659 = vmatprep.subr.mxu0 0.0
    %10660 = vmatpush1.msra.mxu0 %v10625
    %10661 = vmatprep.subr.mxu0 0.0
    %10662 = vmatpush1.msra.mxu0 %v10626
    %10663 = vmatprep.subr.mxu0 0.0
    %10664 = vmatpush1.msra.mxu0 %v10627
    %10665 = vmatprep.subr.mxu0 0.0
    %10666 = vmatpush1.msra.mxu0 %v10628
    %10667 = vmatprep.subr.mxu0 0.0
    %10668 = vmatpush1.msra.mxu0 %v10629
    %10669 = vmatprep.subr.mxu0 0.0
    %10670 = vmatpush1.msra.mxu0 %v10630
    %10671 = vmatprep.subr.mxu0 0.0
    %10672 = vmatpush1.msra.mxu0 0.0
    %10673 = vmatprep.subr.mxu0 0.0
    %10674 = vmatpush1.msra.mxu0 0.0
    %10675 = vmatprep.subr.mxu0 0.0
    %10676 = vmatpush1.msra.mxu0 0.0
    %10677 = vmatprep.subr.mxu0 0.0
    %10678 = vmatpush1.msra.mxu0 0.0
    %10679 = vmatprep.subr.mxu0 0.0
    %10680 = vmatpush1.msra.mxu0 0.0
    %10681 = vmatprep.subr.mxu0 0.0
    %10682 = vmatpush1.msra.mxu0 0.0
    %10683 = vmatprep.subr.mxu0 0.0
    %10684 = vmatpush1.msra.mxu0 0.0
    %10685 = vmatprep.subr.mxu0 0.0
    %10686 = vmatpush1.msra.mxu0 0.0
    %10687 = vmatprep.subr.mxu0 0.0
    %10688 = vmatpush1.msra.mxu0 0.0
    %10689 = vmatprep.subr.mxu0 0.0
    %10690 = vmatpush1.msra.mxu0 0.0
    %10691 = vmatprep.subr.mxu0 0.0
    %10692 = vmatpush1.msra.mxu0 0.0
    %10693 = vmatprep.subr.mxu0 0.0
    %10694 = vmatpush1.msra.mxu0 0.0
    %10695 = vmatprep.subr.mxu0 0.0
    %10696 = vmatpush1.msra.mxu0 0.0
    %10697 = vmatprep.subr.mxu0 0.0
    %10698 = vmatpush1.msra.mxu0 0.0
    %10699 = vmatprep.subr.mxu0 0.0
    %10700 = vmatpush1.msra.mxu0 0.0
    %10701 = vmatprep.subr.mxu0 0.0
    %10702 = vmatpush1.msra.mxu0 0.0
    %10703 = vmatprep.subr.mxu0 0.0
    %10704 = vmatpush1.msra.mxu0 0.0
    %10705 = vmatprep.subr.mxu0 0.0
    %10706 = vmatpush1.msra.mxu0 0.0
    %10707 = vmatprep.subr.mxu0 0.0
    %10708 = vmatpush1.msra.mxu0 0.0
    %10709 = vmatprep.subr.mxu0 0.0
    %10710 = vmatpush1.msra.mxu0 0.0
    %10711 = vmatprep.subr.mxu0 0.0
    %10712 = vmatpush1.msra.mxu0 0.0
    %10713 = vmatprep.subr.mxu0 0.0
    %10714 = vmatpush1.msra.mxu0 0.0
    %10715 = vmatprep.subr.mxu0 0.0
    %10716 = vmatpush1.msra.mxu0 0.0
    %10717 = vmatprep.subr.mxu0 0.0
    %10718 = vmatpush1.msra.mxu0 0.0
    %10719 = vmatprep.mubr.f32.mxu0 0.0
    %10720 = vmatmul.mubr.f32.gmra.mrb[0].mxu0 %v10653
    %v10721 = vpop.f32.mrb[0].mxu0
    %v10722 = vadd.f32 0.0, %v10721
    %v10723 = vpop.f32.mrb[0].mxu0
    %10724 = vdwg.mxu0
    %v10729 = vcombine.low %v10606, %v10607
    %v10730 = vcombine.low %v10608, %v10609
    %v10732 = vunpack.c.l.s4 1983009808
    %v10733 = vunpack.c.0.s8 %v10732
    %v10734 = vlaneseq
    %v10735 = vshrl.u32 %v10734, 7
    %v10736 = vsub.s32 %v10733, %v10735
    %v10737 = vrot.slane %v10729, %v10736
    %v10739 = vunpack.c.l.s4 1983009808
    %v10740 = vunpack.c.0.s8 %v10739
    %v10741 = vlaneseq
    %v10742 = vshrl.u32 %v10741, 7
    %v10743 = vsub.s32 %v10740, %v10742
    %v10744 = vrot.slane %v10730, %v10743
    %v10745 = vcombine.low %v10737, %v10744
    %v10746 = vsel %vm10652, %v10745, 0
    %10748 = vmatprep.subr.mxu0 0.0
    %10749 = vmatpush1.msra.mxu0 %v10610
    %10750 = vmatprep.subr.mxu0 0.0
    %10751 = vmatpush1.msra.mxu0 %v10611
    %10752 = vmatprep.subr.mxu0 0.0
    %10753 = vmatpush1.msra.mxu0 %v10612
    %10754 = vmatprep.subr.mxu0 0.0
    %10755 = vmatpush1.msra.mxu0 %v10613
    %10756 = vmatprep.subr.mxu0 0.0
    %10757 = vmatpush1.msra.mxu0 %v10614
    %10758 = vmatprep.subr.mxu0 0.0
    %10759 = vmatpush1.msra.mxu0 %v10615
    %10760 = vmatprep.subr.mxu0 0.0
    %10761 = vmatpush1.msra.mxu0 %v10616
    %10762 = vmatprep.subr.mxu0 0.0
    %10763 = vmatpush1.msra.mxu0 %v10617
    %10764 = vmatprep.subr.mxu0 0.0
    %10765 = vmatpush1.msra.mxu0 0.0
    %10766 = vmatprep.subr.mxu0 0.0
    %10767 = vmatpush1.msra.mxu0 0.0
    %10768 = vmatprep.subr.mxu0 0.0
    %10769 = vmatpush1.msra.mxu0 0.0
    %10770 = vmatprep.subr.mxu0 0.0
    %10771 = vmatpush1.msra.mxu0 0.0
    %10772 = vmatprep.subr.mxu0 0.0
    %10773 = vmatpush1.msra.mxu0 0.0
    %10774 = vmatprep.subr.mxu0 0.0
    %10775 = vmatpush1.msra.mxu0 0.0
    %10776 = vmatprep.subr.mxu0 0.0
    %10777 = vmatpush1.msra.mxu0 0.0
    %10778 = vmatprep.subr.mxu0 0.0
    %10779 = vmatpush1.msra.mxu0 0.0
    %10780 = vmatprep.subr.mxu0 0.0
    %10781 = vmatpush1.msra.mxu0 0.0
    %10782 = vmatprep.subr.mxu0 0.0
    %10783 = vmatpush1.msra.mxu0 0.0
    %10784 = vmatprep.subr.mxu0 0.0
    %10785 = vmatpush1.msra.mxu0 0.0
    %10786 = vmatprep.subr.mxu0 0.0
    %10787 = vmatpush1.msra.mxu0 0.0
    %10788 = vmatprep.subr.mxu0 0.0
    %10789 = vmatpush1.msra.mxu0 0.0
    %10790 = vmatprep.subr.mxu0 0.0
    %10791 = vmatpush1.msra.mxu0 0.0
    %10792 = vmatprep.subr.mxu0 0.0
    %10793 = vmatpush1.msra.mxu0 0.0
    %10794 = vmatprep.subr.mxu0 0.0
    %10795 = vmatpush1.msra.mxu0 0.0
    %10796 = vmatprep.subr.mxu0 0.0
    %10797 = vmatpush1.msra.mxu0 0.0
    %10798 = vmatprep.subr.mxu0 0.0
    %10799 = vmatpush1.msra.mxu0 0.0
    %10800 = vmatprep.subr.mxu0 0.0
    %10801 = vmatpush1.msra.mxu0 0.0
    %10802 = vmatprep.subr.mxu0 0.0
    %10803 = vmatpush1.msra.mxu0 0.0
    %10804 = vmatprep.subr.mxu0 0.0
    %10805 = vmatpush1.msra.mxu0 0.0
    %10806 = vmatprep.subr.mxu0 0.0
    %10807 = vmatpush1.msra.mxu0 0.0
    %10808 = vmatprep.subr.mxu0 0.0
    %10809 = vmatpush1.msra.mxu0 0.0
    %10810 = vmatprep.subr.mxu0 0.0
    %10811 = vmatpush1.msra.mxu0 0.0
    %10812 = vmatprep.mubr.f32.mxu0 0.0
    %10813 = vmatmul.mubr.f32.gmra.mrb[0].mxu0 %v10746
    %v10814 = vpop.f32.mrb[0].mxu0
    %v10815 = vadd.f32 %v10722, %v10814
    %v10816 = vpop.f32.mrb[0].mxu0
    %10817 = vdwg.mxu0
    %v10818 = vld [vmem:[#allocation4 + $0x2] sm:$0x3]
    %v10819 = vld [vmem:[#allocation4 + $0x6] sm:$0x3]
    %v10820 = vld [vmem:[#allocation4 + $0x12] sm:$0x3]
    %v10821 = vld [vmem:[#allocation4 + $0x16] sm:$0x3]
    %s10822 = scalar_lea.vmem %s7, 128
    %v10823 = vld [vmem:[%s10822] sm:$0xff]
    %v10824 = vld [vmem:[%s10822 + $0x8] sm:$0xff]
    %v10825 = vld [vmem:[%s10822 + $0x10] sm:$0xff]
    %v10826 = vld [vmem:[%s10822 + $0x18] sm:$0xff]
    %v10827 = vld [vmem:[%s10822 + $0x20] sm:$0xff]
    %v10828 = vld [vmem:[%s10822 + $0x28] sm:$0xff]
    %v10829 = vld [vmem:[%s10822 + $0x30] sm:$0xff]
    %v10830 = vld [vmem:[%s10822 + $0x38] sm:$0xff]
    %v10835 = vcombine.low %v10818, %v10819
    %v10836 = vcombine.low %v10820, %v10821
    %v10838 = vunpack.c.l.s4 1983009808
    %v10839 = vunpack.c.0.s8 %v10838
    %v10840 = vlaneseq
    %v10841 = vshrl.u32 %v10840, 7
    %v10842 = vsub.s32 %v10839, %v10841
    %v10843 = vrot.slane %v10835, %v10842
    %v10845 = vunpack.c.l.s4 1983009808
    %v10846 = vunpack.c.0.s8 %v10845
    %v10847 = vlaneseq
    %v10848 = vshrl.u32 %v10847, 7
    %v10849 = vsub.s32 %v10846, %v10848
    %v10850 = vrot.slane %v10836, %v10849
    %v10851 = vcombine.low %v10843, %v10850
    %v10852 = vsel %vm10652, %v10851, 0
    %10854 = vmatprep.subr.mxu0 0.0
    %10855 = vmatpush1.msra.mxu0 %v10823
    %10856 = vmatprep.subr.mxu0 0.0
    %10857 = vmatpush1.msra.mxu0 %v10824
    %10858 = vmatprep.subr.mxu0 0.0
    %10859 = vmatpush1.msra.mxu0 %v10825
    %10860 = vmatprep.subr.mxu0 0.0
    %10861 = vmatpush1.msra.mxu0 %v10826
    %10862 = vmatprep.subr.mxu0 0.0
    %10863 = vmatpush1.msra.mxu0 %v10827
    %10864 = vmatprep.subr.mxu0 0.0
    %10865 = vmatpush1.msra.mxu0 %v10828
    %10866 = vmatprep.subr.mxu0 0.0
    %10867 = vmatpush1.msra.mxu0 %v10829
    %10868 = vmatprep.subr.mxu0 0.0
    %10869 = vmatpush1.msra.mxu0 %v10830
    %10870 = vmatprep.subr.mxu0 0.0
    %10871 = vmatpush1.msra.mxu0 0.0
    %10872 = vmatprep.subr.mxu0 0.0
    %10873 = vmatpush1.msra.mxu0 0.0
    %10874 = vmatprep.subr.mxu0 0.0
    %10875 = vmatpush1.msra.mxu0 0.0
    %10876 = vmatprep.subr.mxu0 0.0
    %10877 = vmatpush1.msra.mxu0 0.0
    %10878 = vmatprep.subr.mxu0 0.0
    %10879 = vmatpush1.msra.mxu0 0.0
    %10880 = vmatprep.subr.mxu0 0.0
    %10881 = vmatpush1.msra.mxu0 0.0
    %10882 = vmatprep.subr.mxu0 0.0
    %10883 = vmatpush1.msra.mxu0 0.0
    %10884 = vmatprep.subr.mxu0 0.0
    %10885 = vmatpush1.msra.mxu0 0.0
    %10886 = vmatprep.subr.mxu0 0.0
    %10887 = vmatpush1.msra.mxu0 0.0
    %10888 = vmatprep.subr.mxu0 0.0
    %10889 = vmatpush1.msra.mxu0 0.0
    %10890 = vmatprep.subr.mxu0 0.0
    %10891 = vmatpush1.msra.mxu0 0.0
    %10892 = vmatprep.subr.mxu0 0.0
    %10893 = vmatpush1.msra.mxu0 0.0
    %10894 = vmatprep.subr.mxu0 0.0
    %10895 = vmatpush1.msra.mxu0 0.0
    %10896 = vmatprep.subr.mxu0 0.0
    %10897 = vmatpush1.msra.mxu0 0.0
    %10898 = vmatprep.subr.mxu0 0.0
    %10899 = vmatpush1.msra.mxu0 0.0
    %10900 = vmatprep.subr.mxu0 0.0
    %10901 = vmatpush1.msra.mxu0 0.0
    %10902 = vmatprep.subr.mxu0 0.0
    %10903 = vmatpush1.msra.mxu0 0.0
    %10904 = vmatprep.subr.mxu0 0.0
    %10905 = vmatpush1.msra.mxu0 0.0
    %10906 = vmatprep.subr.mxu0 0.0
    %10907 = vmatpush1.msra.mxu0 0.0
    %10908 = vmatprep.subr.mxu0 0.0
    %10909 = vmatpush1.msra.mxu0 0.0
    %10910 = vmatprep.subr.mxu0 0.0
    %10911 = vmatpush1.msra.mxu0 0.0
    %10912 = vmatprep.subr.mxu0 0.0
    %10913 = vmatpush1.msra.mxu0 0.0
    %10914 = vmatprep.subr.mxu0 0.0
    %10915 = vmatpush1.msra.mxu0 0.0
    %10916 = vmatprep.subr.mxu0 0.0
    %10917 = vmatpush1.msra.mxu0 0.0
    %10918 = vmatprep.mubr.f32.mxu0 0.0
    %10919 = vmatmul.mubr.f32.gmra.mrb[0].mxu0 %v10852
    %v10920 = vpop.f32.mrb[0].mxu0
    %v10921 = vadd.f32 0.0, %v10920
    %v10922 = vpop.f32.mrb[0].mxu0
    %10923 = vdwg.mxu0
    %v10924 = vadd.f32 %v10815, %v10921
    %v10925 = vld [vmem:[%s10600] sm:$0x3]
    %v10926 = vld [vmem:[%s10600 + $0x4] sm:$0x3]
    %v10927 = vld [vmem:[%s10600 + $0x10] sm:$0x3]
    %v10928 = vld [vmem:[%s10600 + $0x14] sm:$0x3]
    %s10929 = scalar_lea.vmem %s7, 192
    %v10930 = vld [vmem:[%s10929] sm:$0xff]
    %v10931 = vld [vmem:[%s10929 + $0x8] sm:$0xff]
    %v10932 = vld [vmem:[%s10929 + $0x10] sm:$0xff]
    %v10933 = vld [vmem:[%s10929 + $0x18] sm:$0xff]
    %v10934 = vld [vmem:[%s10929 + $0x20] sm:$0xff]
    %v10935 = vld [vmem:[%s10929 + $0x28] sm:$0xff]
    %v10936 = vld [vmem:[%s10929 + $0x30] sm:$0xff]
    %v10937 = vld [vmem:[%s10929 + $0x38] sm:$0xff]
    %v10942 = vcombine.low %v10925, %v10926
    %v10943 = vcombine.low %v10927, %v10928
    %v10945 = vunpack.c.l.s4 1983009808
    %v10946 = vunpack.c.0.s8 %v10945
    %v10947 = vlaneseq
    %v10948 = vshrl.u32 %v10947, 7
    %v10949 = vsub.s32 %v10946, %v10948
    %v10950 = vrot.slane %v10942, %v10949
    %v10952 = vunpack.c.l.s4 1983009808
    %v10953 = vunpack.c.0.s8 %v10952
    %v10954 = vlaneseq
    %v10955 = vshrl.u32 %v10954, 7
    %v10956 = vsub.s32 %v10953, %v10955
    %v10957 = vrot.slane %v10943, %v10956
    %v10958 = vcombine.low %v10950, %v10957
    %v10959 = vsel %vm10652, %v10958, 0
    %10961 = vmatprep.subr.mxu0 0.0
    %10962 = vmatpush1.msra.mxu0 %v10930
    %10963 = vmatprep.subr.mxu0 0.0
    %10964 = vmatpush1.msra.mxu0 %v10931
    %10965 = vmatprep.subr.mxu0 0.0
    %10966 = vmatpush1.msra.mxu0 %v10932
    %10967 = vmatprep.subr.mxu0 0.0
    %10968 = vmatpush1.msra.mxu0 %v10933
    %10969 = vmatprep.subr.mxu0 0.0
    %10970 = vmatpush1.msra.mxu0 %v10934
    %10971 = vmatprep.subr.mxu0 0.0
    %10972 = vmatpush1.msra.mxu0 %v10935
    %10973 = vmatprep.subr.mxu0 0.0
    %10974 = vmatpush1.msra.mxu0 %v10936
    %10975 = vmatprep.subr.mxu0 0.0
    %10976 = vmatpush1.msra.mxu0 %v10937
    %10977 = vmatprep.subr.mxu0 0.0
    %10978 = vmatpush1.msra.mxu0 0.0
    %10979 = vmatprep.subr.mxu0 0.0
    %10980 = vmatpush1.msra.mxu0 0.0
    %10981 = vmatprep.subr.mxu0 0.0
    %10982 = vmatpush1.msra.mxu0 0.0
    %10983 = vmatprep.subr.mxu0 0.0
    %10984 = vmatpush1.msra.mxu0 0.0
    %10985 = vmatprep.subr.mxu0 0.0
    %10986 = vmatpush1.msra.mxu0 0.0
    %10987 = vmatprep.subr.mxu0 0.0
    %10988 = vmatpush1.msra.mxu0 0.0
    %10989 = vmatprep.subr.mxu0 0.0
    %10990 = vmatpush1.msra.mxu0 0.0
    %10991 = vmatprep.subr.mxu0 0.0
    %10992 = vmatpush1.msra.mxu0 0.0
    %10993 = vmatprep.subr.mxu0 0.0
    %10994 = vmatpush1.msra.mxu0 0.0
    %10995 = vmatprep.subr.mxu0 0.0
    %10996 = vmatpush1.msra.mxu0 0.0
    %10997 = vmatprep.subr.mxu0 0.0
    %10998 = vmatpush1.msra.mxu0 0.0
    %10999 = vmatprep.subr.mxu0 0.0
    %11000 = vmatpush1.msra.mxu0 0.0
    %11001 = vmatprep.subr.mxu0 0.0
    %11002 = vmatpush1.msra.mxu0 0.0
    %11003 = vmatprep.subr.mxu0 0.0
    %11004 = vmatpush1.msra.mxu0 0.0
    %11005 = vmatprep.subr.mxu0 0.0
    %11006 = vmatpush1.msra.mxu0 0.0
    %11007 = vmatprep.subr.mxu0 0.0
    %11008 = vmatpush1.msra.mxu0 0.0
    %11009 = vmatprep.subr.mxu0 0.0
    %11010 = vmatpush1.msra.mxu0 0.0
    %11011 = vmatprep.subr.mxu0 0.0
    %11012 = vmatpush1.msra.mxu0 0.0
    %11013 = vmatprep.subr.mxu0 0.0
    %11014 = vmatpush1.msra.mxu0 0.0
    %11015 = vmatprep.subr.mxu0 0.0
    %11016 = vmatpush1.msra.mxu0 0.0
    %11017 = vmatprep.subr.mxu0 0.0
    %11018 = vmatpush1.msra.mxu0 0.0
    %11019 = vmatprep.subr.mxu0 0.0
    %11020 = vmatpush1.msra.mxu0 0.0
    %11021 = vmatprep.subr.mxu0 0.0
    %11022 = vmatpush1.msra.mxu0 0.0
    %11023 = vmatprep.subr.mxu0 0.0
    %11024 = vmatpush1.msra.mxu0 0.0
    %11025 = vmatprep.mubr.f32.mxu0 0.0
    %11026 = vmatmul.mubr.f32.gmra.mrb[0].mxu0 %v10959
    %v11027 = vpop.f32.mrb[0].mxu0
    %v11028 = vadd.f32 0.0, %v11027
    %v11029 = vpop.f32.mrb[0].mxu0
    %11030 = vdwg.mxu0
    %v11031 = vadd.f32 %v10924, %v11028
    %v11032 = vld [vmem:[%s10600 + $0x1] sm:$0x3]
    %v11033 = vld [vmem:[%s10600 + $0x5] sm:$0x3]
    %v11034 = vld [vmem:[%s10600 + $0x11] sm:$0x3]
    %v11035 = vld [vmem:[%s10600 + $0x15] sm:$0x3]
    %s11036 = scalar_lea.vmem %s7, 256
    %v11037 = vld [vmem:[%s11036] sm:$0xff]
    %v11038 = vld [vmem:[%s11036 + $0x8] sm:$0xff]
    %v11039 = vld [vmem:[%s11036 + $0x10] sm:$0xff]
    %v11040 = vld [vmem:[%s11036 + $0x18] sm:$0xff]
    %v11041 = vld [vmem:[%s11036 + $0x20] sm:$0xff]
    %v11042 = vld [vmem:[%s11036 + $0x28] sm:$0xff]
    %v11043 = vld [vmem:[%s11036 + $0x30] sm:$0xff]
    %v11044 = vld [vmem:[%s11036 + $0x38] sm:$0xff]
    %v11049 = vcombine.low %v11032, %v11033
    %v11050 = vcombine.low %v11034, %v11035
    %v11052 = vunpack.c.l.s4 1983009808
    %v11053 = vunpack.c.0.s8 %v11052
    %v11054 = vlaneseq
    %v11055 = vshrl.u32 %v11054, 7
    %v11056 = vsub.s32 %v11053, %v11055
    %v11057 = vrot.slane %v11049, %v11056
    %v11059 = vunpack.c.l.s4 1983009808
    %v11060 = vunpack.c.0.s8 %v11059
    %v11061 = vlaneseq
    %v11062 = vshrl.u32 %v11061, 7
    %v11063 = vsub.s32 %v11060, %v11062
    %v11064 = vrot.slane %v11050, %v11063
    %v11065 = vcombine.low %v11057, %v11064
    %v11066 = vsel %vm10652, %v11065, 0
    %11068 = vmatprep.subr.mxu0 0.0
    %11069 = vmatpush1.msra.mxu0 %v11037
    %11070 = vmatprep.subr.mxu0 0.0
    %11071 = vmatpush1.msra.mxu0 %v11038
    %11072 = vmatprep.subr.mxu0 0.0
    %11073 = vmatpush1.msra.mxu0 %v11039
    %11074 = vmatprep.subr.mxu0 0.0
    %11075 = vmatpush1.msra.mxu0 %v11040
    %11076 = vmatprep.subr.mxu0 0.0
    %11077 = vmatpush1.msra.mxu0 %v11041
    %11078 = vmatprep.subr.mxu0 0.0
    %11079 = vmatpush1.msra.mxu0 %v11042
    %11080 = vmatprep.subr.mxu0 0.0
    %11081 = vmatpush1.msra.mxu0 %v11043
    %11082 = vmatprep.subr.mxu0 0.0
    %11083 = vmatpush1.msra.mxu0 %v11044
    %11084 = vmatprep.subr.mxu0 0.0
    %11085 = vmatpush1.msra.mxu0 0.0
    %11086 = vmatprep.subr.mxu0 0.0
    %11087 = vmatpush1.msra.mxu0 0.0
    %11088 = vmatprep.subr.mxu0 0.0
    %11089 = vmatpush1.msra.mxu0 0.0
    %11090 = vmatprep.subr.mxu0 0.0
    %11091 = vmatpush1.msra.mxu0 0.0
    %11092 = vmatprep.subr.mxu0 0.0
    %11093 = vmatpush1.msra.mxu0 0.0
    %11094 = vmatprep.subr.mxu0 0.0
    %11095 = vmatpush1.msra.mxu0 0.0
    %11096 = vmatprep.subr.mxu0 0.0
    %11097 = vmatpush1.msra.mxu0 0.0
    %11098 = vmatprep.subr.mxu0 0.0
    %11099 = vmatpush1.msra.mxu0 0.0
    %11100 = vmatprep.subr.mxu0 0.0
    %11101 = vmatpush1.msra.mxu0 0.0
    %11102 = vmatprep.subr.mxu0 0.0
    %11103 = vmatpush1.msra.mxu0 0.0
    %11104 = vmatprep.subr.mxu0 0.0
    %11105 = vmatpush1.msra.mxu0 0.0
    %11106 = vmatprep.subr.mxu0 0.0
    %11107 = vmatpush1.msra.mxu0 0.0
    %11108 = vmatprep.subr.mxu0 0.0
    %11109 = vmatpush1.msra.mxu0 0.0
    %11110 = vmatprep.subr.mxu0 0.0
    %11111 = vmatpush1.msra.mxu0 0.0
    %11112 = vmatprep.subr.mxu0 0.0
    %11113 = vmatpush1.msra.mxu0 0.0
    %11114 = vmatprep.subr.mxu0 0.0
    %11115 = vmatpush1.msra.mxu0 0.0
    %11116 = vmatprep.subr.mxu0 0.0
    %11117 = vmatpush1.msra.mxu0 0.0
    %11118 = vmatprep.subr.mxu0 0.0
    %11119 = vmatpush1.msra.mxu0 0.0
    %11120 = vmatprep.subr.mxu0 0.0
    %11121 = vmatpush1.msra.mxu0 0.0
    %11122 = vmatprep.subr.mxu0 0.0
    %11123 = vmatpush1.msra.mxu0 0.0
    %11124 = vmatprep.subr.mxu0 0.0
    %11125 = vmatpush1.msra.mxu0 0.0
    %11126 = vmatprep.subr.mxu0 0.0
    %11127 = vmatpush1.msra.mxu0 0.0
    %11128 = vmatprep.subr.mxu0 0.0
    %11129 = vmatpush1.msra.mxu0 0.0
    %11130 = vmatprep.subr.mxu0 0.0
    %11131 = vmatpush1.msra.mxu0 0.0
    %11132 = vmatprep.mubr.f32.mxu0 0.0
    %11133 = vmatmul.mubr.f32.gmra.mrb[0].mxu0 %v11066
    %v11134 = vpop.f32.mrb[0].mxu0
    %v11135 = vadd.f32 0.0, %v11134
    %v11136 = vpop.f32.mrb[0].mxu0
    %11137 = vdwg.mxu0
    %v11138 = vadd.f32 %v11031, %v11135
    %v11139 = vld [vmem:[%s10600 + $0x2] sm:$0x3]
    %v11140 = vld [vmem:[%s10600 + $0x6] sm:$0x3]
    %v11141 = vld [vmem:[%s10600 + $0x12] sm:$0x3]
    %v11142 = vld [vmem:[%s10600 + $0x16] sm:$0x3]
    %s11143 = scalar_lea.vmem %s7, 320
    %v11144 = vld [vmem:[%s11143] sm:$0xff]
    %v11145 = vld [vmem:[%s11143 + $0x8] sm:$0xff]
    %v11146 = vld [vmem:[%s11143 + $0x10] sm:$0xff]
    %v11147 = vld [vmem:[%s11143 + $0x18] sm:$0xff]
    %v11148 = vld [vmem:[%s11143 + $0x20] sm:$0xff]
    %v11149 = vld [vmem:[%s11143 + $0x28] sm:$0xff]
    %v11150 = vld [vmem:[%s11143 + $0x30] sm:$0xff]
    %v11151 = vld [vmem:[%s11143 + $0x38] sm:$0xff]
    %v11156 = vcombine.low %v11139, %v11140
    %v11157 = vcombine.low %v11141, %v11142
    %v11159 = vunpack.c.l.s4 1983009808
    %v11160 = vunpack.c.0.s8 %v11159
    %v11161 = vlaneseq
    %v11162 = vshrl.u32 %v11161, 7
    %v11163 = vsub.s32 %v11160, %v11162
    %v11164 = vrot.slane %v11156, %v11163
    %v11166 = vunpack.c.l.s4 1983009808
    %v11167 = vunpack.c.0.s8 %v11166
    %v11168 = vlaneseq
    %v11169 = vshrl.u32 %v11168, 7
    %v11170 = vsub.s32 %v11167, %v11169
    %v11171 = vrot.slane %v11157, %v11170
    %v11172 = vcombine.low %v11164, %v11171
    %v11173 = vsel %vm10652, %v11172, 0
    %11175 = vmatprep.subr.mxu0 0.0
    %11176 = vmatpush1.msra.mxu0 %v11144
    %11177 = vmatprep.subr.mxu0 0.0
    %11178 = vmatpush1.msra.mxu0 %v11145
    %11179 = vmatprep.subr.mxu0 0.0
    %11180 = vmatpush1.msra.mxu0 %v11146
    %11181 = vmatprep.subr.mxu0 0.0
    %11182 = vmatpush1.msra.mxu0 %v11147
    %11183 = vmatprep.subr.mxu0 0.0
    %11184 = vmatpush1.msra.mxu0 %v11148
    %11185 = vmatprep.subr.mxu0 0.0
    %11186 = vmatpush1.msra.mxu0 %v11149
    %11187 = vmatprep.subr.mxu0 0.0
    %11188 = vmatpush1.msra.mxu0 %v11150
    %11189 = vmatprep.subr.mxu0 0.0
    %11190 = vmatpush1.msra.mxu0 %v11151
    %11191 = vmatprep.subr.mxu0 0.0
    %11192 = vmatpush1.msra.mxu0 0.0
    %11193 = vmatprep.subr.mxu0 0.0
    %11194 = vmatpush1.msra.mxu0 0.0
    %11195 = vmatprep.subr.mxu0 0.0
    %11196 = vmatpush1.msra.mxu0 0.0
    %11197 = vmatprep.subr.mxu0 0.0
    %11198 = vmatpush1.msra.mxu0 0.0
    %11199 = vmatprep.subr.mxu0 0.0
    %11200 = vmatpush1.msra.mxu0 0.0
    %11201 = vmatprep.subr.mxu0 0.0
    %11202 = vmatpush1.msra.mxu0 0.0
    %11203 = vmatprep.subr.mxu0 0.0
    %11204 = vmatpush1.msra.mxu0 0.0
    %11205 = vmatprep.subr.mxu0 0.0
    %11206 = vmatpush1.msra.mxu0 0.0
    %11207 = vmatprep.subr.mxu0 0.0
    %11208 = vmatpush1.msra.mxu0 0.0
    %11209 = vmatprep.subr.mxu0 0.0
    %11210 = vmatpush1.msra.mxu0 0.0
    %11211 = vmatprep.subr.mxu0 0.0
    %11212 = vmatpush1.msra.mxu0 0.0
    %11213 = vmatprep.subr.mxu0 0.0
    %11214 = vmatpush1.msra.mxu0 0.0
    %11215 = vmatprep.subr.mxu0 0.0
    %11216 = vmatpush1.msra.mxu0 0.0
    %11217 = vmatprep.subr.mxu0 0.0
    %11218 = vmatpush1.msra.mxu0 0.0
    %11219 = vmatprep.subr.mxu0 0.0
    %11220 = vmatpush1.msra.mxu0 0.0
    %11221 = vmatprep.subr.mxu0 0.0
    %11222 = vmatpush1.msra.mxu0 0.0
    %11223 = vmatprep.subr.mxu0 0.0
    %11224 = vmatpush1.msra.mxu0 0.0
    %11225 = vmatprep.subr.mxu0 0.0
    %11226 = vmatpush1.msra.mxu0 0.0
    %11227 = vmatprep.subr.mxu0 0.0
    %11228 = vmatpush1.msra.mxu0 0.0
    %11229 = vmatprep.subr.mxu0 0.0
    %11230 = vmatpush1.msra.mxu0 0.0
    %11231 = vmatprep.subr.mxu0 0.0
    %11232 = vmatpush1.msra.mxu0 0.0
    %11233 = vmatprep.subr.mxu0 0.0
    %11234 = vmatpush1.msra.mxu0 0.0
    %11235 = vmatprep.subr.mxu0 0.0
    %11236 = vmatpush1.msra.mxu0 0.0
    %11237 = vmatprep.subr.mxu0 0.0
    %11238 = vmatpush1.msra.mxu0 0.0
    %11239 = vmatprep.mubr.f32.mxu0 0.0
    %11240 = vmatmul.mubr.f32.gmra.mrb[0].mxu0 %v11173
    %v11241 = vpop.f32.mrb[0].mxu0
    %v11242 = vadd.f32 0.0, %v11241
    %v11243 = vpop.f32.mrb[0].mxu0
    %11244 = vdwg.mxu0
    %v11245 = vadd.f32 %v11138, %v11242
    %s11246 = scalar_lea.vmem [#allocation4], 8
    %v11247 = vld [vmem:[%s11246] sm:$0x3]
    %v11248 = vld [vmem:[%s11246 + $0x4] sm:$0x3]
    %v11249 = vld [vmem:[%s11246 + $0x10] sm:$0x3]
    %v11250 = vld [vmem:[%s11246 + $0x14] sm:$0x3]
    %s11251 = scalar_lea.vmem %s7, 384
    %v11252 = vld [vmem:[%s11251] sm:$0xff]
    %v11253 = vld [vmem:[%s11251 + $0x8] sm:$0xff]
    %v11254 = vld [vmem:[%s11251 + $0x10] sm:$0xff]
    %v11255 = vld [vmem:[%s11251 + $0x18] sm:$0xff]
    %v11256 = vld [vmem:[%s11251 + $0x20] sm:$0xff]
    %v11257 = vld [vmem:[%s11251 + $0x28] sm:$0xff]
    %v11258 = vld [vmem:[%s11251 + $0x30] sm:$0xff]
    %v11259 = vld [vmem:[%s11251 + $0x38] sm:$0xff]
    %v11264 = vcombine.low %v11247, %v11248
    %v11265 = vcombine.low %v11249, %v11250
    %v11267 = vunpack.c.l.s4 1983009808
    %v11268 = vunpack.c.0.s8 %v11267
    %v11269 = vlaneseq
    %v11270 = vshrl.u32 %v11269, 7
    %v11271 = vsub.s32 %v11268, %v11270
    %v11272 = vrot.slane %v11264, %v11271
    %v11274 = vunpack.c.l.s4 1983009808
    %v11275 = vunpack.c.0.s8 %v11274
    %v11276 = vlaneseq
    %v11277 = vshrl.u32 %v11276, 7
    %v11278 = vsub.s32 %v11275, %v11277
    %v11279 = vrot.slane %v11265, %v11278
    %v11280 = vcombine.low %v11272, %v11279
    %v11281 = vsel %vm10652, %v11280, 0
    %11283 = vmatprep.subr.mxu0 0.0
    %11284 = vmatpush1.msra.mxu0 %v11252
    %11285 = vmatprep.subr.mxu0 0.0
    %11286 = vmatpush1.msra.mxu0 %v11253
    %11287 = vmatprep.subr.mxu0 0.0
    %11288 = vmatpush1.msra.mxu0 %v11254
    %11289 = vmatprep.subr.mxu0 0.0
    %11290 = vmatpush1.msra.mxu0 %v11255
    %11291 = vmatprep.subr.mxu0 0.0
    %11292 = vmatpush1.msra.mxu0 %v11256
    %11293 = vmatprep.subr.mxu0 0.0
    %11294 = vmatpush1.msra.mxu0 %v11257
    %11295 = vmatprep.subr.mxu0 0.0
    %11296 = vmatpush1.msra.mxu0 %v11258
    %11297 = vmatprep.subr.mxu0 0.0
    %11298 = vmatpush1.msra.mxu0 %v11259
    %11299 = vmatprep.subr.mxu0 0.0
    %11300 = vmatpush1.msra.mxu0 0.0
    %11301 = vmatprep.subr.mxu0 0.0
    %11302 = vmatpush1.msra.mxu0 0.0
    %11303 = vmatprep.subr.mxu0 0.0
    %11304 = vmatpush1.msra.mxu0 0.0
    %11305 = vmatprep.subr.mxu0 0.0
    %11306 = vmatpush1.msra.mxu0 0.0
    %11307 = vmatprep.subr.mxu0 0.0
    %11308 = vmatpush1.msra.mxu0 0.0
    %11309 = vmatprep.subr.mxu0 0.0
    %11310 = vmatpush1.msra.mxu0 0.0
    %11311 = vmatprep.subr.mxu0 0.0
    %11312 = vmatpush1.msra.mxu0 0.0
    %11313 = vmatprep.subr.mxu0 0.0
    %11314 = vmatpush1.msra.mxu0 0.0
    %11315 = vmatprep.subr.mxu0 0.0
    %11316 = vmatpush1.msra.mxu0 0.0
    %11317 = vmatprep.subr.mxu0 0.0
    %11318 = vmatpush1.msra.mxu0 0.0
    %11319 = vmatprep.subr.mxu0 0.0
    %11320 = vmatpush1.msra.mxu0 0.0
    %11321 = vmatprep.subr.mxu0 0.0
    %11322 = vmatpush1.msra.mxu0 0.0
    %11323 = vmatprep.subr.mxu0 0.0
    %11324 = vmatpush1.msra.mxu0 0.0
    %11325 = vmatprep.subr.mxu0 0.0
    %11326 = vmatpush1.msra.mxu0 0.0
    %11327 = vmatprep.subr.mxu0 0.0
    %11328 = vmatpush1.msra.mxu0 0.0
    %11329 = vmatprep.subr.mxu0 0.0
    %11330 = vmatpush1.msra.mxu0 0.0
    %11331 = vmatprep.subr.mxu0 0.0
    %11332 = vmatpush1.msra.mxu0 0.0
    %11333 = vmatprep.subr.mxu0 0.0
    %11334 = vmatpush1.msra.mxu0 0.0
    %11335 = vmatprep.subr.mxu0 0.0
    %11336 = vmatpush1.msra.mxu0 0.0
    %11337 = vmatprep.subr.mxu0 0.0
    %11338 = vmatpush1.msra.mxu0 0.0
    %11339 = vmatprep.subr.mxu0 0.0
    %11340 = vmatpush1.msra.mxu0 0.0
    %11341 = vmatprep.subr.mxu0 0.0
    %11342 = vmatpush1.msra.mxu0 0.0
    %11343 = vmatprep.subr.mxu0 0.0
    %11344 = vmatpush1.msra.mxu0 0.0
    %11345 = vmatprep.subr.mxu0 0.0
    %11346 = vmatpush1.msra.mxu0 0.0
    %11347 = vmatprep.mubr.f32.mxu0 0.0
    %11348 = vmatmul.mubr.f32.gmra.mrb[0].mxu0 %v11281
    %v11349 = vpop.f32.mrb[0].mxu0
    %v11350 = vadd.f32 0.0, %v11349
    %v11351 = vpop.f32.mrb[0].mxu0
    %11352 = vdwg.mxu0
    %v11353 = vadd.f32 %v11245, %v11350
    %v11354 = vld [vmem:[%s11246 + $0x1] sm:$0x3]
    %v11355 = vld [vmem:[%s11246 + $0x5] sm:$0x3]
    %v11356 = vld [vmem:[%s11246 + $0x11] sm:$0x3]
    %v11357 = vld [vmem:[%s11246 + $0x15] sm:$0x3]
    %s11358 = scalar_lea.vmem %s7, 448
    %v11359 = vld [vmem:[%s11358] sm:$0xff]
    %v11360 = vld [vmem:[%s11358 + $0x8] sm:$0xff]
    %v11361 = vld [vmem:[%s11358 + $0x10] sm:$0xff]
    %v11362 = vld [vmem:[%s11358 + $0x18] sm:$0xff]
    %v11363 = vld [vmem:[%s11358 + $0x20] sm:$0xff]
    %v11364 = vld [vmem:[%s11358 + $0x28] sm:$0xff]
    %v11365 = vld [vmem:[%s11358 + $0x30] sm:$0xff]
    %v11366 = vld [vmem:[%s11358 + $0x38] sm:$0xff]
    %v11371 = vcombine.low %v11354, %v11355
    %v11372 = vcombine.low %v11356, %v11357
    %v11374 = vunpack.c.l.s4 1983009808
    %v11375 = vunpack.c.0.s8 %v11374
    %v11376 = vlaneseq
    %v11377 = vshrl.u32 %v11376, 7
    %v11378 = vsub.s32 %v11375, %v11377
    %v11379 = vrot.slane %v11371, %v11378
    %v11381 = vunpack.c.l.s4 1983009808
    %v11382 = vunpack.c.0.s8 %v11381
    %v11383 = vlaneseq
    %v11384 = vshrl.u32 %v11383, 7
    %v11385 = vsub.s32 %v11382, %v11384
    %v11386 = vrot.slane %v11372, %v11385
    %v11387 = vcombine.low %v11379, %v11386
    %v11388 = vsel %vm10652, %v11387, 0
    %11390 = vmatprep.subr.mxu0 0.0
    %11391 = vmatpush1.msra.mxu0 %v11359
    %11392 = vmatprep.subr.mxu0 0.0
    %11393 = vmatpush1.msra.mxu0 %v11360
    %11394 = vmatprep.subr.mxu0 0.0
    %11395 = vmatpush1.msra.mxu0 %v11361
    %11396 = vmatprep.subr.mxu0 0.0
    %11397 = vmatpush1.msra.mxu0 %v11362
    %11398 = vmatprep.subr.mxu0 0.0
    %11399 = vmatpush1.msra.mxu0 %v11363
    %11400 = vmatprep.subr.mxu0 0.0
    %11401 = vmatpush1.msra.mxu0 %v11364
    %11402 = vmatprep.subr.mxu0 0.0
    %11403 = vmatpush1.msra.mxu0 %v11365
    %11404 = vmatprep.subr.mxu0 0.0
    %11405 = vmatpush1.msra.mxu0 %v11366
    %11406 = vmatprep.subr.mxu0 0.0
    %11407 = vmatpush1.msra.mxu0 0.0
    %11408 = vmatprep.subr.mxu0 0.0
    %11409 = vmatpush1.msra.mxu0 0.0
    %11410 = vmatprep.subr.mxu0 0.0
    %11411 = vmatpush1.msra.mxu0 0.0
    %11412 = vmatprep.subr.mxu0 0.0
    %11413 = vmatpush1.msra.mxu0 0.0
    %11414 = vmatprep.subr.mxu0 0.0
    %11415 = vmatpush1.msra.mxu0 0.0
    %11416 = vmatprep.subr.mxu0 0.0
    %11417 = vmatpush1.msra.mxu0 0.0
    %11418 = vmatprep.subr.mxu0 0.0
    %11419 = vmatpush1.msra.mxu0 0.0
    %11420 = vmatprep.subr.mxu0 0.0
    %11421 = vmatpush1.msra.mxu0 0.0
    %11422 = vmatprep.subr.mxu0 0.0
    %11423 = vmatpush1.msra.mxu0 0.0
    %11424 = vmatprep.subr.mxu0 0.0
    %11425 = vmatpush1.msra.mxu0 0.0
    %11426 = vmatprep.subr.mxu0 0.0
    %11427 = vmatpush1.msra.mxu0 0.0
    %11428 = vmatprep.subr.mxu0 0.0
    %11429 = vmatpush1.msra.mxu0 0.0
    %11430 = vmatprep.subr.mxu0 0.0
    %11431 = vmatpush1.msra.mxu0 0.0
    %11432 = vmatprep.subr.mxu0 0.0
    %11433 = vmatpush1.msra.mxu0 0.0
    %11434 = vmatprep.subr.mxu0 0.0
    %11435 = vmatpush1.msra.mxu0 0.0
    %11436 = vmatprep.subr.mxu0 0.0
    %11437 = vmatpush1.msra.mxu0 0.0
    %11438 = vmatprep.subr.mxu0 0.0
    %11439 = vmatpush1.msra.mxu0 0.0
    %11440 = vmatprep.subr.mxu0 0.0
    %11441 = vmatpush1.msra.mxu0 0.0
    %11442 = vmatprep.subr.mxu0 0.0
    %11443 = vmatpush1.msra.mxu0 0.0
    %11444 = vmatprep.subr.mxu0 0.0
    %11445 = vmatpush1.msra.mxu0 0.0
    %11446 = vmatprep.subr.mxu0 0.0
    %11447 = vmatpush1.msra.mxu0 0.0
    %11448 = vmatprep.subr.mxu0 0.0
    %11449 = vmatpush1.msra.mxu0 0.0
    %11450 = vmatprep.subr.mxu0 0.0
    %11451 = vmatpush1.msra.mxu0 0.0
    %11452 = vmatprep.subr.mxu0 0.0
    %11453 = vmatpush1.msra.mxu0 0.0
    %11454 = vmatprep.mubr.f32.mxu0 0.0
    %11455 = vmatmul.mubr.f32.gmra.mrb[0].mxu0 %v11388
    %v11456 = vpop.f32.mrb[0].mxu0
    %v11457 = vadd.f32 0.0, %v11456
    %v11458 = vpop.f32.mrb[0].mxu0
    %11459 = vdwg.mxu0
    %v11460 = vadd.f32 %v11353, %v11457
    %v11461 = vld [vmem:[%s11246 + $0x2] sm:$0x3]
    %v11462 = vld [vmem:[%s11246 + $0x6] sm:$0x3]
    %v11463 = vld [vmem:[%s11246 + $0x12] sm:$0x3]
    %v11464 = vld [vmem:[%s11246 + $0x16] sm:$0x3]
    %s11465 = scalar_lea.vmem %s7, 512
    %v11466 = vld [vmem:[%s11465] sm:$0xff]
    %v11467 = vld [vmem:[%s11465 + $0x8] sm:$0xff]
    %v11468 = vld [vmem:[%s11465 + $0x10] sm:$0xff]
    %v11469 = vld [vmem:[%s11465 + $0x18] sm:$0xff]
    %v11470 = vld [vmem:[%s11465 + $0x20] sm:$0xff]
    %v11471 = vld [vmem:[%s11465 + $0x28] sm:$0xff]
    %v11472 = vld [vmem:[%s11465 + $0x30] sm:$0xff]
    %v11473 = vld [vmem:[%s11465 + $0x38] sm:$0xff]
    %v11478 = vcombine.low %v11461, %v11462
    %v11479 = vcombine.low %v11463, %v11464
    %v11481 = vunpack.c.l.s4 1983009808
    %v11482 = vunpack.c.0.s8 %v11481
    %v11483 = vlaneseq
    %v11484 = vshrl.u32 %v11483, 7
    %v11485 = vsub.s32 %v11482, %v11484
    %v11486 = vrot.slane %v11478, %v11485
    %v11488 = vunpack.c.l.s4 1983009808
    %v11489 = vunpack.c.0.s8 %v11488
    %v11490 = vlaneseq
    %v11491 = vshrl.u32 %v11490, 7
    %v11492 = vsub.s32 %v11489, %v11491
    %v11493 = vrot.slane %v11479, %v11492
    %v11494 = vcombine.low %v11486, %v11493
    %v11495 = vsel %vm10652, %v11494, 0
    %11497 = vmatprep.subr.mxu0 0.0
    %11498 = vmatpush1.msra.mxu0 %v11466
    %11499 = vmatprep.subr.mxu0 0.0
    %11500 = vmatpush1.msra.mxu0 %v11467
    %11501 = vmatprep.subr.mxu0 0.0
    %11502 = vmatpush1.msra.mxu0 %v11468
    %11503 = vmatprep.subr.mxu0 0.0
    %11504 = vmatpush1.msra.mxu0 %v11469
    %11505 = vmatprep.subr.mxu0 0.0
    %11506 = vmatpush1.msra.mxu0 %v11470
    %11507 = vmatprep.subr.mxu0 0.0
    %11508 = vmatpush1.msra.mxu0 %v11471
    %11509 = vmatprep.subr.mxu0 0.0
    %11510 = vmatpush1.msra.mxu0 %v11472
    %11511 = vmatprep.subr.mxu0 0.0
    %11512 = vmatpush1.msra.mxu0 %v11473
    %11513 = vmatprep.subr.mxu0 0.0
    %11514 = vmatpush1.msra.mxu0 0.0
    %11515 = vmatprep.subr.mxu0 0.0
    %11516 = vmatpush1.msra.mxu0 0.0
    %11517 = vmatprep.subr.mxu0 0.0
    %11518 = vmatpush1.msra.mxu0 0.0
    %11519 = vmatprep.subr.mxu0 0.0
    %11520 = vmatpush1.msra.mxu0 0.0
    %11521 = vmatprep.subr.mxu0 0.0
    %11522 = vmatpush1.msra.mxu0 0.0
    %11523 = vmatprep.subr.mxu0 0.0
    %11524 = vmatpush1.msra.mxu0 0.0
    %11525 = vmatprep.subr.mxu0 0.0
    %11526 = vmatpush1.msra.mxu0 0.0
    %11527 = vmatprep.subr.mxu0 0.0
    %11528 = vmatpush1.msra.mxu0 0.0
    %11529 = vmatprep.subr.mxu0 0.0
    %11530 = vmatpush1.msra.mxu0 0.0
    %11531 = vmatprep.subr.mxu0 0.0
    %11532 = vmatpush1.msra.mxu0 0.0
    %11533 = vmatprep.subr.mxu0 0.0
    %11534 = vmatpush1.msra.mxu0 0.0
    %11535 = vmatprep.subr.mxu0 0.0
    %11536 = vmatpush1.msra.mxu0 0.0
    %11537 = vmatprep.subr.mxu0 0.0
    %11538 = vmatpush1.msra.mxu0 0.0
    %11539 = vmatprep.subr.mxu0 0.0
    %11540 = vmatpush1.msra.mxu0 0.0
    %11541 = vmatprep.subr.mxu0 0.0
    %11542 = vmatpush1.msra.mxu0 0.0
    %11543 = vmatprep.subr.mxu0 0.0
    %11544 = vmatpush1.msra.mxu0 0.0
    %11545 = vmatprep.subr.mxu0 0.0
    %11546 = vmatpush1.msra.mxu0 0.0
    %11547 = vmatprep.subr.mxu0 0.0
    %11548 = vmatpush1.msra.mxu0 0.0
    %11549 = vmatprep.subr.mxu0 0.0
    %11550 = vmatpush1.msra.mxu0 0.0
    %11551 = vmatprep.subr.mxu0 0.0
    %11552 = vmatpush1.msra.mxu0 0.0
    %11553 = vmatprep.subr.mxu0 0.0
    %11554 = vmatpush1.msra.mxu0 0.0
    %11555 = vmatprep.subr.mxu0 0.0
    %11556 = vmatpush1.msra.mxu0 0.0
    %11557 = vmatprep.subr.mxu0 0.0
    %11558 = vmatpush1.msra.mxu0 0.0
    %11559 = vmatprep.subr.mxu0 0.0
    %11560 = vmatpush1.msra.mxu0 0.0
    %11561 = vmatprep.mubr.f32.mxu0 0.0
    %11562 = vmatmul.mubr.f32.gmra.mrb[0].mxu0 %v11495
    %v11563 = vpop.f32.mrb[0].mxu0
    %v11564 = vadd.f32 0.0, %v11563
    %v11565 = vpop.f32.mrb[0].mxu0
    %11566 = vdwg.mxu0
    %v11567 = vadd.f32 %v11460, %v11564
    %v11568 = vld [vmem:[%s8] sm:$0x1]
    %v11570 = vlaneseq
    %v11571 = vshrl.u32 %v11570, 7
    %v11572 = vsub.s32 0, %v11571
    %v11573 = vrot.slane %v11568, %v11572
    %v11575 = vadd.f32 %v11567, %v11573
    %v11577 = vcombine.high %v11575, %v11575
    %v11579 = vunpack.c.l.s4 1983009808
    %v11580 = vunpack.c.0.s8 %v11579
    %v11581 = vlaneseq
    %v11582 = vshrl.u32 %v11581, 7
    %v11583 = vsub.s32 %v11580, %v11582
    %v11584 = vrot.slane %v11575, %v11583
    %v11586 = vunpack.c.l.s4 1983009808
    %v11587 = vunpack.c.0.s8 %v11586
    %v11588 = vlaneseq
    %v11589 = vshrl.u32 %v11588, 7
    %v11590 = vsub.s32 %v11587, %v11589
    %v11591 = vrot.slane %v11577, %v11590
    %v11592 = vcombine.high %v11584, %v11584
    %v11593 = vcombine.high %v11591, %v11591
    %v11598 = vrot.slane %v11584, 7
    %v11599 = vrot.slane %v11598, 2
    %v11600 = vrot.slane %v11592, 7
    %v11601 = vrot.slane %v11600, 2
    %v11602 = vrot.slane %v11591, 7
    %v11603 = vrot.slane %v11602, 2
    %v11604 = vrot.slane %v11593, 7
    %v11605 = vrot.slane %v11604, 2
    %v11610 = vmax.f32 %v11584, %v11599
    %v11611 = vmax.f32 %v11592, %v11601
    %v11612 = vmax.f32 %v11591, %v11603
    %v11613 = vmax.f32 %v11593, %v11605
    %v11614 = vmax.f32 %v11610, %v11611
    %v11615 = vmax.f32 %v11612, %v11613
    %v11618 = vlaneseq
    %v11619 = vshrl.u32 %v11618, 7
    %v11620 = vsub.s32 0, %v11619
    %v11621 = vrot.slane %v11614, %v11620
    %v11622 = vlaneseq
    %v11623 = vshrl.u32 %v11622, 7
    %v11624 = vsub.s32 0, %v11623
    %v11625 = vrot.slane %v11615, %v11624
    %v11626 = vsel %vm9164, %v11625, %v11621
    %vm11628 = vcmask 58368
    %v11629 = vsel %vm11628, %v11626, 0.0
    %v11630 = vrot.slane %v11629, 4
    %v11631 = vadd.f32 %v11629, %v11630
    %v11632 = vrot.slane %v11631, 2
    %v11633 = vadd.f32 %v11631, %v11632
    %v11634 = vrot.slane %v11633, 1
    %v11635 = vadd.f32 %v11633, %v11634
    %v11636 = vmul.f32 %v11635, 0.5
    %vm11637 = vcmask 57344
    %v11638 = vsel %vm11637, %v11636, -inf
    %11639 = vmax.xlane.f32.xlu0 %v11638
    %v11640 = vpop.xlane.xlu0 %11639
    %v11641 = vsub.f32 %v11636, %v11640
    %v11642 = vmul.f32 %v11641, 1.442695
    %v11643 = vpow.pop %v11642
    %v11644 = vsel %vm11637, %v11643, 0.0
    %11645 = vadd.xlane.f32.xlu0 %v11644
    %v11646 = vpop.xlane.xlu0 %11645
    %v11647 = vlog2.pop %v11646
    %v11648 = vmul.f32 %v11647, 0.6931472
    %v11649 = vsub.f32 %v11641, %v11648
    %11650 = vst.msk [vmem:[#allocation5] sm:$0x1] %vm11637, %v11649
    // Predicated region
    $region38: #{classifier_forward.1} parent=1 // pred_check
      _
    $region39: #{classifier_forward.1} parent=1 // pred_check_branch
      %11652 = sbr.rel (0) target = $region41
    $region40: #{classifier_forward.1} parent=1 // pred_region
      %s11654 = ssub.s32 16, 16
      %11655 = vsyncadd [#allocation6], %s11654
      %s11657 = sshll.u32 [#allocation5], 4
      %s11658 = int_to_ptr.vmem [resolvable:$true] %s11657
      %11660 = dma.vmem_to_hbm [thread:$0]  %s11658, 16, %s9, [#allocation6]
    $region41: #{classifier_forward.1} parent=1 // pred_fallthru
      _
    // Predicated region
    $region42: #{classifier_forward.1} parent=1 // pred_check
      _
    $region43: #{classifier_forward.1} parent=1 // pred_check_branch
      %11662 = sbr.rel (0) target = $region45
    $region44: #{classifier_forward.1} parent=1 // pred_region
      %11663 = dma.done [#allocation6], 16
    $region45: #{classifier_forward.1} parent=1 // pred_fallthru
      _
    %11664 = vsyncpa [#allocation6], 1

</llo_original>
